<compile_context>
chip_gen: v7x
topology: tpu7x:2x2x1
jax: 0.10.0
libtpu: 0.0.40
codegen_flags: <defaults>
</compile_context>

<pallas_src>
import jax
import jax.numpy as jnp
from jax.experimental import pallas as pl
from jax.experimental.pallas import tpu as pltpu

REDUCE = 8  # reduce_channel


# -----------------------------------------------------------------------------
# Network plan (VGG13_BN body: stages of [2,2,3,3] convs, MaxPool2d(2,2) between
# stages).  All convs are 3x3 / stride 1 / pad 1, BN folded, ReLU.
# -----------------------------------------------------------------------------
def make_plan(in_spatial, in_ch_pad):
    chans = [64 // REDUCE, 128 // REDUCE, 256 // REDUCE, 512 // REDUCE]
    per_stage = [2, 2, 3, 3]
    plan = []
    H, cin = in_spatial, in_ch_pad
    for s in range(4):
        if s > 0:
            plan.append(dict(kind="pool", H=H, C=cin))
            H //= 2
        for _ in range(per_stage[s]):
            plan.append(dict(kind="conv", H=H, Cin=cin, Cout=chans[s]))
            cin = chans[s]
    return plan


# -----------------------------------------------------------------------------
# Parameters: synthetic conv/BN params, BN folded into conv weight/bias, then the
# conv rewritten as 3 block-Toeplitz matrices (one per vertical tap dy).
# -----------------------------------------------------------------------------
def make_layer_params(key, cin, cout, eps=1e-5):
    k_w, k_b, k_g, k_bt, k_m, k_v = jax.random.split(key, 6)
    fan_in = cin * 9
    w = jax.random.normal(k_w, (3, 3, cin, cout), jnp.float32) * jnp.sqrt(2.0 / fan_in)
    conv_b = jax.random.normal(k_b, (cout,), jnp.float32) * 0.01
    gamma = 1.0 + 0.1 * jax.random.normal(k_g, (cout,), jnp.float32)
    beta = 0.05 * jax.random.normal(k_bt, (cout,), jnp.float32)
    run_mean = 0.1 * jax.random.normal(k_m, (cout,), jnp.float32)
    run_var = 1.0 + 0.1 * jax.random.uniform(k_v, (cout,), jnp.float32)
    scale = gamma / jnp.sqrt(run_var + eps)
    w_folded = w * scale[None, None, None, :]                 # HWIO (3,3,Cin,Cout)
    b_folded = (conv_b - run_mean) * scale + beta             # (Cout,)
    return w_folded, b_folded


def build_toeplitz(w_folded, W):
    """(3,3,Cin,Cout) HWIO -> (3, W*Cin, W*Cout).

    T[dy][x_in*Cin+ci, x_out*Cout+co] = w[dy, x_in-x_out+1, ci, co] (zero outside the
    3-tap band), so a stride-1/pad-1 conv row is row-padded-act[dy:dy+M] @ T[dy]
    summed over dy.  Horizontal zero padding is implicit in the band structure."""
    mats = []
    for dy in range(3):
        t = sum(jnp.kron(jnp.eye(W, k=-(dx - 1), dtype=jnp.float32), w_folded[dy, dx])
                for dx in range(3))
        mats.append(t)
    return jnp.stack(mats)


def build_pool_mats(H, C):
    """0/1 column-block selection matrices (2, H*C, H/2*C) for the lane half of the
    2x2 stride-2 max pool (they multiply on the right, so they batch over M)."""
    eye_h = jnp.eye(H, dtype=jnp.float32)
    eye_c = jnp.eye(C, dtype=jnp.float32)
    s0 = jnp.kron(eye_h[0::2].T, eye_c)   # picks lanes x = 2*x'
    s1 = jnp.kron(eye_h[1::2].T, eye_c)   # picks lanes x = 2*x'+1
    return jnp.stack([s0, s1])


def make_all_params(key, plan, B, in_ch_true, in_ch_pad):
    """Kernel inputs (flat, in plan order, masks appended) + f32 reference params."""
    conv_entries = [e for e in plan if e["kind"] == "conv"]
    keys = jax.random.split(key, len(conv_entries))
    ref_params, flat = [], []
    ci = 0
    for e in plan:
        if e["kind"] == "conv":
            cin_true = in_ch_true if ci == 0 else e["Cin"]
            w_f, b_f = make_layer_params(keys[ci], cin_true, e["Cout"])
            ref_params.append((w_f, b_f))
            w_k = w_f
            if ci == 0 and in_ch_pad != in_ch_true:       # lane-dense K for conv1_1
                w_k = jnp.pad(w_f, ((0, 0), (0, 0), (0, in_ch_pad - in_ch_true), (0, 0)))
            flat.append(build_toeplitz(w_k, e["H"]).astype(jnp.bfloat16))
            flat.append(jnp.tile(b_f, e["H"])[None, :].astype(jnp.float32))
            ci += 1
        else:
            flat.append(build_pool_mats(e["H"], e["C"]).astype(jnp.bfloat16))
    # Interior-row masks: zero the cross-image junk rows (they land on halo rows).
    for i in range(len(plan) - 1):
        if plan[i]["kind"] == "conv" and plan[i + 1]["kind"] == "conv":
            P = plan[i]["H"] + 2
            Mp = B * P - 2
            m = jnp.arange(Mp, dtype=jnp.int32) + 1
            mask = jnp.where((m % P == 0) | (m % P == P - 1), 0.0, 1.0)
            flat.append(mask.astype(jnp.float32)[:, None])
    return flat, ref_params


# -----------------------------------------------------------------------------
# The fused kernel (whole network per grid step, B images stacked along rows).
# -----------------------------------------------------------------------------
def _make_kernel(plan, B):
    n_entries = len(plan)
    param_counts = [2 if e["kind"] == "conv" else 1 for e in plan]
    n_params = sum(param_counts)
    poff, acc = [], 0
    for c in param_counts:
        poff.append(acc)
        acc += c
    mask_entries = [i for i in range(n_entries - 1)
                    if plan[i]["kind"] == "conv" and plan[i + 1]["kind"] == "conv"]
    mask_of = {e: j for j, e in enumerate(mask_entries)}
    n_masks = len(mask_entries)
    n_scratch = n_entries - 1          # scratch[i-1] belongs to plan entry i

    def kernel(*refs):
        x_ref = refs[0]
        params = refs[1:1 + n_params]
        masks = refs[1 + n_params:1 + n_params + n_masks]
        out_ref = refs[1 + n_params + n_masks]
        scratch = refs[2 + n_params + n_masks:]
        assert len(scratch) == n_scratch

        y = None
        for i, e in enumerate(plan):
            if e["kind"] == "conv":
                H = e["H"]
                P = H + 2                      # per-image row pitch (1-row halos)
                Mp = B * P - 2                 # rows of the batched conv output
                t_ref = params[poff[i]]        # (3, W*Cin, W*Cout) bf16
                b_ref = params[poff[i] + 1]    # (1, W*Cout) f32
                src = x_ref if i == 0 else scratch[i - 1]

                # 3 lane-dense dots (M = Mp, N = 128), bf16 operands, f32 accumulate.
                a = jnp.dot(src[0:Mp, :].astype(jnp.bfloat16), t_ref[0],
                            preferred_element_type=jnp.float32)
                a += jnp.dot(src[1:Mp + 1, :].astype(jnp.bfloat16), t_ref[1],
                             preferred_element_type=jnp.float32)
                a += jnp.dot(src[2:Mp + 2, :].astype(jnp.bfloat16), t_ref[2],
                             preferred_element_type=jnp.float32)
                y = jnp.maximum(a + b_ref[...], 0.0)          # (Mp, W*Cout) f32

                nxt = plan[i + 1] if i + 1 < n_entries else None
                if nxt is not None and nxt["kind"] == "conv":
                    # Same resolution: write masked activation into next conv's pad
                    # buffer; junk rows land on halo rows and are zeroed by the mask.
                    dst = scratch[i]
                    dst[1:Mp + 1, :] = y * masks[mask_of[i]][...]
                    zrow = jnp.zeros((1, dst.shape[1]), jnp.float32)
                    dst[0:1, :] = zrow                         # global top halo
                    dst[Mp + 1:Mp + 2, :] = zrow               # global bottom halo
                elif nxt is None:
                    # Last conv: extract each image's valid rows to the output block.
                    for b in range(B):
                        out_ref[b * H:(b + 1) * H, :] = y[b * P:b * P + H, :]
                # else: next entry is the pool, y is consumed there.
            else:
                # MaxPool2d(2,2) fused: lane half by selection matmuls (batched over
                # M), row half by even/odd strided sublane reads from a staging buf.
                H, C = e["H"], e["C"]
                P = H + 2
                Mp = B * P - 2
                Hh = H // 2
                P2 = Hh + 2
                s_ref = params[poff[i]]        # (2, H*C, Hh*C) bf16
                tmp = scratch[i - 1]           # (B*P, Hh*C) f32 staging
                dst = scratch[i]               # next conv's pad buffer (B*P2, Hh*C)

                y16 = y.astype(jnp.bfloat16)
                colv = jnp.maximum(
                    jnp.dot(y16, s_ref[0], preferred_element_type=jnp.float32),
                    jnp.dot(y16, s_ref[1], preferred_element_type=jnp.float32))
                tmp[1:Mp + 1, :] = colv
                cnt = B * P // 2 - 1
                ev = tmp[pl.ds(1, cnt, stride=2), :]           # rows 2r'   (per image)
                od = tmp[pl.ds(2, cnt, stride=2), :]           # rows 2r'+1 (per image)
                u = jnp.maximum(ev, od)                        # (cnt, Hh*C)

                dst[...] = jnp.zeros(dst.shape, jnp.float32)   # halos re-zeroed
                for b in range(B):
                    dst[b * P2 + 1:b * P2 + 1 + Hh, :] = \
                        u[b * (P // 2):b * (P // 2) + Hh, :]

    return kernel


# -----------------------------------------------------------------------------
# Host wrapper: layout glue at the boundary only (NCHW <-> lane-dense rows).
# -----------------------------------------------------------------------------
def make_forward(plan, B, in_ch_true, in_ch_pad):
    H0 = plan[0]["H"]
    last = plan[-1]
    H_last, C_last = last["H"], last["Cout"]
    kernel = _make_kernel(plan, B)

    scratch_shapes = []
    for i, e in enumerate(plan):
        if i == 0:
            continue
        if e["kind"] == "conv":
            scratch_shapes.append(
                pltpu.VMEM((B * (e["H"] + 2), e["H"] * e["Cin"]), jnp.float32))
        else:
            scratch_shapes.append(
                pltpu.VMEM((B * (e["H"] + 2), (e["H"] // 2) * e["C"]), jnp.float32))

    def forward(x_nchw, flat_params):
        N = x_nchw.shape[0]
        assert N % B == 0, "batch must be a multiple of the batch block B"
        # NCHW -> lane-dense (rows, W*C): channels zero-padded 3->8 (full 128-lane K),
        # 1 zero halo row above/below each image, images stacked along rows.
        x = jnp.transpose(x_nchw, (0, 2, 3, 1))
        x = jnp.pad(x, ((0, 0), (0, 0), (0, 0), (0, in_ch_pad - in_ch_true)))
        x = x.reshape(N, H0, H0 * in_ch_pad)
        x = jnp.pad(x, ((0, 0), (1, 1), (0, 0)))
        x = x.reshape(N * (H0 + 2), H0 * in_ch_pad)

        in_specs = [pl.BlockSpec((B * (H0 + 2), H0 * in_ch_pad), lambda n: (n, 0))]
        in_specs += [pl.BlockSpec(p.shape, lambda n, _nd=p.ndim: (0,) * _nd)
                     for p in flat_params]

        out = pl.pallas_call(
            kernel,
            out_shape=jax.ShapeDtypeStruct((N * H_last, H_last * C_last), jnp.float32),
            grid=(N // B,),
            in_specs=in_specs,
            out_specs=pl.BlockSpec((B * H_last, H_last * C_last), lambda n: (n, 0)),
            scratch_shapes=scratch_shapes,
            compiler_params=pltpu.CompilerParams(
                dimension_semantics=("parallel",)),   # v7x: one batch block per TC
        )(x, *flat_params)

        out = out.reshape(N, H_last, H_last, C_last)     # lane = x*C + c
        return jnp.transpose(out, (0, 3, 1, 2))          # -> NCHW

    return jax.jit(forward)


# -----------------------------------------------------------------------------
# Pure-JAX f32 reference (for a tolerance check against the bf16-operand kernel).
# -----------------------------------------------------------------------------
def reference_forward(x_nchw, plan, ref_params):
    y = jnp.transpose(x_nchw, (0, 2, 3, 1))              # NHWC
    ci = 0
    for e in plan:
        if e["kind"] == "conv":
            w, b = ref_params[ci]
            ci += 1
            y = jax.lax.conv_general_dilated(
                y, w, window_strides=(1, 1), padding="SAME",
                dimension_numbers=("NHWC", "HWIO", "NHWC"),
                precision=jax.lax.Precision.HIGHEST)
            y = jnp.maximum(y + b, 0.0)
        else:
            n, h, w_, c = y.shape
            y = y.reshape(n, h // 2, 2, w_ // 2, 2, c).max(axis=(2, 4))
    return jnp.transpose(y, (0, 3, 1, 2))                # NCHW


if __name__ == "__main__":
    key = jax.random.PRNGKey(0)
    k_x, k_p = jax.random.split(key)

    N, IN_CH, SPATIAL = 8, 3, 16
    IN_CH_PAD = 8     # conv1_1 input channels zero-padded 3 -> 8 (lane-dense K=128)
    B = 4             # images per grid step -> grid=(2,): both v7x TCs busy

    plan = make_plan(SPATIAL, IN_CH_PAD)
    flat_params, ref_params = make_all_params(k_p, plan, B, IN_CH, IN_CH_PAD)
    forward = make_forward(plan, B, IN_CH, IN_CH_PAD)

    # PyTorch-style NCHW input.
    x = jax.random.normal(k_x, (N, IN_CH, SPATIAL, SPATIAL), jnp.float32)
    out = jax.block_until_ready(forward(x, flat_params))

    # Output: (N, 512//8, 16/8, 16/8) = (8, 64, 2, 2)
    assert out.shape == (N, 64, 2, 2), out.shape
    assert bool(jnp.all(jnp.isfinite(out)))

    # Tolerance check vs. f32 reference (kernel uses bf16 MXU operands).
    ref = reference_forward(x, plan, ref_params)
    scale = float(jnp.max(jnp.abs(ref))) + 1e-6
    err = float(jnp.max(jnp.abs(out - ref)))
    assert err <= 8e-2 * scale, ("mismatch vs reference", err, scale)
    print("KERNEL_OK")
</pallas_src>

<mosaic_0001>
module attributes {stable_mosaic.version = 11 : i64} {
  func.func @kernel(%arg0: i32, %arg1: memref<72x128xf32, #tpu.memory_space<vmem>>, %arg2: memref<3x128x128xbf16, #tpu.memory_space<vmem>>, %arg3: memref<1x128xf32, #tpu.memory_space<vmem>>, %arg4: memref<3x128x128xbf16, #tpu.memory_space<vmem>>, %arg5: memref<1x128xf32, #tpu.memory_space<vmem>>, %arg6: memref<2x128x64xbf16, #tpu.memory_space<vmem>>, %arg7: memref<3x64x128xbf16, #tpu.memory_space<vmem>>, %arg8: memref<1x128xf32, #tpu.memory_space<vmem>>, %arg9: memref<3x128x128xbf16, #tpu.memory_space<vmem>>, %arg10: memref<1x128xf32, #tpu.memory_space<vmem>>, %arg11: memref<2x128x64xbf16, #tpu.memory_space<vmem>>, %arg12: memref<3x64x128xbf16, #tpu.memory_space<vmem>>, %arg13: memref<1x128xf32, #tpu.memory_space<vmem>>, %arg14: memref<3x128x128xbf16, #tpu.memory_space<vmem>>, %arg15: memref<1x128xf32, #tpu.memory_space<vmem>>, %arg16: memref<3x128x128xbf16, #tpu.memory_space<vmem>>, %arg17: memref<1x128xf32, #tpu.memory_space<vmem>>, %arg18: memref<2x128x64xbf16, #tpu.memory_space<vmem>>, %arg19: memref<3x64x128xbf16, #tpu.memory_space<vmem>>, %arg20: memref<1x128xf32, #tpu.memory_space<vmem>>, %arg21: memref<3x128x128xbf16, #tpu.memory_space<vmem>>, %arg22: memref<1x128xf32, #tpu.memory_space<vmem>>, %arg23: memref<3x128x128xbf16, #tpu.memory_space<vmem>>, %arg24: memref<1x128xf32, #tpu.memory_space<vmem>>, %arg25: memref<70x1xf32, #tpu.memory_space<vmem>>, %arg26: memref<38x1xf32, #tpu.memory_space<vmem>>, %arg27: memref<22x1xf32, #tpu.memory_space<vmem>>, %arg28: memref<22x1xf32, #tpu.memory_space<vmem>>, %arg29: memref<14x1xf32, #tpu.memory_space<vmem>>, %arg30: memref<14x1xf32, #tpu.memory_space<vmem>>, %arg31: memref<8x128xf32, #tpu.memory_space<vmem>>, %arg32: memref<72x128xf32, #tpu.memory_space<vmem>>, %arg33: memref<72x64xf32, #tpu.memory_space<vmem>>, %arg34: memref<40x64xf32, #tpu.memory_space<vmem>>, %arg35: memref<40x128xf32, #tpu.memory_space<vmem>>, %arg36: memref<40x64xf32, #tpu.memory_space<vmem>>, %arg37: memref<24x64xf32, #tpu.memory_space<vmem>>, %arg38: memref<24x128xf32, #tpu.memory_space<vmem>>, %arg39: memref<24x128xf32, #tpu.memory_space<vmem>>, %arg40: memref<24x64xf32, #tpu.memory_space<vmem>>, %arg41: memref<16x64xf32, #tpu.memory_space<vmem>>, %arg42: memref<16x128xf32, #tpu.memory_space<vmem>>, %arg43: memref<16x128xf32, #tpu.memory_space<vmem>>) attributes {dimension_semantics = [#tpu.dimension_semantics<parallel>], iteration_bounds = array<i64: 2>, scalar_prefetch = 0 : i64, scratch_operands = 12 : i64, tpu.core_type = #tpu.core_type<tc>, window_params = [{transform_indices = @transform_0, window_bounds = array<i64: 72, 128>}, {pipeline_mode = #tpu.pipeline_mode<synchronous>, transform_indices = @transform_1, window_bounds = array<i64: 3, 128, 128>}, {pipeline_mode = #tpu.pipeline_mode<synchronous>, transform_indices = @transform_2, window_bounds = array<i64: 1, 128>}, {pipeline_mode = #tpu.pipeline_mode<synchronous>, transform_indices = @transform_3, window_bounds = array<i64: 3, 128, 128>}, {pipeline_mode = #tpu.pipeline_mode<synchronous>, transform_indices = @transform_4, window_bounds = array<i64: 1, 128>}, {pipeline_mode = #tpu.pipeline_mode<synchronous>, transform_indices = @transform_5, window_bounds = array<i64: 2, 128, 64>}, {pipeline_mode = #tpu.pipeline_mode<synchronous>, transform_indices = @transform_6, window_bounds = array<i64: 3, 64, 128>}, {pipeline_mode = #tpu.pipeline_mode<synchronous>, transform_indices = @transform_7, window_bounds = array<i64: 1, 128>}, {pipeline_mode = #tpu.pipeline_mode<synchronous>, transform_indices = @transform_8, window_bounds = array<i64: 3, 128, 128>}, {pipeline_mode = #tpu.pipeline_mode<synchronous>, transform_indices = @transform_9, window_bounds = array<i64: 1, 128>}, {pipeline_mode = #tpu.pipeline_mode<synchronous>, transform_indices = @transform_10, window_bounds = array<i64: 2, 128, 64>}, {pipeline_mode = #tpu.pipeline_mode<synchronous>, transform_indices = @transform_11, window_bounds = array<i64: 3, 64, 128>}, {pipeline_mode = #tpu.pipeline_mode<synchronous>, transform_indices = @transform_12, window_bounds = array<i64: 1, 128>}, {pipeline_mode = #tpu.pipeline_mode<synchronous>, transform_indices = @transform_13, window_bounds = array<i64: 3, 128, 128>}, {pipeline_mode = #tpu.pipeline_mode<synchronous>, transform_indices = @transform_14, window_bounds = array<i64: 1, 128>}, {pipeline_mode = #tpu.pipeline_mode<synchronous>, transform_indices = @transform_15, window_bounds = array<i64: 3, 128, 128>}, {pipeline_mode = #tpu.pipeline_mode<synchronous>, transform_indices = @transform_16, window_bounds = array<i64: 1, 128>}, {pipeline_mode = #tpu.pipeline_mode<synchronous>, transform_indices = @transform_17, window_bounds = array<i64: 2, 128, 64>}, {pipeline_mode = #tpu.pipeline_mode<synchronous>, transform_indices = @transform_18, window_bounds = array<i64: 3, 64, 128>}, {pipeline_mode = #tpu.pipeline_mode<synchronous>, transform_indices = @transform_19, window_bounds = array<i64: 1, 128>}, {pipeline_mode = #tpu.pipeline_mode<synchronous>, transform_indices = @transform_20, window_bounds = array<i64: 3, 128, 128>}, {pipeline_mode = #tpu.pipeline_mode<synchronous>, transform_indices = @transform_21, window_bounds = array<i64: 1, 128>}, {pipeline_mode = #tpu.pipeline_mode<synchronous>, transform_indices = @transform_22, window_bounds = array<i64: 3, 128, 128>}, {pipeline_mode = #tpu.pipeline_mode<synchronous>, transform_indices = @transform_23, window_bounds = array<i64: 1, 128>}, {pipeline_mode = #tpu.pipeline_mode<synchronous>, transform_indices = @transform_24, window_bounds = array<i64: 70, 1>}, {pipeline_mode = #tpu.pipeline_mode<synchronous>, transform_indices = @transform_25, window_bounds = array<i64: 38, 1>}, {pipeline_mode = #tpu.pipeline_mode<synchronous>, transform_indices = @transform_26, window_bounds = array<i64: 22, 1>}, {pipeline_mode = #tpu.pipeline_mode<synchronous>, transform_indices = @transform_27, window_bounds = array<i64: 22, 1>}, {pipeline_mode = #tpu.pipeline_mode<synchronous>, transform_indices = @transform_28, window_bounds = array<i64: 14, 1>}, {pipeline_mode = #tpu.pipeline_mode<synchronous>, transform_indices = @transform_29, window_bounds = array<i64: 14, 1>}, {transform_indices = @transform_30, window_bounds = array<i64: 8, 128>}]} {
    %c0 = arith.constant 0 : index
    %c0_0 = arith.constant 0 : index
    %0 = vector.load %arg1[%c0, %c0_0] : memref<72x128xf32, #tpu.memory_space<vmem>>, vector<70x128xf32>
    %1 = arith.truncf %0 : vector<70x128xf32> to vector<70x128xbf16>
    %c0_1 = arith.constant 0 : index
    %c0_2 = arith.constant 0 : index
    %c0_3 = arith.constant 0 : index
    %2 = vector.load %arg2[%c0_1, %c0_2, %c0_3] : memref<3x128x128xbf16, #tpu.memory_space<vmem>>, vector<1x128x128xbf16>
    %3 = vector.shape_cast %2 : vector<1x128x128xbf16> to vector<128x128xbf16>
    %cst = arith.constant dense<0.000000e+00> : vector<70x128xf32>
    %4 = tpu.matmul %1, %3, %cst {dimension_numbers = #tpu.dot_dimension_numbers<[1], [0], [0], [1], [0, 0, 1, 1], [], []>} : vector<70x128xbf16>, vector<128x128xbf16>, vector<70x128xf32> -> vector<70x128xf32>
    %c1 = arith.constant 1 : index
    %c0_4 = arith.constant 0 : index
    %5 = vector.load %arg1[%c1, %c0_4] : memref<72x128xf32, #tpu.memory_space<vmem>>, vector<70x128xf32>
    %6 = arith.truncf %5 : vector<70x128xf32> to vector<70x128xbf16>
    %c1_5 = arith.constant 1 : index
    %c0_6 = arith.constant 0 : index
    %c0_7 = arith.constant 0 : index
    %7 = vector.load %arg2[%c1_5, %c0_6, %c0_7] : memref<3x128x128xbf16, #tpu.memory_space<vmem>>, vector<1x128x128xbf16>
    %8 = vector.shape_cast %7 : vector<1x128x128xbf16> to vector<128x128xbf16>
    %cst_8 = arith.constant dense<0.000000e+00> : vector<70x128xf32>
    %9 = tpu.matmul %6, %8, %cst_8 {dimension_numbers = #tpu.dot_dimension_numbers<[1], [0], [0], [1], [0, 0, 1, 1], [], []>} : vector<70x128xbf16>, vector<128x128xbf16>, vector<70x128xf32> -> vector<70x128xf32>
    %10 = arith.addf %4, %9 : vector<70x128xf32>
    %c2 = arith.constant 2 : index
    %c0_9 = arith.constant 0 : index
    %11 = vector.load %arg1[%c2, %c0_9] : memref<72x128xf32, #tpu.memory_space<vmem>>, vector<70x128xf32>
    %12 = arith.truncf %11 : vector<70x128xf32> to vector<70x128xbf16>
    %c2_10 = arith.constant 2 : index
    %c0_11 = arith.constant 0 : index
    %c0_12 = arith.constant 0 : index
    %13 = vector.load %arg2[%c2_10, %c0_11, %c0_12] : memref<3x128x128xbf16, #tpu.memory_space<vmem>>, vector<1x128x128xbf16>
    %14 = vector.shape_cast %13 : vector<1x128x128xbf16> to vector<128x128xbf16>
    %cst_13 = arith.constant dense<0.000000e+00> : vector<70x128xf32>
    %15 = tpu.matmul %12, %14, %cst_13 {dimension_numbers = #tpu.dot_dimension_numbers<[1], [0], [0], [1], [0, 0, 1, 1], [], []>} : vector<70x128xbf16>, vector<128x128xbf16>, vector<70x128xf32> -> vector<70x128xf32>
    %16 = arith.addf %10, %15 : vector<70x128xf32>
    %c0_14 = arith.constant 0 : index
    %c0_15 = arith.constant 0 : index
    %17 = vector.load %arg3[%c0_14, %c0_15] : memref<1x128xf32, #tpu.memory_space<vmem>>, vector<1x128xf32>
    %18 = vector.broadcast %17 : vector<1x128xf32> to vector<70x128xf32>
    %19 = arith.addf %16, %18 : vector<70x128xf32>
    %cst_16 = arith.constant 0.000000e+00 : f32
    %20 = vector.broadcast %cst_16 : f32 to vector<70x128xf32>
    %21 = arith.maximumf %19, %20 : vector<70x128xf32>
    %c0_17 = arith.constant 0 : index
    %c0_18 = arith.constant 0 : index
    %22 = vector.load %arg25[%c0_17, %c0_18] : memref<70x1xf32, #tpu.memory_space<vmem>>, vector<70x1xf32>
    %23 = vector.broadcast %22 : vector<70x1xf32> to vector<70x128xf32>
    %24 = arith.mulf %21, %23 : vector<70x128xf32>
    %c1_19 = arith.constant 1 : index
    %c0_20 = arith.constant 0 : index
    %25 = vector.load %arg32[%c1_19, %c0_20] : memref<72x128xf32, #tpu.memory_space<vmem>>, vector<70x128xf32>
    tpu.vector_store %arg32[%c1_19, %c0_20], %24 {strides = array<i32>} : memref<72x128xf32, #tpu.memory_space<vmem>>, vector<70x128xf32>,
    %cst_21 = arith.constant 0.000000e+00 : f32
    %26 = vector.broadcast %cst_21 : f32 to vector<1x128xf32>
    %c0_22 = arith.constant 0 : index
    %c0_23 = arith.constant 0 : index
    %27 = vector.load %arg32[%c0_22, %c0_23] : memref<72x128xf32, #tpu.memory_space<vmem>>, vector<1x128xf32>
    tpu.vector_store %arg32[%c0_22, %c0_23], %26 {strides = array<i32>} : memref<72x128xf32, #tpu.memory_space<vmem>>, vector<1x128xf32>,
    %c71 = arith.constant 71 : index
    %c0_24 = arith.constant 0 : index
    %28 = vector.load %arg32[%c71, %c0_24] : memref<72x128xf32, #tpu.memory_space<vmem>>, vector<1x128xf32>
    tpu.vector_store %arg32[%c71, %c0_24], %26 {strides = array<i32>} : memref<72x128xf32, #tpu.memory_space<vmem>>, vector<1x128xf32>,
    %c0_25 = arith.constant 0 : index
    %c0_26 = arith.constant 0 : index
    %29 = vector.load %arg32[%c0_25, %c0_26] : memref<72x128xf32, #tpu.memory_space<vmem>>, vector<70x128xf32>
    %30 = arith.truncf %29 : vector<70x128xf32> to vector<70x128xbf16>
    %c0_27 = arith.constant 0 : index
    %c0_28 = arith.constant 0 : index
    %c0_29 = arith.constant 0 : index
    %31 = vector.load %arg4[%c0_27, %c0_28, %c0_29] : memref<3x128x128xbf16, #tpu.memory_space<vmem>>, vector<1x128x128xbf16>
    %32 = vector.shape_cast %31 : vector<1x128x128xbf16> to vector<128x128xbf16>
    %cst_30 = arith.constant dense<0.000000e+00> : vector<70x128xf32>
    %33 = tpu.matmul %30, %32, %cst_30 {dimension_numbers = #tpu.dot_dimension_numbers<[1], [0], [0], [1], [0, 0, 1, 1], [], []>} : vector<70x128xbf16>, vector<128x128xbf16>, vector<70x128xf32> -> vector<70x128xf32>
    %c1_31 = arith.constant 1 : index
    %c0_32 = arith.constant 0 : index
    %34 = vector.load %arg32[%c1_31, %c0_32] : memref<72x128xf32, #tpu.memory_space<vmem>>, vector<70x128xf32>
    %35 = arith.truncf %34 : vector<70x128xf32> to vector<70x128xbf16>
    %c1_33 = arith.constant 1 : index
    %c0_34 = arith.constant 0 : index
    %c0_35 = arith.constant 0 : index
    %36 = vector.load %arg4[%c1_33, %c0_34, %c0_35] : memref<3x128x128xbf16, #tpu.memory_space<vmem>>, vector<1x128x128xbf16>
    %37 = vector.shape_cast %36 : vector<1x128x128xbf16> to vector<128x128xbf16>
    %cst_36 = arith.constant dense<0.000000e+00> : vector<70x128xf32>
    %38 = tpu.matmul %35, %37, %cst_36 {dimension_numbers = #tpu.dot_dimension_numbers<[1], [0], [0], [1], [0, 0, 1, 1], [], []>} : vector<70x128xbf16>, vector<128x128xbf16>, vector<70x128xf32> -> vector<70x128xf32>
    %39 = arith.addf %33, %38 : vector<70x128xf32>
    %c2_37 = arith.constant 2 : index
    %c0_38 = arith.constant 0 : index
    %40 = vector.load %arg32[%c2_37, %c0_38] : memref<72x128xf32, #tpu.memory_space<vmem>>, vector<70x128xf32>
    %41 = arith.truncf %40 : vector<70x128xf32> to vector<70x128xbf16>
    %c2_39 = arith.constant 2 : index
    %c0_40 = arith.constant 0 : index
    %c0_41 = arith.constant 0 : index
    %42 = vector.load %arg4[%c2_39, %c0_40, %c0_41] : memref<3x128x128xbf16, #tpu.memory_space<vmem>>, vector<1x128x128xbf16>
    %43 = vector.shape_cast %42 : vector<1x128x128xbf16> to vector<128x128xbf16>
    %cst_42 = arith.constant dense<0.000000e+00> : vector<70x128xf32>
    %44 = tpu.matmul %41, %43, %cst_42 {dimension_numbers = #tpu.dot_dimension_numbers<[1], [0], [0], [1], [0, 0, 1, 1], [], []>} : vector<70x128xbf16>, vector<128x128xbf16>, vector<70x128xf32> -> vector<70x128xf32>
    %45 = arith.addf %39, %44 : vector<70x128xf32>
    %c0_43 = arith.constant 0 : index
    %c0_44 = arith.constant 0 : index
    %46 = vector.load %arg5[%c0_43, %c0_44] : memref<1x128xf32, #tpu.memory_space<vmem>>, vector<1x128xf32>
    %47 = vector.broadcast %46 : vector<1x128xf32> to vector<70x128xf32>
    %48 = arith.addf %45, %47 : vector<70x128xf32>
    %cst_45 = arith.constant 0.000000e+00 : f32
    %49 = vector.broadcast %cst_45 : f32 to vector<70x128xf32>
    %50 = arith.maximumf %48, %49 : vector<70x128xf32>
    %51 = arith.truncf %50 : vector<70x128xf32> to vector<70x128xbf16>
    %c0_46 = arith.constant 0 : index
    %c0_47 = arith.constant 0 : index
    %c0_48 = arith.constant 0 : index
    %52 = vector.load %arg6[%c0_46, %c0_47, %c0_48] : memref<2x128x64xbf16, #tpu.memory_space<vmem>>, vector<1x128x64xbf16>
    %53 = vector.shape_cast %52 : vector<1x128x64xbf16> to vector<128x64xbf16>
    %cst_49 = arith.constant dense<0.000000e+00> : vector<70x64xf32>
    %54 = tpu.matmul %51, %53, %cst_49 {dimension_numbers = #tpu.dot_dimension_numbers<[1], [0], [0], [1], [0, 0, 1, 1], [], []>} : vector<70x128xbf16>, vector<128x64xbf16>, vector<70x64xf32> -> vector<70x64xf32>
    %c1_50 = arith.constant 1 : index
    %c0_51 = arith.constant 0 : index
    %c0_52 = arith.constant 0 : index
    %55 = vector.load %arg6[%c1_50, %c0_51, %c0_52] : memref<2x128x64xbf16, #tpu.memory_space<vmem>>, vector<1x128x64xbf16>
    %56 = vector.shape_cast %55 : vector<1x128x64xbf16> to vector<128x64xbf16>
    %cst_53 = arith.constant dense<0.000000e+00> : vector<70x64xf32>
    %57 = tpu.matmul %51, %56, %cst_53 {dimension_numbers = #tpu.dot_dimension_numbers<[1], [0], [0], [1], [0, 0, 1, 1], [], []>} : vector<70x128xbf16>, vector<128x64xbf16>, vector<70x64xf32> -> vector<70x64xf32>
    %58 = arith.maximumf %54, %57 : vector<70x64xf32>
    %c1_54 = arith.constant 1 : index
    %c0_55 = arith.constant 0 : index
    %59 = vector.load %arg33[%c1_54, %c0_55] : memref<72x64xf32, #tpu.memory_space<vmem>>, vector<70x64xf32>
    tpu.vector_store %arg33[%c1_54, %c0_55], %58 {strides = array<i32>} : memref<72x64xf32, #tpu.memory_space<vmem>>, vector<70x64xf32>,
    %c1_56 = arith.constant 1 : index
    %c0_57 = arith.constant 0 : index
    %60 = tpu.strided_load %arg33[%c1_56, %c0_57] {strides = array<i32: 2, 1>} : memref<72x64xf32, #tpu.memory_space<vmem>>, vector<35x64xf32>
    %c2_58 = arith.constant 2 : index
    %c0_59 = arith.constant 0 : index
    %61 = tpu.strided_load %arg33[%c2_58, %c0_59] {strides = array<i32: 2, 1>} : memref<72x64xf32, #tpu.memory_space<vmem>>, vector<35x64xf32>
    %62 = arith.maximumf %60, %61 : vector<35x64xf32>
    %cst_60 = arith.constant 0.000000e+00 : f32
    %63 = vector.broadcast %cst_60 : f32 to vector<40x64xf32>
    %c0_61 = arith.constant 0 : index
    %c0_62 = arith.constant 0 : index
    %64 = vector.load %arg34[%c0_61, %c0_62] : memref<40x64xf32, #tpu.memory_space<vmem>>, vector<40x64xf32>
    tpu.vector_store %arg34[%c0_61, %c0_62], %63 {strides = array<i32>} : memref<40x64xf32, #tpu.memory_space<vmem>>, vector<40x64xf32>,
    %65 = vector.extract_strided_slice %62 {offsets = [0, 0], sizes = [8, 64], strides = [1, 1]} : vector<35x64xf32> to vector<8x64xf32>
    %c1_63 = arith.constant 1 : index
    %c0_64 = arith.constant 0 : index
    %66 = vector.load %arg34[%c1_63, %c0_64] : memref<40x64xf32, #tpu.memory_space<vmem>>, vector<8x64xf32>
    tpu.vector_store %arg34[%c1_63, %c0_64], %65 {strides = array<i32>} : memref<40x64xf32, #tpu.memory_space<vmem>>, vector<8x64xf32>,
    %67 = vector.extract_strided_slice %62 {offsets = [9, 0], sizes = [8, 64], strides = [1, 1]} : vector<35x64xf32> to vector<8x64xf32>
    %c11 = arith.constant 11 : index
    %c0_65 = arith.constant 0 : index
    %68 = vector.load %arg34[%c11, %c0_65] : memref<40x64xf32, #tpu.memory_space<vmem>>, vector<8x64xf32>
    tpu.vector_store %arg34[%c11, %c0_65], %67 {strides = array<i32>} : memref<40x64xf32, #tpu.memory_space<vmem>>, vector<8x64xf32>,
    %69 = vector.extract_strided_slice %62 {offsets = [18, 0], sizes = [8, 64], strides = [1, 1]} : vector<35x64xf32> to vector<8x64xf32>
    %c21 = arith.constant 21 : index
    %c0_66 = arith.constant 0 : index
    %70 = vector.load %arg34[%c21, %c0_66] : memref<40x64xf32, #tpu.memory_space<vmem>>, vector<8x64xf32>
    tpu.vector_store %arg34[%c21, %c0_66], %69 {strides = array<i32>} : memref<40x64xf32, #tpu.memory_space<vmem>>, vector<8x64xf32>,
    %71 = vector.extract_strided_slice %62 {offsets = [27, 0], sizes = [8, 64], strides = [1, 1]} : vector<35x64xf32> to vector<8x64xf32>
    %c31 = arith.constant 31 : index
    %c0_67 = arith.constant 0 : index
    %72 = vector.load %arg34[%c31, %c0_67] : memref<40x64xf32, #tpu.memory_space<vmem>>, vector<8x64xf32>
    tpu.vector_store %arg34[%c31, %c0_67], %71 {strides = array<i32>} : memref<40x64xf32, #tpu.memory_space<vmem>>, vector<8x64xf32>,
    %c0_68 = arith.constant 0 : index
    %c0_69 = arith.constant 0 : index
    %73 = vector.load %arg34[%c0_68, %c0_69] : memref<40x64xf32, #tpu.memory_space<vmem>>, vector<38x64xf32>
    %74 = arith.truncf %73 : vector<38x64xf32> to vector<38x64xbf16>
    %c0_70 = arith.constant 0 : index
    %c0_71 = arith.constant 0 : index
    %c0_72 = arith.constant 0 : index
    %75 = vector.load %arg7[%c0_70, %c0_71, %c0_72] : memref<3x64x128xbf16, #tpu.memory_space<vmem>>, vector<1x64x128xbf16>
    %76 = vector.shape_cast %75 : vector<1x64x128xbf16> to vector<64x128xbf16>
    %cst_73 = arith.constant dense<0.000000e+00> : vector<38x128xf32>
    %77 = tpu.matmul %74, %76, %cst_73 {dimension_numbers = #tpu.dot_dimension_numbers<[1], [0], [0], [1], [0, 0, 1, 1], [], []>} : vector<38x64xbf16>, vector<64x128xbf16>, vector<38x128xf32> -> vector<38x128xf32>
    %c1_74 = arith.constant 1 : index
    %c0_75 = arith.constant 0 : index
    %78 = vector.load %arg34[%c1_74, %c0_75] : memref<40x64xf32, #tpu.memory_space<vmem>>, vector<38x64xf32>
    %79 = arith.truncf %78 : vector<38x64xf32> to vector<38x64xbf16>
    %c1_76 = arith.constant 1 : index
    %c0_77 = arith.constant 0 : index
    %c0_78 = arith.constant 0 : index
    %80 = vector.load %arg7[%c1_76, %c0_77, %c0_78] : memref<3x64x128xbf16, #tpu.memory_space<vmem>>, vector<1x64x128xbf16>
    %81 = vector.shape_cast %80 : vector<1x64x128xbf16> to vector<64x128xbf16>
    %cst_79 = arith.constant dense<0.000000e+00> : vector<38x128xf32>
    %82 = tpu.matmul %79, %81, %cst_79 {dimension_numbers = #tpu.dot_dimension_numbers<[1], [0], [0], [1], [0, 0, 1, 1], [], []>} : vector<38x64xbf16>, vector<64x128xbf16>, vector<38x128xf32> -> vector<38x128xf32>
    %83 = arith.addf %77, %82 : vector<38x128xf32>
    %c2_80 = arith.constant 2 : index
    %c0_81 = arith.constant 0 : index
    %84 = vector.load %arg34[%c2_80, %c0_81] : memref<40x64xf32, #tpu.memory_space<vmem>>, vector<38x64xf32>
    %85 = arith.truncf %84 : vector<38x64xf32> to vector<38x64xbf16>
    %c2_82 = arith.constant 2 : index
    %c0_83 = arith.constant 0 : index
    %c0_84 = arith.constant 0 : index
    %86 = vector.load %arg7[%c2_82, %c0_83, %c0_84] : memref<3x64x128xbf16, #tpu.memory_space<vmem>>, vector<1x64x128xbf16>
    %87 = vector.shape_cast %86 : vector<1x64x128xbf16> to vector<64x128xbf16>
    %cst_85 = arith.constant dense<0.000000e+00> : vector<38x128xf32>
    %88 = tpu.matmul %85, %87, %cst_85 {dimension_numbers = #tpu.dot_dimension_numbers<[1], [0], [0], [1], [0, 0, 1, 1], [], []>} : vector<38x64xbf16>, vector<64x128xbf16>, vector<38x128xf32> -> vector<38x128xf32>
    %89 = arith.addf %83, %88 : vector<38x128xf32>
    %c0_86 = arith.constant 0 : index
    %c0_87 = arith.constant 0 : index
    %90 = vector.load %arg8[%c0_86, %c0_87] : memref<1x128xf32, #tpu.memory_space<vmem>>, vector<1x128xf32>
    %91 = vector.broadcast %90 : vector<1x128xf32> to vector<38x128xf32>
    %92 = arith.addf %89, %91 : vector<38x128xf32>
    %cst_88 = arith.constant 0.000000e+00 : f32
    %93 = vector.broadcast %cst_88 : f32 to vector<38x128xf32>
    %94 = arith.maximumf %92, %93 : vector<38x128xf32>
    %c0_89 = arith.constant 0 : index
    %c0_90 = arith.constant 0 : index
    %95 = vector.load %arg26[%c0_89, %c0_90] : memref<38x1xf32, #tpu.memory_space<vmem>>, vector<38x1xf32>
    %96 = vector.broadcast %95 : vector<38x1xf32> to vector<38x128xf32>
    %97 = arith.mulf %94, %96 : vector<38x128xf32>
    %c1_91 = arith.constant 1 : index
    %c0_92 = arith.constant 0 : index
    %98 = vector.load %arg35[%c1_91, %c0_92] : memref<40x128xf32, #tpu.memory_space<vmem>>, vector<38x128xf32>
    tpu.vector_store %arg35[%c1_91, %c0_92], %97 {strides = array<i32>} : memref<40x128xf32, #tpu.memory_space<vmem>>, vector<38x128xf32>,
    %cst_93 = arith.constant 0.000000e+00 : f32
    %99 = vector.broadcast %cst_93 : f32 to vector<1x128xf32>
    %c0_94 = arith.constant 0 : index
    %c0_95 = arith.constant 0 : index
    %100 = vector.load %arg35[%c0_94, %c0_95] : memref<40x128xf32, #tpu.memory_space<vmem>>, vector<1x128xf32>
    tpu.vector_store %arg35[%c0_94, %c0_95], %99 {strides = array<i32>} : memref<40x128xf32, #tpu.memory_space<vmem>>, vector<1x128xf32>,
    %c39 = arith.constant 39 : index
    %c0_96 = arith.constant 0 : index
    %101 = vector.load %arg35[%c39, %c0_96] : memref<40x128xf32, #tpu.memory_space<vmem>>, vector<1x128xf32>
    tpu.vector_store %arg35[%c39, %c0_96], %99 {strides = array<i32>} : memref<40x128xf32, #tpu.memory_space<vmem>>, vector<1x128xf32>,
    %c0_97 = arith.constant 0 : index
    %c0_98 = arith.constant 0 : index
    %102 = vector.load %arg35[%c0_97, %c0_98] : memref<40x128xf32, #tpu.memory_space<vmem>>, vector<38x128xf32>
    %103 = arith.truncf %102 : vector<38x128xf32> to vector<38x128xbf16>
    %c0_99 = arith.constant 0 : index
    %c0_100 = arith.constant 0 : index
    %c0_101 = arith.constant 0 : index
    %104 = vector.load %arg9[%c0_99, %c0_100, %c0_101] : memref<3x128x128xbf16, #tpu.memory_space<vmem>>, vector<1x128x128xbf16>
    %105 = vector.shape_cast %104 : vector<1x128x128xbf16> to vector<128x128xbf16>
    %cst_102 = arith.constant dense<0.000000e+00> : vector<38x128xf32>
    %106 = tpu.matmul %103, %105, %cst_102 {dimension_numbers = #tpu.dot_dimension_numbers<[1], [0], [0], [1], [0, 0, 1, 1], [], []>} : vector<38x128xbf16>, vector<128x128xbf16>, vector<38x128xf32> -> vector<38x128xf32>
    %c1_103 = arith.constant 1 : index
    %c0_104 = arith.constant 0 : index
    %107 = vector.load %arg35[%c1_103, %c0_104] : memref<40x128xf32, #tpu.memory_space<vmem>>, vector<38x128xf32>
    %108 = arith.truncf %107 : vector<38x128xf32> to vector<38x128xbf16>
    %c1_105 = arith.constant 1 : index
    %c0_106 = arith.constant 0 : index
    %c0_107 = arith.constant 0 : index
    %109 = vector.load %arg9[%c1_105, %c0_106, %c0_107] : memref<3x128x128xbf16, #tpu.memory_space<vmem>>, vector<1x128x128xbf16>
    %110 = vector.shape_cast %109 : vector<1x128x128xbf16> to vector<128x128xbf16>
    %cst_108 = arith.constant dense<0.000000e+00> : vector<38x128xf32>
    %111 = tpu.matmul %108, %110, %cst_108 {dimension_numbers = #tpu.dot_dimension_numbers<[1], [0], [0], [1], [0, 0, 1, 1], [], []>} : vector<38x128xbf16>, vector<128x128xbf16>, vector<38x128xf32> -> vector<38x128xf32>
    %112 = arith.addf %106, %111 : vector<38x128xf32>
    %c2_109 = arith.constant 2 : index
    %c0_110 = arith.constant 0 : index
    %113 = vector.load %arg35[%c2_109, %c0_110] : memref<40x128xf32, #tpu.memory_space<vmem>>, vector<38x128xf32>
    %114 = arith.truncf %113 : vector<38x128xf32> to vector<38x128xbf16>
    %c2_111 = arith.constant 2 : index
    %c0_112 = arith.constant 0 : index
    %c0_113 = arith.constant 0 : index
    %115 = vector.load %arg9[%c2_111, %c0_112, %c0_113] : memref<3x128x128xbf16, #tpu.memory_space<vmem>>, vector<1x128x128xbf16>
    %116 = vector.shape_cast %115 : vector<1x128x128xbf16> to vector<128x128xbf16>
    %cst_114 = arith.constant dense<0.000000e+00> : vector<38x128xf32>
    %117 = tpu.matmul %114, %116, %cst_114 {dimension_numbers = #tpu.dot_dimension_numbers<[1], [0], [0], [1], [0, 0, 1, 1], [], []>} : vector<38x128xbf16>, vector<128x128xbf16>, vector<38x128xf32> -> vector<38x128xf32>
    %118 = arith.addf %112, %117 : vector<38x128xf32>
    %c0_115 = arith.constant 0 : index
    %c0_116 = arith.constant 0 : index
    %119 = vector.load %arg10[%c0_115, %c0_116] : memref<1x128xf32, #tpu.memory_space<vmem>>, vector<1x128xf32>
    %120 = vector.broadcast %119 : vector<1x128xf32> to vector<38x128xf32>
    %121 = arith.addf %118, %120 : vector<38x128xf32>
    %cst_117 = arith.constant 0.000000e+00 : f32
    %122 = vector.broadcast %cst_117 : f32 to vector<38x128xf32>
    %123 = arith.maximumf %121, %122 : vector<38x128xf32>
    %124 = arith.truncf %123 : vector<38x128xf32> to vector<38x128xbf16>
    %c0_118 = arith.constant 0 : index
    %c0_119 = arith.constant 0 : index
    %c0_120 = arith.constant 0 : index
    %125 = vector.load %arg11[%c0_118, %c0_119, %c0_120] : memref<2x128x64xbf16, #tpu.memory_space<vmem>>, vector<1x128x64xbf16>
    %126 = vector.shape_cast %125 : vector<1x128x64xbf16> to vector<128x64xbf16>
    %cst_121 = arith.constant dense<0.000000e+00> : vector<38x64xf32>
    %127 = tpu.matmul %124, %126, %cst_121 {dimension_numbers = #tpu.dot_dimension_numbers<[1], [0], [0], [1], [0, 0, 1, 1], [], []>} : vector<38x128xbf16>, vector<128x64xbf16>, vector<38x64xf32> -> vector<38x64xf32>
    %c1_122 = arith.constant 1 : index
    %c0_123 = arith.constant 0 : index
    %c0_124 = arith.constant 0 : index
    %128 = vector.load %arg11[%c1_122, %c0_123, %c0_124] : memref<2x128x64xbf16, #tpu.memory_space<vmem>>, vector<1x128x64xbf16>
    %129 = vector.shape_cast %128 : vector<1x128x64xbf16> to vector<128x64xbf16>
    %cst_125 = arith.constant dense<0.000000e+00> : vector<38x64xf32>
    %130 = tpu.matmul %124, %129, %cst_125 {dimension_numbers = #tpu.dot_dimension_numbers<[1], [0], [0], [1], [0, 0, 1, 1], [], []>} : vector<38x128xbf16>, vector<128x64xbf16>, vector<38x64xf32> -> vector<38x64xf32>
    %131 = arith.maximumf %127, %130 : vector<38x64xf32>
    %c1_126 = arith.constant 1 : index
    %c0_127 = arith.constant 0 : index
    %132 = vector.load %arg36[%c1_126, %c0_127] : memref<40x64xf32, #tpu.memory_space<vmem>>, vector<38x64xf32>
    tpu.vector_store %arg36[%c1_126, %c0_127], %131 {strides = array<i32>} : memref<40x64xf32, #tpu.memory_space<vmem>>, vector<38x64xf32>,
    %c1_128 = arith.constant 1 : index
    %c0_129 = arith.constant 0 : index
    %133 = tpu.strided_load %arg36[%c1_128, %c0_129] {strides = array<i32: 2, 1>} : memref<40x64xf32, #tpu.memory_space<vmem>>, vector<19x64xf32>
    %c2_130 = arith.constant 2 : index
    %c0_131 = arith.constant 0 : index
    %134 = tpu.strided_load %arg36[%c2_130, %c0_131] {strides = array<i32: 2, 1>} : memref<40x64xf32, #tpu.memory_space<vmem>>, vector<19x64xf32>
    %135 = arith.maximumf %133, %134 : vector<19x64xf32>
    %cst_132 = arith.constant 0.000000e+00 : f32
    %136 = vector.broadcast %cst_132 : f32 to vector<24x64xf32>
    %c0_133 = arith.constant 0 : index
    %c0_134 = arith.constant 0 : index
    %137 = vector.load %arg37[%c0_133, %c0_134] : memref<24x64xf32, #tpu.memory_space<vmem>>, vector<24x64xf32>
    tpu.vector_store %arg37[%c0_133, %c0_134], %136 {strides = array<i32>} : memref<24x64xf32, #tpu.memory_space<vmem>>, vector<24x64xf32>,
    %138 = vector.extract_strided_slice %135 {offsets = [0, 0], sizes = [4, 64], strides = [1, 1]} : vector<19x64xf32> to vector<4x64xf32>
    %c1_135 = arith.constant 1 : index
    %c0_136 = arith.constant 0 : index
    %139 = vector.load %arg37[%c1_135, %c0_136] : memref<24x64xf32, #tpu.memory_space<vmem>>, vector<4x64xf32>
    tpu.vector_store %arg37[%c1_135, %c0_136], %138 {strides = array<i32>} : memref<24x64xf32, #tpu.memory_space<vmem>>, vector<4x64xf32>,
    %140 = vector.extract_strided_slice %135 {offsets = [5, 0], sizes = [4, 64], strides = [1, 1]} : vector<19x64xf32> to vector<4x64xf32>
    %c7 = arith.constant 7 : index
    %c0_137 = arith.constant 0 : index
    %141 = vector.load %arg37[%c7, %c0_137] : memref<24x64xf32, #tpu.memory_space<vmem>>, vector<4x64xf32>
    tpu.vector_store %arg37[%c7, %c0_137], %140 {strides = array<i32>} : memref<24x64xf32, #tpu.memory_space<vmem>>, vector<4x64xf32>,
    %142 = vector.extract_strided_slice %135 {offsets = [10, 0], sizes = [4, 64], strides = [1, 1]} : vector<19x64xf32> to vector<4x64xf32>
    %c13 = arith.constant 13 : index
    %c0_138 = arith.constant 0 : index
    %143 = vector.load %arg37[%c13, %c0_138] : memref<24x64xf32, #tpu.memory_space<vmem>>, vector<4x64xf32>
    tpu.vector_store %arg37[%c13, %c0_138], %142 {strides = array<i32>} : memref<24x64xf32, #tpu.memory_space<vmem>>, vector<4x64xf32>,
    %144 = vector.extract_strided_slice %135 {offsets = [15, 0], sizes = [4, 64], strides = [1, 1]} : vector<19x64xf32> to vector<4x64xf32>
    %c19 = arith.constant 19 : index
    %c0_139 = arith.constant 0 : index
    %145 = vector.load %arg37[%c19, %c0_139] : memref<24x64xf32, #tpu.memory_space<vmem>>, vector<4x64xf32>
    tpu.vector_store %arg37[%c19, %c0_139], %144 {strides = array<i32>} : memref<24x64xf32, #tpu.memory_space<vmem>>, vector<4x64xf32>,
    %c0_140 = arith.constant 0 : index
    %c0_141 = arith.constant 0 : index
    %146 = vector.load %arg37[%c0_140, %c0_141] : memref<24x64xf32, #tpu.memory_space<vmem>>, vector<22x64xf32>
    %147 = arith.truncf %146 : vector<22x64xf32> to vector<22x64xbf16>
    %c0_142 = arith.constant 0 : index
    %c0_143 = arith.constant 0 : index
    %c0_144 = arith.constant 0 : index
    %148 = vector.load %arg12[%c0_142, %c0_143, %c0_144] : memref<3x64x128xbf16, #tpu.memory_space<vmem>>, vector<1x64x128xbf16>
    %149 = vector.shape_cast %148 : vector<1x64x128xbf16> to vector<64x128xbf16>
    %cst_145 = arith.constant dense<0.000000e+00> : vector<22x128xf32>
    %150 = tpu.matmul %147, %149, %cst_145 {dimension_numbers = #tpu.dot_dimension_numbers<[1], [0], [0], [1], [0, 0, 1, 1], [], []>} : vector<22x64xbf16>, vector<64x128xbf16>, vector<22x128xf32> -> vector<22x128xf32>
    %c1_146 = arith.constant 1 : index
    %c0_147 = arith.constant 0 : index
    %151 = vector.load %arg37[%c1_146, %c0_147] : memref<24x64xf32, #tpu.memory_space<vmem>>, vector<22x64xf32>
    %152 = arith.truncf %151 : vector<22x64xf32> to vector<22x64xbf16>
    %c1_148 = arith.constant 1 : index
    %c0_149 = arith.constant 0 : index
    %c0_150 = arith.constant 0 : index
    %153 = vector.load %arg12[%c1_148, %c0_149, %c0_150] : memref<3x64x128xbf16, #tpu.memory_space<vmem>>, vector<1x64x128xbf16>
    %154 = vector.shape_cast %153 : vector<1x64x128xbf16> to vector<64x128xbf16>
    %cst_151 = arith.constant dense<0.000000e+00> : vector<22x128xf32>
    %155 = tpu.matmul %152, %154, %cst_151 {dimension_numbers = #tpu.dot_dimension_numbers<[1], [0], [0], [1], [0, 0, 1, 1], [], []>} : vector<22x64xbf16>, vector<64x128xbf16>, vector<22x128xf32> -> vector<22x128xf32>
    %156 = arith.addf %150, %155 : vector<22x128xf32>
    %c2_152 = arith.constant 2 : index
    %c0_153 = arith.constant 0 : index
    %157 = vector.load %arg37[%c2_152, %c0_153] : memref<24x64xf32, #tpu.memory_space<vmem>>, vector<22x64xf32>
    %158 = arith.truncf %157 : vector<22x64xf32> to vector<22x64xbf16>
    %c2_154 = arith.constant 2 : index
    %c0_155 = arith.constant 0 : index
    %c0_156 = arith.constant 0 : index
    %159 = vector.load %arg12[%c2_154, %c0_155, %c0_156] : memref<3x64x128xbf16, #tpu.memory_space<vmem>>, vector<1x64x128xbf16>
    %160 = vector.shape_cast %159 : vector<1x64x128xbf16> to vector<64x128xbf16>
    %cst_157 = arith.constant dense<0.000000e+00> : vector<22x128xf32>
    %161 = tpu.matmul %158, %160, %cst_157 {dimension_numbers = #tpu.dot_dimension_numbers<[1], [0], [0], [1], [0, 0, 1, 1], [], []>} : vector<22x64xbf16>, vector<64x128xbf16>, vector<22x128xf32> -> vector<22x128xf32>
    %162 = arith.addf %156, %161 : vector<22x128xf32>
    %c0_158 = arith.constant 0 : index
    %c0_159 = arith.constant 0 : index
    %163 = vector.load %arg13[%c0_158, %c0_159] : memref<1x128xf32, #tpu.memory_space<vmem>>, vector<1x128xf32>
    %164 = vector.broadcast %163 : vector<1x128xf32> to vector<22x128xf32>
    %165 = arith.addf %162, %164 : vector<22x128xf32>
    %cst_160 = arith.constant 0.000000e+00 : f32
    %166 = vector.broadcast %cst_160 : f32 to vector<22x128xf32>
    %167 = arith.maximumf %165, %166 : vector<22x128xf32>
    %c0_161 = arith.constant 0 : index
    %c0_162 = arith.constant 0 : index
    %168 = vector.load %arg27[%c0_161, %c0_162] : memref<22x1xf32, #tpu.memory_space<vmem>>, vector<22x1xf32>
    %169 = vector.broadcast %168 : vector<22x1xf32> to vector<22x128xf32>
    %170 = arith.mulf %167, %169 : vector<22x128xf32>
    %c1_163 = arith.constant 1 : index
    %c0_164 = arith.constant 0 : index
    %171 = vector.load %arg38[%c1_163, %c0_164] : memref<24x128xf32, #tpu.memory_space<vmem>>, vector<22x128xf32>
    tpu.vector_store %arg38[%c1_163, %c0_164], %170 {strides = array<i32>} : memref<24x128xf32, #tpu.memory_space<vmem>>, vector<22x128xf32>,
    %cst_165 = arith.constant 0.000000e+00 : f32
    %172 = vector.broadcast %cst_165 : f32 to vector<1x128xf32>
    %c0_166 = arith.constant 0 : index
    %c0_167 = arith.constant 0 : index
    %173 = vector.load %arg38[%c0_166, %c0_167] : memref<24x128xf32, #tpu.memory_space<vmem>>, vector<1x128xf32>
    tpu.vector_store %arg38[%c0_166, %c0_167], %172 {strides = array<i32>} : memref<24x128xf32, #tpu.memory_space<vmem>>, vector<1x128xf32>,
    %c23 = arith.constant 23 : index
    %c0_168 = arith.constant 0 : index
    %174 = vector.load %arg38[%c23, %c0_168] : memref<24x128xf32, #tpu.memory_space<vmem>>, vector<1x128xf32>
    tpu.vector_store %arg38[%c23, %c0_168], %172 {strides = array<i32>} : memref<24x128xf32, #tpu.memory_space<vmem>>, vector<1x128xf32>,
    %c0_169 = arith.constant 0 : index
    %c0_170 = arith.constant 0 : index
    %175 = vector.load %arg38[%c0_169, %c0_170] : memref<24x128xf32, #tpu.memory_space<vmem>>, vector<22x128xf32>
    %176 = arith.truncf %175 : vector<22x128xf32> to vector<22x128xbf16>
    %c0_171 = arith.constant 0 : index
    %c0_172 = arith.constant 0 : index
    %c0_173 = arith.constant 0 : index
    %177 = vector.load %arg14[%c0_171, %c0_172, %c0_173] : memref<3x128x128xbf16, #tpu.memory_space<vmem>>, vector<1x128x128xbf16>
    %178 = vector.shape_cast %177 : vector<1x128x128xbf16> to vector<128x128xbf16>
    %cst_174 = arith.constant dense<0.000000e+00> : vector<22x128xf32>
    %179 = tpu.matmul %176, %178, %cst_174 {dimension_numbers = #tpu.dot_dimension_numbers<[1], [0], [0], [1], [0, 0, 1, 1], [], []>} : vector<22x128xbf16>, vector<128x128xbf16>, vector<22x128xf32> -> vector<22x128xf32>
    %c1_175 = arith.constant 1 : index
    %c0_176 = arith.constant 0 : index
    %180 = vector.load %arg38[%c1_175, %c0_176] : memref<24x128xf32, #tpu.memory_space<vmem>>, vector<22x128xf32>
    %181 = arith.truncf %180 : vector<22x128xf32> to vector<22x128xbf16>
    %c1_177 = arith.constant 1 : index
    %c0_178 = arith.constant 0 : index
    %c0_179 = arith.constant 0 : index
    %182 = vector.load %arg14[%c1_177, %c0_178, %c0_179] : memref<3x128x128xbf16, #tpu.memory_space<vmem>>, vector<1x128x128xbf16>
    %183 = vector.shape_cast %182 : vector<1x128x128xbf16> to vector<128x128xbf16>
    %cst_180 = arith.constant dense<0.000000e+00> : vector<22x128xf32>
    %184 = tpu.matmul %181, %183, %cst_180 {dimension_numbers = #tpu.dot_dimension_numbers<[1], [0], [0], [1], [0, 0, 1, 1], [], []>} : vector<22x128xbf16>, vector<128x128xbf16>, vector<22x128xf32> -> vector<22x128xf32>
    %185 = arith.addf %179, %184 : vector<22x128xf32>
    %c2_181 = arith.constant 2 : index
    %c0_182 = arith.constant 0 : index
    %186 = vector.load %arg38[%c2_181, %c0_182] : memref<24x128xf32, #tpu.memory_space<vmem>>, vector<22x128xf32>
    %187 = arith.truncf %186 : vector<22x128xf32> to vector<22x128xbf16>
    %c2_183 = arith.constant 2 : index
    %c0_184 = arith.constant 0 : index
    %c0_185 = arith.constant 0 : index
    %188 = vector.load %arg14[%c2_183, %c0_184, %c0_185] : memref<3x128x128xbf16, #tpu.memory_space<vmem>>, vector<1x128x128xbf16>
    %189 = vector.shape_cast %188 : vector<1x128x128xbf16> to vector<128x128xbf16>
    %cst_186 = arith.constant dense<0.000000e+00> : vector<22x128xf32>
    %190 = tpu.matmul %187, %189, %cst_186 {dimension_numbers = #tpu.dot_dimension_numbers<[1], [0], [0], [1], [0, 0, 1, 1], [], []>} : vector<22x128xbf16>, vector<128x128xbf16>, vector<22x128xf32> -> vector<22x128xf32>
    %191 = arith.addf %185, %190 : vector<22x128xf32>
    %c0_187 = arith.constant 0 : index
    %c0_188 = arith.constant 0 : index
    %192 = vector.load %arg15[%c0_187, %c0_188] : memref<1x128xf32, #tpu.memory_space<vmem>>, vector<1x128xf32>
    %193 = vector.broadcast %192 : vector<1x128xf32> to vector<22x128xf32>
    %194 = arith.addf %191, %193 : vector<22x128xf32>
    %cst_189 = arith.constant 0.000000e+00 : f32
    %195 = vector.broadcast %cst_189 : f32 to vector<22x128xf32>
    %196 = arith.maximumf %194, %195 : vector<22x128xf32>
    %c0_190 = arith.constant 0 : index
    %c0_191 = arith.constant 0 : index
    %197 = vector.load %arg28[%c0_190, %c0_191] : memref<22x1xf32, #tpu.memory_space<vmem>>, vector<22x1xf32>
    %198 = vector.broadcast %197 : vector<22x1xf32> to vector<22x128xf32>
    %199 = arith.mulf %196, %198 : vector<22x128xf32>
    %c1_192 = arith.constant 1 : index
    %c0_193 = arith.constant 0 : index
    %200 = vector.load %arg39[%c1_192, %c0_193] : memref<24x128xf32, #tpu.memory_space<vmem>>, vector<22x128xf32>
    tpu.vector_store %arg39[%c1_192, %c0_193], %199 {strides = array<i32>} : memref<24x128xf32, #tpu.memory_space<vmem>>, vector<22x128xf32>,
    %cst_194 = arith.constant 0.000000e+00 : f32
    %201 = vector.broadcast %cst_194 : f32 to vector<1x128xf32>
    %c0_195 = arith.constant 0 : index
    %c0_196 = arith.constant 0 : index
    %202 = vector.load %arg39[%c0_195, %c0_196] : memref<24x128xf32, #tpu.memory_space<vmem>>, vector<1x128xf32>
    tpu.vector_store %arg39[%c0_195, %c0_196], %201 {strides = array<i32>} : memref<24x128xf32, #tpu.memory_space<vmem>>, vector<1x128xf32>,
    %c23_197 = arith.constant 23 : index
    %c0_198 = arith.constant 0 : index
    %203 = vector.load %arg39[%c23_197, %c0_198] : memref<24x128xf32, #tpu.memory_space<vmem>>, vector<1x128xf32>
    tpu.vector_store %arg39[%c23_197, %c0_198], %201 {strides = array<i32>} : memref<24x128xf32, #tpu.memory_space<vmem>>, vector<1x128xf32>,
    %c0_199 = arith.constant 0 : index
    %c0_200 = arith.constant 0 : index
    %204 = vector.load %arg39[%c0_199, %c0_200] : memref<24x128xf32, #tpu.memory_space<vmem>>, vector<22x128xf32>
    %205 = arith.truncf %204 : vector<22x128xf32> to vector<22x128xbf16>
    %c0_201 = arith.constant 0 : index
    %c0_202 = arith.constant 0 : index
    %c0_203 = arith.constant 0 : index
    %206 = vector.load %arg16[%c0_201, %c0_202, %c0_203] : memref<3x128x128xbf16, #tpu.memory_space<vmem>>, vector<1x128x128xbf16>
    %207 = vector.shape_cast %206 : vector<1x128x128xbf16> to vector<128x128xbf16>
    %cst_204 = arith.constant dense<0.000000e+00> : vector<22x128xf32>
    %208 = tpu.matmul %205, %207, %cst_204 {dimension_numbers = #tpu.dot_dimension_numbers<[1], [0], [0], [1], [0, 0, 1, 1], [], []>} : vector<22x128xbf16>, vector<128x128xbf16>, vector<22x128xf32> -> vector<22x128xf32>
    %c1_205 = arith.constant 1 : index
    %c0_206 = arith.constant 0 : index
    %209 = vector.load %arg39[%c1_205, %c0_206] : memref<24x128xf32, #tpu.memory_space<vmem>>, vector<22x128xf32>
    %210 = arith.truncf %209 : vector<22x128xf32> to vector<22x128xbf16>
    %c1_207 = arith.constant 1 : index
    %c0_208 = arith.constant 0 : index
    %c0_209 = arith.constant 0 : index
    %211 = vector.load %arg16[%c1_207, %c0_208, %c0_209] : memref<3x128x128xbf16, #tpu.memory_space<vmem>>, vector<1x128x128xbf16>
    %212 = vector.shape_cast %211 : vector<1x128x128xbf16> to vector<128x128xbf16>
    %cst_210 = arith.constant dense<0.000000e+00> : vector<22x128xf32>
    %213 = tpu.matmul %210, %212, %cst_210 {dimension_numbers = #tpu.dot_dimension_numbers<[1], [0], [0], [1], [0, 0, 1, 1], [], []>} : vector<22x128xbf16>, vector<128x128xbf16>, vector<22x128xf32> -> vector<22x128xf32>
    %214 = arith.addf %208, %213 : vector<22x128xf32>
    %c2_211 = arith.constant 2 : index
    %c0_212 = arith.constant 0 : index
    %215 = vector.load %arg39[%c2_211, %c0_212] : memref<24x128xf32, #tpu.memory_space<vmem>>, vector<22x128xf32>
    %216 = arith.truncf %215 : vector<22x128xf32> to vector<22x128xbf16>
    %c2_213 = arith.constant 2 : index
    %c0_214 = arith.constant 0 : index
    %c0_215 = arith.constant 0 : index
    %217 = vector.load %arg16[%c2_213, %c0_214, %c0_215] : memref<3x128x128xbf16, #tpu.memory_space<vmem>>, vector<1x128x128xbf16>
    %218 = vector.shape_cast %217 : vector<1x128x128xbf16> to vector<128x128xbf16>
    %cst_216 = arith.constant dense<0.000000e+00> : vector<22x128xf32>
    %219 = tpu.matmul %216, %218, %cst_216 {dimension_numbers = #tpu.dot_dimension_numbers<[1], [0], [0], [1], [0, 0, 1, 1], [], []>} : vector<22x128xbf16>, vector<128x128xbf16>, vector<22x128xf32> -> vector<22x128xf32>
    %220 = arith.addf %214, %219 : vector<22x128xf32>
    %c0_217 = arith.constant 0 : index
    %c0_218 = arith.constant 0 : index
    %221 = vector.load %arg17[%c0_217, %c0_218] : memref<1x128xf32, #tpu.memory_space<vmem>>, vector<1x128xf32>
    %222 = vector.broadcast %221 : vector<1x128xf32> to vector<22x128xf32>
    %223 = arith.addf %220, %222 : vector<22x128xf32>
    %cst_219 = arith.constant 0.000000e+00 : f32
    %224 = vector.broadcast %cst_219 : f32 to vector<22x128xf32>
    %225 = arith.maximumf %223, %224 : vector<22x128xf32>
    %226 = arith.truncf %225 : vector<22x128xf32> to vector<22x128xbf16>
    %c0_220 = arith.constant 0 : index
    %c0_221 = arith.constant 0 : index
    %c0_222 = arith.constant 0 : index
    %227 = vector.load %arg18[%c0_220, %c0_221, %c0_222] : memref<2x128x64xbf16, #tpu.memory_space<vmem>>, vector<1x128x64xbf16>
    %228 = vector.shape_cast %227 : vector<1x128x64xbf16> to vector<128x64xbf16>
    %cst_223 = arith.constant dense<0.000000e+00> : vector<22x64xf32>
    %229 = tpu.matmul %226, %228, %cst_223 {dimension_numbers = #tpu.dot_dimension_numbers<[1], [0], [0], [1], [0, 0, 1, 1], [], []>} : vector<22x128xbf16>, vector<128x64xbf16>, vector<22x64xf32> -> vector<22x64xf32>
    %c1_224 = arith.constant 1 : index
    %c0_225 = arith.constant 0 : index
    %c0_226 = arith.constant 0 : index
    %230 = vector.load %arg18[%c1_224, %c0_225, %c0_226] : memref<2x128x64xbf16, #tpu.memory_space<vmem>>, vector<1x128x64xbf16>
    %231 = vector.shape_cast %230 : vector<1x128x64xbf16> to vector<128x64xbf16>
    %cst_227 = arith.constant dense<0.000000e+00> : vector<22x64xf32>
    %232 = tpu.matmul %226, %231, %cst_227 {dimension_numbers = #tpu.dot_dimension_numbers<[1], [0], [0], [1], [0, 0, 1, 1], [], []>} : vector<22x128xbf16>, vector<128x64xbf16>, vector<22x64xf32> -> vector<22x64xf32>
    %233 = arith.maximumf %229, %232 : vector<22x64xf32>
    %c1_228 = arith.constant 1 : index
    %c0_229 = arith.constant 0 : index
    %234 = vector.load %arg40[%c1_228, %c0_229] : memref<24x64xf32, #tpu.memory_space<vmem>>, vector<22x64xf32>
    tpu.vector_store %arg40[%c1_228, %c0_229], %233 {strides = array<i32>} : memref<24x64xf32, #tpu.memory_space<vmem>>, vector<22x64xf32>,
    %c1_230 = arith.constant 1 : index
    %c0_231 = arith.constant 0 : index
    %235 = tpu.strided_load %arg40[%c1_230, %c0_231] {strides = array<i32: 2, 1>} : memref<24x64xf32, #tpu.memory_space<vmem>>, vector<11x64xf32>
    %c2_232 = arith.constant 2 : index
    %c0_233 = arith.constant 0 : index
    %236 = tpu.strided_load %arg40[%c2_232, %c0_233] {strides = array<i32: 2, 1>} : memref<24x64xf32, #tpu.memory_space<vmem>>, vector<11x64xf32>
    %237 = arith.maximumf %235, %236 : vector<11x64xf32>
    %cst_234 = arith.constant 0.000000e+00 : f32
    %238 = vector.broadcast %cst_234 : f32 to vector<16x64xf32>
    %c0_235 = arith.constant 0 : index
    %c0_236 = arith.constant 0 : index
    %239 = vector.load %arg41[%c0_235, %c0_236] : memref<16x64xf32, #tpu.memory_space<vmem>>, vector<16x64xf32>
    tpu.vector_store %arg41[%c0_235, %c0_236], %238 {strides = array<i32>} : memref<16x64xf32, #tpu.memory_space<vmem>>, vector<16x64xf32>,
    %240 = vector.extract_strided_slice %237 {offsets = [0, 0], sizes = [2, 64], strides = [1, 1]} : vector<11x64xf32> to vector<2x64xf32>
    %c1_237 = arith.constant 1 : index
    %c0_238 = arith.constant 0 : index
    %241 = vector.load %arg41[%c1_237, %c0_238] : memref<16x64xf32, #tpu.memory_space<vmem>>, vector<2x64xf32>
    tpu.vector_store %arg41[%c1_237, %c0_238], %240 {strides = array<i32>} : memref<16x64xf32, #tpu.memory_space<vmem>>, vector<2x64xf32>,
    %242 = vector.extract_strided_slice %237 {offsets = [3, 0], sizes = [2, 64], strides = [1, 1]} : vector<11x64xf32> to vector<2x64xf32>
    %c5 = arith.constant 5 : index
    %c0_239 = arith.constant 0 : index
    %243 = vector.load %arg41[%c5, %c0_239] : memref<16x64xf32, #tpu.memory_space<vmem>>, vector<2x64xf32>
    tpu.vector_store %arg41[%c5, %c0_239], %242 {strides = array<i32>} : memref<16x64xf32, #tpu.memory_space<vmem>>, vector<2x64xf32>,
    %244 = vector.extract_strided_slice %237 {offsets = [6, 0], sizes = [2, 64], strides = [1, 1]} : vector<11x64xf32> to vector<2x64xf32>
    %c9 = arith.constant 9 : index
    %c0_240 = arith.constant 0 : index
    %245 = vector.load %arg41[%c9, %c0_240] : memref<16x64xf32, #tpu.memory_space<vmem>>, vector<2x64xf32>
    tpu.vector_store %arg41[%c9, %c0_240], %244 {strides = array<i32>} : memref<16x64xf32, #tpu.memory_space<vmem>>, vector<2x64xf32>,
    %246 = vector.extract_strided_slice %237 {offsets = [9, 0], sizes = [2, 64], strides = [1, 1]} : vector<11x64xf32> to vector<2x64xf32>
    %c13_241 = arith.constant 13 : index
    %c0_242 = arith.constant 0 : index
    %247 = vector.load %arg41[%c13_241, %c0_242] : memref<16x64xf32, #tpu.memory_space<vmem>>, vector<2x64xf32>
    tpu.vector_store %arg41[%c13_241, %c0_242], %246 {strides = array<i32>} : memref<16x64xf32, #tpu.memory_space<vmem>>, vector<2x64xf32>,
    %c0_243 = arith.constant 0 : index
    %c0_244 = arith.constant 0 : index
    %248 = vector.load %arg41[%c0_243, %c0_244] : memref<16x64xf32, #tpu.memory_space<vmem>>, vector<14x64xf32>
    %249 = arith.truncf %248 : vector<14x64xf32> to vector<14x64xbf16>
    %c0_245 = arith.constant 0 : index
    %c0_246 = arith.constant 0 : index
    %c0_247 = arith.constant 0 : index
    %250 = vector.load %arg19[%c0_245, %c0_246, %c0_247] : memref<3x64x128xbf16, #tpu.memory_space<vmem>>, vector<1x64x128xbf16>
    %251 = vector.shape_cast %250 : vector<1x64x128xbf16> to vector<64x128xbf16>
    %cst_248 = arith.constant dense<0.000000e+00> : vector<14x128xf32>
    %252 = tpu.matmul %249, %251, %cst_248 {dimension_numbers = #tpu.dot_dimension_numbers<[1], [0], [0], [1], [0, 0, 1, 1], [], []>} : vector<14x64xbf16>, vector<64x128xbf16>, vector<14x128xf32> -> vector<14x128xf32>
    %c1_249 = arith.constant 1 : index
    %c0_250 = arith.constant 0 : index
    %253 = vector.load %arg41[%c1_249, %c0_250] : memref<16x64xf32, #tpu.memory_space<vmem>>, vector<14x64xf32>
    %254 = arith.truncf %253 : vector<14x64xf32> to vector<14x64xbf16>
    %c1_251 = arith.constant 1 : index
    %c0_252 = arith.constant 0 : index
    %c0_253 = arith.constant 0 : index
    %255 = vector.load %arg19[%c1_251, %c0_252, %c0_253] : memref<3x64x128xbf16, #tpu.memory_space<vmem>>, vector<1x64x128xbf16>
    %256 = vector.shape_cast %255 : vector<1x64x128xbf16> to vector<64x128xbf16>
    %cst_254 = arith.constant dense<0.000000e+00> : vector<14x128xf32>
    %257 = tpu.matmul %254, %256, %cst_254 {dimension_numbers = #tpu.dot_dimension_numbers<[1], [0], [0], [1], [0, 0, 1, 1], [], []>} : vector<14x64xbf16>, vector<64x128xbf16>, vector<14x128xf32> -> vector<14x128xf32>
    %258 = arith.addf %252, %257 : vector<14x128xf32>
    %c2_255 = arith.constant 2 : index
    %c0_256 = arith.constant 0 : index
    %259 = vector.load %arg41[%c2_255, %c0_256] : memref<16x64xf32, #tpu.memory_space<vmem>>, vector<14x64xf32>
    %260 = arith.truncf %259 : vector<14x64xf32> to vector<14x64xbf16>
    %c2_257 = arith.constant 2 : index
    %c0_258 = arith.constant 0 : index
    %c0_259 = arith.constant 0 : index
    %261 = vector.load %arg19[%c2_257, %c0_258, %c0_259] : memref<3x64x128xbf16, #tpu.memory_space<vmem>>, vector<1x64x128xbf16>
    %262 = vector.shape_cast %261 : vector<1x64x128xbf16> to vector<64x128xbf16>
    %cst_260 = arith.constant dense<0.000000e+00> : vector<14x128xf32>
    %263 = tpu.matmul %260, %262, %cst_260 {dimension_numbers = #tpu.dot_dimension_numbers<[1], [0], [0], [1], [0, 0, 1, 1], [], []>} : vector<14x64xbf16>, vector<64x128xbf16>, vector<14x128xf32> -> vector<14x128xf32>
    %264 = arith.addf %258, %263 : vector<14x128xf32>
    %c0_261 = arith.constant 0 : index
    %c0_262 = arith.constant 0 : index
    %265 = vector.load %arg20[%c0_261, %c0_262] : memref<1x128xf32, #tpu.memory_space<vmem>>, vector<1x128xf32>
    %266 = vector.broadcast %265 : vector<1x128xf32> to vector<14x128xf32>
    %267 = arith.addf %264, %266 : vector<14x128xf32>
    %cst_263 = arith.constant 0.000000e+00 : f32
    %268 = vector.broadcast %cst_263 : f32 to vector<14x128xf32>
    %269 = arith.maximumf %267, %268 : vector<14x128xf32>
    %c0_264 = arith.constant 0 : index
    %c0_265 = arith.constant 0 : index
    %270 = vector.load %arg29[%c0_264, %c0_265] : memref<14x1xf32, #tpu.memory_space<vmem>>, vector<14x1xf32>
    %271 = vector.broadcast %270 : vector<14x1xf32> to vector<14x128xf32>
    %272 = arith.mulf %269, %271 : vector<14x128xf32>
    %c1_266 = arith.constant 1 : index
    %c0_267 = arith.constant 0 : index
    %273 = vector.load %arg42[%c1_266, %c0_267] : memref<16x128xf32, #tpu.memory_space<vmem>>, vector<14x128xf32>
    tpu.vector_store %arg42[%c1_266, %c0_267], %272 {strides = array<i32>} : memref<16x128xf32, #tpu.memory_space<vmem>>, vector<14x128xf32>,
    %cst_268 = arith.constant 0.000000e+00 : f32
    %274 = vector.broadcast %cst_268 : f32 to vector<1x128xf32>
    %c0_269 = arith.constant 0 : index
    %c0_270 = arith.constant 0 : index
    %275 = vector.load %arg42[%c0_269, %c0_270] : memref<16x128xf32, #tpu.memory_space<vmem>>, vector<1x128xf32>
    tpu.vector_store %arg42[%c0_269, %c0_270], %274 {strides = array<i32>} : memref<16x128xf32, #tpu.memory_space<vmem>>, vector<1x128xf32>,
    %c15 = arith.constant 15 : index
    %c0_271 = arith.constant 0 : index
    %276 = vector.load %arg42[%c15, %c0_271] : memref<16x128xf32, #tpu.memory_space<vmem>>, vector<1x128xf32>
    tpu.vector_store %arg42[%c15, %c0_271], %274 {strides = array<i32>} : memref<16x128xf32, #tpu.memory_space<vmem>>, vector<1x128xf32>,
    %c0_272 = arith.constant 0 : index
    %c0_273 = arith.constant 0 : index
    %277 = vector.load %arg42[%c0_272, %c0_273] : memref<16x128xf32, #tpu.memory_space<vmem>>, vector<14x128xf32>
    %278 = arith.truncf %277 : vector<14x128xf32> to vector<14x128xbf16>
    %c0_274 = arith.constant 0 : index
    %c0_275 = arith.constant 0 : index
    %c0_276 = arith.constant 0 : index
    %279 = vector.load %arg21[%c0_274, %c0_275, %c0_276] : memref<3x128x128xbf16, #tpu.memory_space<vmem>>, vector<1x128x128xbf16>
    %280 = vector.shape_cast %279 : vector<1x128x128xbf16> to vector<128x128xbf16>
    %cst_277 = arith.constant dense<0.000000e+00> : vector<14x128xf32>
    %281 = tpu.matmul %278, %280, %cst_277 {dimension_numbers = #tpu.dot_dimension_numbers<[1], [0], [0], [1], [0, 0, 1, 1], [], []>} : vector<14x128xbf16>, vector<128x128xbf16>, vector<14x128xf32> -> vector<14x128xf32>
    %c1_278 = arith.constant 1 : index
    %c0_279 = arith.constant 0 : index
    %282 = vector.load %arg42[%c1_278, %c0_279] : memref<16x128xf32, #tpu.memory_space<vmem>>, vector<14x128xf32>
    %283 = arith.truncf %282 : vector<14x128xf32> to vector<14x128xbf16>
    %c1_280 = arith.constant 1 : index
    %c0_281 = arith.constant 0 : index
    %c0_282 = arith.constant 0 : index
    %284 = vector.load %arg21[%c1_280, %c0_281, %c0_282] : memref<3x128x128xbf16, #tpu.memory_space<vmem>>, vector<1x128x128xbf16>
    %285 = vector.shape_cast %284 : vector<1x128x128xbf16> to vector<128x128xbf16>
    %cst_283 = arith.constant dense<0.000000e+00> : vector<14x128xf32>
    %286 = tpu.matmul %283, %285, %cst_283 {dimension_numbers = #tpu.dot_dimension_numbers<[1], [0], [0], [1], [0, 0, 1, 1], [], []>} : vector<14x128xbf16>, vector<128x128xbf16>, vector<14x128xf32> -> vector<14x128xf32>
    %287 = arith.addf %281, %286 : vector<14x128xf32>
    %c2_284 = arith.constant 2 : index
    %c0_285 = arith.constant 0 : index
    %288 = vector.load %arg42[%c2_284, %c0_285] : memref<16x128xf32, #tpu.memory_space<vmem>>, vector<14x128xf32>
    %289 = arith.truncf %288 : vector<14x128xf32> to vector<14x128xbf16>
    %c2_286 = arith.constant 2 : index
    %c0_287 = arith.constant 0 : index
    %c0_288 = arith.constant 0 : index
    %290 = vector.load %arg21[%c2_286, %c0_287, %c0_288] : memref<3x128x128xbf16, #tpu.memory_space<vmem>>, vector<1x128x128xbf16>
    %291 = vector.shape_cast %290 : vector<1x128x128xbf16> to vector<128x128xbf16>
    %cst_289 = arith.constant dense<0.000000e+00> : vector<14x128xf32>
    %292 = tpu.matmul %289, %291, %cst_289 {dimension_numbers = #tpu.dot_dimension_numbers<[1], [0], [0], [1], [0, 0, 1, 1], [], []>} : vector<14x128xbf16>, vector<128x128xbf16>, vector<14x128xf32> -> vector<14x128xf32>
    %293 = arith.addf %287, %292 : vector<14x128xf32>
    %c0_290 = arith.constant 0 : index
    %c0_291 = arith.constant 0 : index
    %294 = vector.load %arg22[%c0_290, %c0_291] : memref<1x128xf32, #tpu.memory_space<vmem>>, vector<1x128xf32>
    %295 = vector.broadcast %294 : vector<1x128xf32> to vector<14x128xf32>
    %296 = arith.addf %293, %295 : vector<14x128xf32>
    %cst_292 = arith.constant 0.000000e+00 : f32
    %297 = vector.broadcast %cst_292 : f32 to vector<14x128xf32>
    %298 = arith.maximumf %296, %297 : vector<14x128xf32>
    %c0_293 = arith.constant 0 : index
    %c0_294 = arith.constant 0 : index
    %299 = vector.load %arg30[%c0_293, %c0_294] : memref<14x1xf32, #tpu.memory_space<vmem>>, vector<14x1xf32>
    %300 = vector.broadcast %299 : vector<14x1xf32> to vector<14x128xf32>
    %301 = arith.mulf %298, %300 : vector<14x128xf32>
    %c1_295 = arith.constant 1 : index
    %c0_296 = arith.constant 0 : index
    %302 = vector.load %arg43[%c1_295, %c0_296] : memref<16x128xf32, #tpu.memory_space<vmem>>, vector<14x128xf32>
    tpu.vector_store %arg43[%c1_295, %c0_296], %301 {strides = array<i32>} : memref<16x128xf32, #tpu.memory_space<vmem>>, vector<14x128xf32>,
    %cst_297 = arith.constant 0.000000e+00 : f32
    %303 = vector.broadcast %cst_297 : f32 to vector<1x128xf32>
    %c0_298 = arith.constant 0 : index
    %c0_299 = arith.constant 0 : index
    %304 = vector.load %arg43[%c0_298, %c0_299] : memref<16x128xf32, #tpu.memory_space<vmem>>, vector<1x128xf32>
    tpu.vector_store %arg43[%c0_298, %c0_299], %303 {strides = array<i32>} : memref<16x128xf32, #tpu.memory_space<vmem>>, vector<1x128xf32>,
    %c15_300 = arith.constant 15 : index
    %c0_301 = arith.constant 0 : index
    %305 = vector.load %arg43[%c15_300, %c0_301] : memref<16x128xf32, #tpu.memory_space<vmem>>, vector<1x128xf32>
    tpu.vector_store %arg43[%c15_300, %c0_301], %303 {strides = array<i32>} : memref<16x128xf32, #tpu.memory_space<vmem>>, vector<1x128xf32>,
    %c0_302 = arith.constant 0 : index
    %c0_303 = arith.constant 0 : index
    %306 = vector.load %arg43[%c0_302, %c0_303] : memref<16x128xf32, #tpu.memory_space<vmem>>, vector<14x128xf32>
    %307 = arith.truncf %306 : vector<14x128xf32> to vector<14x128xbf16>
    %c0_304 = arith.constant 0 : index
    %c0_305 = arith.constant 0 : index
    %c0_306 = arith.constant 0 : index
    %308 = vector.load %arg23[%c0_304, %c0_305, %c0_306] : memref<3x128x128xbf16, #tpu.memory_space<vmem>>, vector<1x128x128xbf16>
    %309 = vector.shape_cast %308 : vector<1x128x128xbf16> to vector<128x128xbf16>
    %cst_307 = arith.constant dense<0.000000e+00> : vector<14x128xf32>
    %310 = tpu.matmul %307, %309, %cst_307 {dimension_numbers = #tpu.dot_dimension_numbers<[1], [0], [0], [1], [0, 0, 1, 1], [], []>} : vector<14x128xbf16>, vector<128x128xbf16>, vector<14x128xf32> -> vector<14x128xf32>
    %c1_308 = arith.constant 1 : index
    %c0_309 = arith.constant 0 : index
    %311 = vector.load %arg43[%c1_308, %c0_309] : memref<16x128xf32, #tpu.memory_space<vmem>>, vector<14x128xf32>
    %312 = arith.truncf %311 : vector<14x128xf32> to vector<14x128xbf16>
    %c1_310 = arith.constant 1 : index
    %c0_311 = arith.constant 0 : index
    %c0_312 = arith.constant 0 : index
    %313 = vector.load %arg23[%c1_310, %c0_311, %c0_312] : memref<3x128x128xbf16, #tpu.memory_space<vmem>>, vector<1x128x128xbf16>
    %314 = vector.shape_cast %313 : vector<1x128x128xbf16> to vector<128x128xbf16>
    %cst_313 = arith.constant dense<0.000000e+00> : vector<14x128xf32>
    %315 = tpu.matmul %312, %314, %cst_313 {dimension_numbers = #tpu.dot_dimension_numbers<[1], [0], [0], [1], [0, 0, 1, 1], [], []>} : vector<14x128xbf16>, vector<128x128xbf16>, vector<14x128xf32> -> vector<14x128xf32>
    %316 = arith.addf %310, %315 : vector<14x128xf32>
    %c2_314 = arith.constant 2 : index
    %c0_315 = arith.constant 0 : index
    %317 = vector.load %arg43[%c2_314, %c0_315] : memref<16x128xf32, #tpu.memory_space<vmem>>, vector<14x128xf32>
    %318 = arith.truncf %317 : vector<14x128xf32> to vector<14x128xbf16>
    %c2_316 = arith.constant 2 : index
    %c0_317 = arith.constant 0 : index
    %c0_318 = arith.constant 0 : index
    %319 = vector.load %arg23[%c2_316, %c0_317, %c0_318] : memref<3x128x128xbf16, #tpu.memory_space<vmem>>, vector<1x128x128xbf16>
    %320 = vector.shape_cast %319 : vector<1x128x128xbf16> to vector<128x128xbf16>
    %cst_319 = arith.constant dense<0.000000e+00> : vector<14x128xf32>
    %321 = tpu.matmul %318, %320, %cst_319 {dimension_numbers = #tpu.dot_dimension_numbers<[1], [0], [0], [1], [0, 0, 1, 1], [], []>} : vector<14x128xbf16>, vector<128x128xbf16>, vector<14x128xf32> -> vector<14x128xf32>
    %322 = arith.addf %316, %321 : vector<14x128xf32>
    %c0_320 = arith.constant 0 : index
    %c0_321 = arith.constant 0 : index
    %323 = vector.load %arg24[%c0_320, %c0_321] : memref<1x128xf32, #tpu.memory_space<vmem>>, vector<1x128xf32>
    %324 = vector.broadcast %323 : vector<1x128xf32> to vector<14x128xf32>
    %325 = arith.addf %322, %324 : vector<14x128xf32>
    %cst_322 = arith.constant 0.000000e+00 : f32
    %326 = vector.broadcast %cst_322 : f32 to vector<14x128xf32>
    %327 = arith.maximumf %325, %326 : vector<14x128xf32>
    %328 = vector.extract_strided_slice %327 {offsets = [0, 0], sizes = [2, 128], strides = [1, 1]} : vector<14x128xf32> to vector<2x128xf32>
    %c0_323 = arith.constant 0 : index
    %c0_324 = arith.constant 0 : index
    %329 = vector.load %arg31[%c0_323, %c0_324] : memref<8x128xf32, #tpu.memory_space<vmem>>, vector<2x128xf32>
    tpu.vector_store %arg31[%c0_323, %c0_324], %328 {strides = array<i32>} : memref<8x128xf32, #tpu.memory_space<vmem>>, vector<2x128xf32>,
    %330 = vector.extract_strided_slice %327 {offsets = [4, 0], sizes = [2, 128], strides = [1, 1]} : vector<14x128xf32> to vector<2x128xf32>
    %c2_325 = arith.constant 2 : index
    %c0_326 = arith.constant 0 : index
    %331 = vector.load %arg31[%c2_325, %c0_326] : memref<8x128xf32, #tpu.memory_space<vmem>>, vector<2x128xf32>
    tpu.vector_store %arg31[%c2_325, %c0_326], %330 {strides = array<i32>} : memref<8x128xf32, #tpu.memory_space<vmem>>, vector<2x128xf32>,
    %332 = vector.extract_strided_slice %327 {offsets = [8, 0], sizes = [2, 128], strides = [1, 1]} : vector<14x128xf32> to vector<2x128xf32>
    %c4 = arith.constant 4 : index
    %c0_327 = arith.constant 0 : index
    %333 = vector.load %arg31[%c4, %c0_327] : memref<8x128xf32, #tpu.memory_space<vmem>>, vector<2x128xf32>
    tpu.vector_store %arg31[%c4, %c0_327], %332 {strides = array<i32>} : memref<8x128xf32, #tpu.memory_space<vmem>>, vector<2x128xf32>,
    %334 = vector.extract_strided_slice %327 {offsets = [12, 0], sizes = [2, 128], strides = [1, 1]} : vector<14x128xf32> to vector<2x128xf32>
    %c6 = arith.constant 6 : index
    %c0_328 = arith.constant 0 : index
    %335 = vector.load %arg31[%c6, %c0_328] : memref<8x128xf32, #tpu.memory_space<vmem>>, vector<2x128xf32>
    tpu.vector_store %arg31[%c6, %c0_328], %334 {strides = array<i32>} : memref<8x128xf32, #tpu.memory_space<vmem>>, vector<2x128xf32>,
    return
  }
  func.func @transform_0(%arg0: i32) -> (i32, i32) {
    %c0_i32 = arith.constant 0 : i32
    %c0_i32_0 = arith.constant 0 : i32
    return %arg0, %c0_i32 : i32, i32
  }
  func.func @transform_1(%arg0: i32) -> (i32, i32, i32) {
    %c0_i32 = arith.constant 0 : i32
    %c0_i32_0 = arith.constant 0 : i32
    %c0_i32_1 = arith.constant 0 : i32
    %c0_i32_2 = arith.constant 0 : i32
    return %c0_i32, %c0_i32_0, %c0_i32_1 : i32, i32, i32
  }
  func.func @transform_2(%arg0: i32) -> (i32, i32) {
    %c0_i32 = arith.constant 0 : i32
    %c0_i32_0 = arith.constant 0 : i32
    %c0_i32_1 = arith.constant 0 : i32
    return %c0_i32, %c0_i32_0 : i32, i32
  }
  func.func @transform_3(%arg0: i32) -> (i32, i32, i32) {
    %c0_i32 = arith.constant 0 : i32
    %c0_i32_0 = arith.constant 0 : i32
    %c0_i32_1 = arith.constant 0 : i32
    %c0_i32_2 = arith.constant 0 : i32
    return %c0_i32, %c0_i32_0, %c0_i32_1 : i32, i32, i32
  }
  func.func @transform_4(%arg0: i32) -> (i32, i32) {
    %c0_i32 = arith.constant 0 : i32
    %c0_i32_0 = arith.constant 0 : i32
    %c0_i32_1 = arith.constant 0 : i32
    return %c0_i32, %c0_i32_0 : i32, i32
  }
  func.func @transform_5(%arg0: i32) -> (i32, i32, i32) {
    %c0_i32 = arith.constant 0 : i32
    %c0_i32_0 = arith.constant 0 : i32
    %c0_i32_1 = arith.constant 0 : i32
    %c0_i32_2 = arith.constant 0 : i32
    return %c0_i32, %c0_i32_0, %c0_i32_1 : i32, i32, i32
  }
  func.func @transform_6(%arg0: i32) -> (i32, i32, i32) {
    %c0_i32 = arith.constant 0 : i32
    %c0_i32_0 = arith.constant 0 : i32
    %c0_i32_1 = arith.constant 0 : i32
    %c0_i32_2 = arith.constant 0 : i32
    return %c0_i32, %c0_i32_0, %c0_i32_1 : i32, i32, i32
  }
  func.func @transform_7(%arg0: i32) -> (i32, i32) {
    %c0_i32 = arith.constant 0 : i32
    %c0_i32_0 = arith.constant 0 : i32
    %c0_i32_1 = arith.constant 0 : i32
    return %c0_i32, %c0_i32_0 : i32, i32
  }
  func.func @transform_8(%arg0: i32) -> (i32, i32, i32) {
    %c0_i32 = arith.constant 0 : i32
    %c0_i32_0 = arith.constant 0 : i32
    %c0_i32_1 = arith.constant 0 : i32
    %c0_i32_2 = arith.constant 0 : i32
    return %c0_i32, %c0_i32_0, %c0_i32_1 : i32, i32, i32
  }
  func.func @transform_9(%arg0: i32) -> (i32, i32) {
    %c0_i32 = arith.constant 0 : i32
    %c0_i32_0 = arith.constant 0 : i32
    %c0_i32_1 = arith.constant 0 : i32
    return %c0_i32, %c0_i32_0 : i32, i32
  }
  func.func @transform_10(%arg0: i32) -> (i32, i32, i32) {
    %c0_i32 = arith.constant 0 : i32
    %c0_i32_0 = arith.constant 0 : i32
    %c0_i32_1 = arith.constant 0 : i32
    %c0_i32_2 = arith.constant 0 : i32
    return %c0_i32, %c0_i32_0, %c0_i32_1 : i32, i32, i32
  }
  func.func @transform_11(%arg0: i32) -> (i32, i32, i32) {
    %c0_i32 = arith.constant 0 : i32
    %c0_i32_0 = arith.constant 0 : i32
    %c0_i32_1 = arith.constant 0 : i32
    %c0_i32_2 = arith.constant 0 : i32
    return %c0_i32, %c0_i32_0, %c0_i32_1 : i32, i32, i32
  }
  func.func @transform_12(%arg0: i32) -> (i32, i32) {
    %c0_i32 = arith.constant 0 : i32
    %c0_i32_0 = arith.constant 0 : i32
    %c0_i32_1 = arith.constant 0 : i32
    return %c0_i32, %c0_i32_0 : i32, i32
  }
  func.func @transform_13(%arg0: i32) -> (i32, i32, i32) {
    %c0_i32 = arith.constant 0 : i32
    %c0_i32_0 = arith.constant 0 : i32
    %c0_i32_1 = arith.constant 0 : i32
    %c0_i32_2 = arith.constant 0 : i32
    return %c0_i32, %c0_i32_0, %c0_i32_1 : i32, i32, i32
  }
  func.func @transform_14(%arg0: i32) -> (i32, i32) {
    %c0_i32 = arith.constant 0 : i32
    %c0_i32_0 = arith.constant 0 : i32
    %c0_i32_1 = arith.constant 0 : i32
    return %c0_i32, %c0_i32_0 : i32, i32
  }
  func.func @transform_15(%arg0: i32) -> (i32, i32, i32) {
    %c0_i32 = arith.constant 0 : i32
    %c0_i32_0 = arith.constant 0 : i32
    %c0_i32_1 = arith.constant 0 : i32
    %c0_i32_2 = arith.constant 0 : i32
    return %c0_i32, %c0_i32_0, %c0_i32_1 : i32, i32, i32
  }
  func.func @transform_16(%arg0: i32) -> (i32, i32) {
    %c0_i32 = arith.constant 0 : i32
    %c0_i32_0 = arith.constant 0 : i32
    %c0_i32_1 = arith.constant 0 : i32
    return %c0_i32, %c0_i32_0 : i32, i32
  }
  func.func @transform_17(%arg0: i32) -> (i32, i32, i32) {
    %c0_i32 = arith.constant 0 : i32
    %c0_i32_0 = arith.constant 0 : i32
    %c0_i32_1 = arith.constant 0 : i32
    %c0_i32_2 = arith.constant 0 : i32
    return %c0_i32, %c0_i32_0, %c0_i32_1 : i32, i32, i32
  }
  func.func @transform_18(%arg0: i32) -> (i32, i32, i32) {
    %c0_i32 = arith.constant 0 : i32
    %c0_i32_0 = arith.constant 0 : i32
    %c0_i32_1 = arith.constant 0 : i32
    %c0_i32_2 = arith.constant 0 : i32
    return %c0_i32, %c0_i32_0, %c0_i32_1 : i32, i32, i32
  }
  func.func @transform_19(%arg0: i32) -> (i32, i32) {
    %c0_i32 = arith.constant 0 : i32
    %c0_i32_0 = arith.constant 0 : i32
    %c0_i32_1 = arith.constant 0 : i32
    return %c0_i32, %c0_i32_0 : i32, i32
  }
  func.func @transform_20(%arg0: i32) -> (i32, i32, i32) {
    %c0_i32 = arith.constant 0 : i32
    %c0_i32_0 = arith.constant 0 : i32
    %c0_i32_1 = arith.constant 0 : i32
    %c0_i32_2 = arith.constant 0 : i32
    return %c0_i32, %c0_i32_0, %c0_i32_1 : i32, i32, i32
  }
  func.func @transform_21(%arg0: i32) -> (i32, i32) {
    %c0_i32 = arith.constant 0 : i32
    %c0_i32_0 = arith.constant 0 : i32
    %c0_i32_1 = arith.constant 0 : i32
    return %c0_i32, %c0_i32_0 : i32, i32
  }
  func.func @transform_22(%arg0: i32) -> (i32, i32, i32) {
    %c0_i32 = arith.constant 0 : i32
    %c0_i32_0 = arith.constant 0 : i32
    %c0_i32_1 = arith.constant 0 : i32
    %c0_i32_2 = arith.constant 0 : i32
    return %c0_i32, %c0_i32_0, %c0_i32_1 : i32, i32, i32
  }
  func.func @transform_23(%arg0: i32) -> (i32, i32) {
    %c0_i32 = arith.constant 0 : i32
    %c0_i32_0 = arith.constant 0 : i32
    %c0_i32_1 = arith.constant 0 : i32
    return %c0_i32, %c0_i32_0 : i32, i32
  }
  func.func @transform_24(%arg0: i32) -> (i32, i32) {
    %c0_i32 = arith.constant 0 : i32
    %c0_i32_0 = arith.constant 0 : i32
    %c0_i32_1 = arith.constant 0 : i32
    return %c0_i32, %c0_i32_0 : i32, i32
  }
  func.func @transform_25(%arg0: i32) -> (i32, i32) {
    %c0_i32 = arith.constant 0 : i32
    %c0_i32_0 = arith.constant 0 : i32
    %c0_i32_1 = arith.constant 0 : i32
    return %c0_i32, %c0_i32_0 : i32, i32
  }
  func.func @transform_26(%arg0: i32) -> (i32, i32) {
    %c0_i32 = arith.constant 0 : i32
    %c0_i32_0 = arith.constant 0 : i32
    %c0_i32_1 = arith.constant 0 : i32
    return %c0_i32, %c0_i32_0 : i32, i32
  }
  func.func @transform_27(%arg0: i32) -> (i32, i32) {
    %c0_i32 = arith.constant 0 : i32
    %c0_i32_0 = arith.constant 0 : i32
    %c0_i32_1 = arith.constant 0 : i32
    return %c0_i32, %c0_i32_0 : i32, i32
  }
  func.func @transform_28(%arg0: i32) -> (i32, i32) {
    %c0_i32 = arith.constant 0 : i32
    %c0_i32_0 = arith.constant 0 : i32
    %c0_i32_1 = arith.constant 0 : i32
    return %c0_i32, %c0_i32_0 : i32, i32
  }
  func.func @transform_29(%arg0: i32) -> (i32, i32) {
    %c0_i32 = arith.constant 0 : i32
    %c0_i32_0 = arith.constant 0 : i32
    %c0_i32_1 = arith.constant 0 : i32
    return %c0_i32, %c0_i32_0 : i32, i32
  }
  func.func @transform_30(%arg0: i32) -> (i32, i32) {
    %c0_i32 = arith.constant 0 : i32
    %c0_i32_0 = arith.constant 0 : i32
    return %arg0, %c0_i32 : i32, i32
  }
}

</mosaic_0001>

<llo_original>
// kernel: forward.1
$region0: #{forward.1}
  #allocation0 [shape = 'u32[]', space=smem, size = 0x4, offset = 0x4, fixed_abs, tag = 'smem constant byte address 0x4 - core index']
  #allocation1 [shape = 'u32[144,128]{1,0:T(1,128)}', space=vmem, size = 0x12000, scoped, tag = 'internal scratch']
  #allocation2 [shape = 'f32[72,128]{1,0:T(8,128)}', space=vmem, size = 0x9000, scoped, tag = 'scratch operand']
  #allocation3 [shape = 'f32[72,64]{1,0:T(8,128)}', space=vmem, size = 0x9000, scoped, tag = 'scratch operand']
  #allocation4 [shape = 'f32[40,64]{1,0:T(8,128)}', space=vmem, size = 0x5000, scoped, tag = 'scratch operand']
  #allocation5 [shape = 'f32[40,128]{1,0:T(8,128)}', space=vmem, size = 0x5000, scoped, tag = 'scratch operand']
  #allocation6 [shape = 'f32[40,64]{1,0:T(8,128)}', space=vmem, size = 0x5000, scoped, tag = 'scratch operand']
  #allocation7 [shape = 'f32[24,64]{1,0:T(8,128)}', space=vmem, size = 0x3000, scoped, tag = 'scratch operand']
  #allocation8 [shape = 'f32[24,128]{1,0:T(8,128)}', space=vmem, size = 0x3000, scoped, tag = 'scratch operand']
  #allocation9 [shape = 'f32[24,128]{1,0:T(8,128)}', space=vmem, size = 0x3000, scoped, tag = 'scratch operand']
  #allocation10 [shape = 'f32[24,64]{1,0:T(8,128)}', space=vmem, size = 0x3000, scoped, tag = 'scratch operand']
  #allocation11 [shape = 'f32[16,64]{1,0:T(8,128)}', space=vmem, size = 0x2000, scoped, tag = 'scratch operand']
  #allocation12 [shape = 'f32[16,128]{1,0:T(8,128)}', space=vmem, size = 0x2000, scoped, tag = 'scratch operand']
  #allocation13 [shape = 'f32[16,128]{1,0:T(8,128)}', space=vmem, size = 0x2000, scoped, tag = 'scratch operand']
  %s0 = inlined_call_operand.smem [shape: u32[31], index: -1, kind: input, shape index: {}]
  %s1 = sld [smem:[%s0]]
  %s2 = scalar_lea.smem %s0, 1
  %s3 = sld [smem:[%s2]]
  %s4 = scalar_lea.smem %s0, 2
  %s5 = sld [smem:[%s4]]
  %s6 = scalar_lea.smem %s0, 3
  %s7 = sld [smem:[%s6]]
  %s8 = scalar_lea.smem %s0, 4
  %s9 = sld [smem:[%s8]]
  %s10 = scalar_lea.smem %s0, 5
  %s11 = sld [smem:[%s10]]
  %s12 = scalar_lea.smem %s0, 6
  %s13 = sld [smem:[%s12]]
  %s14 = scalar_lea.smem %s0, 7
  %s15 = sld [smem:[%s14]]
  %s16 = scalar_lea.smem %s0, 8
  %s17 = sld [smem:[%s16]]
  %s18 = scalar_lea.smem %s0, 9
  %s19 = sld [smem:[%s18]]
  %s20 = scalar_lea.smem %s0, 10
  %s21 = sld [smem:[%s20]]
  %s22 = scalar_lea.smem %s0, 11
  %s23 = sld [smem:[%s22]]
  %s24 = scalar_lea.smem %s0, 12
  %s25 = sld [smem:[%s24]]
  %s26 = scalar_lea.smem %s0, 13
  %s27 = sld [smem:[%s26]]
  %s28 = scalar_lea.smem %s0, 14
  %s29 = sld [smem:[%s28]]
  %s30 = scalar_lea.smem %s0, 15
  %s31 = sld [smem:[%s30]]
  %s32 = scalar_lea.smem %s0, 16
  %s33 = sld [smem:[%s32]]
  %s34 = scalar_lea.smem %s0, 17
  %s35 = sld [smem:[%s34]]
  %s36 = scalar_lea.smem %s0, 18
  %s37 = sld [smem:[%s36]]
  %s38 = scalar_lea.smem %s0, 19
  %s39 = sld [smem:[%s38]]
  %s40 = scalar_lea.smem %s0, 20
  %s41 = sld [smem:[%s40]]
  %s42 = scalar_lea.smem %s0, 21
  %s43 = sld [smem:[%s42]]
  %s44 = scalar_lea.smem %s0, 22
  %s45 = sld [smem:[%s44]]
  %s46 = scalar_lea.smem %s0, 23
  %s47 = sld [smem:[%s46]]
  %s48 = scalar_lea.smem %s0, 24
  %s49 = sld [smem:[%s48]]
  %s50 = scalar_lea.smem %s0, 25
  %s51 = sld [smem:[%s50]]
  %s52 = scalar_lea.smem %s0, 26
  %s53 = sld [smem:[%s52]]
  %s54 = scalar_lea.smem %s0, 27
  %s55 = sld [smem:[%s54]]
  %s56 = scalar_lea.smem %s0, 28
  %s57 = sld [smem:[%s56]]
  %s58 = scalar_lea.smem %s0, 29
  %s59 = sld [smem:[%s58]]
  %s60 = scalar_lea.smem %s0, 30
  %s61 = sld [smem:[%s60]]
  %s62 = sld [smem:[#allocation0]]
  $region153: #{forward.1} parent=0
    _
  %s64 = ssub.s32 1, %s62
  %s65 = scalar_select 0, %s64, %s62
  loop: start=0, step=1, limit=4
  $region2: #{forward.1} parent=0 // loop_pre_header
    _
  $region3: #{forward.1} parent=0 // loop_header
    %s67 = sphi 0, %s71
    %p68 = scmp.ge.s32.totalorder %s67, 4
    %s77 = sphi 0, %s79
    %s80 = sphi 0, %s77
    %s81 = sphi 0, %s80
    %s97 = sphi 0, %s81
    %s101 = sphi 0, %s101
    %s103 = sphi 0, %s101
    %s104 = sphi 0, %s103
    %s118 = sphi 0, %s104
    %s122 = sphi 0, %s122
    %s124 = sphi 0, %s122
    %s125 = sphi 0, %s124
    %s139 = sphi 0, %s125
    %s143 = sphi 0, %s143
    %s145 = sphi 0, %s143
    %s146 = sphi 0, %s145
    %s160 = sphi 0, %s146
    %s164 = sphi 0, %s164
    %s166 = sphi 0, %s164
    %s167 = sphi 0, %s166
    %s181 = sphi 0, %s167
    %s185 = sphi 0, %s185
    %s187 = sphi 0, %s185
    %s188 = sphi 0, %s187
    %s202 = sphi 0, %s188
    %s206 = sphi 0, %s206
    %s208 = sphi 0, %s206
    %s209 = sphi 0, %s208
    %s223 = sphi 0, %s209
    %s227 = sphi 0, %s227
    %s229 = sphi 0, %s227
    %s230 = sphi 0, %s229
    %s244 = sphi 0, %s230
    %s248 = sphi 0, %s248
    %s250 = sphi 0, %s248
    %s251 = sphi 0, %s250
    %s265 = sphi 0, %s251
    %s269 = sphi 0, %s269
    %s271 = sphi 0, %s269
    %s272 = sphi 0, %s271
    %s286 = sphi 0, %s272
    %s290 = sphi 0, %s290
    %s292 = sphi 0, %s290
    %s293 = sphi 0, %s292
    %s307 = sphi 0, %s293
    %s311 = sphi 0, %s311
    %s313 = sphi 0, %s311
    %s314 = sphi 0, %s313
    %s328 = sphi 0, %s314
    %s332 = sphi 0, %s332
    %s334 = sphi 0, %s332
    %s335 = sphi 0, %s334
    %s349 = sphi 0, %s335
    %s353 = sphi 0, %s353
    %s355 = sphi 0, %s353
    %s356 = sphi 0, %s355
    %s370 = sphi 0, %s356
    %s374 = sphi 0, %s374
    %s376 = sphi 0, %s374
    %s377 = sphi 0, %s376
    %s391 = sphi 0, %s377
    %s395 = sphi 0, %s395
    %s397 = sphi 0, %s395
    %s398 = sphi 0, %s397
    %s412 = sphi 0, %s398
    %s416 = sphi 0, %s416
    %s418 = sphi 0, %s416
    %s419 = sphi 0, %s418
    %s433 = sphi 0, %s419
    %s437 = sphi 0, %s437
    %s439 = sphi 0, %s437
    %s440 = sphi 0, %s439
    %s454 = sphi 0, %s440
    %s458 = sphi 0, %s458
    %s460 = sphi 0, %s458
    %s461 = sphi 0, %s460
    %s475 = sphi 0, %s461
    %s479 = sphi 0, %s479
    %s481 = sphi 0, %s479
    %s482 = sphi 0, %s481
    %s496 = sphi 0, %s482
    %s500 = sphi 0, %s500
    %s502 = sphi 0, %s500
    %s503 = sphi 0, %s502
    %s517 = sphi 0, %s503
    %s521 = sphi 0, %s521
    %s523 = sphi 0, %s521
    %s524 = sphi 0, %s523
    %s538 = sphi 0, %s524
    %s542 = sphi 0, %s542
    %s544 = sphi 0, %s542
    %s545 = sphi 0, %s544
    %s559 = sphi 0, %s545
    %s563 = sphi 0, %s563
    %s565 = sphi 0, %s563
    %s566 = sphi 0, %s565
    %s580 = sphi 0, %s566
    %s584 = sphi 0, %s584
    %s586 = sphi 0, %s584
    %s587 = sphi 0, %s586
    %s601 = sphi 0, %s587
    %s605 = sphi 0, %s605
    %s607 = sphi 0, %s605
    %s608 = sphi 0, %s607
    %s622 = sphi 0, %s608
    %s626 = sphi 0, %s626
    %s628 = sphi 0, %s626
    %s629 = sphi 0, %s628
    %s643 = sphi 0, %s629
    %s647 = sphi 0, %s647
    %s649 = sphi 0, %s647
    %s650 = sphi 0, %s649
    %s664 = sphi 0, %s650
    %s668 = sphi 0, %s668
    %s670 = sphi 0, %s668
    %s671 = sphi 0, %s670
    %s685 = sphi 0, %s671
    %s689 = sphi 0, %s689
    %s691 = sphi 0, %s689
    %s692 = sphi 0, %s691
    %s706 = sphi 0, %s692
    %s712 = sphi 0, %s714
    %s715 = sphi 0, %s712
    %s716 = sphi 0, %s715
    %s732 = sphi 0, %s716
  $region4: #{forward.1} parent=0 // loop_header_branch
    %70 = sbr.rel (%p68) target = $region8
  $region5: #{forward.1} parent=0 // loop_body
    %s72 = ssub.s32 %s67, 1
    %s73 = ssub.s32 %s67, 2
    %s74 = sadd.s32 %s67, 1
    %s75 = ssub.s32 %s67, %s74
    %p76 = scmp.eq.s32.totalorder %s75, 0
    %s78 = sadd.s32 %s77, 1
    %s79 = scalar_select %p76, %s77, %s78
    %p82 = pneg %p76
    %p83 = scmp.eq.s32.totalorder %s67, 1
    %p84 = por %p82, %p83
    %p85 = scmp.ne.s32.totalorder %s77, %s80
    %p86 = scmp.eq.s32.totalorder %s67, 0
    %p87 = por %p85, %p86
    %p88 = scmp.ne.s32.totalorder %s77, %s80
    %p89 = scmp.eq.s32.totalorder %s72, 1
    %p90 = por %p88, %p89
    %p91 = scmp.ne.s32.totalorder %s80, %s81
    %p92 = scmp.eq.s32.totalorder %s72, 0
    %p93 = por %p91, %p92
    %p94 = scmp.ne.s32.totalorder %s80, %s81
    %p95 = scmp.eq.s32.totalorder %s73, 1
    %p96 = por %p94, %p95
    %p98 = scmp.ne.s32.totalorder %s81, %s97
    %p99 = scmp.eq.s32.totalorder %s73, 0
    %p100 = por %p98, %p99
    %s102 = sadd.s32 %s101, 1
    %p105 = scmp.eq.s32.totalorder %s67, 1
    %p106 = scmp.ne.s32.totalorder %s101, %s103
    %p107 = scmp.eq.s32.totalorder %s67, 0
    %p108 = por %p106, %p107
    %p109 = scmp.ne.s32.totalorder %s101, %s103
    %p110 = scmp.eq.s32.totalorder %s72, 1
    %p111 = por %p109, %p110
    %p112 = scmp.ne.s32.totalorder %s103, %s104
    %p113 = scmp.eq.s32.totalorder %s72, 0
    %p114 = por %p112, %p113
    %p115 = scmp.ne.s32.totalorder %s103, %s104
    %p116 = scmp.eq.s32.totalorder %s73, 1
    %p117 = por %p115, %p116
    %p119 = scmp.ne.s32.totalorder %s104, %s118
    %p120 = scmp.eq.s32.totalorder %s73, 0
    %p121 = por %p119, %p120
    %s123 = sadd.s32 %s122, 1
    %p126 = scmp.eq.s32.totalorder %s67, 1
    %p127 = scmp.ne.s32.totalorder %s122, %s124
    %p128 = scmp.eq.s32.totalorder %s67, 0
    %p129 = por %p127, %p128
    %p130 = scmp.ne.s32.totalorder %s122, %s124
    %p131 = scmp.eq.s32.totalorder %s72, 1
    %p132 = por %p130, %p131
    %p133 = scmp.ne.s32.totalorder %s124, %s125
    %p134 = scmp.eq.s32.totalorder %s72, 0
    %p135 = por %p133, %p134
    %p136 = scmp.ne.s32.totalorder %s124, %s125
    %p137 = scmp.eq.s32.totalorder %s73, 1
    %p138 = por %p136, %p137
    %p140 = scmp.ne.s32.totalorder %s125, %s139
    %p141 = scmp.eq.s32.totalorder %s73, 0
    %p142 = por %p140, %p141
    %s144 = sadd.s32 %s143, 1
    %p147 = scmp.eq.s32.totalorder %s67, 1
    %p148 = scmp.ne.s32.totalorder %s143, %s145
    %p149 = scmp.eq.s32.totalorder %s67, 0
    %p150 = por %p148, %p149
    %p151 = scmp.ne.s32.totalorder %s143, %s145
    %p152 = scmp.eq.s32.totalorder %s72, 1
    %p153 = por %p151, %p152
    %p154 = scmp.ne.s32.totalorder %s145, %s146
    %p155 = scmp.eq.s32.totalorder %s72, 0
    %p156 = por %p154, %p155
    %p157 = scmp.ne.s32.totalorder %s145, %s146
    %p158 = scmp.eq.s32.totalorder %s73, 1
    %p159 = por %p157, %p158
    %p161 = scmp.ne.s32.totalorder %s146, %s160
    %p162 = scmp.eq.s32.totalorder %s73, 0
    %p163 = por %p161, %p162
    %s165 = sadd.s32 %s164, 1
    %p168 = scmp.eq.s32.totalorder %s67, 1
    %p169 = scmp.ne.s32.totalorder %s164, %s166
    %p170 = scmp.eq.s32.totalorder %s67, 0
    %p171 = por %p169, %p170
    %p172 = scmp.ne.s32.totalorder %s164, %s166
    %p173 = scmp.eq.s32.totalorder %s72, 1
    %p174 = por %p172, %p173
    %p175 = scmp.ne.s32.totalorder %s166, %s167
    %p176 = scmp.eq.s32.totalorder %s72, 0
    %p177 = por %p175, %p176
    %p178 = scmp.ne.s32.totalorder %s166, %s167
    %p179 = scmp.eq.s32.totalorder %s73, 1
    %p180 = por %p178, %p179
    %p182 = scmp.ne.s32.totalorder %s167, %s181
    %p183 = scmp.eq.s32.totalorder %s73, 0
    %p184 = por %p182, %p183
    %s186 = sadd.s32 %s185, 1
    %p189 = scmp.eq.s32.totalorder %s67, 1
    %p190 = scmp.ne.s32.totalorder %s185, %s187
    %p191 = scmp.eq.s32.totalorder %s67, 0
    %p192 = por %p190, %p191
    %p193 = scmp.ne.s32.totalorder %s185, %s187
    %p194 = scmp.eq.s32.totalorder %s72, 1
    %p195 = por %p193, %p194
    %p196 = scmp.ne.s32.totalorder %s187, %s188
    %p197 = scmp.eq.s32.totalorder %s72, 0
    %p198 = por %p196, %p197
    %p199 = scmp.ne.s32.totalorder %s187, %s188
    %p200 = scmp.eq.s32.totalorder %s73, 1
    %p201 = por %p199, %p200
    %p203 = scmp.ne.s32.totalorder %s188, %s202
    %p204 = scmp.eq.s32.totalorder %s73, 0
    %p205 = por %p203, %p204
    %s207 = sadd.s32 %s206, 1
    %p210 = scmp.eq.s32.totalorder %s67, 1
    %p211 = scmp.ne.s32.totalorder %s206, %s208
    %p212 = scmp.eq.s32.totalorder %s67, 0
    %p213 = por %p211, %p212
    %p214 = scmp.ne.s32.totalorder %s206, %s208
    %p215 = scmp.eq.s32.totalorder %s72, 1
    %p216 = por %p214, %p215
    %p217 = scmp.ne.s32.totalorder %s208, %s209
    %p218 = scmp.eq.s32.totalorder %s72, 0
    %p219 = por %p217, %p218
    %p220 = scmp.ne.s32.totalorder %s208, %s209
    %p221 = scmp.eq.s32.totalorder %s73, 1
    %p222 = por %p220, %p221
    %p224 = scmp.ne.s32.totalorder %s209, %s223
    %p225 = scmp.eq.s32.totalorder %s73, 0
    %p226 = por %p224, %p225
    %s228 = sadd.s32 %s227, 1
    %p231 = scmp.eq.s32.totalorder %s67, 1
    %p232 = scmp.ne.s32.totalorder %s227, %s229
    %p233 = scmp.eq.s32.totalorder %s67, 0
    %p234 = por %p232, %p233
    %p235 = scmp.ne.s32.totalorder %s227, %s229
    %p236 = scmp.eq.s32.totalorder %s72, 1
    %p237 = por %p235, %p236
    %p238 = scmp.ne.s32.totalorder %s229, %s230
    %p239 = scmp.eq.s32.totalorder %s72, 0
    %p240 = por %p238, %p239
    %p241 = scmp.ne.s32.totalorder %s229, %s230
    %p242 = scmp.eq.s32.totalorder %s73, 1
    %p243 = por %p241, %p242
    %p245 = scmp.ne.s32.totalorder %s230, %s244
    %p246 = scmp.eq.s32.totalorder %s73, 0
    %p247 = por %p245, %p246
    %s249 = sadd.s32 %s248, 1
    %p252 = scmp.eq.s32.totalorder %s67, 1
    %p253 = scmp.ne.s32.totalorder %s248, %s250
    %p254 = scmp.eq.s32.totalorder %s67, 0
    %p255 = por %p253, %p254
    %p256 = scmp.ne.s32.totalorder %s248, %s250
    %p257 = scmp.eq.s32.totalorder %s72, 1
    %p258 = por %p256, %p257
    %p259 = scmp.ne.s32.totalorder %s250, %s251
    %p260 = scmp.eq.s32.totalorder %s72, 0
    %p261 = por %p259, %p260
    %p262 = scmp.ne.s32.totalorder %s250, %s251
    %p263 = scmp.eq.s32.totalorder %s73, 1
    %p264 = por %p262, %p263
    %p266 = scmp.ne.s32.totalorder %s251, %s265
    %p267 = scmp.eq.s32.totalorder %s73, 0
    %p268 = por %p266, %p267
    %s270 = sadd.s32 %s269, 1
    %p273 = scmp.eq.s32.totalorder %s67, 1
    %p274 = scmp.ne.s32.totalorder %s269, %s271
    %p275 = scmp.eq.s32.totalorder %s67, 0
    %p276 = por %p274, %p275
    %p277 = scmp.ne.s32.totalorder %s269, %s271
    %p278 = scmp.eq.s32.totalorder %s72, 1
    %p279 = por %p277, %p278
    %p280 = scmp.ne.s32.totalorder %s271, %s272
    %p281 = scmp.eq.s32.totalorder %s72, 0
    %p282 = por %p280, %p281
    %p283 = scmp.ne.s32.totalorder %s271, %s272
    %p284 = scmp.eq.s32.totalorder %s73, 1
    %p285 = por %p283, %p284
    %p287 = scmp.ne.s32.totalorder %s272, %s286
    %p288 = scmp.eq.s32.totalorder %s73, 0
    %p289 = por %p287, %p288
    %s291 = sadd.s32 %s290, 1
    %p294 = scmp.eq.s32.totalorder %s67, 1
    %p295 = scmp.ne.s32.totalorder %s290, %s292
    %p296 = scmp.eq.s32.totalorder %s67, 0
    %p297 = por %p295, %p296
    %p298 = scmp.ne.s32.totalorder %s290, %s292
    %p299 = scmp.eq.s32.totalorder %s72, 1
    %p300 = por %p298, %p299
    %p301 = scmp.ne.s32.totalorder %s292, %s293
    %p302 = scmp.eq.s32.totalorder %s72, 0
    %p303 = por %p301, %p302
    %p304 = scmp.ne.s32.totalorder %s292, %s293
    %p305 = scmp.eq.s32.totalorder %s73, 1
    %p306 = por %p304, %p305
    %p308 = scmp.ne.s32.totalorder %s293, %s307
    %p309 = scmp.eq.s32.totalorder %s73, 0
    %p310 = por %p308, %p309
    %s312 = sadd.s32 %s311, 1
    %p315 = scmp.eq.s32.totalorder %s67, 1
    %p316 = scmp.ne.s32.totalorder %s311, %s313
    %p317 = scmp.eq.s32.totalorder %s67, 0
    %p318 = por %p316, %p317
    %p319 = scmp.ne.s32.totalorder %s311, %s313
    %p320 = scmp.eq.s32.totalorder %s72, 1
    %p321 = por %p319, %p320
    %p322 = scmp.ne.s32.totalorder %s313, %s314
    %p323 = scmp.eq.s32.totalorder %s72, 0
    %p324 = por %p322, %p323
    %p325 = scmp.ne.s32.totalorder %s313, %s314
    %p326 = scmp.eq.s32.totalorder %s73, 1
    %p327 = por %p325, %p326
    %p329 = scmp.ne.s32.totalorder %s314, %s328
    %p330 = scmp.eq.s32.totalorder %s73, 0
    %p331 = por %p329, %p330
    %s333 = sadd.s32 %s332, 1
    %p336 = scmp.eq.s32.totalorder %s67, 1
    %p337 = scmp.ne.s32.totalorder %s332, %s334
    %p338 = scmp.eq.s32.totalorder %s67, 0
    %p339 = por %p337, %p338
    %p340 = scmp.ne.s32.totalorder %s332, %s334
    %p341 = scmp.eq.s32.totalorder %s72, 1
    %p342 = por %p340, %p341
    %p343 = scmp.ne.s32.totalorder %s334, %s335
    %p344 = scmp.eq.s32.totalorder %s72, 0
    %p345 = por %p343, %p344
    %p346 = scmp.ne.s32.totalorder %s334, %s335
    %p347 = scmp.eq.s32.totalorder %s73, 1
    %p348 = por %p346, %p347
    %p350 = scmp.ne.s32.totalorder %s335, %s349
    %p351 = scmp.eq.s32.totalorder %s73, 0
    %p352 = por %p350, %p351
    %s354 = sadd.s32 %s353, 1
    %p357 = scmp.eq.s32.totalorder %s67, 1
    %p358 = scmp.ne.s32.totalorder %s353, %s355
    %p359 = scmp.eq.s32.totalorder %s67, 0
    %p360 = por %p358, %p359
    %p361 = scmp.ne.s32.totalorder %s353, %s355
    %p362 = scmp.eq.s32.totalorder %s72, 1
    %p363 = por %p361, %p362
    %p364 = scmp.ne.s32.totalorder %s355, %s356
    %p365 = scmp.eq.s32.totalorder %s72, 0
    %p366 = por %p364, %p365
    %p367 = scmp.ne.s32.totalorder %s355, %s356
    %p368 = scmp.eq.s32.totalorder %s73, 1
    %p369 = por %p367, %p368
    %p371 = scmp.ne.s32.totalorder %s356, %s370
    %p372 = scmp.eq.s32.totalorder %s73, 0
    %p373 = por %p371, %p372
    %s375 = sadd.s32 %s374, 1
    %p378 = scmp.eq.s32.totalorder %s67, 1
    %p379 = scmp.ne.s32.totalorder %s374, %s376
    %p380 = scmp.eq.s32.totalorder %s67, 0
    %p381 = por %p379, %p380
    %p382 = scmp.ne.s32.totalorder %s374, %s376
    %p383 = scmp.eq.s32.totalorder %s72, 1
    %p384 = por %p382, %p383
    %p385 = scmp.ne.s32.totalorder %s376, %s377
    %p386 = scmp.eq.s32.totalorder %s72, 0
    %p387 = por %p385, %p386
    %p388 = scmp.ne.s32.totalorder %s376, %s377
    %p389 = scmp.eq.s32.totalorder %s73, 1
    %p390 = por %p388, %p389
    %p392 = scmp.ne.s32.totalorder %s377, %s391
    %p393 = scmp.eq.s32.totalorder %s73, 0
    %p394 = por %p392, %p393
    %s396 = sadd.s32 %s395, 1
    %p399 = scmp.eq.s32.totalorder %s67, 1
    %p400 = scmp.ne.s32.totalorder %s395, %s397
    %p401 = scmp.eq.s32.totalorder %s67, 0
    %p402 = por %p400, %p401
    %p403 = scmp.ne.s32.totalorder %s395, %s397
    %p404 = scmp.eq.s32.totalorder %s72, 1
    %p405 = por %p403, %p404
    %p406 = scmp.ne.s32.totalorder %s397, %s398
    %p407 = scmp.eq.s32.totalorder %s72, 0
    %p408 = por %p406, %p407
    %p409 = scmp.ne.s32.totalorder %s397, %s398
    %p410 = scmp.eq.s32.totalorder %s73, 1
    %p411 = por %p409, %p410
    %p413 = scmp.ne.s32.totalorder %s398, %s412
    %p414 = scmp.eq.s32.totalorder %s73, 0
    %p415 = por %p413, %p414
    %s417 = sadd.s32 %s416, 1
    %p420 = scmp.eq.s32.totalorder %s67, 1
    %p421 = scmp.ne.s32.totalorder %s416, %s418
    %p422 = scmp.eq.s32.totalorder %s67, 0
    %p423 = por %p421, %p422
    %p424 = scmp.ne.s32.totalorder %s416, %s418
    %p425 = scmp.eq.s32.totalorder %s72, 1
    %p426 = por %p424, %p425
    %p427 = scmp.ne.s32.totalorder %s418, %s419
    %p428 = scmp.eq.s32.totalorder %s72, 0
    %p429 = por %p427, %p428
    %p430 = scmp.ne.s32.totalorder %s418, %s419
    %p431 = scmp.eq.s32.totalorder %s73, 1
    %p432 = por %p430, %p431
    %p434 = scmp.ne.s32.totalorder %s419, %s433
    %p435 = scmp.eq.s32.totalorder %s73, 0
    %p436 = por %p434, %p435
    %s438 = sadd.s32 %s437, 1
    %p441 = scmp.eq.s32.totalorder %s67, 1
    %p442 = scmp.ne.s32.totalorder %s437, %s439
    %p443 = scmp.eq.s32.totalorder %s67, 0
    %p444 = por %p442, %p443
    %p445 = scmp.ne.s32.totalorder %s437, %s439
    %p446 = scmp.eq.s32.totalorder %s72, 1
    %p447 = por %p445, %p446
    %p448 = scmp.ne.s32.totalorder %s439, %s440
    %p449 = scmp.eq.s32.totalorder %s72, 0
    %p450 = por %p448, %p449
    %p451 = scmp.ne.s32.totalorder %s439, %s440
    %p452 = scmp.eq.s32.totalorder %s73, 1
    %p453 = por %p451, %p452
    %p455 = scmp.ne.s32.totalorder %s440, %s454
    %p456 = scmp.eq.s32.totalorder %s73, 0
    %p457 = por %p455, %p456
    %s459 = sadd.s32 %s458, 1
    %p462 = scmp.eq.s32.totalorder %s67, 1
    %p463 = scmp.ne.s32.totalorder %s458, %s460
    %p464 = scmp.eq.s32.totalorder %s67, 0
    %p465 = por %p463, %p464
    %p466 = scmp.ne.s32.totalorder %s458, %s460
    %p467 = scmp.eq.s32.totalorder %s72, 1
    %p468 = por %p466, %p467
    %p469 = scmp.ne.s32.totalorder %s460, %s461
    %p470 = scmp.eq.s32.totalorder %s72, 0
    %p471 = por %p469, %p470
    %p472 = scmp.ne.s32.totalorder %s460, %s461
    %p473 = scmp.eq.s32.totalorder %s73, 1
    %p474 = por %p472, %p473
    %p476 = scmp.ne.s32.totalorder %s461, %s475
    %p477 = scmp.eq.s32.totalorder %s73, 0
    %p478 = por %p476, %p477
    %s480 = sadd.s32 %s479, 1
    %p483 = scmp.eq.s32.totalorder %s67, 1
    %p484 = scmp.ne.s32.totalorder %s479, %s481
    %p485 = scmp.eq.s32.totalorder %s67, 0
    %p486 = por %p484, %p485
    %p487 = scmp.ne.s32.totalorder %s479, %s481
    %p488 = scmp.eq.s32.totalorder %s72, 1
    %p489 = por %p487, %p488
    %p490 = scmp.ne.s32.totalorder %s481, %s482
    %p491 = scmp.eq.s32.totalorder %s72, 0
    %p492 = por %p490, %p491
    %p493 = scmp.ne.s32.totalorder %s481, %s482
    %p494 = scmp.eq.s32.totalorder %s73, 1
    %p495 = por %p493, %p494
    %p497 = scmp.ne.s32.totalorder %s482, %s496
    %p498 = scmp.eq.s32.totalorder %s73, 0
    %p499 = por %p497, %p498
    %s501 = sadd.s32 %s500, 1
    %p504 = scmp.eq.s32.totalorder %s67, 1
    %p505 = scmp.ne.s32.totalorder %s500, %s502
    %p506 = scmp.eq.s32.totalorder %s67, 0
    %p507 = por %p505, %p506
    %p508 = scmp.ne.s32.totalorder %s500, %s502
    %p509 = scmp.eq.s32.totalorder %s72, 1
    %p510 = por %p508, %p509
    %p511 = scmp.ne.s32.totalorder %s502, %s503
    %p512 = scmp.eq.s32.totalorder %s72, 0
    %p513 = por %p511, %p512
    %p514 = scmp.ne.s32.totalorder %s502, %s503
    %p515 = scmp.eq.s32.totalorder %s73, 1
    %p516 = por %p514, %p515
    %p518 = scmp.ne.s32.totalorder %s503, %s517
    %p519 = scmp.eq.s32.totalorder %s73, 0
    %p520 = por %p518, %p519
    %s522 = sadd.s32 %s521, 1
    %p525 = scmp.eq.s32.totalorder %s67, 1
    %p526 = scmp.ne.s32.totalorder %s521, %s523
    %p527 = scmp.eq.s32.totalorder %s67, 0
    %p528 = por %p526, %p527
    %p529 = scmp.ne.s32.totalorder %s521, %s523
    %p530 = scmp.eq.s32.totalorder %s72, 1
    %p531 = por %p529, %p530
    %p532 = scmp.ne.s32.totalorder %s523, %s524
    %p533 = scmp.eq.s32.totalorder %s72, 0
    %p534 = por %p532, %p533
    %p535 = scmp.ne.s32.totalorder %s523, %s524
    %p536 = scmp.eq.s32.totalorder %s73, 1
    %p537 = por %p535, %p536
    %p539 = scmp.ne.s32.totalorder %s524, %s538
    %p540 = scmp.eq.s32.totalorder %s73, 0
    %p541 = por %p539, %p540
    %s543 = sadd.s32 %s542, 1
    %p546 = scmp.eq.s32.totalorder %s67, 1
    %p547 = scmp.ne.s32.totalorder %s542, %s544
    %p548 = scmp.eq.s32.totalorder %s67, 0
    %p549 = por %p547, %p548
    %p550 = scmp.ne.s32.totalorder %s542, %s544
    %p551 = scmp.eq.s32.totalorder %s72, 1
    %p552 = por %p550, %p551
    %p553 = scmp.ne.s32.totalorder %s544, %s545
    %p554 = scmp.eq.s32.totalorder %s72, 0
    %p555 = por %p553, %p554
    %p556 = scmp.ne.s32.totalorder %s544, %s545
    %p557 = scmp.eq.s32.totalorder %s73, 1
    %p558 = por %p556, %p557
    %p560 = scmp.ne.s32.totalorder %s545, %s559
    %p561 = scmp.eq.s32.totalorder %s73, 0
    %p562 = por %p560, %p561
    %s564 = sadd.s32 %s563, 1
    %p567 = scmp.eq.s32.totalorder %s67, 1
    %p568 = scmp.ne.s32.totalorder %s563, %s565
    %p569 = scmp.eq.s32.totalorder %s67, 0
    %p570 = por %p568, %p569
    %p571 = scmp.ne.s32.totalorder %s563, %s565
    %p572 = scmp.eq.s32.totalorder %s72, 1
    %p573 = por %p571, %p572
    %p574 = scmp.ne.s32.totalorder %s565, %s566
    %p575 = scmp.eq.s32.totalorder %s72, 0
    %p576 = por %p574, %p575
    %p577 = scmp.ne.s32.totalorder %s565, %s566
    %p578 = scmp.eq.s32.totalorder %s73, 1
    %p579 = por %p577, %p578
    %p581 = scmp.ne.s32.totalorder %s566, %s580
    %p582 = scmp.eq.s32.totalorder %s73, 0
    %p583 = por %p581, %p582
    %s585 = sadd.s32 %s584, 1
    %p588 = scmp.eq.s32.totalorder %s67, 1
    %p589 = scmp.ne.s32.totalorder %s584, %s586
    %p590 = scmp.eq.s32.totalorder %s67, 0
    %p591 = por %p589, %p590
    %p592 = scmp.ne.s32.totalorder %s584, %s586
    %p593 = scmp.eq.s32.totalorder %s72, 1
    %p594 = por %p592, %p593
    %p595 = scmp.ne.s32.totalorder %s586, %s587
    %p596 = scmp.eq.s32.totalorder %s72, 0
    %p597 = por %p595, %p596
    %p598 = scmp.ne.s32.totalorder %s586, %s587
    %p599 = scmp.eq.s32.totalorder %s73, 1
    %p600 = por %p598, %p599
    %p602 = scmp.ne.s32.totalorder %s587, %s601
    %p603 = scmp.eq.s32.totalorder %s73, 0
    %p604 = por %p602, %p603
    %s606 = sadd.s32 %s605, 1
    %p609 = scmp.eq.s32.totalorder %s67, 1
    %p610 = scmp.ne.s32.totalorder %s605, %s607
    %p611 = scmp.eq.s32.totalorder %s67, 0
    %p612 = por %p610, %p611
    %p613 = scmp.ne.s32.totalorder %s605, %s607
    %p614 = scmp.eq.s32.totalorder %s72, 1
    %p615 = por %p613, %p614
    %p616 = scmp.ne.s32.totalorder %s607, %s608
    %p617 = scmp.eq.s32.totalorder %s72, 0
    %p618 = por %p616, %p617
    %p619 = scmp.ne.s32.totalorder %s607, %s608
    %p620 = scmp.eq.s32.totalorder %s73, 1
    %p621 = por %p619, %p620
    %p623 = scmp.ne.s32.totalorder %s608, %s622
    %p624 = scmp.eq.s32.totalorder %s73, 0
    %p625 = por %p623, %p624
    %s627 = sadd.s32 %s626, 1
    %p630 = scmp.eq.s32.totalorder %s67, 1
    %p631 = scmp.ne.s32.totalorder %s626, %s628
    %p632 = scmp.eq.s32.totalorder %s67, 0
    %p633 = por %p631, %p632
    %p634 = scmp.ne.s32.totalorder %s626, %s628
    %p635 = scmp.eq.s32.totalorder %s72, 1
    %p636 = por %p634, %p635
    %p637 = scmp.ne.s32.totalorder %s628, %s629
    %p638 = scmp.eq.s32.totalorder %s72, 0
    %p639 = por %p637, %p638
    %p640 = scmp.ne.s32.totalorder %s628, %s629
    %p641 = scmp.eq.s32.totalorder %s73, 1
    %p642 = por %p640, %p641
    %p644 = scmp.ne.s32.totalorder %s629, %s643
    %p645 = scmp.eq.s32.totalorder %s73, 0
    %p646 = por %p644, %p645
    %s648 = sadd.s32 %s647, 1
    %p651 = scmp.eq.s32.totalorder %s67, 1
    %p652 = scmp.ne.s32.totalorder %s647, %s649
    %p653 = scmp.eq.s32.totalorder %s67, 0
    %p654 = por %p652, %p653
    %p655 = scmp.ne.s32.totalorder %s647, %s649
    %p656 = scmp.eq.s32.totalorder %s72, 1
    %p657 = por %p655, %p656
    %p658 = scmp.ne.s32.totalorder %s649, %s650
    %p659 = scmp.eq.s32.totalorder %s72, 0
    %p660 = por %p658, %p659
    %p661 = scmp.ne.s32.totalorder %s649, %s650
    %p662 = scmp.eq.s32.totalorder %s73, 1
    %p663 = por %p661, %p662
    %p665 = scmp.ne.s32.totalorder %s650, %s664
    %p666 = scmp.eq.s32.totalorder %s73, 0
    %p667 = por %p665, %p666
    %s669 = sadd.s32 %s668, 1
    %p672 = scmp.eq.s32.totalorder %s67, 1
    %p673 = scmp.ne.s32.totalorder %s668, %s670
    %p674 = scmp.eq.s32.totalorder %s67, 0
    %p675 = por %p673, %p674
    %p676 = scmp.ne.s32.totalorder %s668, %s670
    %p677 = scmp.eq.s32.totalorder %s72, 1
    %p678 = por %p676, %p677
    %p679 = scmp.ne.s32.totalorder %s670, %s671
    %p680 = scmp.eq.s32.totalorder %s72, 0
    %p681 = por %p679, %p680
    %p682 = scmp.ne.s32.totalorder %s670, %s671
    %p683 = scmp.eq.s32.totalorder %s73, 1
    %p684 = por %p682, %p683
    %p686 = scmp.ne.s32.totalorder %s671, %s685
    %p687 = scmp.eq.s32.totalorder %s73, 0
    %p688 = por %p686, %p687
    %s690 = sadd.s32 %s689, 1
    %p693 = scmp.eq.s32.totalorder %s67, 1
    %p694 = scmp.ne.s32.totalorder %s689, %s691
    %p695 = scmp.eq.s32.totalorder %s67, 0
    %p696 = por %p694, %p695
    %p697 = scmp.ne.s32.totalorder %s689, %s691
    %p698 = scmp.eq.s32.totalorder %s72, 1
    %p699 = por %p697, %p698
    %p700 = scmp.ne.s32.totalorder %s691, %s692
    %p701 = scmp.eq.s32.totalorder %s72, 0
    %p702 = por %p700, %p701
    %p703 = scmp.ne.s32.totalorder %s691, %s692
    %p704 = scmp.eq.s32.totalorder %s73, 1
    %p705 = por %p703, %p704
    %p707 = scmp.ne.s32.totalorder %s692, %s706
    %p708 = scmp.eq.s32.totalorder %s73, 0
    %p709 = por %p707, %p708
    %s710 = ssub.s32 %s67, %s74
    %p711 = scmp.eq.s32.totalorder %s710, 0
    %s713 = sadd.s32 %s712, 1
    %s714 = scalar_select %p711, %s712, %s713
    %p717 = pneg %p711
    %p718 = scmp.eq.s32.totalorder %s67, 1
    %p719 = por %p717, %p718
    %p720 = scmp.ne.s32.totalorder %s712, %s715
    %p721 = scmp.eq.s32.totalorder %s67, 0
    %p722 = por %p720, %p721
    %p723 = scmp.ne.s32.totalorder %s712, %s715
    %p724 = scmp.eq.s32.totalorder %s72, 1
    %p725 = por %p723, %p724
    %p726 = scmp.ne.s32.totalorder %s715, %s716
    %p727 = scmp.eq.s32.totalorder %s72, 0
    %p728 = por %p726, %p727
    %p729 = scmp.ne.s32.totalorder %s715, %s716
    %p730 = scmp.eq.s32.totalorder %s73, 1
    %p731 = por %p729, %p730
    %p733 = scmp.ne.s32.totalorder %s716, %s732
    %p734 = scmp.eq.s32.totalorder %s73, 0
    %p735 = por %p733, %p734
    %p736 = scmp.le.s32.totalorder 1, %s67
    %p737 = scmp.lt.s32.totalorder %s67, 3
    %p738 = pnand %p736, %p737
    %p739 = pneg %p738
    // Predicated region
    $region9: #{forward.1} parent=5 // pred_check
      _
    $region10: #{forward.1} parent=5 // pred_check_branch
      %741 = sbr.rel (%p738) target = $region12
    $region11: #{forward.1} parent=5 // pred_region
      %s742 = ssub.s32 %s67, 1
      // Predicated region
      $region13: #{forward.1} parent=11 // pred_check
        %p743 = pneg %p114
      $region14: #{forward.1} parent=11 // pred_check_branch
        %745 = sbr.rel (%p743) target = $region16
      $region15: #{forward.1} parent=11 // pred_region
        _
      $region16: #{forward.1} parent=11 // pred_fallthru
        _
      // Predicated region
      $region17: #{forward.1} parent=11 // pred_check
        %p746 = pneg %p135
      $region18: #{forward.1} parent=11 // pred_check_branch
        %748 = sbr.rel (%p746) target = $region20
      $region19: #{forward.1} parent=11 // pred_region
        _
      $region20: #{forward.1} parent=11 // pred_fallthru
        _
      // Predicated region
      $region21: #{forward.1} parent=11 // pred_check
        %p749 = pneg %p156
      $region22: #{forward.1} parent=11 // pred_check_branch
        %751 = sbr.rel (%p749) target = $region24
      $region23: #{forward.1} parent=11 // pred_region
        _
      $region24: #{forward.1} parent=11 // pred_fallthru
        _
      // Predicated region
      $region25: #{forward.1} parent=11 // pred_check
        %p752 = pneg %p177
      $region26: #{forward.1} parent=11 // pred_check_branch
        %754 = sbr.rel (%p752) target = $region28
      $region27: #{forward.1} parent=11 // pred_region
        _
      $region28: #{forward.1} parent=11 // pred_fallthru
        _
      // Predicated region
      $region29: #{forward.1} parent=11 // pred_check
        %p755 = pneg %p198
      $region30: #{forward.1} parent=11 // pred_check_branch
        %757 = sbr.rel (%p755) target = $region32
      $region31: #{forward.1} parent=11 // pred_region
        _
      $region32: #{forward.1} parent=11 // pred_fallthru
        _
      // Predicated region
      $region33: #{forward.1} parent=11 // pred_check
        %p758 = pneg %p219
      $region34: #{forward.1} parent=11 // pred_check_branch
        %760 = sbr.rel (%p758) target = $region36
      $region35: #{forward.1} parent=11 // pred_region
        _
      $region36: #{forward.1} parent=11 // pred_fallthru
        _
      // Predicated region
      $region37: #{forward.1} parent=11 // pred_check
        %p761 = pneg %p240
      $region38: #{forward.1} parent=11 // pred_check_branch
        %763 = sbr.rel (%p761) target = $region40
      $region39: #{forward.1} parent=11 // pred_region
        _
      $region40: #{forward.1} parent=11 // pred_fallthru
        _
      // Predicated region
      $region41: #{forward.1} parent=11 // pred_check
        %p764 = pneg %p261
      $region42: #{forward.1} parent=11 // pred_check_branch
        %766 = sbr.rel (%p764) target = $region44
      $region43: #{forward.1} parent=11 // pred_region
        _
      $region44: #{forward.1} parent=11 // pred_fallthru
        _
      // Predicated region
      $region45: #{forward.1} parent=11 // pred_check
        %p767 = pneg %p282
      $region46: #{forward.1} parent=11 // pred_check_branch
        %769 = sbr.rel (%p767) target = $region48
      $region47: #{forward.1} parent=11 // pred_region
        _
      $region48: #{forward.1} parent=11 // pred_fallthru
        _
      // Predicated region
      $region49: #{forward.1} parent=11 // pred_check
        %p770 = pneg %p303
      $region50: #{forward.1} parent=11 // pred_check_branch
        %772 = sbr.rel (%p770) target = $region52
      $region51: #{forward.1} parent=11 // pred_region
        _
      $region52: #{forward.1} parent=11 // pred_fallthru
        _
      // Predicated region
      $region53: #{forward.1} parent=11 // pred_check
        %p773 = pneg %p324
      $region54: #{forward.1} parent=11 // pred_check_branch
        %775 = sbr.rel (%p773) target = $region56
      $region55: #{forward.1} parent=11 // pred_region
        _
      $region56: #{forward.1} parent=11 // pred_fallthru
        _
      // Predicated region
      $region57: #{forward.1} parent=11 // pred_check
        %p776 = pneg %p345
      $region58: #{forward.1} parent=11 // pred_check_branch
        %778 = sbr.rel (%p776) target = $region60
      $region59: #{forward.1} parent=11 // pred_region
        _
      $region60: #{forward.1} parent=11 // pred_fallthru
        _
      // Predicated region
      $region61: #{forward.1} parent=11 // pred_check
        %p779 = pneg %p366
      $region62: #{forward.1} parent=11 // pred_check_branch
        %781 = sbr.rel (%p779) target = $region64
      $region63: #{forward.1} parent=11 // pred_region
        _
      $region64: #{forward.1} parent=11 // pred_fallthru
        _
      // Predicated region
      $region65: #{forward.1} parent=11 // pred_check
        %p782 = pneg %p387
      $region66: #{forward.1} parent=11 // pred_check_branch
        %784 = sbr.rel (%p782) target = $region68
      $region67: #{forward.1} parent=11 // pred_region
        _
      $region68: #{forward.1} parent=11 // pred_fallthru
        _
      // Predicated region
      $region69: #{forward.1} parent=11 // pred_check
        %p785 = pneg %p408
      $region70: #{forward.1} parent=11 // pred_check_branch
        %787 = sbr.rel (%p785) target = $region72
      $region71: #{forward.1} parent=11 // pred_region
        _
      $region72: #{forward.1} parent=11 // pred_fallthru
        _
      // Predicated region
      $region73: #{forward.1} parent=11 // pred_check
        %p788 = pneg %p429
      $region74: #{forward.1} parent=11 // pred_check_branch
        %790 = sbr.rel (%p788) target = $region76
      $region75: #{forward.1} parent=11 // pred_region
        _
      $region76: #{forward.1} parent=11 // pred_fallthru
        _
      // Predicated region
      $region77: #{forward.1} parent=11 // pred_check
        %p791 = pneg %p450
      $region78: #{forward.1} parent=11 // pred_check_branch
        %793 = sbr.rel (%p791) target = $region80
      $region79: #{forward.1} parent=11 // pred_region
        _
      $region80: #{forward.1} parent=11 // pred_fallthru
        _
      // Predicated region
      $region81: #{forward.1} parent=11 // pred_check
        %p794 = pneg %p471
      $region82: #{forward.1} parent=11 // pred_check_branch
        %796 = sbr.rel (%p794) target = $region84
      $region83: #{forward.1} parent=11 // pred_region
        _
      $region84: #{forward.1} parent=11 // pred_fallthru
        _
      // Predicated region
      $region85: #{forward.1} parent=11 // pred_check
        %p797 = pneg %p492
      $region86: #{forward.1} parent=11 // pred_check_branch
        %799 = sbr.rel (%p797) target = $region88
      $region87: #{forward.1} parent=11 // pred_region
        _
      $region88: #{forward.1} parent=11 // pred_fallthru
        _
      // Predicated region
      $region89: #{forward.1} parent=11 // pred_check
        %p800 = pneg %p513
      $region90: #{forward.1} parent=11 // pred_check_branch
        %802 = sbr.rel (%p800) target = $region92
      $region91: #{forward.1} parent=11 // pred_region
        _
      $region92: #{forward.1} parent=11 // pred_fallthru
        _
      // Predicated region
      $region93: #{forward.1} parent=11 // pred_check
        %p803 = pneg %p534
      $region94: #{forward.1} parent=11 // pred_check_branch
        %805 = sbr.rel (%p803) target = $region96
      $region95: #{forward.1} parent=11 // pred_region
        _
      $region96: #{forward.1} parent=11 // pred_fallthru
        _
      // Predicated region
      $region97: #{forward.1} parent=11 // pred_check
        %p806 = pneg %p555
      $region98: #{forward.1} parent=11 // pred_check_branch
        %808 = sbr.rel (%p806) target = $region100
      $region99: #{forward.1} parent=11 // pred_region
        _
      $region100: #{forward.1} parent=11 // pred_fallthru
        _
      // Predicated region
      $region101: #{forward.1} parent=11 // pred_check
        %p809 = pneg %p576
      $region102: #{forward.1} parent=11 // pred_check_branch
        %811 = sbr.rel (%p809) target = $region104
      $region103: #{forward.1} parent=11 // pred_region
        _
      $region104: #{forward.1} parent=11 // pred_fallthru
        _
      // Predicated region
      $region105: #{forward.1} parent=11 // pred_check
        %p812 = pneg %p597
      $region106: #{forward.1} parent=11 // pred_check_branch
        %814 = sbr.rel (%p812) target = $region108
      $region107: #{forward.1} parent=11 // pred_region
        _
      $region108: #{forward.1} parent=11 // pred_fallthru
        _
      // Predicated region
      $region109: #{forward.1} parent=11 // pred_check
        %p815 = pneg %p618
      $region110: #{forward.1} parent=11 // pred_check_branch
        %817 = sbr.rel (%p815) target = $region112
      $region111: #{forward.1} parent=11 // pred_region
        _
      $region112: #{forward.1} parent=11 // pred_fallthru
        _
      // Predicated region
      $region113: #{forward.1} parent=11 // pred_check
        %p818 = pneg %p639
      $region114: #{forward.1} parent=11 // pred_check_branch
        %820 = sbr.rel (%p818) target = $region116
      $region115: #{forward.1} parent=11 // pred_region
        _
      $region116: #{forward.1} parent=11 // pred_fallthru
        _
      // Predicated region
      $region117: #{forward.1} parent=11 // pred_check
        %p821 = pneg %p660
      $region118: #{forward.1} parent=11 // pred_check_branch
        %823 = sbr.rel (%p821) target = $region120
      $region119: #{forward.1} parent=11 // pred_region
        _
      $region120: #{forward.1} parent=11 // pred_fallthru
        _
      // Predicated region
      $region121: #{forward.1} parent=11 // pred_check
        %p824 = pneg %p681
      $region122: #{forward.1} parent=11 // pred_check_branch
        %826 = sbr.rel (%p824) target = $region124
      $region123: #{forward.1} parent=11 // pred_region
        _
      $region124: #{forward.1} parent=11 // pred_fallthru
        _
      // Predicated region
      $region125: #{forward.1} parent=11 // pred_check
        %p827 = pneg %p702
      $region126: #{forward.1} parent=11 // pred_check_branch
        %829 = sbr.rel (%p827) target = $region128
      $region127: #{forward.1} parent=11 // pred_region
        _
      $region128: #{forward.1} parent=11 // pred_fallthru
        _
    $region12: #{forward.1} parent=5 // pred_fallthru
      _
    %p830 = scmp.lt.s32.totalorder %s67, 2
    // Predicated region
    $region129: #{forward.1} parent=5 // pred_check
      %p831 = pneg %p830
    $region130: #{forward.1} parent=5 // pred_check_branch
      %833 = sbr.rel (%p831) target = $region132
    $region131: #{forward.1} parent=5 // pred_region
      // Predicated region
      $region133: #{forward.1} parent=131 // pred_check
        %p834 = pneg %p87
      $region134: #{forward.1} parent=131 // pred_check_branch
        %836 = sbr.rel (%p834) target = $region136
      $region135: #{forward.1} parent=131 // pred_region
        %s837 = smul.u32 9, %s67
        %p838 = scmp.lt.s32.totalorder %s837, 17
        %s839 = scalar_select %p838, %s837, 17
        %s840 = smul.addr %s839, 8
        %s841 = scalar_lea.vmem %s1, %s840
        %s842 = smul.u32 9, %s67
      $region136: #{forward.1} parent=131 // pred_fallthru
        _
    $region132: #{forward.1} parent=5 // pred_fallthru
      _
    %p843 = scmp.le.s32.totalorder 1, %s67
    %p844 = scmp.lt.s32.totalorder %s67, 3
    %p845 = pnand %p843, %p844
    %p846 = pneg %p845
    // Predicated region
    $region137: #{forward.1} parent=5 // pred_check
      _
    $region138: #{forward.1} parent=5 // pred_check_branch
      %848 = sbr.rel (%p845) target = $region140
    $region139: #{forward.1} parent=5 // pred_region
      %s849 = ssub.s32 %s67, 1
      %s850 = smul.u32 9, %s72
      %p851 = scmp.lt.s32.totalorder %s850, 17
      %s852 = scalar_select %p851, %s850, 17
      %s853 = smul.addr %s852, 8
      %s854 = scalar_lea.vmem %s1, %s853
      %p855 = pneg %p93
      %p856 = pneg %p90
      %p857 = pneg %p114
      %p858 = pneg %p111
      %p859 = pneg %p135
      %p860 = pneg %p132
      %p861 = pneg %p156
      %p862 = pneg %p153
      %p863 = pneg %p177
      %p864 = pneg %p174
      %p865 = pneg %p198
      %p866 = pneg %p195
      %p867 = pneg %p219
      %p868 = pneg %p216
      %p869 = pneg %p240
      %p870 = pneg %p237
      %p871 = pneg %p261
      %p872 = pneg %p258
      %p873 = pneg %p282
      %p874 = pneg %p279
      %p875 = pneg %p303
      %p876 = pneg %p300
      %p877 = pneg %p324
      %p878 = pneg %p321
      %p879 = pneg %p345
      %p880 = pneg %p342
      %p881 = pneg %p366
      %p882 = pneg %p363
      %p883 = pneg %p387
      %p884 = pneg %p384
      %p885 = pneg %p408
      %p886 = pneg %p405
      %p887 = pneg %p429
      %p888 = pneg %p426
      %p889 = pneg %p450
      %p890 = pneg %p447
      %p891 = pneg %p471
      %p892 = pneg %p468
      %p893 = pneg %p492
      %p894 = pneg %p489
      %p895 = pneg %p513
      %p896 = pneg %p510
      %p897 = pneg %p534
      %p898 = pneg %p531
      %p899 = pneg %p555
      %p900 = pneg %p552
      %p901 = pneg %p576
      %p902 = pneg %p573
      %p903 = pneg %p597
      %p904 = pneg %p594
      %p905 = pneg %p618
      %p906 = pneg %p615
      %p907 = pneg %p639
      %p908 = pneg %p636
      %p909 = pneg %p660
      %p910 = pneg %p657
      %p911 = pneg %p681
      %p912 = pneg %p678
      %p913 = pneg %p702
      %p914 = pneg %p699
      %p915 = pneg %p728
      %p916 = pneg %p725
      %p917 = scmp.lt.s32.totalorder %s72, 1
      %s918 = scalar_select %p917, %s72, 1
      %s919 = smul.addr %s918, 8
      %s920 = scalar_lea.vmem %s61, %s919
      %s921 = smul.u32 9, %s72
      %p922 = scmp.lt.s32.totalorder %s921, 17
      %s923 = scalar_select %p922, %s921, 17
      %s924 = smul.addr %s923, 8
      %s925 = scalar_lea.vmem %s1, %s924
      %s926 = smul.u32 9, %s72
      %p927 = scmp.lt.s32.totalorder %s72, 1
      %s928 = scalar_select %p927, %s72, 1
      %s929 = smul.addr %s928, 8
      %s930 = scalar_lea.vmem %s61, %s929
      %v932 = vld [vmem:[%s925] sm:$0xff]
      %v933 = vld [vmem:[%s925 + $0x8] sm:$0xff]
      %v934 = vld [vmem:[%s925 + $0x10] sm:$0xff]
      %v935 = vld [vmem:[%s925 + $0x18] sm:$0xff]
      %v936 = vld [vmem:[%s925 + $0x20] sm:$0xff]
      %v937 = vld [vmem:[%s925 + $0x28] sm:$0xff]
      %v938 = vld [vmem:[%s925 + $0x30] sm:$0xff]
      %v939 = vld [vmem:[%s925 + $0x38] sm:$0xff]
      %v940 = vld [vmem:[%s925 + $0x40] sm:$0x3f]
      %v941 = vpack.c.bf16 %v933, %v932
      %v942 = vpack.c.bf16 %v935, %v934
      %v943 = vpack.c.bf16 %v937, %v936
      %v944 = vpack.c.bf16 %v939, %v938
      %v945 = vpack.c.bf16 %v940, %v940
      %v946 = vld [vmem:[%s3] sm:$0xf]
      %v947 = vld [vmem:[%s3 + $0x4] sm:$0xf]
      %v948 = vld [vmem:[%s3 + $0x8] sm:$0xf]
      %v949 = vld [vmem:[%s3 + $0xc] sm:$0xf]
      %v950 = vld [vmem:[%s3 + $0x10] sm:$0xf]
      %v951 = vld [vmem:[%s3 + $0x14] sm:$0xf]
      %v952 = vld [vmem:[%s3 + $0x18] sm:$0xf]
      %v953 = vld [vmem:[%s3 + $0x1c] sm:$0xf]
      %v954 = vld [vmem:[%s3 + $0x20] sm:$0xf]
      %v955 = vld [vmem:[%s3 + $0x24] sm:$0xf]
      %v956 = vld [vmem:[%s3 + $0x28] sm:$0xf]
      %v957 = vld [vmem:[%s3 + $0x2c] sm:$0xf]
      %v958 = vld [vmem:[%s3 + $0x30] sm:$0xf]
      %v959 = vld [vmem:[%s3 + $0x34] sm:$0xf]
      %v960 = vld [vmem:[%s3 + $0x38] sm:$0xf]
      %v961 = vld [vmem:[%s3 + $0x3c] sm:$0xf]
      %v962 = vld [vmem:[%s925 + $0x1] sm:$0xff]
      %v963 = vld [vmem:[%s925 + $0x9] sm:$0xff]
      %v964 = vld [vmem:[%s925 + $0x11] sm:$0xff]
      %v965 = vld [vmem:[%s925 + $0x19] sm:$0xff]
      %v966 = vld [vmem:[%s925 + $0x21] sm:$0xff]
      %v967 = vld [vmem:[%s925 + $0x29] sm:$0xff]
      %v968 = vld [vmem:[%s925 + $0x31] sm:$0xff]
      %v969 = vld [vmem:[%s925 + $0x39] sm:$0xff]
      %v970 = vld [vmem:[%s925 + $0x41] sm:$0x3f]
      %v971 = vpack.c.bf16 %v963, %v962
      %v972 = vpack.c.bf16 %v965, %v964
      %v973 = vpack.c.bf16 %v967, %v966
      %v974 = vpack.c.bf16 %v969, %v968
      %v975 = vpack.c.bf16 %v970, %v970
      %s976 = scalar_lea.vmem %s3, 64
      %v977 = vld [vmem:[%s976] sm:$0xf]
      %v978 = vld [vmem:[%s976 + $0x4] sm:$0xf]
      %v979 = vld [vmem:[%s976 + $0x8] sm:$0xf]
      %v980 = vld [vmem:[%s976 + $0xc] sm:$0xf]
      %v981 = vld [vmem:[%s976 + $0x10] sm:$0xf]
      %v982 = vld [vmem:[%s976 + $0x14] sm:$0xf]
      %v983 = vld [vmem:[%s976 + $0x18] sm:$0xf]
      %v984 = vld [vmem:[%s976 + $0x1c] sm:$0xf]
      %v985 = vld [vmem:[%s976 + $0x20] sm:$0xf]
      %v986 = vld [vmem:[%s976 + $0x24] sm:$0xf]
      %v987 = vld [vmem:[%s976 + $0x28] sm:$0xf]
      %v988 = vld [vmem:[%s976 + $0x2c] sm:$0xf]
      %v989 = vld [vmem:[%s976 + $0x30] sm:$0xf]
      %v990 = vld [vmem:[%s976 + $0x34] sm:$0xf]
      %v991 = vld [vmem:[%s976 + $0x38] sm:$0xf]
      %v992 = vld [vmem:[%s976 + $0x3c] sm:$0xf]
      %v1009 = vunpack.c.l.b16 %v977
      %v1010 = vunpack.c.l.b16 %v978
      %v1011 = vunpack.c.l.b16 %v979
      %v1012 = vunpack.c.l.b16 %v980
      %v1013 = vunpack.c.l.b16 %v981
      %v1014 = vunpack.c.l.b16 %v982
      %v1015 = vunpack.c.l.b16 %v983
      %v1016 = vunpack.c.l.b16 %v984
      %v1017 = vunpack.c.l.b16 %v985
      %v1018 = vunpack.c.l.b16 %v986
      %v1019 = vunpack.c.l.b16 %v987
      %v1020 = vunpack.c.l.b16 %v988
      %v1021 = vunpack.c.l.b16 %v989
      %v1022 = vunpack.c.l.b16 %v990
      %v1023 = vunpack.c.l.b16 %v991
      %v1024 = vunpack.c.l.b16 %v992
      %v1025 = vpack.c.b16 %v1010, %v1009
      %v1026 = vpack.c.b16 %v1012, %v1011
      %v1027 = vpack.c.b16 %v1014, %v1013
      %v1028 = vpack.c.b16 %v1016, %v1015
      %v1029 = vpack.c.b16 %v1018, %v1017
      %v1030 = vpack.c.b16 %v1020, %v1019
      %v1031 = vpack.c.b16 %v1022, %v1021
      %v1032 = vpack.c.b16 %v1024, %v1023
      %1041 = vmatprep.subr.bf16.mxu0 0
      %1042 = vmatpush1.bf16.msra.mxu0 %v1025
      %1043 = vmatprep.subr.bf16.mxu0 0
      %1044 = vmatpush1.bf16.msra.mxu0 %v1026
      %1045 = vmatprep.subr.bf16.mxu0 0
      %1046 = vmatpush1.bf16.msra.mxu0 %v1027
      %1047 = vmatprep.subr.bf16.mxu0 0
      %1048 = vmatpush1.bf16.msra.mxu0 %v1028
      %1049 = vmatprep.subr.bf16.mxu0 0
      %1050 = vmatpush1.bf16.msra.mxu0 %v1029
      %1051 = vmatprep.subr.bf16.mxu0 0
      %1052 = vmatpush1.bf16.msra.mxu0 %v1030
      %1053 = vmatprep.subr.bf16.mxu0 0
      %1054 = vmatpush1.bf16.msra.mxu0 %v1031
      %1055 = vmatprep.subr.bf16.mxu0 0
      %1056 = vmatpush1.bf16.msra.mxu0 %v1032
      %1057 = vmatprep.subr.bf16.mxu0 0
      %1058 = vmatpush1.bf16.msra.mxu0 0
      %1059 = vmatprep.subr.bf16.mxu0 0
      %1060 = vmatpush1.bf16.msra.mxu0 0
      %1061 = vmatprep.subr.bf16.mxu0 0
      %1062 = vmatpush1.bf16.msra.mxu0 0
      %1063 = vmatprep.subr.bf16.mxu0 0
      %1064 = vmatpush1.bf16.msra.mxu0 0
      %1065 = vmatprep.subr.bf16.mxu0 0
      %1066 = vmatpush1.bf16.msra.mxu0 0
      %1067 = vmatprep.subr.bf16.mxu0 0
      %1068 = vmatpush1.bf16.msra.mxu0 0
      %1069 = vmatprep.subr.bf16.mxu0 0
      %1070 = vmatpush1.bf16.msra.mxu0 0
      %1071 = vmatprep.subr.bf16.mxu0 0
      %1072 = vmatpush1.bf16.msra.mxu0 0
      %1073 = vmatprep.mubr.bf16.mxu0 0
      %1074 = vmatmul.mubr.bf16.gmra.mrb[0].mxu0 %v971
      %v1075 = vpop.f32.mrb[0].mxu0
      %v1076 = vadd.f32 0.0, %v1075
      %v1077 = vpop.f32.mrb[0].mxu0
      %v1078 = vpop.f32.mrb[0].mxu0
      %v1079 = vadd.f32 0.0, %v1078
      %v1080 = vpop.f32.mrb[0].mxu0
      %1081 = vmatprep.mubr.bf16.mxu0 0
      %1082 = vmatmul.mubr.bf16.gmra.mrb[0].mxu0 %v972
      %v1083 = vpop.f32.mrb[0].mxu0
      %v1084 = vadd.f32 0.0, %v1083
      %v1085 = vpop.f32.mrb[0].mxu0
      %v1086 = vpop.f32.mrb[0].mxu0
      %v1087 = vadd.f32 0.0, %v1086
      %v1088 = vpop.f32.mrb[0].mxu0
      %1089 = vmatprep.mubr.bf16.mxu0 0
      %1090 = vmatmul.mubr.bf16.gmra.mrb[0].mxu0 %v973
      %v1091 = vpop.f32.mrb[0].mxu0
      %v1092 = vadd.f32 0.0, %v1091
      %v1093 = vpop.f32.mrb[0].mxu0
      %v1094 = vpop.f32.mrb[0].mxu0
      %v1095 = vadd.f32 0.0, %v1094
      %v1096 = vpop.f32.mrb[0].mxu0
      %1097 = vmatprep.mubr.bf16.mxu0 0
      %1098 = vmatmul.mubr.bf16.gmra.mrb[0].mxu0 %v974
      %v1099 = vpop.f32.mrb[0].mxu0
      %v1100 = vadd.f32 0.0, %v1099
      %v1101 = vpop.f32.mrb[0].mxu0
      %v1102 = vpop.f32.mrb[0].mxu0
      %v1103 = vadd.f32 0.0, %v1102
      %v1104 = vpop.f32.mrb[0].mxu0
      %1105 = vmatprep.mubr.bf16.mxu0 0
      %1106 = vmatmul.mubr.bf16.gmra.mrb[0].mxu0 %v975
      %v1107 = vpop.f32.mrb[0].mxu0
      %v1108 = vadd.f32 0.0, %v1107
      %v1109 = vpop.f32.mrb[0].mxu0
      %v1110 = vpop.f32.mrb[0].mxu0
      %v1111 = vpop.f32.mrb[0].mxu0
      %1112 = vdwg.mxu0
      %v1129 = vunpack.c.l.b16 %v946
      %v1130 = vunpack.c.l.b16 %v947
      %v1131 = vunpack.c.l.b16 %v948
      %v1132 = vunpack.c.l.b16 %v949
      %v1133 = vunpack.c.l.b16 %v950
      %v1134 = vunpack.c.l.b16 %v951
      %v1135 = vunpack.c.l.b16 %v952
      %v1136 = vunpack.c.l.b16 %v953
      %v1137 = vunpack.c.l.b16 %v954
      %v1138 = vunpack.c.l.b16 %v955
      %v1139 = vunpack.c.l.b16 %v956
      %v1140 = vunpack.c.l.b16 %v957
      %v1141 = vunpack.c.l.b16 %v958
      %v1142 = vunpack.c.l.b16 %v959
      %v1143 = vunpack.c.l.b16 %v960
      %v1144 = vunpack.c.l.b16 %v961
      %v1145 = vpack.c.b16 %v1130, %v1129
      %v1146 = vpack.c.b16 %v1132, %v1131
      %v1147 = vpack.c.b16 %v1134, %v1133
      %v1148 = vpack.c.b16 %v1136, %v1135
      %v1149 = vpack.c.b16 %v1138, %v1137
      %v1150 = vpack.c.b16 %v1140, %v1139
      %v1151 = vpack.c.b16 %v1142, %v1141
      %v1152 = vpack.c.b16 %v1144, %v1143
      %1161 = vmatprep.subr.bf16.mxu0 0
      %1162 = vmatpush1.bf16.msra.mxu0 %v1145
      %1163 = vmatprep.subr.bf16.mxu0 0
      %1164 = vmatpush1.bf16.msra.mxu0 %v1146
      %1165 = vmatprep.subr.bf16.mxu0 0
      %1166 = vmatpush1.bf16.msra.mxu0 %v1147
      %1167 = vmatprep.subr.bf16.mxu0 0
      %1168 = vmatpush1.bf16.msra.mxu0 %v1148
      %1169 = vmatprep.subr.bf16.mxu0 0
      %1170 = vmatpush1.bf16.msra.mxu0 %v1149
      %1171 = vmatprep.subr.bf16.mxu0 0
      %1172 = vmatpush1.bf16.msra.mxu0 %v1150
      %1173 = vmatprep.subr.bf16.mxu0 0
      %1174 = vmatpush1.bf16.msra.mxu0 %v1151
      %1175 = vmatprep.subr.bf16.mxu0 0
      %1176 = vmatpush1.bf16.msra.mxu0 %v1152
      %1177 = vmatprep.subr.bf16.mxu0 0
      %1178 = vmatpush1.bf16.msra.mxu0 0
      %1179 = vmatprep.subr.bf16.mxu0 0
      %1180 = vmatpush1.bf16.msra.mxu0 0
      %1181 = vmatprep.subr.bf16.mxu0 0
      %1182 = vmatpush1.bf16.msra.mxu0 0
      %1183 = vmatprep.subr.bf16.mxu0 0
      %1184 = vmatpush1.bf16.msra.mxu0 0
      %1185 = vmatprep.subr.bf16.mxu0 0
      %1186 = vmatpush1.bf16.msra.mxu0 0
      %1187 = vmatprep.subr.bf16.mxu0 0
      %1188 = vmatpush1.bf16.msra.mxu0 0
      %1189 = vmatprep.subr.bf16.mxu0 0
      %1190 = vmatpush1.bf16.msra.mxu0 0
      %1191 = vmatprep.subr.bf16.mxu0 0
      %1192 = vmatpush1.bf16.msra.mxu0 0
      %1193 = vmatprep.mubr.bf16.mxu0 0
      %1194 = vmatmul.mubr.bf16.gmra.mrb[0].mxu0 %v941
      %v1195 = vpop.f32.mrb[0].mxu0
      %v1196 = vadd.f32 %v1076, %v1195
      %v1197 = vpop.f32.mrb[0].mxu0
      %v1198 = vpop.f32.mrb[0].mxu0
      %v1199 = vadd.f32 %v1079, %v1198
      %v1200 = vpop.f32.mrb[0].mxu0
      %1201 = vmatprep.mubr.bf16.mxu0 0
      %1202 = vmatmul.mubr.bf16.gmra.mrb[0].mxu0 %v942
      %v1203 = vpop.f32.mrb[0].mxu0
      %v1204 = vadd.f32 %v1084, %v1203
      %v1205 = vpop.f32.mrb[0].mxu0
      %v1206 = vpop.f32.mrb[0].mxu0
      %v1207 = vadd.f32 %v1087, %v1206
      %v1208 = vpop.f32.mrb[0].mxu0
      %1209 = vmatprep.mubr.bf16.mxu0 0
      %1210 = vmatmul.mubr.bf16.gmra.mrb[0].mxu0 %v943
      %v1211 = vpop.f32.mrb[0].mxu0
      %v1212 = vadd.f32 %v1092, %v1211
      %v1213 = vpop.f32.mrb[0].mxu0
      %v1214 = vpop.f32.mrb[0].mxu0
      %v1215 = vadd.f32 %v1095, %v1214
      %v1216 = vpop.f32.mrb[0].mxu0
      %1217 = vmatprep.mubr.bf16.mxu0 0
      %1218 = vmatmul.mubr.bf16.gmra.mrb[0].mxu0 %v944
      %v1219 = vpop.f32.mrb[0].mxu0
      %v1220 = vadd.f32 %v1100, %v1219
      %v1221 = vpop.f32.mrb[0].mxu0
      %v1222 = vpop.f32.mrb[0].mxu0
      %v1223 = vadd.f32 %v1103, %v1222
      %v1224 = vpop.f32.mrb[0].mxu0
      %1225 = vmatprep.mubr.bf16.mxu0 0
      %1226 = vmatmul.mubr.bf16.gmra.mrb[0].mxu0 %v945
      %v1227 = vpop.f32.mrb[0].mxu0
      %v1228 = vadd.f32 %v1108, %v1227
      %v1229 = vpop.f32.mrb[0].mxu0
      %v1230 = vpop.f32.mrb[0].mxu0
      %v1231 = vpop.f32.mrb[0].mxu0
      %1232 = vdwg.mxu0
      %v1233 = vld [vmem:[%s925 + $0x2] sm:$0xff]
      %v1234 = vld [vmem:[%s925 + $0xa] sm:$0xff]
      %v1235 = vld [vmem:[%s925 + $0x12] sm:$0xff]
      %v1236 = vld [vmem:[%s925 + $0x1a] sm:$0xff]
      %v1237 = vld [vmem:[%s925 + $0x22] sm:$0xff]
      %v1238 = vld [vmem:[%s925 + $0x2a] sm:$0xff]
      %v1239 = vld [vmem:[%s925 + $0x32] sm:$0xff]
      %v1240 = vld [vmem:[%s925 + $0x3a] sm:$0xff]
      %v1241 = vld [vmem:[%s925 + $0x42] sm:$0x3f]
      %v1242 = vpack.c.bf16 %v1234, %v1233
      %v1243 = vpack.c.bf16 %v1236, %v1235
      %v1244 = vpack.c.bf16 %v1238, %v1237
      %v1245 = vpack.c.bf16 %v1240, %v1239
      %v1246 = vpack.c.bf16 %v1241, %v1241
      %s1247 = scalar_lea.vmem %s3, 128
      %v1248 = vld [vmem:[%s1247] sm:$0xf]
      %v1249 = vld [vmem:[%s1247 + $0x4] sm:$0xf]
      %v1250 = vld [vmem:[%s1247 + $0x8] sm:$0xf]
      %v1251 = vld [vmem:[%s1247 + $0xc] sm:$0xf]
      %v1252 = vld [vmem:[%s1247 + $0x10] sm:$0xf]
      %v1253 = vld [vmem:[%s1247 + $0x14] sm:$0xf]
      %v1254 = vld [vmem:[%s1247 + $0x18] sm:$0xf]
      %v1255 = vld [vmem:[%s1247 + $0x1c] sm:$0xf]
      %v1256 = vld [vmem:[%s1247 + $0x20] sm:$0xf]
      %v1257 = vld [vmem:[%s1247 + $0x24] sm:$0xf]
      %v1258 = vld [vmem:[%s1247 + $0x28] sm:$0xf]
      %v1259 = vld [vmem:[%s1247 + $0x2c] sm:$0xf]
      %v1260 = vld [vmem:[%s1247 + $0x30] sm:$0xf]
      %v1261 = vld [vmem:[%s1247 + $0x34] sm:$0xf]
      %v1262 = vld [vmem:[%s1247 + $0x38] sm:$0xf]
      %v1263 = vld [vmem:[%s1247 + $0x3c] sm:$0xf]
      %v1280 = vunpack.c.l.b16 %v1248
      %v1281 = vunpack.c.l.b16 %v1249
      %v1282 = vunpack.c.l.b16 %v1250
      %v1283 = vunpack.c.l.b16 %v1251
      %v1284 = vunpack.c.l.b16 %v1252
      %v1285 = vunpack.c.l.b16 %v1253
      %v1286 = vunpack.c.l.b16 %v1254
      %v1287 = vunpack.c.l.b16 %v1255
      %v1288 = vunpack.c.l.b16 %v1256
      %v1289 = vunpack.c.l.b16 %v1257
      %v1290 = vunpack.c.l.b16 %v1258
      %v1291 = vunpack.c.l.b16 %v1259
      %v1292 = vunpack.c.l.b16 %v1260
      %v1293 = vunpack.c.l.b16 %v1261
      %v1294 = vunpack.c.l.b16 %v1262
      %v1295 = vunpack.c.l.b16 %v1263
      %v1296 = vpack.c.b16 %v1281, %v1280
      %v1297 = vpack.c.b16 %v1283, %v1282
      %v1298 = vpack.c.b16 %v1285, %v1284
      %v1299 = vpack.c.b16 %v1287, %v1286
      %v1300 = vpack.c.b16 %v1289, %v1288
      %v1301 = vpack.c.b16 %v1291, %v1290
      %v1302 = vpack.c.b16 %v1293, %v1292
      %v1303 = vpack.c.b16 %v1295, %v1294
      %1312 = vmatprep.subr.bf16.mxu0 0
      %1313 = vmatpush1.bf16.msra.mxu0 %v1296
      %1314 = vmatprep.subr.bf16.mxu0 0
      %1315 = vmatpush1.bf16.msra.mxu0 %v1297
      %1316 = vmatprep.subr.bf16.mxu0 0
      %1317 = vmatpush1.bf16.msra.mxu0 %v1298
      %1318 = vmatprep.subr.bf16.mxu0 0
      %1319 = vmatpush1.bf16.msra.mxu0 %v1299
      %1320 = vmatprep.subr.bf16.mxu0 0
      %1321 = vmatpush1.bf16.msra.mxu0 %v1300
      %1322 = vmatprep.subr.bf16.mxu0 0
      %1323 = vmatpush1.bf16.msra.mxu0 %v1301
      %1324 = vmatprep.subr.bf16.mxu0 0
      %1325 = vmatpush1.bf16.msra.mxu0 %v1302
      %1326 = vmatprep.subr.bf16.mxu0 0
      %1327 = vmatpush1.bf16.msra.mxu0 %v1303
      %1328 = vmatprep.subr.bf16.mxu0 0
      %1329 = vmatpush1.bf16.msra.mxu0 0
      %1330 = vmatprep.subr.bf16.mxu0 0
      %1331 = vmatpush1.bf16.msra.mxu0 0
      %1332 = vmatprep.subr.bf16.mxu0 0
      %1333 = vmatpush1.bf16.msra.mxu0 0
      %1334 = vmatprep.subr.bf16.mxu0 0
      %1335 = vmatpush1.bf16.msra.mxu0 0
      %1336 = vmatprep.subr.bf16.mxu0 0
      %1337 = vmatpush1.bf16.msra.mxu0 0
      %1338 = vmatprep.subr.bf16.mxu0 0
      %1339 = vmatpush1.bf16.msra.mxu0 0
      %1340 = vmatprep.subr.bf16.mxu0 0
      %1341 = vmatpush1.bf16.msra.mxu0 0
      %1342 = vmatprep.subr.bf16.mxu0 0
      %1343 = vmatpush1.bf16.msra.mxu0 0
      %1344 = vmatprep.mubr.bf16.mxu0 0
      %1345 = vmatmul.mubr.bf16.gmra.mrb[0].mxu0 %v1242
      %v1346 = vpop.f32.mrb[0].mxu0
      %v1347 = vadd.f32 0.0, %v1346
      %v1348 = vpop.f32.mrb[0].mxu0
      %v1349 = vpop.f32.mrb[0].mxu0
      %v1350 = vadd.f32 0.0, %v1349
      %v1351 = vpop.f32.mrb[0].mxu0
      %1352 = vmatprep.mubr.bf16.mxu0 0
      %1353 = vmatmul.mubr.bf16.gmra.mrb[0].mxu0 %v1243
      %v1354 = vpop.f32.mrb[0].mxu0
      %v1355 = vadd.f32 0.0, %v1354
      %v1356 = vpop.f32.mrb[0].mxu0
      %v1357 = vpop.f32.mrb[0].mxu0
      %v1358 = vadd.f32 0.0, %v1357
      %v1359 = vpop.f32.mrb[0].mxu0
      %1360 = vmatprep.mubr.bf16.mxu0 0
      %1361 = vmatmul.mubr.bf16.gmra.mrb[0].mxu0 %v1244
      %v1362 = vpop.f32.mrb[0].mxu0
      %v1363 = vadd.f32 0.0, %v1362
      %v1364 = vpop.f32.mrb[0].mxu0
      %v1365 = vpop.f32.mrb[0].mxu0
      %v1366 = vadd.f32 0.0, %v1365
      %v1367 = vpop.f32.mrb[0].mxu0
      %1368 = vmatprep.mubr.bf16.mxu0 0
      %1369 = vmatmul.mubr.bf16.gmra.mrb[0].mxu0 %v1245
      %v1370 = vpop.f32.mrb[0].mxu0
      %v1371 = vadd.f32 0.0, %v1370
      %v1372 = vpop.f32.mrb[0].mxu0
      %v1373 = vpop.f32.mrb[0].mxu0
      %v1374 = vadd.f32 0.0, %v1373
      %v1375 = vpop.f32.mrb[0].mxu0
      %1376 = vmatprep.mubr.bf16.mxu0 0
      %1377 = vmatmul.mubr.bf16.gmra.mrb[0].mxu0 %v1246
      %v1378 = vpop.f32.mrb[0].mxu0
      %v1379 = vadd.f32 0.0, %v1378
      %v1380 = vpop.f32.mrb[0].mxu0
      %v1381 = vpop.f32.mrb[0].mxu0
      %v1382 = vpop.f32.mrb[0].mxu0
      %1383 = vdwg.mxu0
      %v1384 = vadd.f32 %v1196, %v1347
      %v1385 = vadd.f32 %v1199, %v1350
      %v1386 = vadd.f32 %v1204, %v1355
      %v1387 = vadd.f32 %v1207, %v1358
      %v1388 = vadd.f32 %v1212, %v1363
      %v1389 = vadd.f32 %v1215, %v1366
      %v1390 = vadd.f32 %v1220, %v1371
      %v1391 = vadd.f32 %v1223, %v1374
      %v1392 = vadd.f32 %v1228, %v1379
      %v1393 = vld [vmem:[%s5] sm:$0x1]
      %v1395 = vlaneseq
      %v1396 = vshrl.u32 %v1395, 7
      %v1397 = vsub.s32 0, %v1396
      %v1398 = vrot.slane %v1393, %v1397
      %v1400 = vadd.f32 %v1384, %v1398
      %v1401 = vadd.f32 %v1385, %v1398
      %v1402 = vadd.f32 %v1386, %v1398
      %v1403 = vadd.f32 %v1387, %v1398
      %v1404 = vadd.f32 %v1388, %v1398
      %v1405 = vadd.f32 %v1389, %v1398
      %v1406 = vadd.f32 %v1390, %v1398
      %v1407 = vadd.f32 %v1391, %v1398
      %v1408 = vadd.f32 %v1392, %v1398
      %v1409 = vmax.f32 %v1400, 0.0
      %v1410 = vmax.f32 %v1401, 0.0
      %v1411 = vmax.f32 %v1402, 0.0
      %v1412 = vmax.f32 %v1403, 0.0
      %v1413 = vmax.f32 %v1404, 0.0
      %v1414 = vmax.f32 %v1405, 0.0
      %v1415 = vmax.f32 %v1406, 0.0
      %v1416 = vmax.f32 %v1407, 0.0
      %v1417 = vmax.f32 %v1408, 0.0
      %v1418 = vld [vmem:[%s49] sm:$0xff]
      %v1419 = vld [vmem:[%s49 + $0x8] sm:$0xff]
      %v1420 = vld [vmem:[%s49 + $0x10] sm:$0xff]
      %v1421 = vld [vmem:[%s49 + $0x18] sm:$0xff]
      %v1422 = vld [vmem:[%s49 + $0x20] sm:$0xff]
      %v1423 = vld [vmem:[%s49 + $0x28] sm:$0xff]
      %v1424 = vld [vmem:[%s49 + $0x30] sm:$0xff]
      %v1425 = vld [vmem:[%s49 + $0x38] sm:$0xff]
      %v1426 = vld [vmem:[%s49 + $0x40] sm:$0x3f]
      %1428 = vset.pattern.permute.xlu0 0
      %1429 = vperm.xlu0 %1428, %v1418
      %v1430 = vpop.permute.xlu0 %1429
      %1433 = vset.pattern.permute.xlu0 0
      %1434 = vperm.xlu0 %1433, %v1419
      %v1435 = vpop.permute.xlu0 %1434
      %1438 = vset.pattern.permute.xlu0 0
      %1439 = vperm.xlu0 %1438, %v1420
      %v1440 = vpop.permute.xlu0 %1439
      %1443 = vset.pattern.permute.xlu0 0
      %1444 = vperm.xlu0 %1443, %v1421
      %v1445 = vpop.permute.xlu0 %1444
      %1448 = vset.pattern.permute.xlu0 0
      %1449 = vperm.xlu0 %1448, %v1422
      %v1450 = vpop.permute.xlu0 %1449
      %1453 = vset.pattern.permute.xlu0 0
      %1454 = vperm.xlu0 %1453, %v1423
      %v1455 = vpop.permute.xlu0 %1454
      %1458 = vset.pattern.permute.xlu0 0
      %1459 = vperm.xlu0 %1458, %v1424
      %v1460 = vpop.permute.xlu0 %1459
      %1463 = vset.pattern.permute.xlu0 0
      %1464 = vperm.xlu0 %1463, %v1425
      %v1465 = vpop.permute.xlu0 %1464
      %1468 = vset.pattern.permute.xlu0 0
      %1469 = vperm.xlu0 %1468, %v1426
      %v1470 = vpop.permute.xlu0 %1469
      %v1472 = vmul.f32 %v1409, %v1430
      %v1473 = vmul.f32 %v1410, %v1435
      %v1474 = vmul.f32 %v1411, %v1440
      %v1475 = vmul.f32 %v1412, %v1445
      %v1476 = vmul.f32 %v1413, %v1450
      %v1477 = vmul.f32 %v1414, %v1455
      %v1478 = vmul.f32 %v1415, %v1460
      %v1479 = vmul.f32 %v1416, %v1465
      %v1480 = vmul.f32 %v1417, %v1470
      %1481 = vst [vmem:[#allocation2 + $0x1] sm:$0xff] %v1472
      %1482 = vst [vmem:[#allocation2 + $0x9] sm:$0xff] %v1473
      %1483 = vst [vmem:[#allocation2 + $0x11] sm:$0xff] %v1474
      %1484 = vst [vmem:[#allocation2 + $0x19] sm:$0xff] %v1475
      %1485 = vst [vmem:[#allocation2 + $0x21] sm:$0xff] %v1476
      %1486 = vst [vmem:[#allocation2 + $0x29] sm:$0xff] %v1477
      %1487 = vst [vmem:[#allocation2 + $0x31] sm:$0xff] %v1478
      %1488 = vst [vmem:[#allocation2 + $0x39] sm:$0xff] %v1479
      %1489 = vst [vmem:[#allocation2 + $0x41] sm:$0x3f] %v1480
      %1490 = vst [vmem:[#allocation2] sm:$0x1] 0.0
      %1491 = vst [vmem:[#allocation2 + $0x47] sm:$0x1] 0.0
      %v1492 = vld [vmem:[#allocation2] sm:$0xff]
      %v1493 = vld [vmem:[#allocation2 + $0x8] sm:$0xff]
      %v1494 = vld [vmem:[#allocation2 + $0x10] sm:$0xff]
      %v1495 = vld [vmem:[#allocation2 + $0x18] sm:$0xff]
      %v1496 = vld [vmem:[#allocation2 + $0x20] sm:$0xff]
      %v1497 = vld [vmem:[#allocation2 + $0x28] sm:$0xff]
      %v1498 = vld [vmem:[#allocation2 + $0x30] sm:$0xff]
      %v1499 = vld [vmem:[#allocation2 + $0x38] sm:$0xff]
      %v1500 = vld [vmem:[#allocation2 + $0x40] sm:$0x3f]
      %v1501 = vpack.c.bf16 %v1493, %v1492
      %v1502 = vpack.c.bf16 %v1495, %v1494
      %v1503 = vpack.c.bf16 %v1497, %v1496
      %v1504 = vpack.c.bf16 %v1499, %v1498
      %v1505 = vpack.c.bf16 %v1500, %v1500
      %v1506 = vld [vmem:[%s7] sm:$0xf]
      %v1507 = vld [vmem:[%s7 + $0x4] sm:$0xf]
      %v1508 = vld [vmem:[%s7 + $0x8] sm:$0xf]
      %v1509 = vld [vmem:[%s7 + $0xc] sm:$0xf]
      %v1510 = vld [vmem:[%s7 + $0x10] sm:$0xf]
      %v1511 = vld [vmem:[%s7 + $0x14] sm:$0xf]
      %v1512 = vld [vmem:[%s7 + $0x18] sm:$0xf]
      %v1513 = vld [vmem:[%s7 + $0x1c] sm:$0xf]
      %v1514 = vld [vmem:[%s7 + $0x20] sm:$0xf]
      %v1515 = vld [vmem:[%s7 + $0x24] sm:$0xf]
      %v1516 = vld [vmem:[%s7 + $0x28] sm:$0xf]
      %v1517 = vld [vmem:[%s7 + $0x2c] sm:$0xf]
      %v1518 = vld [vmem:[%s7 + $0x30] sm:$0xf]
      %v1519 = vld [vmem:[%s7 + $0x34] sm:$0xf]
      %v1520 = vld [vmem:[%s7 + $0x38] sm:$0xf]
      %v1521 = vld [vmem:[%s7 + $0x3c] sm:$0xf]
      %v1522 = vld [vmem:[#allocation2 + $0x1] sm:$0xff]
      %v1523 = vld [vmem:[#allocation2 + $0x9] sm:$0xff]
      %v1524 = vld [vmem:[#allocation2 + $0x11] sm:$0xff]
      %v1525 = vld [vmem:[#allocation2 + $0x19] sm:$0xff]
      %v1526 = vld [vmem:[#allocation2 + $0x21] sm:$0xff]
      %v1527 = vld [vmem:[#allocation2 + $0x29] sm:$0xff]
      %v1528 = vld [vmem:[#allocation2 + $0x31] sm:$0xff]
      %v1529 = vld [vmem:[#allocation2 + $0x39] sm:$0xff]
      %v1530 = vld [vmem:[#allocation2 + $0x41] sm:$0x3f]
      %v1531 = vpack.c.bf16 %v1523, %v1522
      %v1532 = vpack.c.bf16 %v1525, %v1524
      %v1533 = vpack.c.bf16 %v1527, %v1526
      %v1534 = vpack.c.bf16 %v1529, %v1528
      %v1535 = vpack.c.bf16 %v1530, %v1530
      %s1536 = scalar_lea.vmem %s7, 64
      %v1537 = vld [vmem:[%s1536] sm:$0xf]
      %v1538 = vld [vmem:[%s1536 + $0x4] sm:$0xf]
      %v1539 = vld [vmem:[%s1536 + $0x8] sm:$0xf]
      %v1540 = vld [vmem:[%s1536 + $0xc] sm:$0xf]
      %v1541 = vld [vmem:[%s1536 + $0x10] sm:$0xf]
      %v1542 = vld [vmem:[%s1536 + $0x14] sm:$0xf]
      %v1543 = vld [vmem:[%s1536 + $0x18] sm:$0xf]
      %v1544 = vld [vmem:[%s1536 + $0x1c] sm:$0xf]
      %v1545 = vld [vmem:[%s1536 + $0x20] sm:$0xf]
      %v1546 = vld [vmem:[%s1536 + $0x24] sm:$0xf]
      %v1547 = vld [vmem:[%s1536 + $0x28] sm:$0xf]
      %v1548 = vld [vmem:[%s1536 + $0x2c] sm:$0xf]
      %v1549 = vld [vmem:[%s1536 + $0x30] sm:$0xf]
      %v1550 = vld [vmem:[%s1536 + $0x34] sm:$0xf]
      %v1551 = vld [vmem:[%s1536 + $0x38] sm:$0xf]
      %v1552 = vld [vmem:[%s1536 + $0x3c] sm:$0xf]
      %v1569 = vunpack.c.l.b16 %v1537
      %v1570 = vunpack.c.l.b16 %v1538
      %v1571 = vunpack.c.l.b16 %v1539
      %v1572 = vunpack.c.l.b16 %v1540
      %v1573 = vunpack.c.l.b16 %v1541
      %v1574 = vunpack.c.l.b16 %v1542
      %v1575 = vunpack.c.l.b16 %v1543
      %v1576 = vunpack.c.l.b16 %v1544
      %v1577 = vunpack.c.l.b16 %v1545
      %v1578 = vunpack.c.l.b16 %v1546
      %v1579 = vunpack.c.l.b16 %v1547
      %v1580 = vunpack.c.l.b16 %v1548
      %v1581 = vunpack.c.l.b16 %v1549
      %v1582 = vunpack.c.l.b16 %v1550
      %v1583 = vunpack.c.l.b16 %v1551
      %v1584 = vunpack.c.l.b16 %v1552
      %v1585 = vpack.c.b16 %v1570, %v1569
      %v1586 = vpack.c.b16 %v1572, %v1571
      %v1587 = vpack.c.b16 %v1574, %v1573
      %v1588 = vpack.c.b16 %v1576, %v1575
      %v1589 = vpack.c.b16 %v1578, %v1577
      %v1590 = vpack.c.b16 %v1580, %v1579
      %v1591 = vpack.c.b16 %v1582, %v1581
      %v1592 = vpack.c.b16 %v1584, %v1583
      %1601 = vmatprep.subr.bf16.mxu0 0
      %1602 = vmatpush1.bf16.msra.mxu0 %v1585
      %1603 = vmatprep.subr.bf16.mxu0 0
      %1604 = vmatpush1.bf16.msra.mxu0 %v1586
      %1605 = vmatprep.subr.bf16.mxu0 0
      %1606 = vmatpush1.bf16.msra.mxu0 %v1587
      %1607 = vmatprep.subr.bf16.mxu0 0
      %1608 = vmatpush1.bf16.msra.mxu0 %v1588
      %1609 = vmatprep.subr.bf16.mxu0 0
      %1610 = vmatpush1.bf16.msra.mxu0 %v1589
      %1611 = vmatprep.subr.bf16.mxu0 0
      %1612 = vmatpush1.bf16.msra.mxu0 %v1590
      %1613 = vmatprep.subr.bf16.mxu0 0
      %1614 = vmatpush1.bf16.msra.mxu0 %v1591
      %1615 = vmatprep.subr.bf16.mxu0 0
      %1616 = vmatpush1.bf16.msra.mxu0 %v1592
      %1617 = vmatprep.subr.bf16.mxu0 0
      %1618 = vmatpush1.bf16.msra.mxu0 0
      %1619 = vmatprep.subr.bf16.mxu0 0
      %1620 = vmatpush1.bf16.msra.mxu0 0
      %1621 = vmatprep.subr.bf16.mxu0 0
      %1622 = vmatpush1.bf16.msra.mxu0 0
      %1623 = vmatprep.subr.bf16.mxu0 0
      %1624 = vmatpush1.bf16.msra.mxu0 0
      %1625 = vmatprep.subr.bf16.mxu0 0
      %1626 = vmatpush1.bf16.msra.mxu0 0
      %1627 = vmatprep.subr.bf16.mxu0 0
      %1628 = vmatpush1.bf16.msra.mxu0 0
      %1629 = vmatprep.subr.bf16.mxu0 0
      %1630 = vmatpush1.bf16.msra.mxu0 0
      %1631 = vmatprep.subr.bf16.mxu0 0
      %1632 = vmatpush1.bf16.msra.mxu0 0
      %1633 = vmatprep.mubr.bf16.mxu0 0
      %1634 = vmatmul.mubr.bf16.gmra.mrb[0].mxu0 %v1531
      %v1635 = vpop.f32.mrb[0].mxu0
      %v1636 = vadd.f32 0.0, %v1635
      %v1637 = vpop.f32.mrb[0].mxu0
      %v1638 = vpop.f32.mrb[0].mxu0
      %v1639 = vadd.f32 0.0, %v1638
      %v1640 = vpop.f32.mrb[0].mxu0
      %1641 = vmatprep.mubr.bf16.mxu0 0
      %1642 = vmatmul.mubr.bf16.gmra.mrb[0].mxu0 %v1532
      %v1643 = vpop.f32.mrb[0].mxu0
      %v1644 = vadd.f32 0.0, %v1643
      %v1645 = vpop.f32.mrb[0].mxu0
      %v1646 = vpop.f32.mrb[0].mxu0
      %v1647 = vadd.f32 0.0, %v1646
      %v1648 = vpop.f32.mrb[0].mxu0
      %1649 = vmatprep.mubr.bf16.mxu0 0
      %1650 = vmatmul.mubr.bf16.gmra.mrb[0].mxu0 %v1533
      %v1651 = vpop.f32.mrb[0].mxu0
      %v1652 = vadd.f32 0.0, %v1651
      %v1653 = vpop.f32.mrb[0].mxu0
      %v1654 = vpop.f32.mrb[0].mxu0
      %v1655 = vadd.f32 0.0, %v1654
      %v1656 = vpop.f32.mrb[0].mxu0
      %1657 = vmatprep.mubr.bf16.mxu0 0
      %1658 = vmatmul.mubr.bf16.gmra.mrb[0].mxu0 %v1534
      %v1659 = vpop.f32.mrb[0].mxu0
      %v1660 = vadd.f32 0.0, %v1659
      %v1661 = vpop.f32.mrb[0].mxu0
      %v1662 = vpop.f32.mrb[0].mxu0
      %v1663 = vadd.f32 0.0, %v1662
      %v1664 = vpop.f32.mrb[0].mxu0
      %1665 = vmatprep.mubr.bf16.mxu0 0
      %1666 = vmatmul.mubr.bf16.gmra.mrb[0].mxu0 %v1535
      %v1667 = vpop.f32.mrb[0].mxu0
      %v1668 = vadd.f32 0.0, %v1667
      %v1669 = vpop.f32.mrb[0].mxu0
      %v1670 = vpop.f32.mrb[0].mxu0
      %v1671 = vpop.f32.mrb[0].mxu0
      %1672 = vdwg.mxu0
      %v1689 = vunpack.c.l.b16 %v1506
      %v1690 = vunpack.c.l.b16 %v1507
      %v1691 = vunpack.c.l.b16 %v1508
      %v1692 = vunpack.c.l.b16 %v1509
      %v1693 = vunpack.c.l.b16 %v1510
      %v1694 = vunpack.c.l.b16 %v1511
      %v1695 = vunpack.c.l.b16 %v1512
      %v1696 = vunpack.c.l.b16 %v1513
      %v1697 = vunpack.c.l.b16 %v1514
      %v1698 = vunpack.c.l.b16 %v1515
      %v1699 = vunpack.c.l.b16 %v1516
      %v1700 = vunpack.c.l.b16 %v1517
      %v1701 = vunpack.c.l.b16 %v1518
      %v1702 = vunpack.c.l.b16 %v1519
      %v1703 = vunpack.c.l.b16 %v1520
      %v1704 = vunpack.c.l.b16 %v1521
      %v1705 = vpack.c.b16 %v1690, %v1689
      %v1706 = vpack.c.b16 %v1692, %v1691
      %v1707 = vpack.c.b16 %v1694, %v1693
      %v1708 = vpack.c.b16 %v1696, %v1695
      %v1709 = vpack.c.b16 %v1698, %v1697
      %v1710 = vpack.c.b16 %v1700, %v1699
      %v1711 = vpack.c.b16 %v1702, %v1701
      %v1712 = vpack.c.b16 %v1704, %v1703
      %1721 = vmatprep.subr.bf16.mxu0 0
      %1722 = vmatpush1.bf16.msra.mxu0 %v1705
      %1723 = vmatprep.subr.bf16.mxu0 0
      %1724 = vmatpush1.bf16.msra.mxu0 %v1706
      %1725 = vmatprep.subr.bf16.mxu0 0
      %1726 = vmatpush1.bf16.msra.mxu0 %v1707
      %1727 = vmatprep.subr.bf16.mxu0 0
      %1728 = vmatpush1.bf16.msra.mxu0 %v1708
      %1729 = vmatprep.subr.bf16.mxu0 0
      %1730 = vmatpush1.bf16.msra.mxu0 %v1709
      %1731 = vmatprep.subr.bf16.mxu0 0
      %1732 = vmatpush1.bf16.msra.mxu0 %v1710
      %1733 = vmatprep.subr.bf16.mxu0 0
      %1734 = vmatpush1.bf16.msra.mxu0 %v1711
      %1735 = vmatprep.subr.bf16.mxu0 0
      %1736 = vmatpush1.bf16.msra.mxu0 %v1712
      %1737 = vmatprep.subr.bf16.mxu0 0
      %1738 = vmatpush1.bf16.msra.mxu0 0
      %1739 = vmatprep.subr.bf16.mxu0 0
      %1740 = vmatpush1.bf16.msra.mxu0 0
      %1741 = vmatprep.subr.bf16.mxu0 0
      %1742 = vmatpush1.bf16.msra.mxu0 0
      %1743 = vmatprep.subr.bf16.mxu0 0
      %1744 = vmatpush1.bf16.msra.mxu0 0
      %1745 = vmatprep.subr.bf16.mxu0 0
      %1746 = vmatpush1.bf16.msra.mxu0 0
      %1747 = vmatprep.subr.bf16.mxu0 0
      %1748 = vmatpush1.bf16.msra.mxu0 0
      %1749 = vmatprep.subr.bf16.mxu0 0
      %1750 = vmatpush1.bf16.msra.mxu0 0
      %1751 = vmatprep.subr.bf16.mxu0 0
      %1752 = vmatpush1.bf16.msra.mxu0 0
      %1753 = vmatprep.mubr.bf16.mxu0 0
      %1754 = vmatmul.mubr.bf16.gmra.mrb[0].mxu0 %v1501
      %v1755 = vpop.f32.mrb[0].mxu0
      %v1756 = vadd.f32 %v1636, %v1755
      %v1757 = vpop.f32.mrb[0].mxu0
      %v1758 = vpop.f32.mrb[0].mxu0
      %v1759 = vadd.f32 %v1639, %v1758
      %v1760 = vpop.f32.mrb[0].mxu0
      %1761 = vmatprep.mubr.bf16.mxu0 0
      %1762 = vmatmul.mubr.bf16.gmra.mrb[0].mxu0 %v1502
      %v1763 = vpop.f32.mrb[0].mxu0
      %v1764 = vadd.f32 %v1644, %v1763
      %v1765 = vpop.f32.mrb[0].mxu0
      %v1766 = vpop.f32.mrb[0].mxu0
      %v1767 = vadd.f32 %v1647, %v1766
      %v1768 = vpop.f32.mrb[0].mxu0
      %1769 = vmatprep.mubr.bf16.mxu0 0
      %1770 = vmatmul.mubr.bf16.gmra.mrb[0].mxu0 %v1503
      %v1771 = vpop.f32.mrb[0].mxu0
      %v1772 = vadd.f32 %v1652, %v1771
      %v1773 = vpop.f32.mrb[0].mxu0
      %v1774 = vpop.f32.mrb[0].mxu0
      %v1775 = vadd.f32 %v1655, %v1774
      %v1776 = vpop.f32.mrb[0].mxu0
      %1777 = vmatprep.mubr.bf16.mxu0 0
      %1778 = vmatmul.mubr.bf16.gmra.mrb[0].mxu0 %v1504
      %v1779 = vpop.f32.mrb[0].mxu0
      %v1780 = vadd.f32 %v1660, %v1779
      %v1781 = vpop.f32.mrb[0].mxu0
      %v1782 = vpop.f32.mrb[0].mxu0
      %v1783 = vadd.f32 %v1663, %v1782
      %v1784 = vpop.f32.mrb[0].mxu0
      %1785 = vmatprep.mubr.bf16.mxu0 0
      %1786 = vmatmul.mubr.bf16.gmra.mrb[0].mxu0 %v1505
      %v1787 = vpop.f32.mrb[0].mxu0
      %v1788 = vadd.f32 %v1668, %v1787
      %v1789 = vpop.f32.mrb[0].mxu0
      %v1790 = vpop.f32.mrb[0].mxu0
      %v1791 = vpop.f32.mrb[0].mxu0
      %1792 = vdwg.mxu0
      %v1793 = vld [vmem:[#allocation2 + $0x2] sm:$0xff]
      %v1794 = vld [vmem:[#allocation2 + $0xa] sm:$0xff]
      %v1795 = vld [vmem:[#allocation2 + $0x12] sm:$0xff]
      %v1796 = vld [vmem:[#allocation2 + $0x1a] sm:$0xff]
      %v1797 = vld [vmem:[#allocation2 + $0x22] sm:$0xff]
      %v1798 = vld [vmem:[#allocation2 + $0x2a] sm:$0xff]
      %v1799 = vld [vmem:[#allocation2 + $0x32] sm:$0xff]
      %v1800 = vld [vmem:[#allocation2 + $0x3a] sm:$0xff]
      %v1801 = vld [vmem:[#allocation2 + $0x42] sm:$0x3f]
      %v1802 = vpack.c.bf16 %v1794, %v1793
      %v1803 = vpack.c.bf16 %v1796, %v1795
      %v1804 = vpack.c.bf16 %v1798, %v1797
      %v1805 = vpack.c.bf16 %v1800, %v1799
      %v1806 = vpack.c.bf16 %v1801, %v1801
      %s1807 = scalar_lea.vmem %s7, 128
      %v1808 = vld [vmem:[%s1807] sm:$0xf]
      %v1809 = vld [vmem:[%s1807 + $0x4] sm:$0xf]
      %v1810 = vld [vmem:[%s1807 + $0x8] sm:$0xf]
      %v1811 = vld [vmem:[%s1807 + $0xc] sm:$0xf]
      %v1812 = vld [vmem:[%s1807 + $0x10] sm:$0xf]
      %v1813 = vld [vmem:[%s1807 + $0x14] sm:$0xf]
      %v1814 = vld [vmem:[%s1807 + $0x18] sm:$0xf]
      %v1815 = vld [vmem:[%s1807 + $0x1c] sm:$0xf]
      %v1816 = vld [vmem:[%s1807 + $0x20] sm:$0xf]
      %v1817 = vld [vmem:[%s1807 + $0x24] sm:$0xf]
      %v1818 = vld [vmem:[%s1807 + $0x28] sm:$0xf]
      %v1819 = vld [vmem:[%s1807 + $0x2c] sm:$0xf]
      %v1820 = vld [vmem:[%s1807 + $0x30] sm:$0xf]
      %v1821 = vld [vmem:[%s1807 + $0x34] sm:$0xf]
      %v1822 = vld [vmem:[%s1807 + $0x38] sm:$0xf]
      %v1823 = vld [vmem:[%s1807 + $0x3c] sm:$0xf]
      %v1840 = vunpack.c.l.b16 %v1808
      %v1841 = vunpack.c.l.b16 %v1809
      %v1842 = vunpack.c.l.b16 %v1810
      %v1843 = vunpack.c.l.b16 %v1811
      %v1844 = vunpack.c.l.b16 %v1812
      %v1845 = vunpack.c.l.b16 %v1813
      %v1846 = vunpack.c.l.b16 %v1814
      %v1847 = vunpack.c.l.b16 %v1815
      %v1848 = vunpack.c.l.b16 %v1816
      %v1849 = vunpack.c.l.b16 %v1817
      %v1850 = vunpack.c.l.b16 %v1818
      %v1851 = vunpack.c.l.b16 %v1819
      %v1852 = vunpack.c.l.b16 %v1820
      %v1853 = vunpack.c.l.b16 %v1821
      %v1854 = vunpack.c.l.b16 %v1822
      %v1855 = vunpack.c.l.b16 %v1823
      %v1856 = vpack.c.b16 %v1841, %v1840
      %v1857 = vpack.c.b16 %v1843, %v1842
      %v1858 = vpack.c.b16 %v1845, %v1844
      %v1859 = vpack.c.b16 %v1847, %v1846
      %v1860 = vpack.c.b16 %v1849, %v1848
      %v1861 = vpack.c.b16 %v1851, %v1850
      %v1862 = vpack.c.b16 %v1853, %v1852
      %v1863 = vpack.c.b16 %v1855, %v1854
      %1872 = vmatprep.subr.bf16.mxu0 0
      %1873 = vmatpush1.bf16.msra.mxu0 %v1856
      %1874 = vmatprep.subr.bf16.mxu0 0
      %1875 = vmatpush1.bf16.msra.mxu0 %v1857
      %1876 = vmatprep.subr.bf16.mxu0 0
      %1877 = vmatpush1.bf16.msra.mxu0 %v1858
      %1878 = vmatprep.subr.bf16.mxu0 0
      %1879 = vmatpush1.bf16.msra.mxu0 %v1859
      %1880 = vmatprep.subr.bf16.mxu0 0
      %1881 = vmatpush1.bf16.msra.mxu0 %v1860
      %1882 = vmatprep.subr.bf16.mxu0 0
      %1883 = vmatpush1.bf16.msra.mxu0 %v1861
      %1884 = vmatprep.subr.bf16.mxu0 0
      %1885 = vmatpush1.bf16.msra.mxu0 %v1862
      %1886 = vmatprep.subr.bf16.mxu0 0
      %1887 = vmatpush1.bf16.msra.mxu0 %v1863
      %1888 = vmatprep.subr.bf16.mxu0 0
      %1889 = vmatpush1.bf16.msra.mxu0 0
      %1890 = vmatprep.subr.bf16.mxu0 0
      %1891 = vmatpush1.bf16.msra.mxu0 0
      %1892 = vmatprep.subr.bf16.mxu0 0
      %1893 = vmatpush1.bf16.msra.mxu0 0
      %1894 = vmatprep.subr.bf16.mxu0 0
      %1895 = vmatpush1.bf16.msra.mxu0 0
      %1896 = vmatprep.subr.bf16.mxu0 0
      %1897 = vmatpush1.bf16.msra.mxu0 0
      %1898 = vmatprep.subr.bf16.mxu0 0
      %1899 = vmatpush1.bf16.msra.mxu0 0
      %1900 = vmatprep.subr.bf16.mxu0 0
      %1901 = vmatpush1.bf16.msra.mxu0 0
      %1902 = vmatprep.subr.bf16.mxu0 0
      %1903 = vmatpush1.bf16.msra.mxu0 0
      %1904 = vmatprep.mubr.bf16.mxu0 0
      %1905 = vmatmul.mubr.bf16.gmra.mrb[0].mxu0 %v1802
      %v1906 = vpop.f32.mrb[0].mxu0
      %v1907 = vadd.f32 0.0, %v1906
      %v1908 = vpop.f32.mrb[0].mxu0
      %v1909 = vpop.f32.mrb[0].mxu0
      %v1910 = vadd.f32 0.0, %v1909
      %v1911 = vpop.f32.mrb[0].mxu0
      %1912 = vmatprep.mubr.bf16.mxu0 0
      %1913 = vmatmul.mubr.bf16.gmra.mrb[0].mxu0 %v1803
      %v1914 = vpop.f32.mrb[0].mxu0
      %v1915 = vadd.f32 0.0, %v1914
      %v1916 = vpop.f32.mrb[0].mxu0
      %v1917 = vpop.f32.mrb[0].mxu0
      %v1918 = vadd.f32 0.0, %v1917
      %v1919 = vpop.f32.mrb[0].mxu0
      %1920 = vmatprep.mubr.bf16.mxu0 0
      %1921 = vmatmul.mubr.bf16.gmra.mrb[0].mxu0 %v1804
      %v1922 = vpop.f32.mrb[0].mxu0
      %v1923 = vadd.f32 0.0, %v1922
      %v1924 = vpop.f32.mrb[0].mxu0
      %v1925 = vpop.f32.mrb[0].mxu0
      %v1926 = vadd.f32 0.0, %v1925
      %v1927 = vpop.f32.mrb[0].mxu0
      %1928 = vmatprep.mubr.bf16.mxu0 0
      %1929 = vmatmul.mubr.bf16.gmra.mrb[0].mxu0 %v1805
      %v1930 = vpop.f32.mrb[0].mxu0
      %v1931 = vadd.f32 0.0, %v1930
      %v1932 = vpop.f32.mrb[0].mxu0
      %v1933 = vpop.f32.mrb[0].mxu0
      %v1934 = vadd.f32 0.0, %v1933
      %v1935 = vpop.f32.mrb[0].mxu0
      %1936 = vmatprep.mubr.bf16.mxu0 0
      %1937 = vmatmul.mubr.bf16.gmra.mrb[0].mxu0 %v1806
      %v1938 = vpop.f32.mrb[0].mxu0
      %v1939 = vadd.f32 0.0, %v1938
      %v1940 = vpop.f32.mrb[0].mxu0
      %v1941 = vpop.f32.mrb[0].mxu0
      %v1942 = vpop.f32.mrb[0].mxu0
      %1943 = vdwg.mxu0
      %v1944 = vadd.f32 %v1756, %v1907
      %v1945 = vadd.f32 %v1759, %v1910
      %v1946 = vadd.f32 %v1764, %v1915
      %v1947 = vadd.f32 %v1767, %v1918
      %v1948 = vadd.f32 %v1772, %v1923
      %v1949 = vadd.f32 %v1775, %v1926
      %v1950 = vadd.f32 %v1780, %v1931
      %v1951 = vadd.f32 %v1783, %v1934
      %v1952 = vadd.f32 %v1788, %v1939
      %v1953 = vld [vmem:[%s9] sm:$0x1]
      %v1955 = vlaneseq
      %v1956 = vshrl.u32 %v1955, 7
      %v1957 = vsub.s32 0, %v1956
      %v1958 = vrot.slane %v1953, %v1957
      %v1960 = vadd.f32 %v1944, %v1958
      %v1961 = vadd.f32 %v1945, %v1958
      %v1962 = vadd.f32 %v1946, %v1958
      %v1963 = vadd.f32 %v1947, %v1958
      %v1964 = vadd.f32 %v1948, %v1958
      %v1965 = vadd.f32 %v1949, %v1958
      %v1966 = vadd.f32 %v1950, %v1958
      %v1967 = vadd.f32 %v1951, %v1958
      %v1968 = vadd.f32 %v1952, %v1958
      %v1969 = vmax.f32 %v1960, 0.0
      %v1970 = vmax.f32 %v1961, 0.0
      %v1971 = vmax.f32 %v1962, 0.0
      %v1972 = vmax.f32 %v1963, 0.0
      %v1973 = vmax.f32 %v1964, 0.0
      %v1974 = vmax.f32 %v1965, 0.0
      %v1975 = vmax.f32 %v1966, 0.0
      %v1976 = vmax.f32 %v1967, 0.0
      %v1977 = vmax.f32 %v1968, 0.0
      %v1978 = vpack.c.bf16 %v1970, %v1969
      %v1979 = vpack.c.bf16 %v1972, %v1971
      %v1980 = vpack.c.bf16 %v1974, %v1973
      %v1981 = vpack.c.bf16 %v1976, %v1975
      %v1982 = vpack.c.bf16 %v1977, %v1977
      %v1983 = vld [vmem:[%s11] sm:$0xf]
      %v1984 = vld [vmem:[%s11 + $0x4] sm:$0xf]
      %v1985 = vld [vmem:[%s11 + $0x8] sm:$0xf]
      %v1986 = vld [vmem:[%s11 + $0xc] sm:$0xf]
      %v1987 = vld [vmem:[%s11 + $0x10] sm:$0xf]
      %v1988 = vld [vmem:[%s11 + $0x14] sm:$0xf]
      %v1989 = vld [vmem:[%s11 + $0x18] sm:$0xf]
      %v1990 = vld [vmem:[%s11 + $0x1c] sm:$0xf]
      %v1991 = vld [vmem:[%s11 + $0x20] sm:$0xf]
      %v1992 = vld [vmem:[%s11 + $0x24] sm:$0xf]
      %v1993 = vld [vmem:[%s11 + $0x28] sm:$0xf]
      %v1994 = vld [vmem:[%s11 + $0x2c] sm:$0xf]
      %v1995 = vld [vmem:[%s11 + $0x30] sm:$0xf]
      %v1996 = vld [vmem:[%s11 + $0x34] sm:$0xf]
      %v1997 = vld [vmem:[%s11 + $0x38] sm:$0xf]
      %v1998 = vld [vmem:[%s11 + $0x3c] sm:$0xf]
      %v2015 = vunpack.c.l.b16 %v1983
      %v2016 = vunpack.c.l.b16 %v1984
      %v2017 = vunpack.c.l.b16 %v1985
      %v2018 = vunpack.c.l.b16 %v1986
      %v2019 = vunpack.c.l.b16 %v1987
      %v2020 = vunpack.c.l.b16 %v1988
      %v2021 = vunpack.c.l.b16 %v1989
      %v2022 = vunpack.c.l.b16 %v1990
      %v2023 = vunpack.c.l.b16 %v1991
      %v2024 = vunpack.c.l.b16 %v1992
      %v2025 = vunpack.c.l.b16 %v1993
      %v2026 = vunpack.c.l.b16 %v1994
      %v2027 = vunpack.c.l.b16 %v1995
      %v2028 = vunpack.c.l.b16 %v1996
      %v2029 = vunpack.c.l.b16 %v1997
      %v2030 = vunpack.c.l.b16 %v1998
      %v2031 = vpack.c.b16 %v2016, %v2015
      %v2032 = vpack.c.b16 %v2018, %v2017
      %v2033 = vpack.c.b16 %v2020, %v2019
      %v2034 = vpack.c.b16 %v2022, %v2021
      %v2035 = vpack.c.b16 %v2024, %v2023
      %v2036 = vpack.c.b16 %v2026, %v2025
      %v2037 = vpack.c.b16 %v2028, %v2027
      %v2038 = vpack.c.b16 %v2030, %v2029
      %2047 = vmatprep.subr.bf16.mxu0 0
      %2048 = vmatpush1.bf16.msra.mxu0 %v2031
      %2049 = vmatprep.subr.bf16.mxu0 0
      %2050 = vmatpush1.bf16.msra.mxu0 %v2032
      %2051 = vmatprep.subr.bf16.mxu0 0
      %2052 = vmatpush1.bf16.msra.mxu0 %v2033
      %2053 = vmatprep.subr.bf16.mxu0 0
      %2054 = vmatpush1.bf16.msra.mxu0 %v2034
      %2055 = vmatprep.subr.bf16.mxu0 0
      %2056 = vmatpush1.bf16.msra.mxu0 %v2035
      %2057 = vmatprep.subr.bf16.mxu0 0
      %2058 = vmatpush1.bf16.msra.mxu0 %v2036
      %2059 = vmatprep.subr.bf16.mxu0 0
      %2060 = vmatpush1.bf16.msra.mxu0 %v2037
      %2061 = vmatprep.subr.bf16.mxu0 0
      %2062 = vmatpush1.bf16.msra.mxu0 %v2038
      %2063 = vmatprep.subr.bf16.mxu0 0
      %2064 = vmatpush1.bf16.msra.mxu0 0
      %2065 = vmatprep.subr.bf16.mxu0 0
      %2066 = vmatpush1.bf16.msra.mxu0 0
      %2067 = vmatprep.subr.bf16.mxu0 0
      %2068 = vmatpush1.bf16.msra.mxu0 0
      %2069 = vmatprep.subr.bf16.mxu0 0
      %2070 = vmatpush1.bf16.msra.mxu0 0
      %2071 = vmatprep.subr.bf16.mxu0 0
      %2072 = vmatpush1.bf16.msra.mxu0 0
      %2073 = vmatprep.subr.bf16.mxu0 0
      %2074 = vmatpush1.bf16.msra.mxu0 0
      %2075 = vmatprep.subr.bf16.mxu0 0
      %2076 = vmatpush1.bf16.msra.mxu0 0
      %2077 = vmatprep.subr.bf16.mxu0 0
      %2078 = vmatpush1.bf16.msra.mxu0 0
      %2079 = vmatprep.mubr.bf16.mxu0 0
      %2080 = vmatmul.mubr.bf16.gmra.mrb[0].mxu0 %v1978
      %v2081 = vpop.f32.mrb[0].mxu0
      %v2082 = vadd.f32 0.0, %v2081
      %v2083 = vpop.f32.mrb[0].mxu0
      %v2084 = vpop.f32.mrb[0].mxu0
      %v2085 = vadd.f32 0.0, %v2084
      %v2086 = vpop.f32.mrb[0].mxu0
      %2087 = vmatprep.mubr.bf16.mxu0 0
      %2088 = vmatmul.mubr.bf16.gmra.mrb[0].mxu0 %v1979
      %v2089 = vpop.f32.mrb[0].mxu0
      %v2090 = vadd.f32 0.0, %v2089
      %v2091 = vpop.f32.mrb[0].mxu0
      %v2092 = vpop.f32.mrb[0].mxu0
      %v2093 = vadd.f32 0.0, %v2092
      %v2094 = vpop.f32.mrb[0].mxu0
      %2095 = vmatprep.mubr.bf16.mxu0 0
      %2096 = vmatmul.mubr.bf16.gmra.mrb[0].mxu0 %v1980
      %v2097 = vpop.f32.mrb[0].mxu0
      %v2098 = vadd.f32 0.0, %v2097
      %v2099 = vpop.f32.mrb[0].mxu0
      %v2100 = vpop.f32.mrb[0].mxu0
      %v2101 = vadd.f32 0.0, %v2100
      %v2102 = vpop.f32.mrb[0].mxu0
      %2103 = vmatprep.mubr.bf16.mxu0 0
      %2104 = vmatmul.mubr.bf16.gmra.mrb[0].mxu0 %v1981
      %v2105 = vpop.f32.mrb[0].mxu0
      %v2106 = vadd.f32 0.0, %v2105
      %v2107 = vpop.f32.mrb[0].mxu0
      %v2108 = vpop.f32.mrb[0].mxu0
      %v2109 = vadd.f32 0.0, %v2108
      %v2110 = vpop.f32.mrb[0].mxu0
      %2111 = vmatprep.mubr.bf16.mxu0 0
      %2112 = vmatmul.mubr.bf16.gmra.mrb[0].mxu0 %v1982
      %v2113 = vpop.f32.mrb[0].mxu0
      %v2114 = vadd.f32 0.0, %v2113
      %v2115 = vpop.f32.mrb[0].mxu0
      %v2116 = vpop.f32.mrb[0].mxu0
      %v2117 = vpop.f32.mrb[0].mxu0
      %2118 = vdwg.mxu0
      %s2119 = scalar_lea.vmem %s11, 64
      %v2120 = vld [vmem:[%s2119] sm:$0xf]
      %v2121 = vld [vmem:[%s2119 + $0x4] sm:$0xf]
      %v2122 = vld [vmem:[%s2119 + $0x8] sm:$0xf]
      %v2123 = vld [vmem:[%s2119 + $0xc] sm:$0xf]
      %v2124 = vld [vmem:[%s2119 + $0x10] sm:$0xf]
      %v2125 = vld [vmem:[%s2119 + $0x14] sm:$0xf]
      %v2126 = vld [vmem:[%s2119 + $0x18] sm:$0xf]
      %v2127 = vld [vmem:[%s2119 + $0x1c] sm:$0xf]
      %v2128 = vld [vmem:[%s2119 + $0x20] sm:$0xf]
      %v2129 = vld [vmem:[%s2119 + $0x24] sm:$0xf]
      %v2130 = vld [vmem:[%s2119 + $0x28] sm:$0xf]
      %v2131 = vld [vmem:[%s2119 + $0x2c] sm:$0xf]
      %v2132 = vld [vmem:[%s2119 + $0x30] sm:$0xf]
      %v2133 = vld [vmem:[%s2119 + $0x34] sm:$0xf]
      %v2134 = vld [vmem:[%s2119 + $0x38] sm:$0xf]
      %v2135 = vld [vmem:[%s2119 + $0x3c] sm:$0xf]
      %v2152 = vunpack.c.l.b16 %v2120
      %v2153 = vunpack.c.l.b16 %v2121
      %v2154 = vunpack.c.l.b16 %v2122
      %v2155 = vunpack.c.l.b16 %v2123
      %v2156 = vunpack.c.l.b16 %v2124
      %v2157 = vunpack.c.l.b16 %v2125
      %v2158 = vunpack.c.l.b16 %v2126
      %v2159 = vunpack.c.l.b16 %v2127
      %v2160 = vunpack.c.l.b16 %v2128
      %v2161 = vunpack.c.l.b16 %v2129
      %v2162 = vunpack.c.l.b16 %v2130
      %v2163 = vunpack.c.l.b16 %v2131
      %v2164 = vunpack.c.l.b16 %v2132
      %v2165 = vunpack.c.l.b16 %v2133
      %v2166 = vunpack.c.l.b16 %v2134
      %v2167 = vunpack.c.l.b16 %v2135
      %v2168 = vpack.c.b16 %v2153, %v2152
      %v2169 = vpack.c.b16 %v2155, %v2154
      %v2170 = vpack.c.b16 %v2157, %v2156
      %v2171 = vpack.c.b16 %v2159, %v2158
      %v2172 = vpack.c.b16 %v2161, %v2160
      %v2173 = vpack.c.b16 %v2163, %v2162
      %v2174 = vpack.c.b16 %v2165, %v2164
      %v2175 = vpack.c.b16 %v2167, %v2166
      %2184 = vmatprep.subr.bf16.mxu0 0
      %2185 = vmatpush1.bf16.msra.mxu0 %v2168
      %2186 = vmatprep.subr.bf16.mxu0 0
      %2187 = vmatpush1.bf16.msra.mxu0 %v2169
      %2188 = vmatprep.subr.bf16.mxu0 0
      %2189 = vmatpush1.bf16.msra.mxu0 %v2170
      %2190 = vmatprep.subr.bf16.mxu0 0
      %2191 = vmatpush1.bf16.msra.mxu0 %v2171
      %2192 = vmatprep.subr.bf16.mxu0 0
      %2193 = vmatpush1.bf16.msra.mxu0 %v2172
      %2194 = vmatprep.subr.bf16.mxu0 0
      %2195 = vmatpush1.bf16.msra.mxu0 %v2173
      %2196 = vmatprep.subr.bf16.mxu0 0
      %2197 = vmatpush1.bf16.msra.mxu0 %v2174
      %2198 = vmatprep.subr.bf16.mxu0 0
      %2199 = vmatpush1.bf16.msra.mxu0 %v2175
      %2200 = vmatprep.subr.bf16.mxu0 0
      %2201 = vmatpush1.bf16.msra.mxu0 0
      %2202 = vmatprep.subr.bf16.mxu0 0
      %2203 = vmatpush1.bf16.msra.mxu0 0
      %2204 = vmatprep.subr.bf16.mxu0 0
      %2205 = vmatpush1.bf16.msra.mxu0 0
      %2206 = vmatprep.subr.bf16.mxu0 0
      %2207 = vmatpush1.bf16.msra.mxu0 0
      %2208 = vmatprep.subr.bf16.mxu0 0
      %2209 = vmatpush1.bf16.msra.mxu0 0
      %2210 = vmatprep.subr.bf16.mxu0 0
      %2211 = vmatpush1.bf16.msra.mxu0 0
      %2212 = vmatprep.subr.bf16.mxu0 0
      %2213 = vmatpush1.bf16.msra.mxu0 0
      %2214 = vmatprep.subr.bf16.mxu0 0
      %2215 = vmatpush1.bf16.msra.mxu0 0
      %2216 = vmatprep.mubr.bf16.mxu0 0
      %2217 = vmatmul.mubr.bf16.gmra.mrb[0].mxu0 %v1978
      %v2218 = vpop.f32.mrb[0].mxu0
      %v2219 = vadd.f32 0.0, %v2218
      %v2220 = vpop.f32.mrb[0].mxu0
      %v2221 = vpop.f32.mrb[0].mxu0
      %v2222 = vadd.f32 0.0, %v2221
      %v2223 = vpop.f32.mrb[0].mxu0
      %2224 = vmatprep.mubr.bf16.mxu0 0
      %2225 = vmatmul.mubr.bf16.gmra.mrb[0].mxu0 %v1979
      %v2226 = vpop.f32.mrb[0].mxu0
      %v2227 = vadd.f32 0.0, %v2226
      %v2228 = vpop.f32.mrb[0].mxu0
      %v2229 = vpop.f32.mrb[0].mxu0
      %v2230 = vadd.f32 0.0, %v2229
      %v2231 = vpop.f32.mrb[0].mxu0
      %2232 = vmatprep.mubr.bf16.mxu0 0
      %2233 = vmatmul.mubr.bf16.gmra.mrb[0].mxu0 %v1980
      %v2234 = vpop.f32.mrb[0].mxu0
      %v2235 = vadd.f32 0.0, %v2234
      %v2236 = vpop.f32.mrb[0].mxu0
      %v2237 = vpop.f32.mrb[0].mxu0
      %v2238 = vadd.f32 0.0, %v2237
      %v2239 = vpop.f32.mrb[0].mxu0
      %2240 = vmatprep.mubr.bf16.mxu0 0
      %2241 = vmatmul.mubr.bf16.gmra.mrb[0].mxu0 %v1981
      %v2242 = vpop.f32.mrb[0].mxu0
      %v2243 = vadd.f32 0.0, %v2242
      %v2244 = vpop.f32.mrb[0].mxu0
      %v2245 = vpop.f32.mrb[0].mxu0
      %v2246 = vadd.f32 0.0, %v2245
      %v2247 = vpop.f32.mrb[0].mxu0
      %2248 = vmatprep.mubr.bf16.mxu0 0
      %2249 = vmatmul.mubr.bf16.gmra.mrb[0].mxu0 %v1982
      %v2250 = vpop.f32.mrb[0].mxu0
      %v2251 = vadd.f32 0.0, %v2250
      %v2252 = vpop.f32.mrb[0].mxu0
      %v2253 = vpop.f32.mrb[0].mxu0
      %v2254 = vpop.f32.mrb[0].mxu0
      %2255 = vdwg.mxu0
      %v2256 = vmax.f32 %v2082, %v2219
      %v2257 = vmax.f32 %v2085, %v2222
      %v2258 = vmax.f32 %v2090, %v2227
      %v2259 = vmax.f32 %v2093, %v2230
      %v2260 = vmax.f32 %v2098, %v2235
      %v2261 = vmax.f32 %v2101, %v2238
      %v2262 = vmax.f32 %v2106, %v2243
      %v2263 = vmax.f32 %v2109, %v2246
      %v2264 = vmax.f32 %v2114, %v2251
      %vm2265 = vcmask 523264
      %2266 = vst.msk [vmem:[#allocation3 + $0x1] sm:$0xff] %vm2265, %v2256
      %2267 = vst.msk [vmem:[#allocation3 + $0x9] sm:$0xff] %vm2265, %v2257
      %2268 = vst.msk [vmem:[#allocation3 + $0x11] sm:$0xff] %vm2265, %v2258
      %2269 = vst.msk [vmem:[#allocation3 + $0x19] sm:$0xff] %vm2265, %v2259
      %2270 = vst.msk [vmem:[#allocation3 + $0x21] sm:$0xff] %vm2265, %v2260
      %2271 = vst.msk [vmem:[#allocation3 + $0x29] sm:$0xff] %vm2265, %v2261
      %2272 = vst.msk [vmem:[#allocation3 + $0x31] sm:$0xff] %vm2265, %v2262
      %2273 = vst.msk [vmem:[#allocation3 + $0x39] sm:$0xff] %vm2265, %v2263
      %vm2274 = vcmask 521216
      %2275 = vst.msk [vmem:[#allocation3 + $0x41] sm:$0x3f] %vm2274, %v2264
      %s2276 = scalar_lea.vmem [#allocation3], 1
      %v2277 = vld [vmem:[%s2276] ss:$2 sm:$0xff]
      %s2278 = scalar_lea.vmem [#allocation3], 17
      %v2279 = vld [vmem:[%s2278] ss:$2 sm:$0xff]
      %s2280 = scalar_lea.vmem [#allocation3], 33
      %v2281 = vld [vmem:[%s2280] ss:$2 sm:$0xff]
      %s2282 = scalar_lea.vmem [#allocation3], 49
      %v2283 = vld [vmem:[%s2282] ss:$2 sm:$0xff]
      %s2284 = scalar_lea.vmem [#allocation3], 65
      %v2285 = vld [vmem:[%s2284] ss:$2 sm:$0x7]
      %s2286 = scalar_lea.vmem [#allocation3], 2
      %v2287 = vld [vmem:[%s2286] ss:$2 sm:$0xff]
      %s2288 = scalar_lea.vmem [#allocation3], 18
      %v2289 = vld [vmem:[%s2288] ss:$2 sm:$0xff]
      %s2290 = scalar_lea.vmem [#allocation3], 34
      %v2291 = vld [vmem:[%s2290] ss:$2 sm:$0xff]
      %s2292 = scalar_lea.vmem [#allocation3], 50
      %v2293 = vld [vmem:[%s2292] ss:$2 sm:$0xff]
      %s2294 = scalar_lea.vmem [#allocation3], 66
      %v2295 = vld [vmem:[%s2294] ss:$2 sm:$0x7]
      %v2296 = vmax.f32 %v2277, %v2287
      %v2297 = vmax.f32 %v2279, %v2289
      %v2298 = vmax.f32 %v2281, %v2291
      %v2299 = vmax.f32 %v2283, %v2293
      %v2300 = vmax.f32 %v2285, %v2295
      %2301 = vst.msk [vmem:[#allocation4] sm:$0xff] %vm2265, 0.0
      %2302 = vst.msk [vmem:[#allocation4 + $0x8] sm:$0xff] %vm2265, 0.0
      %2303 = vst.msk [vmem:[#allocation4 + $0x10] sm:$0xff] %vm2265, 0.0
      %2304 = vst.msk [vmem:[#allocation4 + $0x18] sm:$0xff] %vm2265, 0.0
      %2305 = vst.msk [vmem:[#allocation4 + $0x20] sm:$0xff] %vm2265, 0.0
      %2306 = vst.msk [vmem:[#allocation4 + $0x1] sm:$0xff] %vm2265, %v2296
      %vm2307 = vcmask 523265
      %2308 = vst.msk [vmem:[#allocation4 + $0xa] sm:$0xfe] %vm2307, %v2297
      %vm2309 = vcmask 516096
      %2310 = vst.msk [vmem:[#allocation4 + $0x12] sm:$0x1] %vm2309, %v2298
      %vm2311 = vcmask 523266
      %2312 = vst.msk [vmem:[#allocation4 + $0x13] sm:$0xfc] %vm2311, %v2298
      %vm2313 = vcmask 517120
      %2314 = vst.msk [vmem:[#allocation4 + $0x1b] sm:$0x3] %vm2313, %v2299
      %vm2315 = vcmask 523267
      %2316 = vst.msk [vmem:[#allocation4 + $0x1c] sm:$0xf8] %vm2315, %v2299
      %vm2317 = vcmask 518144
      %2318 = vst.msk [vmem:[#allocation4 + $0x24] sm:$0x7] %vm2317, %v2300
      %v2319 = vld [vmem:[#allocation4] sm:$0xff]
      %v2320 = vld [vmem:[#allocation4 + $0x8] sm:$0xff]
      %v2321 = vld [vmem:[#allocation4 + $0x10] sm:$0xff]
      %v2322 = vld [vmem:[#allocation4 + $0x18] sm:$0xff]
      %v2323 = vld [vmem:[#allocation4 + $0x20] sm:$0x3f]
      %v2324 = vpack.c.bf16 %v2320, %v2319
      %v2325 = vpack.c.bf16 %v2322, %v2321
      %v2326 = vpack.c.bf16 %v2323, %v2323
      %v2327 = vld [vmem:[%s13] sm:$0xf]
      %v2328 = vld [vmem:[%s13 + $0x4] sm:$0xf]
      %v2329 = vld [vmem:[%s13 + $0x8] sm:$0xf]
      %v2330 = vld [vmem:[%s13 + $0xc] sm:$0xf]
      %v2331 = vld [vmem:[%s13 + $0x10] sm:$0xf]
      %v2332 = vld [vmem:[%s13 + $0x14] sm:$0xf]
      %v2333 = vld [vmem:[%s13 + $0x18] sm:$0xf]
      %v2334 = vld [vmem:[%s13 + $0x1c] sm:$0xf]
      %v2335 = vld [vmem:[#allocation4 + $0x1] sm:$0xff]
      %v2336 = vld [vmem:[#allocation4 + $0x9] sm:$0xff]
      %v2337 = vld [vmem:[#allocation4 + $0x11] sm:$0xff]
      %v2338 = vld [vmem:[#allocation4 + $0x19] sm:$0xff]
      %v2339 = vld [vmem:[#allocation4 + $0x21] sm:$0x3f]
      %v2340 = vpack.c.bf16 %v2336, %v2335
      %v2341 = vpack.c.bf16 %v2338, %v2337
      %v2342 = vpack.c.bf16 %v2339, %v2339
      %s2343 = scalar_lea.vmem %s13, 32
      %v2344 = vld [vmem:[%s2343] sm:$0xf]
      %v2345 = vld [vmem:[%s2343 + $0x4] sm:$0xf]
      %v2346 = vld [vmem:[%s2343 + $0x8] sm:$0xf]
      %v2347 = vld [vmem:[%s2343 + $0xc] sm:$0xf]
      %v2348 = vld [vmem:[%s2343 + $0x10] sm:$0xf]
      %v2349 = vld [vmem:[%s2343 + $0x14] sm:$0xf]
      %v2350 = vld [vmem:[%s2343 + $0x18] sm:$0xf]
      %v2351 = vld [vmem:[%s2343 + $0x1c] sm:$0xf]
      %v2360 = vunpack.c.l.b16 %v2344
      %v2361 = vunpack.c.l.b16 %v2345
      %v2362 = vunpack.c.l.b16 %v2346
      %v2363 = vunpack.c.l.b16 %v2347
      %v2364 = vunpack.c.l.b16 %v2348
      %v2365 = vunpack.c.l.b16 %v2349
      %v2366 = vunpack.c.l.b16 %v2350
      %v2367 = vunpack.c.l.b16 %v2351
      %v2368 = vpack.c.b16 %v2361, %v2360
      %v2369 = vpack.c.b16 %v2363, %v2362
      %v2370 = vpack.c.b16 %v2365, %v2364
      %v2371 = vpack.c.b16 %v2367, %v2366
      %v2377 = vsel %vm2265, %v2340, 0
      %v2380 = vsel %vm2265, %v2341, 0
      %v2383 = vsel %vm2265, %v2342, 0
      %2385 = vmatprep.subr.bf16.mxu0 0
      %2386 = vmatpush1.bf16.msra.mxu0 %v2368
      %2387 = vmatprep.subr.bf16.mxu0 0
      %2388 = vmatpush1.bf16.msra.mxu0 %v2369
      %2389 = vmatprep.subr.bf16.mxu0 0
      %2390 = vmatpush1.bf16.msra.mxu0 %v2370
      %2391 = vmatprep.subr.bf16.mxu0 0
      %2392 = vmatpush1.bf16.msra.mxu0 %v2371
      %2393 = vmatprep.subr.bf16.mxu0 0
      %2394 = vmatpush1.bf16.msra.mxu0 0
      %2395 = vmatprep.subr.bf16.mxu0 0
      %2396 = vmatpush1.bf16.msra.mxu0 0
      %2397 = vmatprep.subr.bf16.mxu0 0
      %2398 = vmatpush1.bf16.msra.mxu0 0
      %2399 = vmatprep.subr.bf16.mxu0 0
      %2400 = vmatpush1.bf16.msra.mxu0 0
      %2401 = vmatprep.subr.bf16.mxu0 0
      %2402 = vmatpush1.bf16.msra.mxu0 0
      %2403 = vmatprep.subr.bf16.mxu0 0
      %2404 = vmatpush1.bf16.msra.mxu0 0
      %2405 = vmatprep.subr.bf16.mxu0 0
      %2406 = vmatpush1.bf16.msra.mxu0 0
      %2407 = vmatprep.subr.bf16.mxu0 0
      %2408 = vmatpush1.bf16.msra.mxu0 0
      %2409 = vmatprep.subr.bf16.mxu0 0
      %2410 = vmatpush1.bf16.msra.mxu0 0
      %2411 = vmatprep.subr.bf16.mxu0 0
      %2412 = vmatpush1.bf16.msra.mxu0 0
      %2413 = vmatprep.subr.bf16.mxu0 0
      %2414 = vmatpush1.bf16.msra.mxu0 0
      %2415 = vmatprep.subr.bf16.mxu0 0
      %2416 = vmatpush1.bf16.msra.mxu0 0
      %2417 = vmatprep.mubr.bf16.mxu0 0
      %2418 = vmatmul.mubr.bf16.gmra.mrb[0].mxu0 %v2377
      %v2419 = vpop.f32.mrb[0].mxu0
      %v2420 = vadd.f32 0.0, %v2419
      %v2421 = vpop.f32.mrb[0].mxu0
      %v2422 = vpop.f32.mrb[0].mxu0
      %v2423 = vadd.f32 0.0, %v2422
      %v2424 = vpop.f32.mrb[0].mxu0
      %2425 = vmatprep.mubr.bf16.mxu0 0
      %2426 = vmatmul.mubr.bf16.gmra.mrb[0].mxu0 %v2380
      %v2427 = vpop.f32.mrb[0].mxu0
      %v2428 = vadd.f32 0.0, %v2427
      %v2429 = vpop.f32.mrb[0].mxu0
      %v2430 = vpop.f32.mrb[0].mxu0
      %v2431 = vadd.f32 0.0, %v2430
      %v2432 = vpop.f32.mrb[0].mxu0
      %2433 = vmatprep.mubr.bf16.mxu0 0
      %2434 = vmatmul.mubr.bf16.gmra.mrb[0].mxu0 %v2383
      %v2435 = vpop.f32.mrb[0].mxu0
      %v2436 = vadd.f32 0.0, %v2435
      %v2437 = vpop.f32.mrb[0].mxu0
      %v2438 = vpop.f32.mrb[0].mxu0
      %v2439 = vpop.f32.mrb[0].mxu0
      %2440 = vdwg.mxu0
      %v2449 = vunpack.c.l.b16 %v2327
      %v2450 = vunpack.c.l.b16 %v2328
      %v2451 = vunpack.c.l.b16 %v2329
      %v2452 = vunpack.c.l.b16 %v2330
      %v2453 = vunpack.c.l.b16 %v2331
      %v2454 = vunpack.c.l.b16 %v2332
      %v2455 = vunpack.c.l.b16 %v2333
      %v2456 = vunpack.c.l.b16 %v2334
      %v2457 = vpack.c.b16 %v2450, %v2449
      %v2458 = vpack.c.b16 %v2452, %v2451
      %v2459 = vpack.c.b16 %v2454, %v2453
      %v2460 = vpack.c.b16 %v2456, %v2455
      %v2466 = vsel %vm2265, %v2324, 0
      %v2469 = vsel %vm2265, %v2325, 0
      %v2472 = vsel %vm2265, %v2326, 0
      %2474 = vmatprep.subr.bf16.mxu0 0
      %2475 = vmatpush1.bf16.msra.mxu0 %v2457
      %2476 = vmatprep.subr.bf16.mxu0 0
      %2477 = vmatpush1.bf16.msra.mxu0 %v2458
      %2478 = vmatprep.subr.bf16.mxu0 0
      %2479 = vmatpush1.bf16.msra.mxu0 %v2459
      %2480 = vmatprep.subr.bf16.mxu0 0
      %2481 = vmatpush1.bf16.msra.mxu0 %v2460
      %2482 = vmatprep.subr.bf16.mxu0 0
      %2483 = vmatpush1.bf16.msra.mxu0 0
      %2484 = vmatprep.subr.bf16.mxu0 0
      %2485 = vmatpush1.bf16.msra.mxu0 0
      %2486 = vmatprep.subr.bf16.mxu0 0
      %2487 = vmatpush1.bf16.msra.mxu0 0
      %2488 = vmatprep.subr.bf16.mxu0 0
      %2489 = vmatpush1.bf16.msra.mxu0 0
      %2490 = vmatprep.subr.bf16.mxu0 0
      %2491 = vmatpush1.bf16.msra.mxu0 0
      %2492 = vmatprep.subr.bf16.mxu0 0
      %2493 = vmatpush1.bf16.msra.mxu0 0
      %2494 = vmatprep.subr.bf16.mxu0 0
      %2495 = vmatpush1.bf16.msra.mxu0 0
      %2496 = vmatprep.subr.bf16.mxu0 0
      %2497 = vmatpush1.bf16.msra.mxu0 0
      %2498 = vmatprep.subr.bf16.mxu0 0
      %2499 = vmatpush1.bf16.msra.mxu0 0
      %2500 = vmatprep.subr.bf16.mxu0 0
      %2501 = vmatpush1.bf16.msra.mxu0 0
      %2502 = vmatprep.subr.bf16.mxu0 0
      %2503 = vmatpush1.bf16.msra.mxu0 0
      %2504 = vmatprep.subr.bf16.mxu0 0
      %2505 = vmatpush1.bf16.msra.mxu0 0
      %2506 = vmatprep.mubr.bf16.mxu0 0
      %2507 = vmatmul.mubr.bf16.gmra.mrb[0].mxu0 %v2466
      %v2508 = vpop.f32.mrb[0].mxu0
      %v2509 = vadd.f32 %v2420, %v2508
      %v2510 = vpop.f32.mrb[0].mxu0
      %v2511 = vpop.f32.mrb[0].mxu0
      %v2512 = vadd.f32 %v2423, %v2511
      %v2513 = vpop.f32.mrb[0].mxu0
      %2514 = vmatprep.mubr.bf16.mxu0 0
      %2515 = vmatmul.mubr.bf16.gmra.mrb[0].mxu0 %v2469
      %v2516 = vpop.f32.mrb[0].mxu0
      %v2517 = vadd.f32 %v2428, %v2516
      %v2518 = vpop.f32.mrb[0].mxu0
      %v2519 = vpop.f32.mrb[0].mxu0
      %v2520 = vadd.f32 %v2431, %v2519
      %v2521 = vpop.f32.mrb[0].mxu0
      %2522 = vmatprep.mubr.bf16.mxu0 0
      %2523 = vmatmul.mubr.bf16.gmra.mrb[0].mxu0 %v2472
      %v2524 = vpop.f32.mrb[0].mxu0
      %v2525 = vadd.f32 %v2436, %v2524
      %v2526 = vpop.f32.mrb[0].mxu0
      %v2527 = vpop.f32.mrb[0].mxu0
      %v2528 = vpop.f32.mrb[0].mxu0
      %2529 = vdwg.mxu0
      %v2530 = vld [vmem:[#allocation4 + $0x2] sm:$0xff]
      %v2531 = vld [vmem:[#allocation4 + $0xa] sm:$0xff]
      %v2532 = vld [vmem:[#allocation4 + $0x12] sm:$0xff]
      %v2533 = vld [vmem:[#allocation4 + $0x1a] sm:$0xff]
      %v2534 = vld [vmem:[#allocation4 + $0x22] sm:$0x3f]
      %v2535 = vpack.c.bf16 %v2531, %v2530
      %v2536 = vpack.c.bf16 %v2533, %v2532
      %v2537 = vpack.c.bf16 %v2534, %v2534
      %s2538 = scalar_lea.vmem %s13, 64
      %v2539 = vld [vmem:[%s2538] sm:$0xf]
      %v2540 = vld [vmem:[%s2538 + $0x4] sm:$0xf]
      %v2541 = vld [vmem:[%s2538 + $0x8] sm:$0xf]
      %v2542 = vld [vmem:[%s2538 + $0xc] sm:$0xf]
      %v2543 = vld [vmem:[%s2538 + $0x10] sm:$0xf]
      %v2544 = vld [vmem:[%s2538 + $0x14] sm:$0xf]
      %v2545 = vld [vmem:[%s2538 + $0x18] sm:$0xf]
      %v2546 = vld [vmem:[%s2538 + $0x1c] sm:$0xf]
      %v2555 = vunpack.c.l.b16 %v2539
      %v2556 = vunpack.c.l.b16 %v2540
      %v2557 = vunpack.c.l.b16 %v2541
      %v2558 = vunpack.c.l.b16 %v2542
      %v2559 = vunpack.c.l.b16 %v2543
      %v2560 = vunpack.c.l.b16 %v2544
      %v2561 = vunpack.c.l.b16 %v2545
      %v2562 = vunpack.c.l.b16 %v2546
      %v2563 = vpack.c.b16 %v2556, %v2555
      %v2564 = vpack.c.b16 %v2558, %v2557
      %v2565 = vpack.c.b16 %v2560, %v2559
      %v2566 = vpack.c.b16 %v2562, %v2561
      %v2572 = vsel %vm2265, %v2535, 0
      %v2575 = vsel %vm2265, %v2536, 0
      %v2578 = vsel %vm2265, %v2537, 0
      %2580 = vmatprep.subr.bf16.mxu0 0
      %2581 = vmatpush1.bf16.msra.mxu0 %v2563
      %2582 = vmatprep.subr.bf16.mxu0 0
      %2583 = vmatpush1.bf16.msra.mxu0 %v2564
      %2584 = vmatprep.subr.bf16.mxu0 0
      %2585 = vmatpush1.bf16.msra.mxu0 %v2565
      %2586 = vmatprep.subr.bf16.mxu0 0
      %2587 = vmatpush1.bf16.msra.mxu0 %v2566
      %2588 = vmatprep.subr.bf16.mxu0 0
      %2589 = vmatpush1.bf16.msra.mxu0 0
      %2590 = vmatprep.subr.bf16.mxu0 0
      %2591 = vmatpush1.bf16.msra.mxu0 0
      %2592 = vmatprep.subr.bf16.mxu0 0
      %2593 = vmatpush1.bf16.msra.mxu0 0
      %2594 = vmatprep.subr.bf16.mxu0 0
      %2595 = vmatpush1.bf16.msra.mxu0 0
      %2596 = vmatprep.subr.bf16.mxu0 0
      %2597 = vmatpush1.bf16.msra.mxu0 0
      %2598 = vmatprep.subr.bf16.mxu0 0
      %2599 = vmatpush1.bf16.msra.mxu0 0
      %2600 = vmatprep.subr.bf16.mxu0 0
      %2601 = vmatpush1.bf16.msra.mxu0 0
      %2602 = vmatprep.subr.bf16.mxu0 0
      %2603 = vmatpush1.bf16.msra.mxu0 0
      %2604 = vmatprep.subr.bf16.mxu0 0
      %2605 = vmatpush1.bf16.msra.mxu0 0
      %2606 = vmatprep.subr.bf16.mxu0 0
      %2607 = vmatpush1.bf16.msra.mxu0 0
      %2608 = vmatprep.subr.bf16.mxu0 0
      %2609 = vmatpush1.bf16.msra.mxu0 0
      %2610 = vmatprep.subr.bf16.mxu0 0
      %2611 = vmatpush1.bf16.msra.mxu0 0
      %2612 = vmatprep.mubr.bf16.mxu0 0
      %2613 = vmatmul.mubr.bf16.gmra.mrb[0].mxu0 %v2572
      %v2614 = vpop.f32.mrb[0].mxu0
      %v2615 = vadd.f32 0.0, %v2614
      %v2616 = vpop.f32.mrb[0].mxu0
      %v2617 = vpop.f32.mrb[0].mxu0
      %v2618 = vadd.f32 0.0, %v2617
      %v2619 = vpop.f32.mrb[0].mxu0
      %2620 = vmatprep.mubr.bf16.mxu0 0
      %2621 = vmatmul.mubr.bf16.gmra.mrb[0].mxu0 %v2575
      %v2622 = vpop.f32.mrb[0].mxu0
      %v2623 = vadd.f32 0.0, %v2622
      %v2624 = vpop.f32.mrb[0].mxu0
      %v2625 = vpop.f32.mrb[0].mxu0
      %v2626 = vadd.f32 0.0, %v2625
      %v2627 = vpop.f32.mrb[0].mxu0
      %2628 = vmatprep.mubr.bf16.mxu0 0
      %2629 = vmatmul.mubr.bf16.gmra.mrb[0].mxu0 %v2578
      %v2630 = vpop.f32.mrb[0].mxu0
      %v2631 = vadd.f32 0.0, %v2630
      %v2632 = vpop.f32.mrb[0].mxu0
      %v2633 = vpop.f32.mrb[0].mxu0
      %v2634 = vpop.f32.mrb[0].mxu0
      %2635 = vdwg.mxu0
      %v2636 = vadd.f32 %v2509, %v2615
      %v2637 = vadd.f32 %v2512, %v2618
      %v2638 = vadd.f32 %v2517, %v2623
      %v2639 = vadd.f32 %v2520, %v2626
      %v2640 = vadd.f32 %v2525, %v2631
      %v2641 = vld [vmem:[%s15] sm:$0x1]
      %v2643 = vlaneseq
      %v2644 = vshrl.u32 %v2643, 7
      %v2645 = vsub.s32 0, %v2644
      %v2646 = vrot.slane %v2641, %v2645
      %v2648 = vadd.f32 %v2636, %v2646
      %v2649 = vadd.f32 %v2637, %v2646
      %v2650 = vadd.f32 %v2638, %v2646
      %v2651 = vadd.f32 %v2639, %v2646
      %v2652 = vadd.f32 %v2640, %v2646
      %v2653 = vmax.f32 %v2648, 0.0
      %v2654 = vmax.f32 %v2649, 0.0
      %v2655 = vmax.f32 %v2650, 0.0
      %v2656 = vmax.f32 %v2651, 0.0
      %v2657 = vmax.f32 %v2652, 0.0
      %v2658 = vld [vmem:[%s51] sm:$0xff]
      %v2659 = vld [vmem:[%s51 + $0x8] sm:$0xff]
      %v2660 = vld [vmem:[%s51 + $0x10] sm:$0xff]
      %v2661 = vld [vmem:[%s51 + $0x18] sm:$0xff]
      %v2662 = vld [vmem:[%s51 + $0x20] sm:$0x3f]
      %2664 = vset.pattern.permute.xlu0 0
      %2665 = vperm.xlu0 %2664, %v2658
      %v2666 = vpop.permute.xlu0 %2665
      %2669 = vset.pattern.permute.xlu0 0
      %2670 = vperm.xlu0 %2669, %v2659
      %v2671 = vpop.permute.xlu0 %2670
      %2674 = vset.pattern.permute.xlu0 0
      %2675 = vperm.xlu0 %2674, %v2660
      %v2676 = vpop.permute.xlu0 %2675
      %2679 = vset.pattern.permute.xlu0 0
      %2680 = vperm.xlu0 %2679, %v2661
      %v2681 = vpop.permute.xlu0 %2680
      %2684 = vset.pattern.permute.xlu0 0
      %2685 = vperm.xlu0 %2684, %v2662
      %v2686 = vpop.permute.xlu0 %2685
      %v2688 = vmul.f32 %v2653, %v2666
      %v2689 = vmul.f32 %v2654, %v2671
      %v2690 = vmul.f32 %v2655, %v2676
      %v2691 = vmul.f32 %v2656, %v2681
      %v2692 = vmul.f32 %v2657, %v2686
      %2693 = vst [vmem:[#allocation5 + $0x1] sm:$0xff] %v2688
      %2694 = vst [vmem:[#allocation5 + $0x9] sm:$0xff] %v2689
      %2695 = vst [vmem:[#allocation5 + $0x11] sm:$0xff] %v2690
      %2696 = vst [vmem:[#allocation5 + $0x19] sm:$0xff] %v2691
      %2697 = vst [vmem:[#allocation5 + $0x21] sm:$0x3f] %v2692
      %2698 = vst [vmem:[#allocation5] sm:$0x1] 0.0
      %2699 = vst [vmem:[#allocation5 + $0x27] sm:$0x1] 0.0
      %v2700 = vld [vmem:[#allocation5] sm:$0xff]
      %v2701 = vld [vmem:[#allocation5 + $0x8] sm:$0xff]
      %v2702 = vld [vmem:[#allocation5 + $0x10] sm:$0xff]
      %v2703 = vld [vmem:[#allocation5 + $0x18] sm:$0xff]
      %v2704 = vld [vmem:[#allocation5 + $0x20] sm:$0x3f]
      %v2705 = vpack.c.bf16 %v2701, %v2700
      %v2706 = vpack.c.bf16 %v2703, %v2702
      %v2707 = vpack.c.bf16 %v2704, %v2704
      %v2708 = vld [vmem:[%s17] sm:$0xf]
      %v2709 = vld [vmem:[%s17 + $0x4] sm:$0xf]
      %v2710 = vld [vmem:[%s17 + $0x8] sm:$0xf]
      %v2711 = vld [vmem:[%s17 + $0xc] sm:$0xf]
      %v2712 = vld [vmem:[%s17 + $0x10] sm:$0xf]
      %v2713 = vld [vmem:[%s17 + $0x14] sm:$0xf]
      %v2714 = vld [vmem:[%s17 + $0x18] sm:$0xf]
      %v2715 = vld [vmem:[%s17 + $0x1c] sm:$0xf]
      %v2716 = vld [vmem:[%s17 + $0x20] sm:$0xf]
      %v2717 = vld [vmem:[%s17 + $0x24] sm:$0xf]
      %v2718 = vld [vmem:[%s17 + $0x28] sm:$0xf]
      %v2719 = vld [vmem:[%s17 + $0x2c] sm:$0xf]
      %v2720 = vld [vmem:[%s17 + $0x30] sm:$0xf]
      %v2721 = vld [vmem:[%s17 + $0x34] sm:$0xf]
      %v2722 = vld [vmem:[%s17 + $0x38] sm:$0xf]
      %v2723 = vld [vmem:[%s17 + $0x3c] sm:$0xf]
      %v2724 = vld [vmem:[#allocation5 + $0x1] sm:$0xff]
      %v2725 = vld [vmem:[#allocation5 + $0x9] sm:$0xff]
      %v2726 = vld [vmem:[#allocation5 + $0x11] sm:$0xff]
      %v2727 = vld [vmem:[#allocation5 + $0x19] sm:$0xff]
      %v2728 = vld [vmem:[#allocation5 + $0x21] sm:$0x3f]
      %v2729 = vpack.c.bf16 %v2725, %v2724
      %v2730 = vpack.c.bf16 %v2727, %v2726
      %v2731 = vpack.c.bf16 %v2728, %v2728
      %s2732 = scalar_lea.vmem %s17, 64
      %v2733 = vld [vmem:[%s2732] sm:$0xf]
      %v2734 = vld [vmem:[%s2732 + $0x4] sm:$0xf]
      %v2735 = vld [vmem:[%s2732 + $0x8] sm:$0xf]
      %v2736 = vld [vmem:[%s2732 + $0xc] sm:$0xf]
      %v2737 = vld [vmem:[%s2732 + $0x10] sm:$0xf]
      %v2738 = vld [vmem:[%s2732 + $0x14] sm:$0xf]
      %v2739 = vld [vmem:[%s2732 + $0x18] sm:$0xf]
      %v2740 = vld [vmem:[%s2732 + $0x1c] sm:$0xf]
      %v2741 = vld [vmem:[%s2732 + $0x20] sm:$0xf]
      %v2742 = vld [vmem:[%s2732 + $0x24] sm:$0xf]
      %v2743 = vld [vmem:[%s2732 + $0x28] sm:$0xf]
      %v2744 = vld [vmem:[%s2732 + $0x2c] sm:$0xf]
      %v2745 = vld [vmem:[%s2732 + $0x30] sm:$0xf]
      %v2746 = vld [vmem:[%s2732 + $0x34] sm:$0xf]
      %v2747 = vld [vmem:[%s2732 + $0x38] sm:$0xf]
      %v2748 = vld [vmem:[%s2732 + $0x3c] sm:$0xf]
      %v2765 = vunpack.c.l.b16 %v2733
      %v2766 = vunpack.c.l.b16 %v2734
      %v2767 = vunpack.c.l.b16 %v2735
      %v2768 = vunpack.c.l.b16 %v2736
      %v2769 = vunpack.c.l.b16 %v2737
      %v2770 = vunpack.c.l.b16 %v2738
      %v2771 = vunpack.c.l.b16 %v2739
      %v2772 = vunpack.c.l.b16 %v2740
      %v2773 = vunpack.c.l.b16 %v2741
      %v2774 = vunpack.c.l.b16 %v2742
      %v2775 = vunpack.c.l.b16 %v2743
      %v2776 = vunpack.c.l.b16 %v2744
      %v2777 = vunpack.c.l.b16 %v2745
      %v2778 = vunpack.c.l.b16 %v2746
      %v2779 = vunpack.c.l.b16 %v2747
      %v2780 = vunpack.c.l.b16 %v2748
      %v2781 = vpack.c.b16 %v2766, %v2765
      %v2782 = vpack.c.b16 %v2768, %v2767
      %v2783 = vpack.c.b16 %v2770, %v2769
      %v2784 = vpack.c.b16 %v2772, %v2771
      %v2785 = vpack.c.b16 %v2774, %v2773
      %v2786 = vpack.c.b16 %v2776, %v2775
      %v2787 = vpack.c.b16 %v2778, %v2777
      %v2788 = vpack.c.b16 %v2780, %v2779
      %2797 = vmatprep.subr.bf16.mxu0 0
      %2798 = vmatpush1.bf16.msra.mxu0 %v2781
      %2799 = vmatprep.subr.bf16.mxu0 0
      %2800 = vmatpush1.bf16.msra.mxu0 %v2782
      %2801 = vmatprep.subr.bf16.mxu0 0
      %2802 = vmatpush1.bf16.msra.mxu0 %v2783
      %2803 = vmatprep.subr.bf16.mxu0 0
      %2804 = vmatpush1.bf16.msra.mxu0 %v2784
      %2805 = vmatprep.subr.bf16.mxu0 0
      %2806 = vmatpush1.bf16.msra.mxu0 %v2785
      %2807 = vmatprep.subr.bf16.mxu0 0
      %2808 = vmatpush1.bf16.msra.mxu0 %v2786
      %2809 = vmatprep.subr.bf16.mxu0 0
      %2810 = vmatpush1.bf16.msra.mxu0 %v2787
      %2811 = vmatprep.subr.bf16.mxu0 0
      %2812 = vmatpush1.bf16.msra.mxu0 %v2788
      %2813 = vmatprep.subr.bf16.mxu0 0
      %2814 = vmatpush1.bf16.msra.mxu0 0
      %2815 = vmatprep.subr.bf16.mxu0 0
      %2816 = vmatpush1.bf16.msra.mxu0 0
      %2817 = vmatprep.subr.bf16.mxu0 0
      %2818 = vmatpush1.bf16.msra.mxu0 0
      %2819 = vmatprep.subr.bf16.mxu0 0
      %2820 = vmatpush1.bf16.msra.mxu0 0
      %2821 = vmatprep.subr.bf16.mxu0 0
      %2822 = vmatpush1.bf16.msra.mxu0 0
      %2823 = vmatprep.subr.bf16.mxu0 0
      %2824 = vmatpush1.bf16.msra.mxu0 0
      %2825 = vmatprep.subr.bf16.mxu0 0
      %2826 = vmatpush1.bf16.msra.mxu0 0
      %2827 = vmatprep.subr.bf16.mxu0 0
      %2828 = vmatpush1.bf16.msra.mxu0 0
      %2829 = vmatprep.mubr.bf16.mxu0 0
      %2830 = vmatmul.mubr.bf16.gmra.mrb[0].mxu0 %v2729
      %v2831 = vpop.f32.mrb[0].mxu0
      %v2832 = vadd.f32 0.0, %v2831
      %v2833 = vpop.f32.mrb[0].mxu0
      %v2834 = vpop.f32.mrb[0].mxu0
      %v2835 = vadd.f32 0.0, %v2834
      %v2836 = vpop.f32.mrb[0].mxu0
      %2837 = vmatprep.mubr.bf16.mxu0 0
      %2838 = vmatmul.mubr.bf16.gmra.mrb[0].mxu0 %v2730
      %v2839 = vpop.f32.mrb[0].mxu0
      %v2840 = vadd.f32 0.0, %v2839
      %v2841 = vpop.f32.mrb[0].mxu0
      %v2842 = vpop.f32.mrb[0].mxu0
      %v2843 = vadd.f32 0.0, %v2842
      %v2844 = vpop.f32.mrb[0].mxu0
      %2845 = vmatprep.mubr.bf16.mxu0 0
      %2846 = vmatmul.mubr.bf16.gmra.mrb[0].mxu0 %v2731
      %v2847 = vpop.f32.mrb[0].mxu0
      %v2848 = vadd.f32 0.0, %v2847
      %v2849 = vpop.f32.mrb[0].mxu0
      %v2850 = vpop.f32.mrb[0].mxu0
      %v2851 = vpop.f32.mrb[0].mxu0
      %2852 = vdwg.mxu0
      %v2869 = vunpack.c.l.b16 %v2708
      %v2870 = vunpack.c.l.b16 %v2709
      %v2871 = vunpack.c.l.b16 %v2710
      %v2872 = vunpack.c.l.b16 %v2711
      %v2873 = vunpack.c.l.b16 %v2712
      %v2874 = vunpack.c.l.b16 %v2713
      %v2875 = vunpack.c.l.b16 %v2714
      %v2876 = vunpack.c.l.b16 %v2715
      %v2877 = vunpack.c.l.b16 %v2716
      %v2878 = vunpack.c.l.b16 %v2717
      %v2879 = vunpack.c.l.b16 %v2718
      %v2880 = vunpack.c.l.b16 %v2719
      %v2881 = vunpack.c.l.b16 %v2720
      %v2882 = vunpack.c.l.b16 %v2721
      %v2883 = vunpack.c.l.b16 %v2722
      %v2884 = vunpack.c.l.b16 %v2723
      %v2885 = vpack.c.b16 %v2870, %v2869
      %v2886 = vpack.c.b16 %v2872, %v2871
      %v2887 = vpack.c.b16 %v2874, %v2873
      %v2888 = vpack.c.b16 %v2876, %v2875
      %v2889 = vpack.c.b16 %v2878, %v2877
      %v2890 = vpack.c.b16 %v2880, %v2879
      %v2891 = vpack.c.b16 %v2882, %v2881
      %v2892 = vpack.c.b16 %v2884, %v2883
      %2901 = vmatprep.subr.bf16.mxu0 0
      %2902 = vmatpush1.bf16.msra.mxu0 %v2885
      %2903 = vmatprep.subr.bf16.mxu0 0
      %2904 = vmatpush1.bf16.msra.mxu0 %v2886
      %2905 = vmatprep.subr.bf16.mxu0 0
      %2906 = vmatpush1.bf16.msra.mxu0 %v2887
      %2907 = vmatprep.subr.bf16.mxu0 0
      %2908 = vmatpush1.bf16.msra.mxu0 %v2888
      %2909 = vmatprep.subr.bf16.mxu0 0
      %2910 = vmatpush1.bf16.msra.mxu0 %v2889
      %2911 = vmatprep.subr.bf16.mxu0 0
      %2912 = vmatpush1.bf16.msra.mxu0 %v2890
      %2913 = vmatprep.subr.bf16.mxu0 0
      %2914 = vmatpush1.bf16.msra.mxu0 %v2891
      %2915 = vmatprep.subr.bf16.mxu0 0
      %2916 = vmatpush1.bf16.msra.mxu0 %v2892
      %2917 = vmatprep.subr.bf16.mxu0 0
      %2918 = vmatpush1.bf16.msra.mxu0 0
      %2919 = vmatprep.subr.bf16.mxu0 0
      %2920 = vmatpush1.bf16.msra.mxu0 0
      %2921 = vmatprep.subr.bf16.mxu0 0
      %2922 = vmatpush1.bf16.msra.mxu0 0
      %2923 = vmatprep.subr.bf16.mxu0 0
      %2924 = vmatpush1.bf16.msra.mxu0 0
      %2925 = vmatprep.subr.bf16.mxu0 0
      %2926 = vmatpush1.bf16.msra.mxu0 0
      %2927 = vmatprep.subr.bf16.mxu0 0
      %2928 = vmatpush1.bf16.msra.mxu0 0
      %2929 = vmatprep.subr.bf16.mxu0 0
      %2930 = vmatpush1.bf16.msra.mxu0 0
      %2931 = vmatprep.subr.bf16.mxu0 0
      %2932 = vmatpush1.bf16.msra.mxu0 0
      %2933 = vmatprep.mubr.bf16.mxu0 0
      %2934 = vmatmul.mubr.bf16.gmra.mrb[0].mxu0 %v2705
      %v2935 = vpop.f32.mrb[0].mxu0
      %v2936 = vadd.f32 %v2832, %v2935
      %v2937 = vpop.f32.mrb[0].mxu0
      %v2938 = vpop.f32.mrb[0].mxu0
      %v2939 = vadd.f32 %v2835, %v2938
      %v2940 = vpop.f32.mrb[0].mxu0
      %2941 = vmatprep.mubr.bf16.mxu0 0
      %2942 = vmatmul.mubr.bf16.gmra.mrb[0].mxu0 %v2706
      %v2943 = vpop.f32.mrb[0].mxu0
      %v2944 = vadd.f32 %v2840, %v2943
      %v2945 = vpop.f32.mrb[0].mxu0
      %v2946 = vpop.f32.mrb[0].mxu0
      %v2947 = vadd.f32 %v2843, %v2946
      %v2948 = vpop.f32.mrb[0].mxu0
      %2949 = vmatprep.mubr.bf16.mxu0 0
      %2950 = vmatmul.mubr.bf16.gmra.mrb[0].mxu0 %v2707
      %v2951 = vpop.f32.mrb[0].mxu0
      %v2952 = vadd.f32 %v2848, %v2951
      %v2953 = vpop.f32.mrb[0].mxu0
      %v2954 = vpop.f32.mrb[0].mxu0
      %v2955 = vpop.f32.mrb[0].mxu0
      %2956 = vdwg.mxu0
      %v2957 = vld [vmem:[#allocation5 + $0x2] sm:$0xff]
      %v2958 = vld [vmem:[#allocation5 + $0xa] sm:$0xff]
      %v2959 = vld [vmem:[#allocation5 + $0x12] sm:$0xff]
      %v2960 = vld [vmem:[#allocation5 + $0x1a] sm:$0xff]
      %v2961 = vld [vmem:[#allocation5 + $0x22] sm:$0x3f]
      %v2962 = vpack.c.bf16 %v2958, %v2957
      %v2963 = vpack.c.bf16 %v2960, %v2959
      %v2964 = vpack.c.bf16 %v2961, %v2961
      %s2965 = scalar_lea.vmem %s17, 128
      %v2966 = vld [vmem:[%s2965] sm:$0xf]
      %v2967 = vld [vmem:[%s2965 + $0x4] sm:$0xf]
      %v2968 = vld [vmem:[%s2965 + $0x8] sm:$0xf]
      %v2969 = vld [vmem:[%s2965 + $0xc] sm:$0xf]
      %v2970 = vld [vmem:[%s2965 + $0x10] sm:$0xf]
      %v2971 = vld [vmem:[%s2965 + $0x14] sm:$0xf]
      %v2972 = vld [vmem:[%s2965 + $0x18] sm:$0xf]
      %v2973 = vld [vmem:[%s2965 + $0x1c] sm:$0xf]
      %v2974 = vld [vmem:[%s2965 + $0x20] sm:$0xf]
      %v2975 = vld [vmem:[%s2965 + $0x24] sm:$0xf]
      %v2976 = vld [vmem:[%s2965 + $0x28] sm:$0xf]
      %v2977 = vld [vmem:[%s2965 + $0x2c] sm:$0xf]
      %v2978 = vld [vmem:[%s2965 + $0x30] sm:$0xf]
      %v2979 = vld [vmem:[%s2965 + $0x34] sm:$0xf]
      %v2980 = vld [vmem:[%s2965 + $0x38] sm:$0xf]
      %v2981 = vld [vmem:[%s2965 + $0x3c] sm:$0xf]
      %v2998 = vunpack.c.l.b16 %v2966
      %v2999 = vunpack.c.l.b16 %v2967
      %v3000 = vunpack.c.l.b16 %v2968
      %v3001 = vunpack.c.l.b16 %v2969
      %v3002 = vunpack.c.l.b16 %v2970
      %v3003 = vunpack.c.l.b16 %v2971
      %v3004 = vunpack.c.l.b16 %v2972
      %v3005 = vunpack.c.l.b16 %v2973
      %v3006 = vunpack.c.l.b16 %v2974
      %v3007 = vunpack.c.l.b16 %v2975
      %v3008 = vunpack.c.l.b16 %v2976
      %v3009 = vunpack.c.l.b16 %v2977
      %v3010 = vunpack.c.l.b16 %v2978
      %v3011 = vunpack.c.l.b16 %v2979
      %v3012 = vunpack.c.l.b16 %v2980
      %v3013 = vunpack.c.l.b16 %v2981
      %v3014 = vpack.c.b16 %v2999, %v2998
      %v3015 = vpack.c.b16 %v3001, %v3000
      %v3016 = vpack.c.b16 %v3003, %v3002
      %v3017 = vpack.c.b16 %v3005, %v3004
      %v3018 = vpack.c.b16 %v3007, %v3006
      %v3019 = vpack.c.b16 %v3009, %v3008
      %v3020 = vpack.c.b16 %v3011, %v3010
      %v3021 = vpack.c.b16 %v3013, %v3012
      %3030 = vmatprep.subr.bf16.mxu0 0
      %3031 = vmatpush1.bf16.msra.mxu0 %v3014
      %3032 = vmatprep.subr.bf16.mxu0 0
      %3033 = vmatpush1.bf16.msra.mxu0 %v3015
      %3034 = vmatprep.subr.bf16.mxu0 0
      %3035 = vmatpush1.bf16.msra.mxu0 %v3016
      %3036 = vmatprep.subr.bf16.mxu0 0
      %3037 = vmatpush1.bf16.msra.mxu0 %v3017
      %3038 = vmatprep.subr.bf16.mxu0 0
      %3039 = vmatpush1.bf16.msra.mxu0 %v3018
      %3040 = vmatprep.subr.bf16.mxu0 0
      %3041 = vmatpush1.bf16.msra.mxu0 %v3019
      %3042 = vmatprep.subr.bf16.mxu0 0
      %3043 = vmatpush1.bf16.msra.mxu0 %v3020
      %3044 = vmatprep.subr.bf16.mxu0 0
      %3045 = vmatpush1.bf16.msra.mxu0 %v3021
      %3046 = vmatprep.subr.bf16.mxu0 0
      %3047 = vmatpush1.bf16.msra.mxu0 0
      %3048 = vmatprep.subr.bf16.mxu0 0
      %3049 = vmatpush1.bf16.msra.mxu0 0
      %3050 = vmatprep.subr.bf16.mxu0 0
      %3051 = vmatpush1.bf16.msra.mxu0 0
      %3052 = vmatprep.subr.bf16.mxu0 0
      %3053 = vmatpush1.bf16.msra.mxu0 0
      %3054 = vmatprep.subr.bf16.mxu0 0
      %3055 = vmatpush1.bf16.msra.mxu0 0
      %3056 = vmatprep.subr.bf16.mxu0 0
      %3057 = vmatpush1.bf16.msra.mxu0 0
      %3058 = vmatprep.subr.bf16.mxu0 0
      %3059 = vmatpush1.bf16.msra.mxu0 0
      %3060 = vmatprep.subr.bf16.mxu0 0
      %3061 = vmatpush1.bf16.msra.mxu0 0
      %3062 = vmatprep.mubr.bf16.mxu0 0
      %3063 = vmatmul.mubr.bf16.gmra.mrb[0].mxu0 %v2962
      %v3064 = vpop.f32.mrb[0].mxu0
      %v3065 = vadd.f32 0.0, %v3064
      %v3066 = vpop.f32.mrb[0].mxu0
      %v3067 = vpop.f32.mrb[0].mxu0
      %v3068 = vadd.f32 0.0, %v3067
      %v3069 = vpop.f32.mrb[0].mxu0
      %3070 = vmatprep.mubr.bf16.mxu0 0
      %3071 = vmatmul.mubr.bf16.gmra.mrb[0].mxu0 %v2963
      %v3072 = vpop.f32.mrb[0].mxu0
      %v3073 = vadd.f32 0.0, %v3072
      %v3074 = vpop.f32.mrb[0].mxu0
      %v3075 = vpop.f32.mrb[0].mxu0
      %v3076 = vadd.f32 0.0, %v3075
      %v3077 = vpop.f32.mrb[0].mxu0
      %3078 = vmatprep.mubr.bf16.mxu0 0
      %3079 = vmatmul.mubr.bf16.gmra.mrb[0].mxu0 %v2964
      %v3080 = vpop.f32.mrb[0].mxu0
      %v3081 = vadd.f32 0.0, %v3080
      %v3082 = vpop.f32.mrb[0].mxu0
      %v3083 = vpop.f32.mrb[0].mxu0
      %v3084 = vpop.f32.mrb[0].mxu0
      %3085 = vdwg.mxu0
      %v3086 = vadd.f32 %v2936, %v3065
      %v3087 = vadd.f32 %v2939, %v3068
      %v3088 = vadd.f32 %v2944, %v3073
      %v3089 = vadd.f32 %v2947, %v3076
      %v3090 = vadd.f32 %v2952, %v3081
      %v3091 = vld [vmem:[%s19] sm:$0x1]
      %v3093 = vlaneseq
      %v3094 = vshrl.u32 %v3093, 7
      %v3095 = vsub.s32 0, %v3094
      %v3096 = vrot.slane %v3091, %v3095
      %v3098 = vadd.f32 %v3086, %v3096
      %v3099 = vadd.f32 %v3087, %v3096
      %v3100 = vadd.f32 %v3088, %v3096
      %v3101 = vadd.f32 %v3089, %v3096
      %v3102 = vadd.f32 %v3090, %v3096
      %v3103 = vmax.f32 %v3098, 0.0
      %v3104 = vmax.f32 %v3099, 0.0
      %v3105 = vmax.f32 %v3100, 0.0
      %v3106 = vmax.f32 %v3101, 0.0
      %v3107 = vmax.f32 %v3102, 0.0
      %v3108 = vpack.c.bf16 %v3104, %v3103
      %v3109 = vpack.c.bf16 %v3106, %v3105
      %v3110 = vpack.c.bf16 %v3107, %v3107
      %v3111 = vld [vmem:[%s21] sm:$0xf]
      %v3112 = vld [vmem:[%s21 + $0x4] sm:$0xf]
      %v3113 = vld [vmem:[%s21 + $0x8] sm:$0xf]
      %v3114 = vld [vmem:[%s21 + $0xc] sm:$0xf]
      %v3115 = vld [vmem:[%s21 + $0x10] sm:$0xf]
      %v3116 = vld [vmem:[%s21 + $0x14] sm:$0xf]
      %v3117 = vld [vmem:[%s21 + $0x18] sm:$0xf]
      %v3118 = vld [vmem:[%s21 + $0x1c] sm:$0xf]
      %v3119 = vld [vmem:[%s21 + $0x20] sm:$0xf]
      %v3120 = vld [vmem:[%s21 + $0x24] sm:$0xf]
      %v3121 = vld [vmem:[%s21 + $0x28] sm:$0xf]
      %v3122 = vld [vmem:[%s21 + $0x2c] sm:$0xf]
      %v3123 = vld [vmem:[%s21 + $0x30] sm:$0xf]
      %v3124 = vld [vmem:[%s21 + $0x34] sm:$0xf]
      %v3125 = vld [vmem:[%s21 + $0x38] sm:$0xf]
      %v3126 = vld [vmem:[%s21 + $0x3c] sm:$0xf]
      %v3143 = vunpack.c.l.b16 %v3111
      %v3144 = vunpack.c.l.b16 %v3112
      %v3145 = vunpack.c.l.b16 %v3113
      %v3146 = vunpack.c.l.b16 %v3114
      %v3147 = vunpack.c.l.b16 %v3115
      %v3148 = vunpack.c.l.b16 %v3116
      %v3149 = vunpack.c.l.b16 %v3117
      %v3150 = vunpack.c.l.b16 %v3118
      %v3151 = vunpack.c.l.b16 %v3119
      %v3152 = vunpack.c.l.b16 %v3120
      %v3153 = vunpack.c.l.b16 %v3121
      %v3154 = vunpack.c.l.b16 %v3122
      %v3155 = vunpack.c.l.b16 %v3123
      %v3156 = vunpack.c.l.b16 %v3124
      %v3157 = vunpack.c.l.b16 %v3125
      %v3158 = vunpack.c.l.b16 %v3126
      %v3159 = vpack.c.b16 %v3144, %v3143
      %v3160 = vpack.c.b16 %v3146, %v3145
      %v3161 = vpack.c.b16 %v3148, %v3147
      %v3162 = vpack.c.b16 %v3150, %v3149
      %v3163 = vpack.c.b16 %v3152, %v3151
      %v3164 = vpack.c.b16 %v3154, %v3153
      %v3165 = vpack.c.b16 %v3156, %v3155
      %v3166 = vpack.c.b16 %v3158, %v3157
      %3175 = vmatprep.subr.bf16.mxu0 0
      %3176 = vmatpush1.bf16.msra.mxu0 %v3159
      %3177 = vmatprep.subr.bf16.mxu0 0
      %3178 = vmatpush1.bf16.msra.mxu0 %v3160
      %3179 = vmatprep.subr.bf16.mxu0 0
      %3180 = vmatpush1.bf16.msra.mxu0 %v3161
      %3181 = vmatprep.subr.bf16.mxu0 0
      %3182 = vmatpush1.bf16.msra.mxu0 %v3162
      %3183 = vmatprep.subr.bf16.mxu0 0
      %3184 = vmatpush1.bf16.msra.mxu0 %v3163
      %3185 = vmatprep.subr.bf16.mxu0 0
      %3186 = vmatpush1.bf16.msra.mxu0 %v3164
      %3187 = vmatprep.subr.bf16.mxu0 0
      %3188 = vmatpush1.bf16.msra.mxu0 %v3165
      %3189 = vmatprep.subr.bf16.mxu0 0
      %3190 = vmatpush1.bf16.msra.mxu0 %v3166
      %3191 = vmatprep.subr.bf16.mxu0 0
      %3192 = vmatpush1.bf16.msra.mxu0 0
      %3193 = vmatprep.subr.bf16.mxu0 0
      %3194 = vmatpush1.bf16.msra.mxu0 0
      %3195 = vmatprep.subr.bf16.mxu0 0
      %3196 = vmatpush1.bf16.msra.mxu0 0
      %3197 = vmatprep.subr.bf16.mxu0 0
      %3198 = vmatpush1.bf16.msra.mxu0 0
      %3199 = vmatprep.subr.bf16.mxu0 0
      %3200 = vmatpush1.bf16.msra.mxu0 0
      %3201 = vmatprep.subr.bf16.mxu0 0
      %3202 = vmatpush1.bf16.msra.mxu0 0
      %3203 = vmatprep.subr.bf16.mxu0 0
      %3204 = vmatpush1.bf16.msra.mxu0 0
      %3205 = vmatprep.subr.bf16.mxu0 0
      %3206 = vmatpush1.bf16.msra.mxu0 0
      %3207 = vmatprep.mubr.bf16.mxu0 0
      %3208 = vmatmul.mubr.bf16.gmra.mrb[0].mxu0 %v3108
      %v3209 = vpop.f32.mrb[0].mxu0
      %v3210 = vadd.f32 0.0, %v3209
      %v3211 = vpop.f32.mrb[0].mxu0
      %v3212 = vpop.f32.mrb[0].mxu0
      %v3213 = vadd.f32 0.0, %v3212
      %v3214 = vpop.f32.mrb[0].mxu0
      %3215 = vmatprep.mubr.bf16.mxu0 0
      %3216 = vmatmul.mubr.bf16.gmra.mrb[0].mxu0 %v3109
      %v3217 = vpop.f32.mrb[0].mxu0
      %v3218 = vadd.f32 0.0, %v3217
      %v3219 = vpop.f32.mrb[0].mxu0
      %v3220 = vpop.f32.mrb[0].mxu0
      %v3221 = vadd.f32 0.0, %v3220
      %v3222 = vpop.f32.mrb[0].mxu0
      %3223 = vmatprep.mubr.bf16.mxu0 0
      %3224 = vmatmul.mubr.bf16.gmra.mrb[0].mxu0 %v3110
      %v3225 = vpop.f32.mrb[0].mxu0
      %v3226 = vadd.f32 0.0, %v3225
      %v3227 = vpop.f32.mrb[0].mxu0
      %v3228 = vpop.f32.mrb[0].mxu0
      %v3229 = vpop.f32.mrb[0].mxu0
      %3230 = vdwg.mxu0
      %s3231 = scalar_lea.vmem %s21, 64
      %v3232 = vld [vmem:[%s3231] sm:$0xf]
      %v3233 = vld [vmem:[%s3231 + $0x4] sm:$0xf]
      %v3234 = vld [vmem:[%s3231 + $0x8] sm:$0xf]
      %v3235 = vld [vmem:[%s3231 + $0xc] sm:$0xf]
      %v3236 = vld [vmem:[%s3231 + $0x10] sm:$0xf]
      %v3237 = vld [vmem:[%s3231 + $0x14] sm:$0xf]
      %v3238 = vld [vmem:[%s3231 + $0x18] sm:$0xf]
      %v3239 = vld [vmem:[%s3231 + $0x1c] sm:$0xf]
      %v3240 = vld [vmem:[%s3231 + $0x20] sm:$0xf]
      %v3241 = vld [vmem:[%s3231 + $0x24] sm:$0xf]
      %v3242 = vld [vmem:[%s3231 + $0x28] sm:$0xf]
      %v3243 = vld [vmem:[%s3231 + $0x2c] sm:$0xf]
      %v3244 = vld [vmem:[%s3231 + $0x30] sm:$0xf]
      %v3245 = vld [vmem:[%s3231 + $0x34] sm:$0xf]
      %v3246 = vld [vmem:[%s3231 + $0x38] sm:$0xf]
      %v3247 = vld [vmem:[%s3231 + $0x3c] sm:$0xf]
      %v3264 = vunpack.c.l.b16 %v3232
      %v3265 = vunpack.c.l.b16 %v3233
      %v3266 = vunpack.c.l.b16 %v3234
      %v3267 = vunpack.c.l.b16 %v3235
      %v3268 = vunpack.c.l.b16 %v3236
      %v3269 = vunpack.c.l.b16 %v3237
      %v3270 = vunpack.c.l.b16 %v3238
      %v3271 = vunpack.c.l.b16 %v3239
      %v3272 = vunpack.c.l.b16 %v3240
      %v3273 = vunpack.c.l.b16 %v3241
      %v3274 = vunpack.c.l.b16 %v3242
      %v3275 = vunpack.c.l.b16 %v3243
      %v3276 = vunpack.c.l.b16 %v3244
      %v3277 = vunpack.c.l.b16 %v3245
      %v3278 = vunpack.c.l.b16 %v3246
      %v3279 = vunpack.c.l.b16 %v3247
      %v3280 = vpack.c.b16 %v3265, %v3264
      %v3281 = vpack.c.b16 %v3267, %v3266
      %v3282 = vpack.c.b16 %v3269, %v3268
      %v3283 = vpack.c.b16 %v3271, %v3270
      %v3284 = vpack.c.b16 %v3273, %v3272
      %v3285 = vpack.c.b16 %v3275, %v3274
      %v3286 = vpack.c.b16 %v3277, %v3276
      %v3287 = vpack.c.b16 %v3279, %v3278
      %3296 = vmatprep.subr.bf16.mxu0 0
      %3297 = vmatpush1.bf16.msra.mxu0 %v3280
      %3298 = vmatprep.subr.bf16.mxu0 0
      %3299 = vmatpush1.bf16.msra.mxu0 %v3281
      %3300 = vmatprep.subr.bf16.mxu0 0
      %3301 = vmatpush1.bf16.msra.mxu0 %v3282
      %3302 = vmatprep.subr.bf16.mxu0 0
      %3303 = vmatpush1.bf16.msra.mxu0 %v3283
      %3304 = vmatprep.subr.bf16.mxu0 0
      %3305 = vmatpush1.bf16.msra.mxu0 %v3284
      %3306 = vmatprep.subr.bf16.mxu0 0
      %3307 = vmatpush1.bf16.msra.mxu0 %v3285
      %3308 = vmatprep.subr.bf16.mxu0 0
      %3309 = vmatpush1.bf16.msra.mxu0 %v3286
      %3310 = vmatprep.subr.bf16.mxu0 0
      %3311 = vmatpush1.bf16.msra.mxu0 %v3287
      %3312 = vmatprep.subr.bf16.mxu0 0
      %3313 = vmatpush1.bf16.msra.mxu0 0
      %3314 = vmatprep.subr.bf16.mxu0 0
      %3315 = vmatpush1.bf16.msra.mxu0 0
      %3316 = vmatprep.subr.bf16.mxu0 0
      %3317 = vmatpush1.bf16.msra.mxu0 0
      %3318 = vmatprep.subr.bf16.mxu0 0
      %3319 = vmatpush1.bf16.msra.mxu0 0
      %3320 = vmatprep.subr.bf16.mxu0 0
      %3321 = vmatpush1.bf16.msra.mxu0 0
      %3322 = vmatprep.subr.bf16.mxu0 0
      %3323 = vmatpush1.bf16.msra.mxu0 0
      %3324 = vmatprep.subr.bf16.mxu0 0
      %3325 = vmatpush1.bf16.msra.mxu0 0
      %3326 = vmatprep.subr.bf16.mxu0 0
      %3327 = vmatpush1.bf16.msra.mxu0 0
      %3328 = vmatprep.mubr.bf16.mxu0 0
      %3329 = vmatmul.mubr.bf16.gmra.mrb[0].mxu0 %v3108
      %v3330 = vpop.f32.mrb[0].mxu0
      %v3331 = vadd.f32 0.0, %v3330
      %v3332 = vpop.f32.mrb[0].mxu0
      %v3333 = vpop.f32.mrb[0].mxu0
      %v3334 = vadd.f32 0.0, %v3333
      %v3335 = vpop.f32.mrb[0].mxu0
      %3336 = vmatprep.mubr.bf16.mxu0 0
      %3337 = vmatmul.mubr.bf16.gmra.mrb[0].mxu0 %v3109
      %v3338 = vpop.f32.mrb[0].mxu0
      %v3339 = vadd.f32 0.0, %v3338
      %v3340 = vpop.f32.mrb[0].mxu0
      %v3341 = vpop.f32.mrb[0].mxu0
      %v3342 = vadd.f32 0.0, %v3341
      %v3343 = vpop.f32.mrb[0].mxu0
      %3344 = vmatprep.mubr.bf16.mxu0 0
      %3345 = vmatmul.mubr.bf16.gmra.mrb[0].mxu0 %v3110
      %v3346 = vpop.f32.mrb[0].mxu0
      %v3347 = vadd.f32 0.0, %v3346
      %v3348 = vpop.f32.mrb[0].mxu0
      %v3349 = vpop.f32.mrb[0].mxu0
      %v3350 = vpop.f32.mrb[0].mxu0
      %3351 = vdwg.mxu0
      %v3352 = vmax.f32 %v3210, %v3331
      %v3353 = vmax.f32 %v3213, %v3334
      %v3354 = vmax.f32 %v3218, %v3339
      %v3355 = vmax.f32 %v3221, %v3342
      %v3356 = vmax.f32 %v3226, %v3347
      %3357 = vst.msk [vmem:[#allocation6 + $0x1] sm:$0xff] %vm2265, %v3352
      %3358 = vst.msk [vmem:[#allocation6 + $0x9] sm:$0xff] %vm2265, %v3353
      %3359 = vst.msk [vmem:[#allocation6 + $0x11] sm:$0xff] %vm2265, %v3354
      %3360 = vst.msk [vmem:[#allocation6 + $0x19] sm:$0xff] %vm2265, %v3355
      %3361 = vst.msk [vmem:[#allocation6 + $0x21] sm:$0x3f] %vm2274, %v3356
      %s3362 = scalar_lea.vmem [#allocation6], 1
      %v3363 = vld [vmem:[%s3362] ss:$2 sm:$0xff]
      %s3364 = scalar_lea.vmem [#allocation6], 17
      %v3365 = vld [vmem:[%s3364] ss:$2 sm:$0xff]
      %s3366 = scalar_lea.vmem [#allocation6], 33
      %v3367 = vld [vmem:[%s3366] ss:$2 sm:$0x7]
      %s3368 = scalar_lea.vmem [#allocation6], 2
      %v3369 = vld [vmem:[%s3368] ss:$2 sm:$0xff]
      %s3370 = scalar_lea.vmem [#allocation6], 18
      %v3371 = vld [vmem:[%s3370] ss:$2 sm:$0xff]
      %s3372 = scalar_lea.vmem [#allocation6], 34
      %v3373 = vld [vmem:[%s3372] ss:$2 sm:$0x7]
      %v3374 = vmax.f32 %v3363, %v3369
      %v3375 = vmax.f32 %v3365, %v3371
      %v3376 = vmax.f32 %v3367, %v3373
      %3377 = vst.msk [vmem:[#allocation7] sm:$0xff] %vm2265, 0.0
      %3378 = vst.msk [vmem:[#allocation7 + $0x8] sm:$0xff] %vm2265, 0.0
      %3379 = vst.msk [vmem:[#allocation7 + $0x10] sm:$0xff] %vm2265, 0.0
      %vm3380 = vcmask 519168
      %3381 = vst.msk [vmem:[#allocation7 + $0x1] sm:$0xf] %vm3380, %v3374
      %vm3382 = vcmask 523269
      %3383 = vst.msk [vmem:[#allocation7 + $0x2] sm:$0xe0] %vm3382, %v3374
      %3384 = vst.msk [vmem:[#allocation7 + $0xa] sm:$0x1] %vm2309, %v3375
      %vm3385 = vcmask 521218
      %3386 = vst.msk [vmem:[#allocation7 + $0xb] sm:$0x3c] %vm3385, %v3375
      %vm3387 = vcmask 523271
      %3388 = vst.msk [vmem:[#allocation7 + $0xc] sm:$0x80] %vm3387, %v3375
      %3389 = vst.msk [vmem:[#allocation7 + $0x14] sm:$0x7] %vm2317, %v3376
      %v3390 = vld [vmem:[#allocation7] sm:$0xff]
      %v3391 = vld [vmem:[#allocation7 + $0x8] sm:$0xff]
      %v3392 = vld [vmem:[#allocation7 + $0x10] sm:$0x3f]
      %v3393 = vpack.c.bf16 %v3391, %v3390
      %v3394 = vpack.c.bf16 %v3392, %v3392
      %v3395 = vld [vmem:[%s23] sm:$0xf]
      %v3396 = vld [vmem:[%s23 + $0x4] sm:$0xf]
      %v3397 = vld [vmem:[%s23 + $0x8] sm:$0xf]
      %v3398 = vld [vmem:[%s23 + $0xc] sm:$0xf]
      %v3399 = vld [vmem:[%s23 + $0x10] sm:$0xf]
      %v3400 = vld [vmem:[%s23 + $0x14] sm:$0xf]
      %v3401 = vld [vmem:[%s23 + $0x18] sm:$0xf]
      %v3402 = vld [vmem:[%s23 + $0x1c] sm:$0xf]
      %v3403 = vld [vmem:[#allocation7 + $0x1] sm:$0xff]
      %v3404 = vld [vmem:[#allocation7 + $0x9] sm:$0xff]
      %v3405 = vld [vmem:[#allocation7 + $0x11] sm:$0x3f]
      %v3406 = vpack.c.bf16 %v3404, %v3403
      %v3407 = vpack.c.bf16 %v3405, %v3405
      %s3408 = scalar_lea.vmem %s23, 32
      %v3409 = vld [vmem:[%s3408] sm:$0xf]
      %v3410 = vld [vmem:[%s3408 + $0x4] sm:$0xf]
      %v3411 = vld [vmem:[%s3408 + $0x8] sm:$0xf]
      %v3412 = vld [vmem:[%s3408 + $0xc] sm:$0xf]
      %v3413 = vld [vmem:[%s3408 + $0x10] sm:$0xf]
      %v3414 = vld [vmem:[%s3408 + $0x14] sm:$0xf]
      %v3415 = vld [vmem:[%s3408 + $0x18] sm:$0xf]
      %v3416 = vld [vmem:[%s3408 + $0x1c] sm:$0xf]
      %v3425 = vunpack.c.l.b16 %v3409
      %v3426 = vunpack.c.l.b16 %v3410
      %v3427 = vunpack.c.l.b16 %v3411
      %v3428 = vunpack.c.l.b16 %v3412
      %v3429 = vunpack.c.l.b16 %v3413
      %v3430 = vunpack.c.l.b16 %v3414
      %v3431 = vunpack.c.l.b16 %v3415
      %v3432 = vunpack.c.l.b16 %v3416
      %v3433 = vpack.c.b16 %v3426, %v3425
      %v3434 = vpack.c.b16 %v3428, %v3427
      %v3435 = vpack.c.b16 %v3430, %v3429
      %v3436 = vpack.c.b16 %v3432, %v3431
      %v3442 = vsel %vm2265, %v3406, 0
      %v3445 = vsel %vm2265, %v3407, 0
      %3447 = vmatprep.subr.bf16.mxu0 0
      %3448 = vmatpush1.bf16.msra.mxu0 %v3433
      %3449 = vmatprep.subr.bf16.mxu0 0
      %3450 = vmatpush1.bf16.msra.mxu0 %v3434
      %3451 = vmatprep.subr.bf16.mxu0 0
      %3452 = vmatpush1.bf16.msra.mxu0 %v3435
      %3453 = vmatprep.subr.bf16.mxu0 0
      %3454 = vmatpush1.bf16.msra.mxu0 %v3436
      %3455 = vmatprep.subr.bf16.mxu0 0
      %3456 = vmatpush1.bf16.msra.mxu0 0
      %3457 = vmatprep.subr.bf16.mxu0 0
      %3458 = vmatpush1.bf16.msra.mxu0 0
      %3459 = vmatprep.subr.bf16.mxu0 0
      %3460 = vmatpush1.bf16.msra.mxu0 0
      %3461 = vmatprep.subr.bf16.mxu0 0
      %3462 = vmatpush1.bf16.msra.mxu0 0
      %3463 = vmatprep.subr.bf16.mxu0 0
      %3464 = vmatpush1.bf16.msra.mxu0 0
      %3465 = vmatprep.subr.bf16.mxu0 0
      %3466 = vmatpush1.bf16.msra.mxu0 0
      %3467 = vmatprep.subr.bf16.mxu0 0
      %3468 = vmatpush1.bf16.msra.mxu0 0
      %3469 = vmatprep.subr.bf16.mxu0 0
      %3470 = vmatpush1.bf16.msra.mxu0 0
      %3471 = vmatprep.subr.bf16.mxu0 0
      %3472 = vmatpush1.bf16.msra.mxu0 0
      %3473 = vmatprep.subr.bf16.mxu0 0
      %3474 = vmatpush1.bf16.msra.mxu0 0
      %3475 = vmatprep.subr.bf16.mxu0 0
      %3476 = vmatpush1.bf16.msra.mxu0 0
      %3477 = vmatprep.subr.bf16.mxu0 0
      %3478 = vmatpush1.bf16.msra.mxu0 0
      %3479 = vmatprep.mubr.bf16.mxu0 0
      %3480 = vmatmul.mubr.bf16.gmra.mrb[0].mxu0 %v3442
      %v3481 = vpop.f32.mrb[0].mxu0
      %v3482 = vadd.f32 0.0, %v3481
      %v3483 = vpop.f32.mrb[0].mxu0
      %v3484 = vpop.f32.mrb[0].mxu0
      %v3485 = vadd.f32 0.0, %v3484
      %v3486 = vpop.f32.mrb[0].mxu0
      %3487 = vmatprep.mubr.bf16.mxu0 0
      %3488 = vmatmul.mubr.bf16.gmra.mrb[0].mxu0 %v3445
      %v3489 = vpop.f32.mrb[0].mxu0
      %v3490 = vadd.f32 0.0, %v3489
      %v3491 = vpop.f32.mrb[0].mxu0
      %v3492 = vpop.f32.mrb[0].mxu0
      %v3493 = vpop.f32.mrb[0].mxu0
      %3494 = vdwg.mxu0
      %v3503 = vunpack.c.l.b16 %v3395
      %v3504 = vunpack.c.l.b16 %v3396
      %v3505 = vunpack.c.l.b16 %v3397
      %v3506 = vunpack.c.l.b16 %v3398
      %v3507 = vunpack.c.l.b16 %v3399
      %v3508 = vunpack.c.l.b16 %v3400
      %v3509 = vunpack.c.l.b16 %v3401
      %v3510 = vunpack.c.l.b16 %v3402
      %v3511 = vpack.c.b16 %v3504, %v3503
      %v3512 = vpack.c.b16 %v3506, %v3505
      %v3513 = vpack.c.b16 %v3508, %v3507
      %v3514 = vpack.c.b16 %v3510, %v3509
      %v3520 = vsel %vm2265, %v3393, 0
      %v3523 = vsel %vm2265, %v3394, 0
      %3525 = vmatprep.subr.bf16.mxu0 0
      %3526 = vmatpush1.bf16.msra.mxu0 %v3511
      %3527 = vmatprep.subr.bf16.mxu0 0
      %3528 = vmatpush1.bf16.msra.mxu0 %v3512
      %3529 = vmatprep.subr.bf16.mxu0 0
      %3530 = vmatpush1.bf16.msra.mxu0 %v3513
      %3531 = vmatprep.subr.bf16.mxu0 0
      %3532 = vmatpush1.bf16.msra.mxu0 %v3514
      %3533 = vmatprep.subr.bf16.mxu0 0
      %3534 = vmatpush1.bf16.msra.mxu0 0
      %3535 = vmatprep.subr.bf16.mxu0 0
      %3536 = vmatpush1.bf16.msra.mxu0 0
      %3537 = vmatprep.subr.bf16.mxu0 0
      %3538 = vmatpush1.bf16.msra.mxu0 0
      %3539 = vmatprep.subr.bf16.mxu0 0
      %3540 = vmatpush1.bf16.msra.mxu0 0
      %3541 = vmatprep.subr.bf16.mxu0 0
      %3542 = vmatpush1.bf16.msra.mxu0 0
      %3543 = vmatprep.subr.bf16.mxu0 0
      %3544 = vmatpush1.bf16.msra.mxu0 0
      %3545 = vmatprep.subr.bf16.mxu0 0
      %3546 = vmatpush1.bf16.msra.mxu0 0
      %3547 = vmatprep.subr.bf16.mxu0 0
      %3548 = vmatpush1.bf16.msra.mxu0 0
      %3549 = vmatprep.subr.bf16.mxu0 0
      %3550 = vmatpush1.bf16.msra.mxu0 0
      %3551 = vmatprep.subr.bf16.mxu0 0
      %3552 = vmatpush1.bf16.msra.mxu0 0
      %3553 = vmatprep.subr.bf16.mxu0 0
      %3554 = vmatpush1.bf16.msra.mxu0 0
      %3555 = vmatprep.subr.bf16.mxu0 0
      %3556 = vmatpush1.bf16.msra.mxu0 0
      %3557 = vmatprep.mubr.bf16.mxu0 0
      %3558 = vmatmul.mubr.bf16.gmra.mrb[0].mxu0 %v3520
      %v3559 = vpop.f32.mrb[0].mxu0
      %v3560 = vadd.f32 %v3482, %v3559
      %v3561 = vpop.f32.mrb[0].mxu0
      %v3562 = vpop.f32.mrb[0].mxu0
      %v3563 = vadd.f32 %v3485, %v3562
      %v3564 = vpop.f32.mrb[0].mxu0
      %3565 = vmatprep.mubr.bf16.mxu0 0
      %3566 = vmatmul.mubr.bf16.gmra.mrb[0].mxu0 %v3523
      %v3567 = vpop.f32.mrb[0].mxu0
      %v3568 = vadd.f32 %v3490, %v3567
      %v3569 = vpop.f32.mrb[0].mxu0
      %v3570 = vpop.f32.mrb[0].mxu0
      %v3571 = vpop.f32.mrb[0].mxu0
      %3572 = vdwg.mxu0
      %v3573 = vld [vmem:[#allocation7 + $0x2] sm:$0xff]
      %v3574 = vld [vmem:[#allocation7 + $0xa] sm:$0xff]
      %v3575 = vld [vmem:[#allocation7 + $0x12] sm:$0x3f]
      %v3576 = vpack.c.bf16 %v3574, %v3573
      %v3577 = vpack.c.bf16 %v3575, %v3575
      %s3578 = scalar_lea.vmem %s23, 64
      %v3579 = vld [vmem:[%s3578] sm:$0xf]
      %v3580 = vld [vmem:[%s3578 + $0x4] sm:$0xf]
      %v3581 = vld [vmem:[%s3578 + $0x8] sm:$0xf]
      %v3582 = vld [vmem:[%s3578 + $0xc] sm:$0xf]
      %v3583 = vld [vmem:[%s3578 + $0x10] sm:$0xf]
      %v3584 = vld [vmem:[%s3578 + $0x14] sm:$0xf]
      %v3585 = vld [vmem:[%s3578 + $0x18] sm:$0xf]
      %v3586 = vld [vmem:[%s3578 + $0x1c] sm:$0xf]
      %v3595 = vunpack.c.l.b16 %v3579
      %v3596 = vunpack.c.l.b16 %v3580
      %v3597 = vunpack.c.l.b16 %v3581
      %v3598 = vunpack.c.l.b16 %v3582
      %v3599 = vunpack.c.l.b16 %v3583
      %v3600 = vunpack.c.l.b16 %v3584
      %v3601 = vunpack.c.l.b16 %v3585
      %v3602 = vunpack.c.l.b16 %v3586
      %v3603 = vpack.c.b16 %v3596, %v3595
      %v3604 = vpack.c.b16 %v3598, %v3597
      %v3605 = vpack.c.b16 %v3600, %v3599
      %v3606 = vpack.c.b16 %v3602, %v3601
      %v3612 = vsel %vm2265, %v3576, 0
      %v3615 = vsel %vm2265, %v3577, 0
      %3617 = vmatprep.subr.bf16.mxu0 0
      %3618 = vmatpush1.bf16.msra.mxu0 %v3603
      %3619 = vmatprep.subr.bf16.mxu0 0
      %3620 = vmatpush1.bf16.msra.mxu0 %v3604
      %3621 = vmatprep.subr.bf16.mxu0 0
      %3622 = vmatpush1.bf16.msra.mxu0 %v3605
      %3623 = vmatprep.subr.bf16.mxu0 0
      %3624 = vmatpush1.bf16.msra.mxu0 %v3606
      %3625 = vmatprep.subr.bf16.mxu0 0
      %3626 = vmatpush1.bf16.msra.mxu0 0
      %3627 = vmatprep.subr.bf16.mxu0 0
      %3628 = vmatpush1.bf16.msra.mxu0 0
      %3629 = vmatprep.subr.bf16.mxu0 0
      %3630 = vmatpush1.bf16.msra.mxu0 0
      %3631 = vmatprep.subr.bf16.mxu0 0
      %3632 = vmatpush1.bf16.msra.mxu0 0
      %3633 = vmatprep.subr.bf16.mxu0 0
      %3634 = vmatpush1.bf16.msra.mxu0 0
      %3635 = vmatprep.subr.bf16.mxu0 0
      %3636 = vmatpush1.bf16.msra.mxu0 0
      %3637 = vmatprep.subr.bf16.mxu0 0
      %3638 = vmatpush1.bf16.msra.mxu0 0
      %3639 = vmatprep.subr.bf16.mxu0 0
      %3640 = vmatpush1.bf16.msra.mxu0 0
      %3641 = vmatprep.subr.bf16.mxu0 0
      %3642 = vmatpush1.bf16.msra.mxu0 0
      %3643 = vmatprep.subr.bf16.mxu0 0
      %3644 = vmatpush1.bf16.msra.mxu0 0
      %3645 = vmatprep.subr.bf16.mxu0 0
      %3646 = vmatpush1.bf16.msra.mxu0 0
      %3647 = vmatprep.subr.bf16.mxu0 0
      %3648 = vmatpush1.bf16.msra.mxu0 0
      %3649 = vmatprep.mubr.bf16.mxu0 0
      %3650 = vmatmul.mubr.bf16.gmra.mrb[0].mxu0 %v3612
      %v3651 = vpop.f32.mrb[0].mxu0
      %v3652 = vadd.f32 0.0, %v3651
      %v3653 = vpop.f32.mrb[0].mxu0
      %v3654 = vpop.f32.mrb[0].mxu0
      %v3655 = vadd.f32 0.0, %v3654
      %v3656 = vpop.f32.mrb[0].mxu0
      %3657 = vmatprep.mubr.bf16.mxu0 0
      %3658 = vmatmul.mubr.bf16.gmra.mrb[0].mxu0 %v3615
      %v3659 = vpop.f32.mrb[0].mxu0
      %v3660 = vadd.f32 0.0, %v3659
      %v3661 = vpop.f32.mrb[0].mxu0
      %v3662 = vpop.f32.mrb[0].mxu0
      %v3663 = vpop.f32.mrb[0].mxu0
      %3664 = vdwg.mxu0
      %v3665 = vadd.f32 %v3560, %v3652
      %v3666 = vadd.f32 %v3563, %v3655
      %v3667 = vadd.f32 %v3568, %v3660
      %v3668 = vld [vmem:[%s25] sm:$0x1]
      %v3670 = vlaneseq
      %v3671 = vshrl.u32 %v3670, 7
      %v3672 = vsub.s32 0, %v3671
      %v3673 = vrot.slane %v3668, %v3672
      %v3675 = vadd.f32 %v3665, %v3673
      %v3676 = vadd.f32 %v3666, %v3673
      %v3677 = vadd.f32 %v3667, %v3673
      %v3678 = vmax.f32 %v3675, 0.0
      %v3679 = vmax.f32 %v3676, 0.0
      %v3680 = vmax.f32 %v3677, 0.0
      %v3681 = vld [vmem:[%s53] sm:$0xff]
      %v3682 = vld [vmem:[%s53 + $0x8] sm:$0xff]
      %v3683 = vld [vmem:[%s53 + $0x10] sm:$0x3f]
      %3685 = vset.pattern.permute.xlu0 0
      %3686 = vperm.xlu0 %3685, %v3681
      %v3687 = vpop.permute.xlu0 %3686
      %3690 = vset.pattern.permute.xlu0 0
      %3691 = vperm.xlu0 %3690, %v3682
      %v3692 = vpop.permute.xlu0 %3691
      %3695 = vset.pattern.permute.xlu0 0
      %3696 = vperm.xlu0 %3695, %v3683
      %v3697 = vpop.permute.xlu0 %3696
      %v3699 = vmul.f32 %v3678, %v3687
      %v3700 = vmul.f32 %v3679, %v3692
      %v3701 = vmul.f32 %v3680, %v3697
      %3702 = vst [vmem:[#allocation8 + $0x1] sm:$0xff] %v3699
      %3703 = vst [vmem:[#allocation8 + $0x9] sm:$0xff] %v3700
      %3704 = vst [vmem:[#allocation8 + $0x11] sm:$0x3f] %v3701
      %3705 = vst [vmem:[#allocation8] sm:$0x1] 0.0
      %3706 = vst [vmem:[#allocation8 + $0x17] sm:$0x1] 0.0
      %v3707 = vld [vmem:[#allocation8] sm:$0xff]
      %v3708 = vld [vmem:[#allocation8 + $0x8] sm:$0xff]
      %v3709 = vld [vmem:[#allocation8 + $0x10] sm:$0x3f]
      %v3710 = vpack.c.bf16 %v3708, %v3707
      %v3711 = vpack.c.bf16 %v3709, %v3709
      %v3712 = vld [vmem:[%s27] sm:$0xf]
      %v3713 = vld [vmem:[%s27 + $0x4] sm:$0xf]
      %v3714 = vld [vmem:[%s27 + $0x8] sm:$0xf]
      %v3715 = vld [vmem:[%s27 + $0xc] sm:$0xf]
      %v3716 = vld [vmem:[%s27 + $0x10] sm:$0xf]
      %v3717 = vld [vmem:[%s27 + $0x14] sm:$0xf]
      %v3718 = vld [vmem:[%s27 + $0x18] sm:$0xf]
      %v3719 = vld [vmem:[%s27 + $0x1c] sm:$0xf]
      %v3720 = vld [vmem:[%s27 + $0x20] sm:$0xf]
      %v3721 = vld [vmem:[%s27 + $0x24] sm:$0xf]
      %v3722 = vld [vmem:[%s27 + $0x28] sm:$0xf]
      %v3723 = vld [vmem:[%s27 + $0x2c] sm:$0xf]
      %v3724 = vld [vmem:[%s27 + $0x30] sm:$0xf]
      %v3725 = vld [vmem:[%s27 + $0x34] sm:$0xf]
      %v3726 = vld [vmem:[%s27 + $0x38] sm:$0xf]
      %v3727 = vld [vmem:[%s27 + $0x3c] sm:$0xf]
      %v3728 = vld [vmem:[#allocation8 + $0x1] sm:$0xff]
      %v3729 = vld [vmem:[#allocation8 + $0x9] sm:$0xff]
      %v3730 = vld [vmem:[#allocation8 + $0x11] sm:$0x3f]
      %v3731 = vpack.c.bf16 %v3729, %v3728
      %v3732 = vpack.c.bf16 %v3730, %v3730
      %s3733 = scalar_lea.vmem %s27, 64
      %v3734 = vld [vmem:[%s3733] sm:$0xf]
      %v3735 = vld [vmem:[%s3733 + $0x4] sm:$0xf]
      %v3736 = vld [vmem:[%s3733 + $0x8] sm:$0xf]
      %v3737 = vld [vmem:[%s3733 + $0xc] sm:$0xf]
      %v3738 = vld [vmem:[%s3733 + $0x10] sm:$0xf]
      %v3739 = vld [vmem:[%s3733 + $0x14] sm:$0xf]
      %v3740 = vld [vmem:[%s3733 + $0x18] sm:$0xf]
      %v3741 = vld [vmem:[%s3733 + $0x1c] sm:$0xf]
      %v3742 = vld [vmem:[%s3733 + $0x20] sm:$0xf]
      %v3743 = vld [vmem:[%s3733 + $0x24] sm:$0xf]
      %v3744 = vld [vmem:[%s3733 + $0x28] sm:$0xf]
      %v3745 = vld [vmem:[%s3733 + $0x2c] sm:$0xf]
      %v3746 = vld [vmem:[%s3733 + $0x30] sm:$0xf]
      %v3747 = vld [vmem:[%s3733 + $0x34] sm:$0xf]
      %v3748 = vld [vmem:[%s3733 + $0x38] sm:$0xf]
      %v3749 = vld [vmem:[%s3733 + $0x3c] sm:$0xf]
      %v3766 = vunpack.c.l.b16 %v3734
      %v3767 = vunpack.c.l.b16 %v3735
      %v3768 = vunpack.c.l.b16 %v3736
      %v3769 = vunpack.c.l.b16 %v3737
      %v3770 = vunpack.c.l.b16 %v3738
      %v3771 = vunpack.c.l.b16 %v3739
      %v3772 = vunpack.c.l.b16 %v3740
      %v3773 = vunpack.c.l.b16 %v3741
      %v3774 = vunpack.c.l.b16 %v3742
      %v3775 = vunpack.c.l.b16 %v3743
      %v3776 = vunpack.c.l.b16 %v3744
      %v3777 = vunpack.c.l.b16 %v3745
      %v3778 = vunpack.c.l.b16 %v3746
      %v3779 = vunpack.c.l.b16 %v3747
      %v3780 = vunpack.c.l.b16 %v3748
      %v3781 = vunpack.c.l.b16 %v3749
      %v3782 = vpack.c.b16 %v3767, %v3766
      %v3783 = vpack.c.b16 %v3769, %v3768
      %v3784 = vpack.c.b16 %v3771, %v3770
      %v3785 = vpack.c.b16 %v3773, %v3772
      %v3786 = vpack.c.b16 %v3775, %v3774
      %v3787 = vpack.c.b16 %v3777, %v3776
      %v3788 = vpack.c.b16 %v3779, %v3778
      %v3789 = vpack.c.b16 %v3781, %v3780
      %3798 = vmatprep.subr.bf16.mxu0 0
      %3799 = vmatpush1.bf16.msra.mxu0 %v3782
      %3800 = vmatprep.subr.bf16.mxu0 0
      %3801 = vmatpush1.bf16.msra.mxu0 %v3783
      %3802 = vmatprep.subr.bf16.mxu0 0
      %3803 = vmatpush1.bf16.msra.mxu0 %v3784
      %3804 = vmatprep.subr.bf16.mxu0 0
      %3805 = vmatpush1.bf16.msra.mxu0 %v3785
      %3806 = vmatprep.subr.bf16.mxu0 0
      %3807 = vmatpush1.bf16.msra.mxu0 %v3786
      %3808 = vmatprep.subr.bf16.mxu0 0
      %3809 = vmatpush1.bf16.msra.mxu0 %v3787
      %3810 = vmatprep.subr.bf16.mxu0 0
      %3811 = vmatpush1.bf16.msra.mxu0 %v3788
      %3812 = vmatprep.subr.bf16.mxu0 0
      %3813 = vmatpush1.bf16.msra.mxu0 %v3789
      %3814 = vmatprep.subr.bf16.mxu0 0
      %3815 = vmatpush1.bf16.msra.mxu0 0
      %3816 = vmatprep.subr.bf16.mxu0 0
      %3817 = vmatpush1.bf16.msra.mxu0 0
      %3818 = vmatprep.subr.bf16.mxu0 0
      %3819 = vmatpush1.bf16.msra.mxu0 0
      %3820 = vmatprep.subr.bf16.mxu0 0
      %3821 = vmatpush1.bf16.msra.mxu0 0
      %3822 = vmatprep.subr.bf16.mxu0 0
      %3823 = vmatpush1.bf16.msra.mxu0 0
      %3824 = vmatprep.subr.bf16.mxu0 0
      %3825 = vmatpush1.bf16.msra.mxu0 0
      %3826 = vmatprep.subr.bf16.mxu0 0
      %3827 = vmatpush1.bf16.msra.mxu0 0
      %3828 = vmatprep.subr.bf16.mxu0 0
      %3829 = vmatpush1.bf16.msra.mxu0 0
      %3830 = vmatprep.mubr.bf16.mxu0 0
      %3831 = vmatmul.mubr.bf16.gmra.mrb[0].mxu0 %v3731
      %v3832 = vpop.f32.mrb[0].mxu0
      %v3833 = vadd.f32 0.0, %v3832
      %v3834 = vpop.f32.mrb[0].mxu0
      %v3835 = vpop.f32.mrb[0].mxu0
      %v3836 = vadd.f32 0.0, %v3835
      %v3837 = vpop.f32.mrb[0].mxu0
      %3838 = vmatprep.mubr.bf16.mxu0 0
      %3839 = vmatmul.mubr.bf16.gmra.mrb[0].mxu0 %v3732
      %v3840 = vpop.f32.mrb[0].mxu0
      %v3841 = vadd.f32 0.0, %v3840
      %v3842 = vpop.f32.mrb[0].mxu0
      %v3843 = vpop.f32.mrb[0].mxu0
      %v3844 = vpop.f32.mrb[0].mxu0
      %3845 = vdwg.mxu0
      %v3862 = vunpack.c.l.b16 %v3712
      %v3863 = vunpack.c.l.b16 %v3713
      %v3864 = vunpack.c.l.b16 %v3714
      %v3865 = vunpack.c.l.b16 %v3715
      %v3866 = vunpack.c.l.b16 %v3716
      %v3867 = vunpack.c.l.b16 %v3717
      %v3868 = vunpack.c.l.b16 %v3718
      %v3869 = vunpack.c.l.b16 %v3719
      %v3870 = vunpack.c.l.b16 %v3720
      %v3871 = vunpack.c.l.b16 %v3721
      %v3872 = vunpack.c.l.b16 %v3722
      %v3873 = vunpack.c.l.b16 %v3723
      %v3874 = vunpack.c.l.b16 %v3724
      %v3875 = vunpack.c.l.b16 %v3725
      %v3876 = vunpack.c.l.b16 %v3726
      %v3877 = vunpack.c.l.b16 %v3727
      %v3878 = vpack.c.b16 %v3863, %v3862
      %v3879 = vpack.c.b16 %v3865, %v3864
      %v3880 = vpack.c.b16 %v3867, %v3866
      %v3881 = vpack.c.b16 %v3869, %v3868
      %v3882 = vpack.c.b16 %v3871, %v3870
      %v3883 = vpack.c.b16 %v3873, %v3872
      %v3884 = vpack.c.b16 %v3875, %v3874
      %v3885 = vpack.c.b16 %v3877, %v3876
      %3894 = vmatprep.subr.bf16.mxu0 0
      %3895 = vmatpush1.bf16.msra.mxu0 %v3878
      %3896 = vmatprep.subr.bf16.mxu0 0
      %3897 = vmatpush1.bf16.msra.mxu0 %v3879
      %3898 = vmatprep.subr.bf16.mxu0 0
      %3899 = vmatpush1.bf16.msra.mxu0 %v3880
      %3900 = vmatprep.subr.bf16.mxu0 0
      %3901 = vmatpush1.bf16.msra.mxu0 %v3881
      %3902 = vmatprep.subr.bf16.mxu0 0
      %3903 = vmatpush1.bf16.msra.mxu0 %v3882
      %3904 = vmatprep.subr.bf16.mxu0 0
      %3905 = vmatpush1.bf16.msra.mxu0 %v3883
      %3906 = vmatprep.subr.bf16.mxu0 0
      %3907 = vmatpush1.bf16.msra.mxu0 %v3884
      %3908 = vmatprep.subr.bf16.mxu0 0
      %3909 = vmatpush1.bf16.msra.mxu0 %v3885
      %3910 = vmatprep.subr.bf16.mxu0 0
      %3911 = vmatpush1.bf16.msra.mxu0 0
      %3912 = vmatprep.subr.bf16.mxu0 0
      %3913 = vmatpush1.bf16.msra.mxu0 0
      %3914 = vmatprep.subr.bf16.mxu0 0
      %3915 = vmatpush1.bf16.msra.mxu0 0
      %3916 = vmatprep.subr.bf16.mxu0 0
      %3917 = vmatpush1.bf16.msra.mxu0 0
      %3918 = vmatprep.subr.bf16.mxu0 0
      %3919 = vmatpush1.bf16.msra.mxu0 0
      %3920 = vmatprep.subr.bf16.mxu0 0
      %3921 = vmatpush1.bf16.msra.mxu0 0
      %3922 = vmatprep.subr.bf16.mxu0 0
      %3923 = vmatpush1.bf16.msra.mxu0 0
      %3924 = vmatprep.subr.bf16.mxu0 0
      %3925 = vmatpush1.bf16.msra.mxu0 0
      %3926 = vmatprep.mubr.bf16.mxu0 0
      %3927 = vmatmul.mubr.bf16.gmra.mrb[0].mxu0 %v3710
      %v3928 = vpop.f32.mrb[0].mxu0
      %v3929 = vadd.f32 %v3833, %v3928
      %v3930 = vpop.f32.mrb[0].mxu0
      %v3931 = vpop.f32.mrb[0].mxu0
      %v3932 = vadd.f32 %v3836, %v3931
      %v3933 = vpop.f32.mrb[0].mxu0
      %3934 = vmatprep.mubr.bf16.mxu0 0
      %3935 = vmatmul.mubr.bf16.gmra.mrb[0].mxu0 %v3711
      %v3936 = vpop.f32.mrb[0].mxu0
      %v3937 = vadd.f32 %v3841, %v3936
      %v3938 = vpop.f32.mrb[0].mxu0
      %v3939 = vpop.f32.mrb[0].mxu0
      %v3940 = vpop.f32.mrb[0].mxu0
      %3941 = vdwg.mxu0
      %v3942 = vld [vmem:[#allocation8 + $0x2] sm:$0xff]
      %v3943 = vld [vmem:[#allocation8 + $0xa] sm:$0xff]
      %v3944 = vld [vmem:[#allocation8 + $0x12] sm:$0x3f]
      %v3945 = vpack.c.bf16 %v3943, %v3942
      %v3946 = vpack.c.bf16 %v3944, %v3944
      %s3947 = scalar_lea.vmem %s27, 128
      %v3948 = vld [vmem:[%s3947] sm:$0xf]
      %v3949 = vld [vmem:[%s3947 + $0x4] sm:$0xf]
      %v3950 = vld [vmem:[%s3947 + $0x8] sm:$0xf]
      %v3951 = vld [vmem:[%s3947 + $0xc] sm:$0xf]
      %v3952 = vld [vmem:[%s3947 + $0x10] sm:$0xf]
      %v3953 = vld [vmem:[%s3947 + $0x14] sm:$0xf]
      %v3954 = vld [vmem:[%s3947 + $0x18] sm:$0xf]
      %v3955 = vld [vmem:[%s3947 + $0x1c] sm:$0xf]
      %v3956 = vld [vmem:[%s3947 + $0x20] sm:$0xf]
      %v3957 = vld [vmem:[%s3947 + $0x24] sm:$0xf]
      %v3958 = vld [vmem:[%s3947 + $0x28] sm:$0xf]
      %v3959 = vld [vmem:[%s3947 + $0x2c] sm:$0xf]
      %v3960 = vld [vmem:[%s3947 + $0x30] sm:$0xf]
      %v3961 = vld [vmem:[%s3947 + $0x34] sm:$0xf]
      %v3962 = vld [vmem:[%s3947 + $0x38] sm:$0xf]
      %v3963 = vld [vmem:[%s3947 + $0x3c] sm:$0xf]
      %v3980 = vunpack.c.l.b16 %v3948
      %v3981 = vunpack.c.l.b16 %v3949
      %v3982 = vunpack.c.l.b16 %v3950
      %v3983 = vunpack.c.l.b16 %v3951
      %v3984 = vunpack.c.l.b16 %v3952
      %v3985 = vunpack.c.l.b16 %v3953
      %v3986 = vunpack.c.l.b16 %v3954
      %v3987 = vunpack.c.l.b16 %v3955
      %v3988 = vunpack.c.l.b16 %v3956
      %v3989 = vunpack.c.l.b16 %v3957
      %v3990 = vunpack.c.l.b16 %v3958
      %v3991 = vunpack.c.l.b16 %v3959
      %v3992 = vunpack.c.l.b16 %v3960
      %v3993 = vunpack.c.l.b16 %v3961
      %v3994 = vunpack.c.l.b16 %v3962
      %v3995 = vunpack.c.l.b16 %v3963
      %v3996 = vpack.c.b16 %v3981, %v3980
      %v3997 = vpack.c.b16 %v3983, %v3982
      %v3998 = vpack.c.b16 %v3985, %v3984
      %v3999 = vpack.c.b16 %v3987, %v3986
      %v4000 = vpack.c.b16 %v3989, %v3988
      %v4001 = vpack.c.b16 %v3991, %v3990
      %v4002 = vpack.c.b16 %v3993, %v3992
      %v4003 = vpack.c.b16 %v3995, %v3994
      %4012 = vmatprep.subr.bf16.mxu0 0
      %4013 = vmatpush1.bf16.msra.mxu0 %v3996
      %4014 = vmatprep.subr.bf16.mxu0 0
      %4015 = vmatpush1.bf16.msra.mxu0 %v3997
      %4016 = vmatprep.subr.bf16.mxu0 0
      %4017 = vmatpush1.bf16.msra.mxu0 %v3998
      %4018 = vmatprep.subr.bf16.mxu0 0
      %4019 = vmatpush1.bf16.msra.mxu0 %v3999
      %4020 = vmatprep.subr.bf16.mxu0 0
      %4021 = vmatpush1.bf16.msra.mxu0 %v4000
      %4022 = vmatprep.subr.bf16.mxu0 0
      %4023 = vmatpush1.bf16.msra.mxu0 %v4001
      %4024 = vmatprep.subr.bf16.mxu0 0
      %4025 = vmatpush1.bf16.msra.mxu0 %v4002
      %4026 = vmatprep.subr.bf16.mxu0 0
      %4027 = vmatpush1.bf16.msra.mxu0 %v4003
      %4028 = vmatprep.subr.bf16.mxu0 0
      %4029 = vmatpush1.bf16.msra.mxu0 0
      %4030 = vmatprep.subr.bf16.mxu0 0
      %4031 = vmatpush1.bf16.msra.mxu0 0
      %4032 = vmatprep.subr.bf16.mxu0 0
      %4033 = vmatpush1.bf16.msra.mxu0 0
      %4034 = vmatprep.subr.bf16.mxu0 0
      %4035 = vmatpush1.bf16.msra.mxu0 0
      %4036 = vmatprep.subr.bf16.mxu0 0
      %4037 = vmatpush1.bf16.msra.mxu0 0
      %4038 = vmatprep.subr.bf16.mxu0 0
      %4039 = vmatpush1.bf16.msra.mxu0 0
      %4040 = vmatprep.subr.bf16.mxu0 0
      %4041 = vmatpush1.bf16.msra.mxu0 0
      %4042 = vmatprep.subr.bf16.mxu0 0
      %4043 = vmatpush1.bf16.msra.mxu0 0
      %4044 = vmatprep.mubr.bf16.mxu0 0
      %4045 = vmatmul.mubr.bf16.gmra.mrb[0].mxu0 %v3945
      %v4046 = vpop.f32.mrb[0].mxu0
      %v4047 = vadd.f32 0.0, %v4046
      %v4048 = vpop.f32.mrb[0].mxu0
      %v4049 = vpop.f32.mrb[0].mxu0
      %v4050 = vadd.f32 0.0, %v4049
      %v4051 = vpop.f32.mrb[0].mxu0
      %4052 = vmatprep.mubr.bf16.mxu0 0
      %4053 = vmatmul.mubr.bf16.gmra.mrb[0].mxu0 %v3946
      %v4054 = vpop.f32.mrb[0].mxu0
      %v4055 = vadd.f32 0.0, %v4054
      %v4056 = vpop.f32.mrb[0].mxu0
      %v4057 = vpop.f32.mrb[0].mxu0
      %v4058 = vpop.f32.mrb[0].mxu0
      %4059 = vdwg.mxu0
      %v4060 = vadd.f32 %v3929, %v4047
      %v4061 = vadd.f32 %v3932, %v4050
      %v4062 = vadd.f32 %v3937, %v4055
      %v4063 = vld [vmem:[%s29] sm:$0x1]
      %v4065 = vlaneseq
      %v4066 = vshrl.u32 %v4065, 7
      %v4067 = vsub.s32 0, %v4066
      %v4068 = vrot.slane %v4063, %v4067
      %v4070 = vadd.f32 %v4060, %v4068
      %v4071 = vadd.f32 %v4061, %v4068
      %v4072 = vadd.f32 %v4062, %v4068
      %v4073 = vmax.f32 %v4070, 0.0
      %v4074 = vmax.f32 %v4071, 0.0
      %v4075 = vmax.f32 %v4072, 0.0
      %v4076 = vld [vmem:[%s55] sm:$0xff]
      %v4077 = vld [vmem:[%s55 + $0x8] sm:$0xff]
      %v4078 = vld [vmem:[%s55 + $0x10] sm:$0x3f]
      %4080 = vset.pattern.permute.xlu0 0
      %4081 = vperm.xlu0 %4080, %v4076
      %v4082 = vpop.permute.xlu0 %4081
      %4085 = vset.pattern.permute.xlu0 0
      %4086 = vperm.xlu0 %4085, %v4077
      %v4087 = vpop.permute.xlu0 %4086
      %4090 = vset.pattern.permute.xlu0 0
      %4091 = vperm.xlu0 %4090, %v4078
      %v4092 = vpop.permute.xlu0 %4091
      %v4094 = vmul.f32 %v4073, %v4082
      %v4095 = vmul.f32 %v4074, %v4087
      %v4096 = vmul.f32 %v4075, %v4092
      %4097 = vst [vmem:[#allocation9 + $0x1] sm:$0xff] %v4094
      %4098 = vst [vmem:[#allocation9 + $0x9] sm:$0xff] %v4095
      %4099 = vst [vmem:[#allocation9 + $0x11] sm:$0x3f] %v4096
      %4100 = vst [vmem:[#allocation9] sm:$0x1] 0.0
      %4101 = vst [vmem:[#allocation9 + $0x17] sm:$0x1] 0.0
      %v4102 = vld [vmem:[#allocation9] sm:$0xff]
      %v4103 = vld [vmem:[#allocation9 + $0x8] sm:$0xff]
      %v4104 = vld [vmem:[#allocation9 + $0x10] sm:$0x3f]
      %v4105 = vpack.c.bf16 %v4103, %v4102
      %v4106 = vpack.c.bf16 %v4104, %v4104
      %v4107 = vld [vmem:[%s31] sm:$0xf]
      %v4108 = vld [vmem:[%s31 + $0x4] sm:$0xf]
      %v4109 = vld [vmem:[%s31 + $0x8] sm:$0xf]
      %v4110 = vld [vmem:[%s31 + $0xc] sm:$0xf]
      %v4111 = vld [vmem:[%s31 + $0x10] sm:$0xf]
      %v4112 = vld [vmem:[%s31 + $0x14] sm:$0xf]
      %v4113 = vld [vmem:[%s31 + $0x18] sm:$0xf]
      %v4114 = vld [vmem:[%s31 + $0x1c] sm:$0xf]
      %v4115 = vld [vmem:[%s31 + $0x20] sm:$0xf]
      %v4116 = vld [vmem:[%s31 + $0x24] sm:$0xf]
      %v4117 = vld [vmem:[%s31 + $0x28] sm:$0xf]
      %v4118 = vld [vmem:[%s31 + $0x2c] sm:$0xf]
      %v4119 = vld [vmem:[%s31 + $0x30] sm:$0xf]
      %v4120 = vld [vmem:[%s31 + $0x34] sm:$0xf]
      %v4121 = vld [vmem:[%s31 + $0x38] sm:$0xf]
      %v4122 = vld [vmem:[%s31 + $0x3c] sm:$0xf]
      %v4123 = vld [vmem:[#allocation9 + $0x1] sm:$0xff]
      %v4124 = vld [vmem:[#allocation9 + $0x9] sm:$0xff]
      %v4125 = vld [vmem:[#allocation9 + $0x11] sm:$0x3f]
      %v4126 = vpack.c.bf16 %v4124, %v4123
      %v4127 = vpack.c.bf16 %v4125, %v4125
      %s4128 = scalar_lea.vmem %s31, 64
      %v4129 = vld [vmem:[%s4128] sm:$0xf]
      %v4130 = vld [vmem:[%s4128 + $0x4] sm:$0xf]
      %v4131 = vld [vmem:[%s4128 + $0x8] sm:$0xf]
      %v4132 = vld [vmem:[%s4128 + $0xc] sm:$0xf]
      %v4133 = vld [vmem:[%s4128 + $0x10] sm:$0xf]
      %v4134 = vld [vmem:[%s4128 + $0x14] sm:$0xf]
      %v4135 = vld [vmem:[%s4128 + $0x18] sm:$0xf]
      %v4136 = vld [vmem:[%s4128 + $0x1c] sm:$0xf]
      %v4137 = vld [vmem:[%s4128 + $0x20] sm:$0xf]
      %v4138 = vld [vmem:[%s4128 + $0x24] sm:$0xf]
      %v4139 = vld [vmem:[%s4128 + $0x28] sm:$0xf]
      %v4140 = vld [vmem:[%s4128 + $0x2c] sm:$0xf]
      %v4141 = vld [vmem:[%s4128 + $0x30] sm:$0xf]
      %v4142 = vld [vmem:[%s4128 + $0x34] sm:$0xf]
      %v4143 = vld [vmem:[%s4128 + $0x38] sm:$0xf]
      %v4144 = vld [vmem:[%s4128 + $0x3c] sm:$0xf]
      %v4161 = vunpack.c.l.b16 %v4129
      %v4162 = vunpack.c.l.b16 %v4130
      %v4163 = vunpack.c.l.b16 %v4131
      %v4164 = vunpack.c.l.b16 %v4132
      %v4165 = vunpack.c.l.b16 %v4133
      %v4166 = vunpack.c.l.b16 %v4134
      %v4167 = vunpack.c.l.b16 %v4135
      %v4168 = vunpack.c.l.b16 %v4136
      %v4169 = vunpack.c.l.b16 %v4137
      %v4170 = vunpack.c.l.b16 %v4138
      %v4171 = vunpack.c.l.b16 %v4139
      %v4172 = vunpack.c.l.b16 %v4140
      %v4173 = vunpack.c.l.b16 %v4141
      %v4174 = vunpack.c.l.b16 %v4142
      %v4175 = vunpack.c.l.b16 %v4143
      %v4176 = vunpack.c.l.b16 %v4144
      %v4177 = vpack.c.b16 %v4162, %v4161
      %v4178 = vpack.c.b16 %v4164, %v4163
      %v4179 = vpack.c.b16 %v4166, %v4165
      %v4180 = vpack.c.b16 %v4168, %v4167
      %v4181 = vpack.c.b16 %v4170, %v4169
      %v4182 = vpack.c.b16 %v4172, %v4171
      %v4183 = vpack.c.b16 %v4174, %v4173
      %v4184 = vpack.c.b16 %v4176, %v4175
      %4193 = vmatprep.subr.bf16.mxu0 0
      %4194 = vmatpush1.bf16.msra.mxu0 %v4177
      %4195 = vmatprep.subr.bf16.mxu0 0
      %4196 = vmatpush1.bf16.msra.mxu0 %v4178
      %4197 = vmatprep.subr.bf16.mxu0 0
      %4198 = vmatpush1.bf16.msra.mxu0 %v4179
      %4199 = vmatprep.subr.bf16.mxu0 0
      %4200 = vmatpush1.bf16.msra.mxu0 %v4180
      %4201 = vmatprep.subr.bf16.mxu0 0
      %4202 = vmatpush1.bf16.msra.mxu0 %v4181
      %4203 = vmatprep.subr.bf16.mxu0 0
      %4204 = vmatpush1.bf16.msra.mxu0 %v4182
      %4205 = vmatprep.subr.bf16.mxu0 0
      %4206 = vmatpush1.bf16.msra.mxu0 %v4183
      %4207 = vmatprep.subr.bf16.mxu0 0
      %4208 = vmatpush1.bf16.msra.mxu0 %v4184
      %4209 = vmatprep.subr.bf16.mxu0 0
      %4210 = vmatpush1.bf16.msra.mxu0 0
      %4211 = vmatprep.subr.bf16.mxu0 0
      %4212 = vmatpush1.bf16.msra.mxu0 0
      %4213 = vmatprep.subr.bf16.mxu0 0
      %4214 = vmatpush1.bf16.msra.mxu0 0
      %4215 = vmatprep.subr.bf16.mxu0 0
      %4216 = vmatpush1.bf16.msra.mxu0 0
      %4217 = vmatprep.subr.bf16.mxu0 0
      %4218 = vmatpush1.bf16.msra.mxu0 0
      %4219 = vmatprep.subr.bf16.mxu0 0
      %4220 = vmatpush1.bf16.msra.mxu0 0
      %4221 = vmatprep.subr.bf16.mxu0 0
      %4222 = vmatpush1.bf16.msra.mxu0 0
      %4223 = vmatprep.subr.bf16.mxu0 0
      %4224 = vmatpush1.bf16.msra.mxu0 0
      %4225 = vmatprep.mubr.bf16.mxu0 0
      %4226 = vmatmul.mubr.bf16.gmra.mrb[0].mxu0 %v4126
      %v4227 = vpop.f32.mrb[0].mxu0
      %v4228 = vadd.f32 0.0, %v4227
      %v4229 = vpop.f32.mrb[0].mxu0
      %v4230 = vpop.f32.mrb[0].mxu0
      %v4231 = vadd.f32 0.0, %v4230
      %v4232 = vpop.f32.mrb[0].mxu0
      %4233 = vmatprep.mubr.bf16.mxu0 0
      %4234 = vmatmul.mubr.bf16.gmra.mrb[0].mxu0 %v4127
      %v4235 = vpop.f32.mrb[0].mxu0
      %v4236 = vadd.f32 0.0, %v4235
      %v4237 = vpop.f32.mrb[0].mxu0
      %v4238 = vpop.f32.mrb[0].mxu0
      %v4239 = vpop.f32.mrb[0].mxu0
      %4240 = vdwg.mxu0
      %v4257 = vunpack.c.l.b16 %v4107
      %v4258 = vunpack.c.l.b16 %v4108
      %v4259 = vunpack.c.l.b16 %v4109
      %v4260 = vunpack.c.l.b16 %v4110
      %v4261 = vunpack.c.l.b16 %v4111
      %v4262 = vunpack.c.l.b16 %v4112
      %v4263 = vunpack.c.l.b16 %v4113
      %v4264 = vunpack.c.l.b16 %v4114
      %v4265 = vunpack.c.l.b16 %v4115
      %v4266 = vunpack.c.l.b16 %v4116
      %v4267 = vunpack.c.l.b16 %v4117
      %v4268 = vunpack.c.l.b16 %v4118
      %v4269 = vunpack.c.l.b16 %v4119
      %v4270 = vunpack.c.l.b16 %v4120
      %v4271 = vunpack.c.l.b16 %v4121
      %v4272 = vunpack.c.l.b16 %v4122
      %v4273 = vpack.c.b16 %v4258, %v4257
      %v4274 = vpack.c.b16 %v4260, %v4259
      %v4275 = vpack.c.b16 %v4262, %v4261
      %v4276 = vpack.c.b16 %v4264, %v4263
      %v4277 = vpack.c.b16 %v4266, %v4265
      %v4278 = vpack.c.b16 %v4268, %v4267
      %v4279 = vpack.c.b16 %v4270, %v4269
      %v4280 = vpack.c.b16 %v4272, %v4271
      %4289 = vmatprep.subr.bf16.mxu0 0
      %4290 = vmatpush1.bf16.msra.mxu0 %v4273
      %4291 = vmatprep.subr.bf16.mxu0 0
      %4292 = vmatpush1.bf16.msra.mxu0 %v4274
      %4293 = vmatprep.subr.bf16.mxu0 0
      %4294 = vmatpush1.bf16.msra.mxu0 %v4275
      %4295 = vmatprep.subr.bf16.mxu0 0
      %4296 = vmatpush1.bf16.msra.mxu0 %v4276
      %4297 = vmatprep.subr.bf16.mxu0 0
      %4298 = vmatpush1.bf16.msra.mxu0 %v4277
      %4299 = vmatprep.subr.bf16.mxu0 0
      %4300 = vmatpush1.bf16.msra.mxu0 %v4278
      %4301 = vmatprep.subr.bf16.mxu0 0
      %4302 = vmatpush1.bf16.msra.mxu0 %v4279
      %4303 = vmatprep.subr.bf16.mxu0 0
      %4304 = vmatpush1.bf16.msra.mxu0 %v4280
      %4305 = vmatprep.subr.bf16.mxu0 0
      %4306 = vmatpush1.bf16.msra.mxu0 0
      %4307 = vmatprep.subr.bf16.mxu0 0
      %4308 = vmatpush1.bf16.msra.mxu0 0
      %4309 = vmatprep.subr.bf16.mxu0 0
      %4310 = vmatpush1.bf16.msra.mxu0 0
      %4311 = vmatprep.subr.bf16.mxu0 0
      %4312 = vmatpush1.bf16.msra.mxu0 0
      %4313 = vmatprep.subr.bf16.mxu0 0
      %4314 = vmatpush1.bf16.msra.mxu0 0
      %4315 = vmatprep.subr.bf16.mxu0 0
      %4316 = vmatpush1.bf16.msra.mxu0 0
      %4317 = vmatprep.subr.bf16.mxu0 0
      %4318 = vmatpush1.bf16.msra.mxu0 0
      %4319 = vmatprep.subr.bf16.mxu0 0
      %4320 = vmatpush1.bf16.msra.mxu0 0
      %4321 = vmatprep.mubr.bf16.mxu0 0
      %4322 = vmatmul.mubr.bf16.gmra.mrb[0].mxu0 %v4105
      %v4323 = vpop.f32.mrb[0].mxu0
      %v4324 = vadd.f32 %v4228, %v4323
      %v4325 = vpop.f32.mrb[0].mxu0
      %v4326 = vpop.f32.mrb[0].mxu0
      %v4327 = vadd.f32 %v4231, %v4326
      %v4328 = vpop.f32.mrb[0].mxu0
      %4329 = vmatprep.mubr.bf16.mxu0 0
      %4330 = vmatmul.mubr.bf16.gmra.mrb[0].mxu0 %v4106
      %v4331 = vpop.f32.mrb[0].mxu0
      %v4332 = vadd.f32 %v4236, %v4331
      %v4333 = vpop.f32.mrb[0].mxu0
      %v4334 = vpop.f32.mrb[0].mxu0
      %v4335 = vpop.f32.mrb[0].mxu0
      %4336 = vdwg.mxu0
      %v4337 = vld [vmem:[#allocation9 + $0x2] sm:$0xff]
      %v4338 = vld [vmem:[#allocation9 + $0xa] sm:$0xff]
      %v4339 = vld [vmem:[#allocation9 + $0x12] sm:$0x3f]
      %v4340 = vpack.c.bf16 %v4338, %v4337
      %v4341 = vpack.c.bf16 %v4339, %v4339
      %s4342 = scalar_lea.vmem %s31, 128
      %v4343 = vld [vmem:[%s4342] sm:$0xf]
      %v4344 = vld [vmem:[%s4342 + $0x4] sm:$0xf]
      %v4345 = vld [vmem:[%s4342 + $0x8] sm:$0xf]
      %v4346 = vld [vmem:[%s4342 + $0xc] sm:$0xf]
      %v4347 = vld [vmem:[%s4342 + $0x10] sm:$0xf]
      %v4348 = vld [vmem:[%s4342 + $0x14] sm:$0xf]
      %v4349 = vld [vmem:[%s4342 + $0x18] sm:$0xf]
      %v4350 = vld [vmem:[%s4342 + $0x1c] sm:$0xf]
      %v4351 = vld [vmem:[%s4342 + $0x20] sm:$0xf]
      %v4352 = vld [vmem:[%s4342 + $0x24] sm:$0xf]
      %v4353 = vld [vmem:[%s4342 + $0x28] sm:$0xf]
      %v4354 = vld [vmem:[%s4342 + $0x2c] sm:$0xf]
      %v4355 = vld [vmem:[%s4342 + $0x30] sm:$0xf]
      %v4356 = vld [vmem:[%s4342 + $0x34] sm:$0xf]
      %v4357 = vld [vmem:[%s4342 + $0x38] sm:$0xf]
      %v4358 = vld [vmem:[%s4342 + $0x3c] sm:$0xf]
      %v4375 = vunpack.c.l.b16 %v4343
      %v4376 = vunpack.c.l.b16 %v4344
      %v4377 = vunpack.c.l.b16 %v4345
      %v4378 = vunpack.c.l.b16 %v4346
      %v4379 = vunpack.c.l.b16 %v4347
      %v4380 = vunpack.c.l.b16 %v4348
      %v4381 = vunpack.c.l.b16 %v4349
      %v4382 = vunpack.c.l.b16 %v4350
      %v4383 = vunpack.c.l.b16 %v4351
      %v4384 = vunpack.c.l.b16 %v4352
      %v4385 = vunpack.c.l.b16 %v4353
      %v4386 = vunpack.c.l.b16 %v4354
      %v4387 = vunpack.c.l.b16 %v4355
      %v4388 = vunpack.c.l.b16 %v4356
      %v4389 = vunpack.c.l.b16 %v4357
      %v4390 = vunpack.c.l.b16 %v4358
      %v4391 = vpack.c.b16 %v4376, %v4375
      %v4392 = vpack.c.b16 %v4378, %v4377
      %v4393 = vpack.c.b16 %v4380, %v4379
      %v4394 = vpack.c.b16 %v4382, %v4381
      %v4395 = vpack.c.b16 %v4384, %v4383
      %v4396 = vpack.c.b16 %v4386, %v4385
      %v4397 = vpack.c.b16 %v4388, %v4387
      %v4398 = vpack.c.b16 %v4390, %v4389
      %4407 = vmatprep.subr.bf16.mxu0 0
      %4408 = vmatpush1.bf16.msra.mxu0 %v4391
      %4409 = vmatprep.subr.bf16.mxu0 0
      %4410 = vmatpush1.bf16.msra.mxu0 %v4392
      %4411 = vmatprep.subr.bf16.mxu0 0
      %4412 = vmatpush1.bf16.msra.mxu0 %v4393
      %4413 = vmatprep.subr.bf16.mxu0 0
      %4414 = vmatpush1.bf16.msra.mxu0 %v4394
      %4415 = vmatprep.subr.bf16.mxu0 0
      %4416 = vmatpush1.bf16.msra.mxu0 %v4395
      %4417 = vmatprep.subr.bf16.mxu0 0
      %4418 = vmatpush1.bf16.msra.mxu0 %v4396
      %4419 = vmatprep.subr.bf16.mxu0 0
      %4420 = vmatpush1.bf16.msra.mxu0 %v4397
      %4421 = vmatprep.subr.bf16.mxu0 0
      %4422 = vmatpush1.bf16.msra.mxu0 %v4398
      %4423 = vmatprep.subr.bf16.mxu0 0
      %4424 = vmatpush1.bf16.msra.mxu0 0
      %4425 = vmatprep.subr.bf16.mxu0 0
      %4426 = vmatpush1.bf16.msra.mxu0 0
      %4427 = vmatprep.subr.bf16.mxu0 0
      %4428 = vmatpush1.bf16.msra.mxu0 0
      %4429 = vmatprep.subr.bf16.mxu0 0
      %4430 = vmatpush1.bf16.msra.mxu0 0
      %4431 = vmatprep.subr.bf16.mxu0 0
      %4432 = vmatpush1.bf16.msra.mxu0 0
      %4433 = vmatprep.subr.bf16.mxu0 0
      %4434 = vmatpush1.bf16.msra.mxu0 0
      %4435 = vmatprep.subr.bf16.mxu0 0
      %4436 = vmatpush1.bf16.msra.mxu0 0
      %4437 = vmatprep.subr.bf16.mxu0 0
      %4438 = vmatpush1.bf16.msra.mxu0 0
      %4439 = vmatprep.mubr.bf16.mxu0 0
      %4440 = vmatmul.mubr.bf16.gmra.mrb[0].mxu0 %v4340
      %v4441 = vpop.f32.mrb[0].mxu0
      %v4442 = vadd.f32 0.0, %v4441
      %v4443 = vpop.f32.mrb[0].mxu0
      %v4444 = vpop.f32.mrb[0].mxu0
      %v4445 = vadd.f32 0.0, %v4444
      %v4446 = vpop.f32.mrb[0].mxu0
      %4447 = vmatprep.mubr.bf16.mxu0 0
      %4448 = vmatmul.mubr.bf16.gmra.mrb[0].mxu0 %v4341
      %v4449 = vpop.f32.mrb[0].mxu0
      %v4450 = vadd.f32 0.0, %v4449
      %v4451 = vpop.f32.mrb[0].mxu0
      %v4452 = vpop.f32.mrb[0].mxu0
      %v4453 = vpop.f32.mrb[0].mxu0
      %4454 = vdwg.mxu0
      %v4455 = vadd.f32 %v4324, %v4442
      %v4456 = vadd.f32 %v4327, %v4445
      %v4457 = vadd.f32 %v4332, %v4450
      %v4458 = vld [vmem:[%s33] sm:$0x1]
      %v4460 = vlaneseq
      %v4461 = vshrl.u32 %v4460, 7
      %v4462 = vsub.s32 0, %v4461
      %v4463 = vrot.slane %v4458, %v4462
      %v4465 = vadd.f32 %v4455, %v4463
      %v4466 = vadd.f32 %v4456, %v4463
      %v4467 = vadd.f32 %v4457, %v4463
      %v4468 = vmax.f32 %v4465, 0.0
      %v4469 = vmax.f32 %v4466, 0.0
      %v4470 = vmax.f32 %v4467, 0.0
      %v4471 = vpack.c.bf16 %v4469, %v4468
      %v4472 = vpack.c.bf16 %v4470, %v4470
      %v4473 = vld [vmem:[%s35] sm:$0xf]
      %v4474 = vld [vmem:[%s35 + $0x4] sm:$0xf]
      %v4475 = vld [vmem:[%s35 + $0x8] sm:$0xf]
      %v4476 = vld [vmem:[%s35 + $0xc] sm:$0xf]
      %v4477 = vld [vmem:[%s35 + $0x10] sm:$0xf]
      %v4478 = vld [vmem:[%s35 + $0x14] sm:$0xf]
      %v4479 = vld [vmem:[%s35 + $0x18] sm:$0xf]
      %v4480 = vld [vmem:[%s35 + $0x1c] sm:$0xf]
      %v4481 = vld [vmem:[%s35 + $0x20] sm:$0xf]
      %v4482 = vld [vmem:[%s35 + $0x24] sm:$0xf]
      %v4483 = vld [vmem:[%s35 + $0x28] sm:$0xf]
      %v4484 = vld [vmem:[%s35 + $0x2c] sm:$0xf]
      %v4485 = vld [vmem:[%s35 + $0x30] sm:$0xf]
      %v4486 = vld [vmem:[%s35 + $0x34] sm:$0xf]
      %v4487 = vld [vmem:[%s35 + $0x38] sm:$0xf]
      %v4488 = vld [vmem:[%s35 + $0x3c] sm:$0xf]
      %v4505 = vunpack.c.l.b16 %v4473
      %v4506 = vunpack.c.l.b16 %v4474
      %v4507 = vunpack.c.l.b16 %v4475
      %v4508 = vunpack.c.l.b16 %v4476
      %v4509 = vunpack.c.l.b16 %v4477
      %v4510 = vunpack.c.l.b16 %v4478
      %v4511 = vunpack.c.l.b16 %v4479
      %v4512 = vunpack.c.l.b16 %v4480
      %v4513 = vunpack.c.l.b16 %v4481
      %v4514 = vunpack.c.l.b16 %v4482
      %v4515 = vunpack.c.l.b16 %v4483
      %v4516 = vunpack.c.l.b16 %v4484
      %v4517 = vunpack.c.l.b16 %v4485
      %v4518 = vunpack.c.l.b16 %v4486
      %v4519 = vunpack.c.l.b16 %v4487
      %v4520 = vunpack.c.l.b16 %v4488
      %v4521 = vpack.c.b16 %v4506, %v4505
      %v4522 = vpack.c.b16 %v4508, %v4507
      %v4523 = vpack.c.b16 %v4510, %v4509
      %v4524 = vpack.c.b16 %v4512, %v4511
      %v4525 = vpack.c.b16 %v4514, %v4513
      %v4526 = vpack.c.b16 %v4516, %v4515
      %v4527 = vpack.c.b16 %v4518, %v4517
      %v4528 = vpack.c.b16 %v4520, %v4519
      %4537 = vmatprep.subr.bf16.mxu0 0
      %4538 = vmatpush1.bf16.msra.mxu0 %v4521
      %4539 = vmatprep.subr.bf16.mxu0 0
      %4540 = vmatpush1.bf16.msra.mxu0 %v4522
      %4541 = vmatprep.subr.bf16.mxu0 0
      %4542 = vmatpush1.bf16.msra.mxu0 %v4523
      %4543 = vmatprep.subr.bf16.mxu0 0
      %4544 = vmatpush1.bf16.msra.mxu0 %v4524
      %4545 = vmatprep.subr.bf16.mxu0 0
      %4546 = vmatpush1.bf16.msra.mxu0 %v4525
      %4547 = vmatprep.subr.bf16.mxu0 0
      %4548 = vmatpush1.bf16.msra.mxu0 %v4526
      %4549 = vmatprep.subr.bf16.mxu0 0
      %4550 = vmatpush1.bf16.msra.mxu0 %v4527
      %4551 = vmatprep.subr.bf16.mxu0 0
      %4552 = vmatpush1.bf16.msra.mxu0 %v4528
      %4553 = vmatprep.subr.bf16.mxu0 0
      %4554 = vmatpush1.bf16.msra.mxu0 0
      %4555 = vmatprep.subr.bf16.mxu0 0
      %4556 = vmatpush1.bf16.msra.mxu0 0
      %4557 = vmatprep.subr.bf16.mxu0 0
      %4558 = vmatpush1.bf16.msra.mxu0 0
      %4559 = vmatprep.subr.bf16.mxu0 0
      %4560 = vmatpush1.bf16.msra.mxu0 0
      %4561 = vmatprep.subr.bf16.mxu0 0
      %4562 = vmatpush1.bf16.msra.mxu0 0
      %4563 = vmatprep.subr.bf16.mxu0 0
      %4564 = vmatpush1.bf16.msra.mxu0 0
      %4565 = vmatprep.subr.bf16.mxu0 0
      %4566 = vmatpush1.bf16.msra.mxu0 0
      %4567 = vmatprep.subr.bf16.mxu0 0
      %4568 = vmatpush1.bf16.msra.mxu0 0
      %4569 = vmatprep.mubr.bf16.mxu0 0
      %4570 = vmatmul.mubr.bf16.gmra.mrb[0].mxu0 %v4471
      %v4571 = vpop.f32.mrb[0].mxu0
      %v4572 = vadd.f32 0.0, %v4571
      %v4573 = vpop.f32.mrb[0].mxu0
      %v4574 = vpop.f32.mrb[0].mxu0
      %v4575 = vadd.f32 0.0, %v4574
      %v4576 = vpop.f32.mrb[0].mxu0
      %4577 = vmatprep.mubr.bf16.mxu0 0
      %4578 = vmatmul.mubr.bf16.gmra.mrb[0].mxu0 %v4472
      %v4579 = vpop.f32.mrb[0].mxu0
      %v4580 = vadd.f32 0.0, %v4579
      %v4581 = vpop.f32.mrb[0].mxu0
      %v4582 = vpop.f32.mrb[0].mxu0
      %v4583 = vpop.f32.mrb[0].mxu0
      %4584 = vdwg.mxu0
      %s4585 = scalar_lea.vmem %s35, 64
      %v4586 = vld [vmem:[%s4585] sm:$0xf]
      %v4587 = vld [vmem:[%s4585 + $0x4] sm:$0xf]
      %v4588 = vld [vmem:[%s4585 + $0x8] sm:$0xf]
      %v4589 = vld [vmem:[%s4585 + $0xc] sm:$0xf]
      %v4590 = vld [vmem:[%s4585 + $0x10] sm:$0xf]
      %v4591 = vld [vmem:[%s4585 + $0x14] sm:$0xf]
      %v4592 = vld [vmem:[%s4585 + $0x18] sm:$0xf]
      %v4593 = vld [vmem:[%s4585 + $0x1c] sm:$0xf]
      %v4594 = vld [vmem:[%s4585 + $0x20] sm:$0xf]
      %v4595 = vld [vmem:[%s4585 + $0x24] sm:$0xf]
      %v4596 = vld [vmem:[%s4585 + $0x28] sm:$0xf]
      %v4597 = vld [vmem:[%s4585 + $0x2c] sm:$0xf]
      %v4598 = vld [vmem:[%s4585 + $0x30] sm:$0xf]
      %v4599 = vld [vmem:[%s4585 + $0x34] sm:$0xf]
      %v4600 = vld [vmem:[%s4585 + $0x38] sm:$0xf]
      %v4601 = vld [vmem:[%s4585 + $0x3c] sm:$0xf]
      %v4618 = vunpack.c.l.b16 %v4586
      %v4619 = vunpack.c.l.b16 %v4587
      %v4620 = vunpack.c.l.b16 %v4588
      %v4621 = vunpack.c.l.b16 %v4589
      %v4622 = vunpack.c.l.b16 %v4590
      %v4623 = vunpack.c.l.b16 %v4591
      %v4624 = vunpack.c.l.b16 %v4592
      %v4625 = vunpack.c.l.b16 %v4593
      %v4626 = vunpack.c.l.b16 %v4594
      %v4627 = vunpack.c.l.b16 %v4595
      %v4628 = vunpack.c.l.b16 %v4596
      %v4629 = vunpack.c.l.b16 %v4597
      %v4630 = vunpack.c.l.b16 %v4598
      %v4631 = vunpack.c.l.b16 %v4599
      %v4632 = vunpack.c.l.b16 %v4600
      %v4633 = vunpack.c.l.b16 %v4601
      %v4634 = vpack.c.b16 %v4619, %v4618
      %v4635 = vpack.c.b16 %v4621, %v4620
      %v4636 = vpack.c.b16 %v4623, %v4622
      %v4637 = vpack.c.b16 %v4625, %v4624
      %v4638 = vpack.c.b16 %v4627, %v4626
      %v4639 = vpack.c.b16 %v4629, %v4628
      %v4640 = vpack.c.b16 %v4631, %v4630
      %v4641 = vpack.c.b16 %v4633, %v4632
      %4650 = vmatprep.subr.bf16.mxu0 0
      %4651 = vmatpush1.bf16.msra.mxu0 %v4634
      %4652 = vmatprep.subr.bf16.mxu0 0
      %4653 = vmatpush1.bf16.msra.mxu0 %v4635
      %4654 = vmatprep.subr.bf16.mxu0 0
      %4655 = vmatpush1.bf16.msra.mxu0 %v4636
      %4656 = vmatprep.subr.bf16.mxu0 0
      %4657 = vmatpush1.bf16.msra.mxu0 %v4637
      %4658 = vmatprep.subr.bf16.mxu0 0
      %4659 = vmatpush1.bf16.msra.mxu0 %v4638
      %4660 = vmatprep.subr.bf16.mxu0 0
      %4661 = vmatpush1.bf16.msra.mxu0 %v4639
      %4662 = vmatprep.subr.bf16.mxu0 0
      %4663 = vmatpush1.bf16.msra.mxu0 %v4640
      %4664 = vmatprep.subr.bf16.mxu0 0
      %4665 = vmatpush1.bf16.msra.mxu0 %v4641
      %4666 = vmatprep.subr.bf16.mxu0 0
      %4667 = vmatpush1.bf16.msra.mxu0 0
      %4668 = vmatprep.subr.bf16.mxu0 0
      %4669 = vmatpush1.bf16.msra.mxu0 0
      %4670 = vmatprep.subr.bf16.mxu0 0
      %4671 = vmatpush1.bf16.msra.mxu0 0
      %4672 = vmatprep.subr.bf16.mxu0 0
      %4673 = vmatpush1.bf16.msra.mxu0 0
      %4674 = vmatprep.subr.bf16.mxu0 0
      %4675 = vmatpush1.bf16.msra.mxu0 0
      %4676 = vmatprep.subr.bf16.mxu0 0
      %4677 = vmatpush1.bf16.msra.mxu0 0
      %4678 = vmatprep.subr.bf16.mxu0 0
      %4679 = vmatpush1.bf16.msra.mxu0 0
      %4680 = vmatprep.subr.bf16.mxu0 0
      %4681 = vmatpush1.bf16.msra.mxu0 0
      %4682 = vmatprep.mubr.bf16.mxu0 0
      %4683 = vmatmul.mubr.bf16.gmra.mrb[0].mxu0 %v4471
      %v4684 = vpop.f32.mrb[0].mxu0
      %v4685 = vadd.f32 0.0, %v4684
      %v4686 = vpop.f32.mrb[0].mxu0
      %v4687 = vpop.f32.mrb[0].mxu0
      %v4688 = vadd.f32 0.0, %v4687
      %v4689 = vpop.f32.mrb[0].mxu0
      %4690 = vmatprep.mubr.bf16.mxu0 0
      %4691 = vmatmul.mubr.bf16.gmra.mrb[0].mxu0 %v4472
      %v4692 = vpop.f32.mrb[0].mxu0
      %v4693 = vadd.f32 0.0, %v4692
      %v4694 = vpop.f32.mrb[0].mxu0
      %v4695 = vpop.f32.mrb[0].mxu0
      %v4696 = vpop.f32.mrb[0].mxu0
      %4697 = vdwg.mxu0
      %v4698 = vmax.f32 %v4572, %v4685
      %v4699 = vmax.f32 %v4575, %v4688
      %v4700 = vmax.f32 %v4580, %v4693
      %4701 = vst.msk [vmem:[#allocation10 + $0x1] sm:$0xff] %vm2265, %v4698
      %4702 = vst.msk [vmem:[#allocation10 + $0x9] sm:$0xff] %vm2265, %v4699
      %4703 = vst.msk [vmem:[#allocation10 + $0x11] sm:$0x3f] %vm2274, %v4700
      %s4704 = scalar_lea.vmem [#allocation10], 1
      %v4705 = vld [vmem:[%s4704] ss:$2 sm:$0xff]
      %s4706 = scalar_lea.vmem [#allocation10], 17
      %v4707 = vld [vmem:[%s4706] ss:$2 sm:$0x7]
      %s4708 = scalar_lea.vmem [#allocation10], 2
      %v4709 = vld [vmem:[%s4708] ss:$2 sm:$0xff]
      %s4710 = scalar_lea.vmem [#allocation10], 18
      %v4711 = vld [vmem:[%s4710] ss:$2 sm:$0x7]
      %v4712 = vmax.f32 %v4705, %v4709
      %v4713 = vmax.f32 %v4707, %v4711
      %4714 = vst.msk [vmem:[#allocation11] sm:$0xff] %vm2265, 0.0
      %4715 = vst.msk [vmem:[#allocation11 + $0x8] sm:$0xff] %vm2265, 0.0
      %4716 = vst.msk [vmem:[#allocation11 + $0x1] sm:$0x3] %vm2313, %v4712
      %vm4717 = vcmask 520195
      %4718 = vst.msk [vmem:[#allocation11 + $0x2] sm:$0x18] %vm4717, %v4712
      %vm4719 = vcmask 523270
      %4720 = vst.msk [vmem:[#allocation11 + $0x3] sm:$0xc0] %vm4719, %v4712
      %vm4721 = vcmask 518145
      %4722 = vst.msk [vmem:[#allocation11 + $0xc] sm:$0x6] %vm4721, %v4713
      %v4723 = vld [vmem:[#allocation11] sm:$0xff]
      %v4724 = vld [vmem:[#allocation11 + $0x8] sm:$0x3f]
      %v4725 = vpack.c.bf16 %v4724, %v4723
      %v4726 = vld [vmem:[%s37] sm:$0xf]
      %v4727 = vld [vmem:[%s37 + $0x4] sm:$0xf]
      %v4728 = vld [vmem:[%s37 + $0x8] sm:$0xf]
      %v4729 = vld [vmem:[%s37 + $0xc] sm:$0xf]
      %v4730 = vld [vmem:[%s37 + $0x10] sm:$0xf]
      %v4731 = vld [vmem:[%s37 + $0x14] sm:$0xf]
      %v4732 = vld [vmem:[%s37 + $0x18] sm:$0xf]
      %v4733 = vld [vmem:[%s37 + $0x1c] sm:$0xf]
      %v4734 = vld [vmem:[#allocation11 + $0x1] sm:$0xff]
      %v4735 = vld [vmem:[#allocation11 + $0x9] sm:$0x3f]
      %v4736 = vpack.c.bf16 %v4735, %v4734
      %s4737 = scalar_lea.vmem %s37, 32
      %v4738 = vld [vmem:[%s4737] sm:$0xf]
      %v4739 = vld [vmem:[%s4737 + $0x4] sm:$0xf]
      %v4740 = vld [vmem:[%s4737 + $0x8] sm:$0xf]
      %v4741 = vld [vmem:[%s4737 + $0xc] sm:$0xf]
      %v4742 = vld [vmem:[%s4737 + $0x10] sm:$0xf]
      %v4743 = vld [vmem:[%s4737 + $0x14] sm:$0xf]
      %v4744 = vld [vmem:[%s4737 + $0x18] sm:$0xf]
      %v4745 = vld [vmem:[%s4737 + $0x1c] sm:$0xf]
      %v4754 = vunpack.c.l.b16 %v4738
      %v4755 = vunpack.c.l.b16 %v4739
      %v4756 = vunpack.c.l.b16 %v4740
      %v4757 = vunpack.c.l.b16 %v4741
      %v4758 = vunpack.c.l.b16 %v4742
      %v4759 = vunpack.c.l.b16 %v4743
      %v4760 = vunpack.c.l.b16 %v4744
      %v4761 = vunpack.c.l.b16 %v4745
      %v4762 = vpack.c.b16 %v4755, %v4754
      %v4763 = vpack.c.b16 %v4757, %v4756
      %v4764 = vpack.c.b16 %v4759, %v4758
      %v4765 = vpack.c.b16 %v4761, %v4760
      %v4771 = vsel %vm2265, %v4736, 0
      %4773 = vmatprep.subr.bf16.mxu0 0
      %4774 = vmatpush1.bf16.msra.mxu0 %v4762
      %4775 = vmatprep.subr.bf16.mxu0 0
      %4776 = vmatpush1.bf16.msra.mxu0 %v4763
      %4777 = vmatprep.subr.bf16.mxu0 0
      %4778 = vmatpush1.bf16.msra.mxu0 %v4764
      %4779 = vmatprep.subr.bf16.mxu0 0
      %4780 = vmatpush1.bf16.msra.mxu0 %v4765
      %4781 = vmatprep.subr.bf16.mxu0 0
      %4782 = vmatpush1.bf16.msra.mxu0 0
      %4783 = vmatprep.subr.bf16.mxu0 0
      %4784 = vmatpush1.bf16.msra.mxu0 0
      %4785 = vmatprep.subr.bf16.mxu0 0
      %4786 = vmatpush1.bf16.msra.mxu0 0
      %4787 = vmatprep.subr.bf16.mxu0 0
      %4788 = vmatpush1.bf16.msra.mxu0 0
      %4789 = vmatprep.subr.bf16.mxu0 0
      %4790 = vmatpush1.bf16.msra.mxu0 0
      %4791 = vmatprep.subr.bf16.mxu0 0
      %4792 = vmatpush1.bf16.msra.mxu0 0
      %4793 = vmatprep.subr.bf16.mxu0 0
      %4794 = vmatpush1.bf16.msra.mxu0 0
      %4795 = vmatprep.subr.bf16.mxu0 0
      %4796 = vmatpush1.bf16.msra.mxu0 0
      %4797 = vmatprep.subr.bf16.mxu0 0
      %4798 = vmatpush1.bf16.msra.mxu0 0
      %4799 = vmatprep.subr.bf16.mxu0 0
      %4800 = vmatpush1.bf16.msra.mxu0 0
      %4801 = vmatprep.subr.bf16.mxu0 0
      %4802 = vmatpush1.bf16.msra.mxu0 0
      %4803 = vmatprep.subr.bf16.mxu0 0
      %4804 = vmatpush1.bf16.msra.mxu0 0
      %4805 = vmatprep.mubr.bf16.mxu0 0
      %4806 = vmatmul.mubr.bf16.gmra.mrb[0].mxu0 %v4771
      %v4807 = vpop.f32.mrb[0].mxu0
      %v4808 = vadd.f32 0.0, %v4807
      %v4809 = vpop.f32.mrb[0].mxu0
      %v4810 = vpop.f32.mrb[0].mxu0
      %v4811 = vadd.f32 0.0, %v4810
      %v4812 = vpop.f32.mrb[0].mxu0
      %4813 = vdwg.mxu0
      %v4822 = vunpack.c.l.b16 %v4726
      %v4823 = vunpack.c.l.b16 %v4727
      %v4824 = vunpack.c.l.b16 %v4728
      %v4825 = vunpack.c.l.b16 %v4729
      %v4826 = vunpack.c.l.b16 %v4730
      %v4827 = vunpack.c.l.b16 %v4731
      %v4828 = vunpack.c.l.b16 %v4732
      %v4829 = vunpack.c.l.b16 %v4733
      %v4830 = vpack.c.b16 %v4823, %v4822
      %v4831 = vpack.c.b16 %v4825, %v4824
      %v4832 = vpack.c.b16 %v4827, %v4826
      %v4833 = vpack.c.b16 %v4829, %v4828
      %v4839 = vsel %vm2265, %v4725, 0
      %4841 = vmatprep.subr.bf16.mxu0 0
      %4842 = vmatpush1.bf16.msra.mxu0 %v4830
      %4843 = vmatprep.subr.bf16.mxu0 0
      %4844 = vmatpush1.bf16.msra.mxu0 %v4831
      %4845 = vmatprep.subr.bf16.mxu0 0
      %4846 = vmatpush1.bf16.msra.mxu0 %v4832
      %4847 = vmatprep.subr.bf16.mxu0 0
      %4848 = vmatpush1.bf16.msra.mxu0 %v4833
      %4849 = vmatprep.subr.bf16.mxu0 0
      %4850 = vmatpush1.bf16.msra.mxu0 0
      %4851 = vmatprep.subr.bf16.mxu0 0
      %4852 = vmatpush1.bf16.msra.mxu0 0
      %4853 = vmatprep.subr.bf16.mxu0 0
      %4854 = vmatpush1.bf16.msra.mxu0 0
      %4855 = vmatprep.subr.bf16.mxu0 0
      %4856 = vmatpush1.bf16.msra.mxu0 0
      %4857 = vmatprep.subr.bf16.mxu0 0
      %4858 = vmatpush1.bf16.msra.mxu0 0
      %4859 = vmatprep.subr.bf16.mxu0 0
      %4860 = vmatpush1.bf16.msra.mxu0 0
      %4861 = vmatprep.subr.bf16.mxu0 0
      %4862 = vmatpush1.bf16.msra.mxu0 0
      %4863 = vmatprep.subr.bf16.mxu0 0
      %4864 = vmatpush1.bf16.msra.mxu0 0
      %4865 = vmatprep.subr.bf16.mxu0 0
      %4866 = vmatpush1.bf16.msra.mxu0 0
      %4867 = vmatprep.subr.bf16.mxu0 0
      %4868 = vmatpush1.bf16.msra.mxu0 0
      %4869 = vmatprep.subr.bf16.mxu0 0
      %4870 = vmatpush1.bf16.msra.mxu0 0
      %4871 = vmatprep.subr.bf16.mxu0 0
      %4872 = vmatpush1.bf16.msra.mxu0 0
      %4873 = vmatprep.mubr.bf16.mxu0 0
      %4874 = vmatmul.mubr.bf16.gmra.mrb[0].mxu0 %v4839
      %v4875 = vpop.f32.mrb[0].mxu0
      %v4876 = vadd.f32 %v4808, %v4875
      %v4877 = vpop.f32.mrb[0].mxu0
      %v4878 = vpop.f32.mrb[0].mxu0
      %v4879 = vadd.f32 %v4811, %v4878
      %v4880 = vpop.f32.mrb[0].mxu0
      %4881 = vdwg.mxu0
      %v4882 = vld [vmem:[#allocation11 + $0x2] sm:$0xff]
      %v4883 = vld [vmem:[#allocation11 + $0xa] sm:$0x3f]
      %v4884 = vpack.c.bf16 %v4883, %v4882
      %s4885 = scalar_lea.vmem %s37, 64
      %v4886 = vld [vmem:[%s4885] sm:$0xf]
      %v4887 = vld [vmem:[%s4885 + $0x4] sm:$0xf]
      %v4888 = vld [vmem:[%s4885 + $0x8] sm:$0xf]
      %v4889 = vld [vmem:[%s4885 + $0xc] sm:$0xf]
      %v4890 = vld [vmem:[%s4885 + $0x10] sm:$0xf]
      %v4891 = vld [vmem:[%s4885 + $0x14] sm:$0xf]
      %v4892 = vld [vmem:[%s4885 + $0x18] sm:$0xf]
      %v4893 = vld [vmem:[%s4885 + $0x1c] sm:$0xf]
      %v4902 = vunpack.c.l.b16 %v4886
      %v4903 = vunpack.c.l.b16 %v4887
      %v4904 = vunpack.c.l.b16 %v4888
      %v4905 = vunpack.c.l.b16 %v4889
      %v4906 = vunpack.c.l.b16 %v4890
      %v4907 = vunpack.c.l.b16 %v4891
      %v4908 = vunpack.c.l.b16 %v4892
      %v4909 = vunpack.c.l.b16 %v4893
      %v4910 = vpack.c.b16 %v4903, %v4902
      %v4911 = vpack.c.b16 %v4905, %v4904
      %v4912 = vpack.c.b16 %v4907, %v4906
      %v4913 = vpack.c.b16 %v4909, %v4908
      %v4919 = vsel %vm2265, %v4884, 0
      %4921 = vmatprep.subr.bf16.mxu0 0
      %4922 = vmatpush1.bf16.msra.mxu0 %v4910
      %4923 = vmatprep.subr.bf16.mxu0 0
      %4924 = vmatpush1.bf16.msra.mxu0 %v4911
      %4925 = vmatprep.subr.bf16.mxu0 0
      %4926 = vmatpush1.bf16.msra.mxu0 %v4912
      %4927 = vmatprep.subr.bf16.mxu0 0
      %4928 = vmatpush1.bf16.msra.mxu0 %v4913
      %4929 = vmatprep.subr.bf16.mxu0 0
      %4930 = vmatpush1.bf16.msra.mxu0 0
      %4931 = vmatprep.subr.bf16.mxu0 0
      %4932 = vmatpush1.bf16.msra.mxu0 0
      %4933 = vmatprep.subr.bf16.mxu0 0
      %4934 = vmatpush1.bf16.msra.mxu0 0
      %4935 = vmatprep.subr.bf16.mxu0 0
      %4936 = vmatpush1.bf16.msra.mxu0 0
      %4937 = vmatprep.subr.bf16.mxu0 0
      %4938 = vmatpush1.bf16.msra.mxu0 0
      %4939 = vmatprep.subr.bf16.mxu0 0
      %4940 = vmatpush1.bf16.msra.mxu0 0
      %4941 = vmatprep.subr.bf16.mxu0 0
      %4942 = vmatpush1.bf16.msra.mxu0 0
      %4943 = vmatprep.subr.bf16.mxu0 0
      %4944 = vmatpush1.bf16.msra.mxu0 0
      %4945 = vmatprep.subr.bf16.mxu0 0
      %4946 = vmatpush1.bf16.msra.mxu0 0
      %4947 = vmatprep.subr.bf16.mxu0 0
      %4948 = vmatpush1.bf16.msra.mxu0 0
      %4949 = vmatprep.subr.bf16.mxu0 0
      %4950 = vmatpush1.bf16.msra.mxu0 0
      %4951 = vmatprep.subr.bf16.mxu0 0
      %4952 = vmatpush1.bf16.msra.mxu0 0
      %4953 = vmatprep.mubr.bf16.mxu0 0
      %4954 = vmatmul.mubr.bf16.gmra.mrb[0].mxu0 %v4919
      %v4955 = vpop.f32.mrb[0].mxu0
      %v4956 = vadd.f32 0.0, %v4955
      %v4957 = vpop.f32.mrb[0].mxu0
      %v4958 = vpop.f32.mrb[0].mxu0
      %v4959 = vadd.f32 0.0, %v4958
      %v4960 = vpop.f32.mrb[0].mxu0
      %4961 = vdwg.mxu0
      %v4962 = vadd.f32 %v4876, %v4956
      %v4963 = vadd.f32 %v4879, %v4959
      %v4964 = vld [vmem:[%s39] sm:$0x1]
      %v4966 = vlaneseq
      %v4967 = vshrl.u32 %v4966, 7
      %v4968 = vsub.s32 0, %v4967
      %v4969 = vrot.slane %v4964, %v4968
      %v4971 = vadd.f32 %v4962, %v4969
      %v4972 = vadd.f32 %v4963, %v4969
      %v4973 = vmax.f32 %v4971, 0.0
      %v4974 = vmax.f32 %v4972, 0.0
      %v4975 = vld [vmem:[%s57] sm:$0xff]
      %v4976 = vld [vmem:[%s57 + $0x8] sm:$0x3f]
      %4978 = vset.pattern.permute.xlu0 0
      %4979 = vperm.xlu0 %4978, %v4975
      %v4980 = vpop.permute.xlu0 %4979
      %4983 = vset.pattern.permute.xlu0 0
      %4984 = vperm.xlu0 %4983, %v4976
      %v4985 = vpop.permute.xlu0 %4984
      %v4987 = vmul.f32 %v4973, %v4980
      %v4988 = vmul.f32 %v4974, %v4985
      %4989 = vst [vmem:[#allocation12 + $0x1] sm:$0xff] %v4987
      %4990 = vst [vmem:[#allocation12 + $0x9] sm:$0x3f] %v4988
      %4991 = vst [vmem:[#allocation12] sm:$0x1] 0.0
      %4992 = vst [vmem:[#allocation12 + $0xf] sm:$0x1] 0.0
      %v4993 = vld [vmem:[#allocation12] sm:$0xff]
      %v4994 = vld [vmem:[#allocation12 + $0x8] sm:$0x3f]
      %v4995 = vpack.c.bf16 %v4994, %v4993
      %v4996 = vld [vmem:[%s41] sm:$0xf]
      %v4997 = vld [vmem:[%s41 + $0x4] sm:$0xf]
      %v4998 = vld [vmem:[%s41 + $0x8] sm:$0xf]
      %v4999 = vld [vmem:[%s41 + $0xc] sm:$0xf]
      %v5000 = vld [vmem:[%s41 + $0x10] sm:$0xf]
      %v5001 = vld [vmem:[%s41 + $0x14] sm:$0xf]
      %v5002 = vld [vmem:[%s41 + $0x18] sm:$0xf]
      %v5003 = vld [vmem:[%s41 + $0x1c] sm:$0xf]
      %v5004 = vld [vmem:[%s41 + $0x20] sm:$0xf]
      %v5005 = vld [vmem:[%s41 + $0x24] sm:$0xf]
      %v5006 = vld [vmem:[%s41 + $0x28] sm:$0xf]
      %v5007 = vld [vmem:[%s41 + $0x2c] sm:$0xf]
      %v5008 = vld [vmem:[%s41 + $0x30] sm:$0xf]
      %v5009 = vld [vmem:[%s41 + $0x34] sm:$0xf]
      %v5010 = vld [vmem:[%s41 + $0x38] sm:$0xf]
      %v5011 = vld [vmem:[%s41 + $0x3c] sm:$0xf]
      %v5012 = vld [vmem:[#allocation12 + $0x1] sm:$0xff]
      %v5013 = vld [vmem:[#allocation12 + $0x9] sm:$0x3f]
      %v5014 = vpack.c.bf16 %v5013, %v5012
      %s5015 = scalar_lea.vmem %s41, 64
      %v5016 = vld [vmem:[%s5015] sm:$0xf]
      %v5017 = vld [vmem:[%s5015 + $0x4] sm:$0xf]
      %v5018 = vld [vmem:[%s5015 + $0x8] sm:$0xf]
      %v5019 = vld [vmem:[%s5015 + $0xc] sm:$0xf]
      %v5020 = vld [vmem:[%s5015 + $0x10] sm:$0xf]
      %v5021 = vld [vmem:[%s5015 + $0x14] sm:$0xf]
      %v5022 = vld [vmem:[%s5015 + $0x18] sm:$0xf]
      %v5023 = vld [vmem:[%s5015 + $0x1c] sm:$0xf]
      %v5024 = vld [vmem:[%s5015 + $0x20] sm:$0xf]
      %v5025 = vld [vmem:[%s5015 + $0x24] sm:$0xf]
      %v5026 = vld [vmem:[%s5015 + $0x28] sm:$0xf]
      %v5027 = vld [vmem:[%s5015 + $0x2c] sm:$0xf]
      %v5028 = vld [vmem:[%s5015 + $0x30] sm:$0xf]
      %v5029 = vld [vmem:[%s5015 + $0x34] sm:$0xf]
      %v5030 = vld [vmem:[%s5015 + $0x38] sm:$0xf]
      %v5031 = vld [vmem:[%s5015 + $0x3c] sm:$0xf]
      %v5048 = vunpack.c.l.b16 %v5016
      %v5049 = vunpack.c.l.b16 %v5017
      %v5050 = vunpack.c.l.b16 %v5018
      %v5051 = vunpack.c.l.b16 %v5019
      %v5052 = vunpack.c.l.b16 %v5020
      %v5053 = vunpack.c.l.b16 %v5021
      %v5054 = vunpack.c.l.b16 %v5022
      %v5055 = vunpack.c.l.b16 %v5023
      %v5056 = vunpack.c.l.b16 %v5024
      %v5057 = vunpack.c.l.b16 %v5025
      %v5058 = vunpack.c.l.b16 %v5026
      %v5059 = vunpack.c.l.b16 %v5027
      %v5060 = vunpack.c.l.b16 %v5028
      %v5061 = vunpack.c.l.b16 %v5029
      %v5062 = vunpack.c.l.b16 %v5030
      %v5063 = vunpack.c.l.b16 %v5031
      %v5064 = vpack.c.b16 %v5049, %v5048
      %v5065 = vpack.c.b16 %v5051, %v5050
      %v5066 = vpack.c.b16 %v5053, %v5052
      %v5067 = vpack.c.b16 %v5055, %v5054
      %v5068 = vpack.c.b16 %v5057, %v5056
      %v5069 = vpack.c.b16 %v5059, %v5058
      %v5070 = vpack.c.b16 %v5061, %v5060
      %v5071 = vpack.c.b16 %v5063, %v5062
      %5080 = vmatprep.subr.bf16.mxu0 0
      %5081 = vmatpush1.bf16.msra.mxu0 %v5064
      %5082 = vmatprep.subr.bf16.mxu0 0
      %5083 = vmatpush1.bf16.msra.mxu0 %v5065
      %5084 = vmatprep.subr.bf16.mxu0 0
      %5085 = vmatpush1.bf16.msra.mxu0 %v5066
      %5086 = vmatprep.subr.bf16.mxu0 0
      %5087 = vmatpush1.bf16.msra.mxu0 %v5067
      %5088 = vmatprep.subr.bf16.mxu0 0
      %5089 = vmatpush1.bf16.msra.mxu0 %v5068
      %5090 = vmatprep.subr.bf16.mxu0 0
      %5091 = vmatpush1.bf16.msra.mxu0 %v5069
      %5092 = vmatprep.subr.bf16.mxu0 0
      %5093 = vmatpush1.bf16.msra.mxu0 %v5070
      %5094 = vmatprep.subr.bf16.mxu0 0
      %5095 = vmatpush1.bf16.msra.mxu0 %v5071
      %5096 = vmatprep.subr.bf16.mxu0 0
      %5097 = vmatpush1.bf16.msra.mxu0 0
      %5098 = vmatprep.subr.bf16.mxu0 0
      %5099 = vmatpush1.bf16.msra.mxu0 0
      %5100 = vmatprep.subr.bf16.mxu0 0
      %5101 = vmatpush1.bf16.msra.mxu0 0
      %5102 = vmatprep.subr.bf16.mxu0 0
      %5103 = vmatpush1.bf16.msra.mxu0 0
      %5104 = vmatprep.subr.bf16.mxu0 0
      %5105 = vmatpush1.bf16.msra.mxu0 0
      %5106 = vmatprep.subr.bf16.mxu0 0
      %5107 = vmatpush1.bf16.msra.mxu0 0
      %5108 = vmatprep.subr.bf16.mxu0 0
      %5109 = vmatpush1.bf16.msra.mxu0 0
      %5110 = vmatprep.subr.bf16.mxu0 0
      %5111 = vmatpush1.bf16.msra.mxu0 0
      %5112 = vmatprep.mubr.bf16.mxu0 0
      %5113 = vmatmul.mubr.bf16.gmra.mrb[0].mxu0 %v5014
      %v5114 = vpop.f32.mrb[0].mxu0
      %v5115 = vadd.f32 0.0, %v5114
      %v5116 = vpop.f32.mrb[0].mxu0
      %v5117 = vpop.f32.mrb[0].mxu0
      %v5118 = vadd.f32 0.0, %v5117
      %v5119 = vpop.f32.mrb[0].mxu0
      %5120 = vdwg.mxu0
      %v5137 = vunpack.c.l.b16 %v4996
      %v5138 = vunpack.c.l.b16 %v4997
      %v5139 = vunpack.c.l.b16 %v4998
      %v5140 = vunpack.c.l.b16 %v4999
      %v5141 = vunpack.c.l.b16 %v5000
      %v5142 = vunpack.c.l.b16 %v5001
      %v5143 = vunpack.c.l.b16 %v5002
      %v5144 = vunpack.c.l.b16 %v5003
      %v5145 = vunpack.c.l.b16 %v5004
      %v5146 = vunpack.c.l.b16 %v5005
      %v5147 = vunpack.c.l.b16 %v5006
      %v5148 = vunpack.c.l.b16 %v5007
      %v5149 = vunpack.c.l.b16 %v5008
      %v5150 = vunpack.c.l.b16 %v5009
      %v5151 = vunpack.c.l.b16 %v5010
      %v5152 = vunpack.c.l.b16 %v5011
      %v5153 = vpack.c.b16 %v5138, %v5137
      %v5154 = vpack.c.b16 %v5140, %v5139
      %v5155 = vpack.c.b16 %v5142, %v5141
      %v5156 = vpack.c.b16 %v5144, %v5143
      %v5157 = vpack.c.b16 %v5146, %v5145
      %v5158 = vpack.c.b16 %v5148, %v5147
      %v5159 = vpack.c.b16 %v5150, %v5149
      %v5160 = vpack.c.b16 %v5152, %v5151
      %5169 = vmatprep.subr.bf16.mxu0 0
      %5170 = vmatpush1.bf16.msra.mxu0 %v5153
      %5171 = vmatprep.subr.bf16.mxu0 0
      %5172 = vmatpush1.bf16.msra.mxu0 %v5154
      %5173 = vmatprep.subr.bf16.mxu0 0
      %5174 = vmatpush1.bf16.msra.mxu0 %v5155
      %5175 = vmatprep.subr.bf16.mxu0 0
      %5176 = vmatpush1.bf16.msra.mxu0 %v5156
      %5177 = vmatprep.subr.bf16.mxu0 0
      %5178 = vmatpush1.bf16.msra.mxu0 %v5157
      %5179 = vmatprep.subr.bf16.mxu0 0
      %5180 = vmatpush1.bf16.msra.mxu0 %v5158
      %5181 = vmatprep.subr.bf16.mxu0 0
      %5182 = vmatpush1.bf16.msra.mxu0 %v5159
      %5183 = vmatprep.subr.bf16.mxu0 0
      %5184 = vmatpush1.bf16.msra.mxu0 %v5160
      %5185 = vmatprep.subr.bf16.mxu0 0
      %5186 = vmatpush1.bf16.msra.mxu0 0
      %5187 = vmatprep.subr.bf16.mxu0 0
      %5188 = vmatpush1.bf16.msra.mxu0 0
      %5189 = vmatprep.subr.bf16.mxu0 0
      %5190 = vmatpush1.bf16.msra.mxu0 0
      %5191 = vmatprep.subr.bf16.mxu0 0
      %5192 = vmatpush1.bf16.msra.mxu0 0
      %5193 = vmatprep.subr.bf16.mxu0 0
      %5194 = vmatpush1.bf16.msra.mxu0 0
      %5195 = vmatprep.subr.bf16.mxu0 0
      %5196 = vmatpush1.bf16.msra.mxu0 0
      %5197 = vmatprep.subr.bf16.mxu0 0
      %5198 = vmatpush1.bf16.msra.mxu0 0
      %5199 = vmatprep.subr.bf16.mxu0 0
      %5200 = vmatpush1.bf16.msra.mxu0 0
      %5201 = vmatprep.mubr.bf16.mxu0 0
      %5202 = vmatmul.mubr.bf16.gmra.mrb[0].mxu0 %v4995
      %v5203 = vpop.f32.mrb[0].mxu0
      %v5204 = vadd.f32 %v5115, %v5203
      %v5205 = vpop.f32.mrb[0].mxu0
      %v5206 = vpop.f32.mrb[0].mxu0
      %v5207 = vadd.f32 %v5118, %v5206
      %v5208 = vpop.f32.mrb[0].mxu0
      %5209 = vdwg.mxu0
      %v5210 = vld [vmem:[#allocation12 + $0x2] sm:$0xff]
      %v5211 = vld [vmem:[#allocation12 + $0xa] sm:$0x3f]
      %v5212 = vpack.c.bf16 %v5211, %v5210
      %s5213 = scalar_lea.vmem %s41, 128
      %v5214 = vld [vmem:[%s5213] sm:$0xf]
      %v5215 = vld [vmem:[%s5213 + $0x4] sm:$0xf]
      %v5216 = vld [vmem:[%s5213 + $0x8] sm:$0xf]
      %v5217 = vld [vmem:[%s5213 + $0xc] sm:$0xf]
      %v5218 = vld [vmem:[%s5213 + $0x10] sm:$0xf]
      %v5219 = vld [vmem:[%s5213 + $0x14] sm:$0xf]
      %v5220 = vld [vmem:[%s5213 + $0x18] sm:$0xf]
      %v5221 = vld [vmem:[%s5213 + $0x1c] sm:$0xf]
      %v5222 = vld [vmem:[%s5213 + $0x20] sm:$0xf]
      %v5223 = vld [vmem:[%s5213 + $0x24] sm:$0xf]
      %v5224 = vld [vmem:[%s5213 + $0x28] sm:$0xf]
      %v5225 = vld [vmem:[%s5213 + $0x2c] sm:$0xf]
      %v5226 = vld [vmem:[%s5213 + $0x30] sm:$0xf]
      %v5227 = vld [vmem:[%s5213 + $0x34] sm:$0xf]
      %v5228 = vld [vmem:[%s5213 + $0x38] sm:$0xf]
      %v5229 = vld [vmem:[%s5213 + $0x3c] sm:$0xf]
      %v5246 = vunpack.c.l.b16 %v5214
      %v5247 = vunpack.c.l.b16 %v5215
      %v5248 = vunpack.c.l.b16 %v5216
      %v5249 = vunpack.c.l.b16 %v5217
      %v5250 = vunpack.c.l.b16 %v5218
      %v5251 = vunpack.c.l.b16 %v5219
      %v5252 = vunpack.c.l.b16 %v5220
      %v5253 = vunpack.c.l.b16 %v5221
      %v5254 = vunpack.c.l.b16 %v5222
      %v5255 = vunpack.c.l.b16 %v5223
      %v5256 = vunpack.c.l.b16 %v5224
      %v5257 = vunpack.c.l.b16 %v5225
      %v5258 = vunpack.c.l.b16 %v5226
      %v5259 = vunpack.c.l.b16 %v5227
      %v5260 = vunpack.c.l.b16 %v5228
      %v5261 = vunpack.c.l.b16 %v5229
      %v5262 = vpack.c.b16 %v5247, %v5246
      %v5263 = vpack.c.b16 %v5249, %v5248
      %v5264 = vpack.c.b16 %v5251, %v5250
      %v5265 = vpack.c.b16 %v5253, %v5252
      %v5266 = vpack.c.b16 %v5255, %v5254
      %v5267 = vpack.c.b16 %v5257, %v5256
      %v5268 = vpack.c.b16 %v5259, %v5258
      %v5269 = vpack.c.b16 %v5261, %v5260
      %5278 = vmatprep.subr.bf16.mxu0 0
      %5279 = vmatpush1.bf16.msra.mxu0 %v5262
      %5280 = vmatprep.subr.bf16.mxu0 0
      %5281 = vmatpush1.bf16.msra.mxu0 %v5263
      %5282 = vmatprep.subr.bf16.mxu0 0
      %5283 = vmatpush1.bf16.msra.mxu0 %v5264
      %5284 = vmatprep.subr.bf16.mxu0 0
      %5285 = vmatpush1.bf16.msra.mxu0 %v5265
      %5286 = vmatprep.subr.bf16.mxu0 0
      %5287 = vmatpush1.bf16.msra.mxu0 %v5266
      %5288 = vmatprep.subr.bf16.mxu0 0
      %5289 = vmatpush1.bf16.msra.mxu0 %v5267
      %5290 = vmatprep.subr.bf16.mxu0 0
      %5291 = vmatpush1.bf16.msra.mxu0 %v5268
      %5292 = vmatprep.subr.bf16.mxu0 0
      %5293 = vmatpush1.bf16.msra.mxu0 %v5269
      %5294 = vmatprep.subr.bf16.mxu0 0
      %5295 = vmatpush1.bf16.msra.mxu0 0
      %5296 = vmatprep.subr.bf16.mxu0 0
      %5297 = vmatpush1.bf16.msra.mxu0 0
      %5298 = vmatprep.subr.bf16.mxu0 0
      %5299 = vmatpush1.bf16.msra.mxu0 0
      %5300 = vmatprep.subr.bf16.mxu0 0
      %5301 = vmatpush1.bf16.msra.mxu0 0
      %5302 = vmatprep.subr.bf16.mxu0 0
      %5303 = vmatpush1.bf16.msra.mxu0 0
      %5304 = vmatprep.subr.bf16.mxu0 0
      %5305 = vmatpush1.bf16.msra.mxu0 0
      %5306 = vmatprep.subr.bf16.mxu0 0
      %5307 = vmatpush1.bf16.msra.mxu0 0
      %5308 = vmatprep.subr.bf16.mxu0 0
      %5309 = vmatpush1.bf16.msra.mxu0 0
      %5310 = vmatprep.mubr.bf16.mxu0 0
      %5311 = vmatmul.mubr.bf16.gmra.mrb[0].mxu0 %v5212
      %v5312 = vpop.f32.mrb[0].mxu0
      %v5313 = vadd.f32 0.0, %v5312
      %v5314 = vpop.f32.mrb[0].mxu0
      %v5315 = vpop.f32.mrb[0].mxu0
      %v5316 = vadd.f32 0.0, %v5315
      %v5317 = vpop.f32.mrb[0].mxu0
      %5318 = vdwg.mxu0
      %v5319 = vadd.f32 %v5204, %v5313
      %v5320 = vadd.f32 %v5207, %v5316
      %v5321 = vld [vmem:[%s43] sm:$0x1]
      %v5323 = vlaneseq
      %v5324 = vshrl.u32 %v5323, 7
      %v5325 = vsub.s32 0, %v5324
      %v5326 = vrot.slane %v5321, %v5325
      %v5328 = vadd.f32 %v5319, %v5326
      %v5329 = vadd.f32 %v5320, %v5326
      %v5330 = vmax.f32 %v5328, 0.0
      %v5331 = vmax.f32 %v5329, 0.0
      %v5332 = vld [vmem:[%s59] sm:$0xff]
      %v5333 = vld [vmem:[%s59 + $0x8] sm:$0x3f]
      %5335 = vset.pattern.permute.xlu0 0
      %5336 = vperm.xlu0 %5335, %v5332
      %v5337 = vpop.permute.xlu0 %5336
      %5340 = vset.pattern.permute.xlu0 0
      %5341 = vperm.xlu0 %5340, %v5333
      %v5342 = vpop.permute.xlu0 %5341
      %v5344 = vmul.f32 %v5330, %v5337
      %v5345 = vmul.f32 %v5331, %v5342
      %5346 = vst [vmem:[#allocation13 + $0x1] sm:$0xff] %v5344
      %5347 = vst [vmem:[#allocation13 + $0x9] sm:$0x3f] %v5345
      %5348 = vst [vmem:[#allocation13] sm:$0x1] 0.0
      %5349 = vst [vmem:[#allocation13 + $0xf] sm:$0x1] 0.0
      %v5350 = vld [vmem:[#allocation13] sm:$0xff]
      %v5351 = vld [vmem:[#allocation13 + $0x8] sm:$0x3f]
      %v5352 = vpack.c.bf16 %v5351, %v5350
      %v5353 = vld [vmem:[%s45] sm:$0xf]
      %v5354 = vld [vmem:[%s45 + $0x4] sm:$0xf]
      %v5355 = vld [vmem:[%s45 + $0x8] sm:$0xf]
      %v5356 = vld [vmem:[%s45 + $0xc] sm:$0xf]
      %v5357 = vld [vmem:[%s45 + $0x10] sm:$0xf]
      %v5358 = vld [vmem:[%s45 + $0x14] sm:$0xf]
      %v5359 = vld [vmem:[%s45 + $0x18] sm:$0xf]
      %v5360 = vld [vmem:[%s45 + $0x1c] sm:$0xf]
      %v5361 = vld [vmem:[%s45 + $0x20] sm:$0xf]
      %v5362 = vld [vmem:[%s45 + $0x24] sm:$0xf]
      %v5363 = vld [vmem:[%s45 + $0x28] sm:$0xf]
      %v5364 = vld [vmem:[%s45 + $0x2c] sm:$0xf]
      %v5365 = vld [vmem:[%s45 + $0x30] sm:$0xf]
      %v5366 = vld [vmem:[%s45 + $0x34] sm:$0xf]
      %v5367 = vld [vmem:[%s45 + $0x38] sm:$0xf]
      %v5368 = vld [vmem:[%s45 + $0x3c] sm:$0xf]
      %v5369 = vld [vmem:[#allocation13 + $0x1] sm:$0xff]
      %v5370 = vld [vmem:[#allocation13 + $0x9] sm:$0x3f]
      %v5371 = vpack.c.bf16 %v5370, %v5369
      %s5372 = scalar_lea.vmem %s45, 64
      %v5373 = vld [vmem:[%s5372] sm:$0xf]
      %v5374 = vld [vmem:[%s5372 + $0x4] sm:$0xf]
      %v5375 = vld [vmem:[%s5372 + $0x8] sm:$0xf]
      %v5376 = vld [vmem:[%s5372 + $0xc] sm:$0xf]
      %v5377 = vld [vmem:[%s5372 + $0x10] sm:$0xf]
      %v5378 = vld [vmem:[%s5372 + $0x14] sm:$0xf]
      %v5379 = vld [vmem:[%s5372 + $0x18] sm:$0xf]
      %v5380 = vld [vmem:[%s5372 + $0x1c] sm:$0xf]
      %v5381 = vld [vmem:[%s5372 + $0x20] sm:$0xf]
      %v5382 = vld [vmem:[%s5372 + $0x24] sm:$0xf]
      %v5383 = vld [vmem:[%s5372 + $0x28] sm:$0xf]
      %v5384 = vld [vmem:[%s5372 + $0x2c] sm:$0xf]
      %v5385 = vld [vmem:[%s5372 + $0x30] sm:$0xf]
      %v5386 = vld [vmem:[%s5372 + $0x34] sm:$0xf]
      %v5387 = vld [vmem:[%s5372 + $0x38] sm:$0xf]
      %v5388 = vld [vmem:[%s5372 + $0x3c] sm:$0xf]
      %v5405 = vunpack.c.l.b16 %v5373
      %v5406 = vunpack.c.l.b16 %v5374
      %v5407 = vunpack.c.l.b16 %v5375
      %v5408 = vunpack.c.l.b16 %v5376
      %v5409 = vunpack.c.l.b16 %v5377
      %v5410 = vunpack.c.l.b16 %v5378
      %v5411 = vunpack.c.l.b16 %v5379
      %v5412 = vunpack.c.l.b16 %v5380
      %v5413 = vunpack.c.l.b16 %v5381
      %v5414 = vunpack.c.l.b16 %v5382
      %v5415 = vunpack.c.l.b16 %v5383
      %v5416 = vunpack.c.l.b16 %v5384
      %v5417 = vunpack.c.l.b16 %v5385
      %v5418 = vunpack.c.l.b16 %v5386
      %v5419 = vunpack.c.l.b16 %v5387
      %v5420 = vunpack.c.l.b16 %v5388
      %v5421 = vpack.c.b16 %v5406, %v5405
      %v5422 = vpack.c.b16 %v5408, %v5407
      %v5423 = vpack.c.b16 %v5410, %v5409
      %v5424 = vpack.c.b16 %v5412, %v5411
      %v5425 = vpack.c.b16 %v5414, %v5413
      %v5426 = vpack.c.b16 %v5416, %v5415
      %v5427 = vpack.c.b16 %v5418, %v5417
      %v5428 = vpack.c.b16 %v5420, %v5419
      %5437 = vmatprep.subr.bf16.mxu0 0
      %5438 = vmatpush1.bf16.msra.mxu0 %v5421
      %5439 = vmatprep.subr.bf16.mxu0 0
      %5440 = vmatpush1.bf16.msra.mxu0 %v5422
      %5441 = vmatprep.subr.bf16.mxu0 0
      %5442 = vmatpush1.bf16.msra.mxu0 %v5423
      %5443 = vmatprep.subr.bf16.mxu0 0
      %5444 = vmatpush1.bf16.msra.mxu0 %v5424
      %5445 = vmatprep.subr.bf16.mxu0 0
      %5446 = vmatpush1.bf16.msra.mxu0 %v5425
      %5447 = vmatprep.subr.bf16.mxu0 0
      %5448 = vmatpush1.bf16.msra.mxu0 %v5426
      %5449 = vmatprep.subr.bf16.mxu0 0
      %5450 = vmatpush1.bf16.msra.mxu0 %v5427
      %5451 = vmatprep.subr.bf16.mxu0 0
      %5452 = vmatpush1.bf16.msra.mxu0 %v5428
      %5453 = vmatprep.subr.bf16.mxu0 0
      %5454 = vmatpush1.bf16.msra.mxu0 0
      %5455 = vmatprep.subr.bf16.mxu0 0
      %5456 = vmatpush1.bf16.msra.mxu0 0
      %5457 = vmatprep.subr.bf16.mxu0 0
      %5458 = vmatpush1.bf16.msra.mxu0 0
      %5459 = vmatprep.subr.bf16.mxu0 0
      %5460 = vmatpush1.bf16.msra.mxu0 0
      %5461 = vmatprep.subr.bf16.mxu0 0
      %5462 = vmatpush1.bf16.msra.mxu0 0
      %5463 = vmatprep.subr.bf16.mxu0 0
      %5464 = vmatpush1.bf16.msra.mxu0 0
      %5465 = vmatprep.subr.bf16.mxu0 0
      %5466 = vmatpush1.bf16.msra.mxu0 0
      %5467 = vmatprep.subr.bf16.mxu0 0
      %5468 = vmatpush1.bf16.msra.mxu0 0
      %5469 = vmatprep.mubr.bf16.mxu0 0
      %5470 = vmatmul.mubr.bf16.gmra.mrb[0].mxu0 %v5371
      %v5471 = vpop.f32.mrb[0].mxu0
      %v5472 = vadd.f32 0.0, %v5471
      %v5473 = vpop.f32.mrb[0].mxu0
      %v5474 = vpop.f32.mrb[0].mxu0
      %v5475 = vadd.f32 0.0, %v5474
      %v5476 = vpop.f32.mrb[0].mxu0
      %5477 = vdwg.mxu0
      %v5494 = vunpack.c.l.b16 %v5353
      %v5495 = vunpack.c.l.b16 %v5354
      %v5496 = vunpack.c.l.b16 %v5355
      %v5497 = vunpack.c.l.b16 %v5356
      %v5498 = vunpack.c.l.b16 %v5357
      %v5499 = vunpack.c.l.b16 %v5358
      %v5500 = vunpack.c.l.b16 %v5359
      %v5501 = vunpack.c.l.b16 %v5360
      %v5502 = vunpack.c.l.b16 %v5361
      %v5503 = vunpack.c.l.b16 %v5362
      %v5504 = vunpack.c.l.b16 %v5363
      %v5505 = vunpack.c.l.b16 %v5364
      %v5506 = vunpack.c.l.b16 %v5365
      %v5507 = vunpack.c.l.b16 %v5366
      %v5508 = vunpack.c.l.b16 %v5367
      %v5509 = vunpack.c.l.b16 %v5368
      %v5510 = vpack.c.b16 %v5495, %v5494
      %v5511 = vpack.c.b16 %v5497, %v5496
      %v5512 = vpack.c.b16 %v5499, %v5498
      %v5513 = vpack.c.b16 %v5501, %v5500
      %v5514 = vpack.c.b16 %v5503, %v5502
      %v5515 = vpack.c.b16 %v5505, %v5504
      %v5516 = vpack.c.b16 %v5507, %v5506
      %v5517 = vpack.c.b16 %v5509, %v5508
      %5526 = vmatprep.subr.bf16.mxu0 0
      %5527 = vmatpush1.bf16.msra.mxu0 %v5510
      %5528 = vmatprep.subr.bf16.mxu0 0
      %5529 = vmatpush1.bf16.msra.mxu0 %v5511
      %5530 = vmatprep.subr.bf16.mxu0 0
      %5531 = vmatpush1.bf16.msra.mxu0 %v5512
      %5532 = vmatprep.subr.bf16.mxu0 0
      %5533 = vmatpush1.bf16.msra.mxu0 %v5513
      %5534 = vmatprep.subr.bf16.mxu0 0
      %5535 = vmatpush1.bf16.msra.mxu0 %v5514
      %5536 = vmatprep.subr.bf16.mxu0 0
      %5537 = vmatpush1.bf16.msra.mxu0 %v5515
      %5538 = vmatprep.subr.bf16.mxu0 0
      %5539 = vmatpush1.bf16.msra.mxu0 %v5516
      %5540 = vmatprep.subr.bf16.mxu0 0
      %5541 = vmatpush1.bf16.msra.mxu0 %v5517
      %5542 = vmatprep.subr.bf16.mxu0 0
      %5543 = vmatpush1.bf16.msra.mxu0 0
      %5544 = vmatprep.subr.bf16.mxu0 0
      %5545 = vmatpush1.bf16.msra.mxu0 0
      %5546 = vmatprep.subr.bf16.mxu0 0
      %5547 = vmatpush1.bf16.msra.mxu0 0
      %5548 = vmatprep.subr.bf16.mxu0 0
      %5549 = vmatpush1.bf16.msra.mxu0 0
      %5550 = vmatprep.subr.bf16.mxu0 0
      %5551 = vmatpush1.bf16.msra.mxu0 0
      %5552 = vmatprep.subr.bf16.mxu0 0
      %5553 = vmatpush1.bf16.msra.mxu0 0
      %5554 = vmatprep.subr.bf16.mxu0 0
      %5555 = vmatpush1.bf16.msra.mxu0 0
      %5556 = vmatprep.subr.bf16.mxu0 0
      %5557 = vmatpush1.bf16.msra.mxu0 0
      %5558 = vmatprep.mubr.bf16.mxu0 0
      %5559 = vmatmul.mubr.bf16.gmra.mrb[0].mxu0 %v5352
      %v5560 = vpop.f32.mrb[0].mxu0
      %v5561 = vadd.f32 %v5472, %v5560
      %v5562 = vpop.f32.mrb[0].mxu0
      %v5563 = vpop.f32.mrb[0].mxu0
      %v5564 = vadd.f32 %v5475, %v5563
      %v5565 = vpop.f32.mrb[0].mxu0
      %5566 = vdwg.mxu0
      %v5567 = vld [vmem:[#allocation13 + $0x2] sm:$0xff]
      %v5568 = vld [vmem:[#allocation13 + $0xa] sm:$0x3f]
      %v5569 = vpack.c.bf16 %v5568, %v5567
      %s5570 = scalar_lea.vmem %s45, 128
      %v5571 = vld [vmem:[%s5570] sm:$0xf]
      %v5572 = vld [vmem:[%s5570 + $0x4] sm:$0xf]
      %v5573 = vld [vmem:[%s5570 + $0x8] sm:$0xf]
      %v5574 = vld [vmem:[%s5570 + $0xc] sm:$0xf]
      %v5575 = vld [vmem:[%s5570 + $0x10] sm:$0xf]
      %v5576 = vld [vmem:[%s5570 + $0x14] sm:$0xf]
      %v5577 = vld [vmem:[%s5570 + $0x18] sm:$0xf]
      %v5578 = vld [vmem:[%s5570 + $0x1c] sm:$0xf]
      %v5579 = vld [vmem:[%s5570 + $0x20] sm:$0xf]
      %v5580 = vld [vmem:[%s5570 + $0x24] sm:$0xf]
      %v5581 = vld [vmem:[%s5570 + $0x28] sm:$0xf]
      %v5582 = vld [vmem:[%s5570 + $0x2c] sm:$0xf]
      %v5583 = vld [vmem:[%s5570 + $0x30] sm:$0xf]
      %v5584 = vld [vmem:[%s5570 + $0x34] sm:$0xf]
      %v5585 = vld [vmem:[%s5570 + $0x38] sm:$0xf]
      %v5586 = vld [vmem:[%s5570 + $0x3c] sm:$0xf]
      %v5603 = vunpack.c.l.b16 %v5571
      %v5604 = vunpack.c.l.b16 %v5572
      %v5605 = vunpack.c.l.b16 %v5573
      %v5606 = vunpack.c.l.b16 %v5574
      %v5607 = vunpack.c.l.b16 %v5575
      %v5608 = vunpack.c.l.b16 %v5576
      %v5609 = vunpack.c.l.b16 %v5577
      %v5610 = vunpack.c.l.b16 %v5578
      %v5611 = vunpack.c.l.b16 %v5579
      %v5612 = vunpack.c.l.b16 %v5580
      %v5613 = vunpack.c.l.b16 %v5581
      %v5614 = vunpack.c.l.b16 %v5582
      %v5615 = vunpack.c.l.b16 %v5583
      %v5616 = vunpack.c.l.b16 %v5584
      %v5617 = vunpack.c.l.b16 %v5585
      %v5618 = vunpack.c.l.b16 %v5586
      %v5619 = vpack.c.b16 %v5604, %v5603
      %v5620 = vpack.c.b16 %v5606, %v5605
      %v5621 = vpack.c.b16 %v5608, %v5607
      %v5622 = vpack.c.b16 %v5610, %v5609
      %v5623 = vpack.c.b16 %v5612, %v5611
      %v5624 = vpack.c.b16 %v5614, %v5613
      %v5625 = vpack.c.b16 %v5616, %v5615
      %v5626 = vpack.c.b16 %v5618, %v5617
      %5635 = vmatprep.subr.bf16.mxu0 0
      %5636 = vmatpush1.bf16.msra.mxu0 %v5619
      %5637 = vmatprep.subr.bf16.mxu0 0
      %5638 = vmatpush1.bf16.msra.mxu0 %v5620
      %5639 = vmatprep.subr.bf16.mxu0 0
      %5640 = vmatpush1.bf16.msra.mxu0 %v5621
      %5641 = vmatprep.subr.bf16.mxu0 0
      %5642 = vmatpush1.bf16.msra.mxu0 %v5622
      %5643 = vmatprep.subr.bf16.mxu0 0
      %5644 = vmatpush1.bf16.msra.mxu0 %v5623
      %5645 = vmatprep.subr.bf16.mxu0 0
      %5646 = vmatpush1.bf16.msra.mxu0 %v5624
      %5647 = vmatprep.subr.bf16.mxu0 0
      %5648 = vmatpush1.bf16.msra.mxu0 %v5625
      %5649 = vmatprep.subr.bf16.mxu0 0
      %5650 = vmatpush1.bf16.msra.mxu0 %v5626
      %5651 = vmatprep.subr.bf16.mxu0 0
      %5652 = vmatpush1.bf16.msra.mxu0 0
      %5653 = vmatprep.subr.bf16.mxu0 0
      %5654 = vmatpush1.bf16.msra.mxu0 0
      %5655 = vmatprep.subr.bf16.mxu0 0
      %5656 = vmatpush1.bf16.msra.mxu0 0
      %5657 = vmatprep.subr.bf16.mxu0 0
      %5658 = vmatpush1.bf16.msra.mxu0 0
      %5659 = vmatprep.subr.bf16.mxu0 0
      %5660 = vmatpush1.bf16.msra.mxu0 0
      %5661 = vmatprep.subr.bf16.mxu0 0
      %5662 = vmatpush1.bf16.msra.mxu0 0
      %5663 = vmatprep.subr.bf16.mxu0 0
      %5664 = vmatpush1.bf16.msra.mxu0 0
      %5665 = vmatprep.subr.bf16.mxu0 0
      %5666 = vmatpush1.bf16.msra.mxu0 0
      %5667 = vmatprep.mubr.bf16.mxu0 0
      %5668 = vmatmul.mubr.bf16.gmra.mrb[0].mxu0 %v5569
      %v5669 = vpop.f32.mrb[0].mxu0
      %v5670 = vadd.f32 0.0, %v5669
      %v5671 = vpop.f32.mrb[0].mxu0
      %v5672 = vpop.f32.mrb[0].mxu0
      %v5673 = vadd.f32 0.0, %v5672
      %v5674 = vpop.f32.mrb[0].mxu0
      %5675 = vdwg.mxu0
      %v5676 = vadd.f32 %v5561, %v5670
      %v5677 = vadd.f32 %v5564, %v5673
      %v5678 = vld [vmem:[%s47] sm:$0x1]
      %v5680 = vlaneseq
      %v5681 = vshrl.u32 %v5680, 7
      %v5682 = vsub.s32 0, %v5681
      %v5683 = vrot.slane %v5678, %v5682
      %v5685 = vadd.f32 %v5676, %v5683
      %v5686 = vadd.f32 %v5677, %v5683
      %v5687 = vmax.f32 %v5685, 0.0
      %v5688 = vmax.f32 %v5686, 0.0
      %5689 = vst [vmem:[%s930] sm:$0x3] %v5687
      %5690 = vst [vmem:[%s930 - $0x2] sm:$0x30] %v5687
      %5691 = vst [vmem:[%s930 + $0x4] sm:$0x3] %v5688
      %5692 = vst [vmem:[%s930 + $0x2] sm:$0x30] %v5688
      %p5693 = scmp.lt.s32.totalorder %s72, 1
      %s5694 = scalar_select %p5693, %s72, 1
      %s5695 = smul.addr %s5694, 8
      %s5696 = scalar_lea.vmem %s61, %s5695
      // Predicated region
      $region141: #{forward.1} parent=139 // pred_check
        %p5697 = pneg %p725
      $region142: #{forward.1} parent=139 // pred_check_branch
        %5699 = sbr.rel (%p5697) target = $region144
      $region143: #{forward.1} parent=139 // pred_region
        _
      $region144: #{forward.1} parent=139 // pred_fallthru
        _
    $region140: #{forward.1} parent=5 // pred_fallthru
      _
    %p5700 = scmp.le.s32.totalorder 2, %s67
    // Predicated region
    $region145: #{forward.1} parent=5 // pred_check
      %p5701 = pneg %p5700
    $region146: #{forward.1} parent=5 // pred_check_branch
      %5703 = sbr.rel (%p5701) target = $region148
    $region147: #{forward.1} parent=5 // pred_region
      %s5704 = ssub.s32 %s67, 2
      // Predicated region
      $region149: #{forward.1} parent=147 // pred_check
        %p5705 = pneg %p731
      $region150: #{forward.1} parent=147 // pred_check_branch
        %5707 = sbr.rel (%p5705) target = $region152
      $region151: #{forward.1} parent=147 // pred_region
        %p5708 = scmp.lt.s32.totalorder %s73, 1
        %s5709 = scalar_select %p5708, %s73, 1
        %s5710 = smul.addr %s5709, 8
        %s5711 = scalar_lea.vmem %s61, %s5710
      $region152: #{forward.1} parent=147 // pred_fallthru
        _
    $region148: #{forward.1} parent=5 // pred_fallthru
      _
  $region6: #{forward.1} parent=0 // loop_footer
    %s71 = sadd.s32 1, %s67
  $region7: #{forward.1} parent=0 // loop_footer_branch
    %66 = sbr.rel target = $region3
  $region8: #{forward.1} parent=0 // loop_exit
    _

</llo_original>
